<compile_context>
chip_gen: v7x
topology: tpu7x:2x2x1
jax: 0.10.0
libtpu: 0.0.40
codegen_flags: <defaults>
</compile_context>

<pallas_src>
import numpy as np
import jax
import jax.numpy as jnp
from jax.experimental import pallas as pl
from jax.experimental.pallas import tpu as pltpu


# ----------------------------------------------------------------------------
# Pallas kernel: entire forward pass (LSTM stack + MLP head) in VMEM.
# Gate column order inside the kernel is [i, f, o, g] (permuted in the wrapper).
# ----------------------------------------------------------------------------
def lstm2_kernel(x_ref,                              # (T*B, D_pad)  time-major, flat
                 wih0_ref, whh0_ref, b0_ref,         # layer 0: (D_pad,4H),(H,4H),(1,4H)
                 wih1_ref, whh1_ref, b1_ref,         # layer 1: (H,4H),(H,4H),(1,4H)
                 wih2_ref, whh2_ref, b2_ref,         # layer 2
                 wih3_ref, whh3_ref, b3_ref,         # layer 3
                 fc1w_ref, fc1b_ref,                 # (H,256),(1,256)   BN1 folded in
                 fc2w_ref, fc2b_ref,                 # (256,128),(1,128) BN2 folded in
                 fc3w_ref, fc3b_ref,                 # (128,OUT_PAD),(1,OUT_PAD)
                 out_ref,                            # (B, OUT_PAD)
                 seq_ref,                            # scratch (T*B, H)
                 gx_ref):                            # scratch (T*B, 4H)
    TB = x_ref.shape[0]
    B = out_ref.shape[0]
    T = TB // B
    H = whh0_ref.shape[0]

    layers = ((wih0_ref, whh0_ref, b0_ref),
              (wih1_ref, whh1_ref, b1_ref),
              (wih2_ref, whh2_ref, b2_ref),
              (wih3_ref, whh3_ref, b3_ref))
    num_layers = len(layers)

    h_final = jnp.zeros((B, H), jnp.float32)

    for layer_idx, (wih_ref, whh_ref, b_ref) in enumerate(layers):
        # Read the full previous-layer sequence BEFORE this layer overwrites the
        # scratch (program order guarantees load-before-store here).
        src = x_ref[...] if layer_idx == 0 else seq_ref[...]     # (T*B, D)

        # Hoisted input projection: one big matmul over all timesteps, bias
        # broadcast once per layer.  Written to VMEM so per-step slices are
        # simple offset loads (no long-lived multi-vreg value across the loop).
        gx_ref[...] = (jnp.dot(src, wih_ref[...],
                               preferred_element_type=jnp.float32)
                       + b_ref[...])                             # (T*B, 4H)

        h = jnp.zeros((B, H), jnp.float32)
        c = jnp.zeros((B, H), jnp.float32)
        is_last_layer = layer_idx == num_layers - 1

        # Fully unrolled time loop (T static, small).  Only the unavoidable
        # serial h @ W_hh matmul remains inside.
        for t in range(T):
            gates = gx_ref[t * B:(t + 1) * B, :] + jnp.dot(
                h, whh_ref[...], preferred_element_type=jnp.float32)  # (B, 4H)
            # Gate order [i, f, o, g]: one contiguous sigmoid over 3H lanes,
            # tanh only over the g slice and over c_new.  All 128-lane aligned.
            sig = jax.nn.sigmoid(gates[:, :3 * H])
            i_g = sig[:, 0 * H:1 * H]
            f_g = sig[:, 1 * H:2 * H]
            o_g = sig[:, 2 * H:3 * H]
            g_g = jnp.tanh(gates[:, 3 * H:4 * H])
            c = f_g * c + i_g * g_g
            h = o_g * jnp.tanh(c)
            if not is_last_layer:
                # Last layer's sequence is never read: skip the store there.
                seq_ref[t * B:(t + 1) * B, :] = h
        h_final = h
        # inter-layer LSTM dropout (p=0.2) is identity in eval mode.

    # ---- MLP head on final hidden state of the last layer ----
    # BN1 / BN2 already folded into the weights & biases: matmul + add + relu.
    z = jnp.maximum(
        jnp.dot(h_final, fc1w_ref[...], preferred_element_type=jnp.float32)
        + fc1b_ref[...], 0.0)
    z = jnp.maximum(
        jnp.dot(z, fc2w_ref[...], preferred_element_type=jnp.float32)
        + fc2b_ref[...], 0.0)
    out_ref[...] = (jnp.dot(z, fc3w_ref[...], preferred_element_type=jnp.float32)
                    + fc3b_ref[...])          # lane-dense padded output


# ----------------------------------------------------------------------------
# Parameter initialization (PyTorch-style shapes, deterministic).
# ----------------------------------------------------------------------------
def init_params(key, num_classes, input_size, hidden_size, num_layers):
    params = {"lstm": [], "eps": 1e-5}
    klstm = 1.0 / np.sqrt(hidden_size)
    for l in range(num_layers):
        d_in = input_size if l == 0 else hidden_size
        key, k1, k2, k3, k4 = jax.random.split(key, 5)
        w_ih = jax.random.uniform(k1, (4 * hidden_size, d_in), jnp.float32, -klstm, klstm)
        w_hh = jax.random.uniform(k2, (4 * hidden_size, hidden_size), jnp.float32, -klstm, klstm)
        b_ih = jax.random.uniform(k3, (4 * hidden_size,), jnp.float32, -klstm, klstm)
        b_hh = jax.random.uniform(k4, (4 * hidden_size,), jnp.float32, -klstm, klstm)
        params["lstm"].append((w_ih, w_hh, b_ih, b_hh))

    def linear(key, fan_out, fan_in):
        k = 1.0 / np.sqrt(fan_in)
        k1, k2 = jax.random.split(key)
        w = jax.random.uniform(k1, (fan_out, fan_in), jnp.float32, -k, k)
        b = jax.random.uniform(k2, (fan_out,), jnp.float32, -k, k)
        return w, b

    key, k1, k2, k3 = jax.random.split(key, 4)
    params["fc1"] = linear(k1, 256, hidden_size)
    params["fc2"] = linear(k2, 128, 256)
    params["fc3"] = linear(k3, num_classes, 128)
    # BatchNorm1d defaults: gamma=1, beta=0, running_mean=0, running_var=1
    params["bn1"] = (jnp.ones((256,), jnp.float32), jnp.zeros((256,), jnp.float32),
                     jnp.zeros((256,), jnp.float32), jnp.ones((256,), jnp.float32))
    params["bn2"] = (jnp.ones((128,), jnp.float32), jnp.zeros((128,), jnp.float32),
                     jnp.zeros((128,), jnp.float32), jnp.ones((128,), jnp.float32))
    return params


# ----------------------------------------------------------------------------
# JAX wrapper around pallas_call (glue: transpose, padding, gate permutation,
# bias/BN folding).
# ----------------------------------------------------------------------------
def _permute_ifgo_to_ifog(w_cols):
    """Permute gate columns from PyTorch [i,f,g,o] to kernel order [i,f,o,g]."""
    H4 = w_cols.shape[-1]
    H = H4 // 4
    i = w_cols[..., 0 * H:1 * H]
    f = w_cols[..., 1 * H:2 * H]
    g = w_cols[..., 2 * H:3 * H]
    o = w_cols[..., 3 * H:4 * H]
    return jnp.concatenate([i, f, o, g], axis=-1)


def lstm2_forward(x, params, *, d_pad=128, out_pad=128):
    B, T, D = x.shape
    H = params["lstm"][0][1].shape[1]
    eps = params["eps"]
    num_classes = params["fc3"][0].shape[0]

    # Time-major, flattened to (T*B, D), zero-padded to 128 lanes on the
    # feature axis so the layer-0 matmul operands are lane-dense.
    x_tm = jnp.transpose(x, (1, 0, 2)).astype(jnp.float32).reshape(T * B, D)
    x_flat = jnp.pad(x_tm, ((0, 0), (0, d_pad - D)))

    kernel_inputs = [x_flat]
    for l, (w_ih, w_hh, b_ih, b_hh) in enumerate(params["lstm"]):
        wih_t = w_ih.T.astype(jnp.float32)                    # (D_in, 4H)
        if l == 0:
            wih_t = jnp.pad(wih_t, ((0, d_pad - D), (0, 0)))  # zero rows: no effect
        whh_t = w_hh.T.astype(jnp.float32)                    # (H, 4H)
        bias = (b_ih + b_hh)[None, :].astype(jnp.float32)     # (1, 4H)
        kernel_inputs += [_permute_ifgo_to_ifog(wih_t),
                          _permute_ifgo_to_ifog(whh_t),
                          _permute_ifgo_to_ifog(bias)]

    def fold_bn_into_linear(fc, bn):
        # y = bn(x @ w.T + b) = x @ (w.T * s) + (b * s + shift)
        w, b = fc
        gamma, beta, mean, var = bn
        scale = gamma / jnp.sqrt(var + eps)
        shift = beta - mean * scale
        w_t = w.T.astype(jnp.float32) * scale[None, :]
        b_f = (b * scale + shift)[None, :].astype(jnp.float32)
        return w_t, b_f

    fc1w, fc1b = fold_bn_into_linear(params["fc1"], params["bn1"])
    fc2w, fc2b = fold_bn_into_linear(params["fc2"], params["bn2"])
    fc3_w, fc3_b = params["fc3"]

    # Lane-dense (padded) fc3 so the final store is a full 128-lane block.
    fc3w_pad = jnp.pad(fc3_w.T.astype(jnp.float32), ((0, 0), (0, out_pad - num_classes)))
    fc3b_pad = jnp.pad(fc3_b[None, :].astype(jnp.float32), ((0, 0), (0, out_pad - num_classes)))

    kernel_inputs += [fc1w, fc1b, fc2w, fc2b, fc3w_pad, fc3b_pad]

    n_in = len(kernel_inputs)
    out = pl.pallas_call(
        lstm2_kernel,
        out_shape=jax.ShapeDtypeStruct((B, out_pad), jnp.float32),
        in_specs=[pl.BlockSpec(memory_space=pltpu.MemorySpace.VMEM)] * n_in,
        out_specs=pl.BlockSpec(memory_space=pltpu.MemorySpace.VMEM),
        scratch_shapes=[pltpu.VMEM((T * B, H), jnp.float32),
                        pltpu.VMEM((T * B, 4 * H), jnp.float32)],
    )(*kernel_inputs)
    return out[:, :num_classes]


# ----------------------------------------------------------------------------
# Pure-JAX reference (for correctness check) -- PyTorch gate order, explicit BN.
# ----------------------------------------------------------------------------
def lstm2_reference(x, params):
    B, T, _ = x.shape
    H = params["lstm"][0][1].shape[1]
    eps = params["eps"]
    inp = x.astype(jnp.float32)
    h = jnp.zeros((B, H), jnp.float32)
    for (w_ih, w_hh, b_ih, b_hh) in params["lstm"]:
        h = jnp.zeros((B, H), jnp.float32)
        c = jnp.zeros((B, H), jnp.float32)
        outs = []
        for t in range(T):
            gates = inp[:, t, :] @ w_ih.T + b_ih + h @ w_hh.T + b_hh
            i = jax.nn.sigmoid(gates[:, 0 * H:1 * H])
            f = jax.nn.sigmoid(gates[:, 1 * H:2 * H])
            g = jnp.tanh(gates[:, 2 * H:3 * H])
            o = jax.nn.sigmoid(gates[:, 3 * H:4 * H])
            c = f * c + i * g
            h = o * jnp.tanh(c)
            outs.append(h)
        inp = jnp.stack(outs, axis=1)

    def bn(z, bnp):
        gamma, beta, mean, var = bnp
        return (z - mean) / jnp.sqrt(var + eps) * gamma + beta

    fc1_w, fc1_b = params["fc1"]
    fc2_w, fc2_b = params["fc2"]
    fc3_w, fc3_b = params["fc3"]
    z = jnp.maximum(bn(h @ fc1_w.T + fc1_b, params["bn1"]), 0.0)
    z = jnp.maximum(bn(z @ fc2_w.T + fc2_b, params["bn2"]), 0.0)
    return z @ fc3_w.T + fc3_b


if __name__ == "__main__":
    # Small shapes consistent with the module: batch=2, seq=8,
    # input_size=18 (as in the script), hidden_size=128 (lane-dense), 4 layers.
    num_classes = 1
    input_size = 18
    hidden_size = 128
    num_layers = 4
    B, T = 2, 8

    key = jax.random.PRNGKey(0)
    key, kx = jax.random.split(key)
    x = jax.random.normal(kx, (B, T, input_size), jnp.float32)

    params = init_params(key, num_classes, input_size, hidden_size, num_layers)

    out = lstm2_forward(x, params)
    out = jax.block_until_ready(out)

    ref = jax.block_until_ready(lstm2_reference(x, params))
    np.testing.assert_allclose(np.asarray(out), np.asarray(ref), rtol=1e-3, atol=1e-4)

    print("KERNEL_OK")
</pallas_src>

<mosaic_0001>
module attributes {stable_mosaic.version = 11 : i64} {
  func.func @lstm2_kernel(%arg0: memref<16x128xf32, #tpu.memory_space<vmem>>, %arg1: memref<128x512xf32, #tpu.memory_space<vmem>>, %arg2: memref<128x512xf32, #tpu.memory_space<vmem>>, %arg3: memref<1x512xf32, #tpu.memory_space<vmem>>, %arg4: memref<128x512xf32, #tpu.memory_space<vmem>>, %arg5: memref<128x512xf32, #tpu.memory_space<vmem>>, %arg6: memref<1x512xf32, #tpu.memory_space<vmem>>, %arg7: memref<128x512xf32, #tpu.memory_space<vmem>>, %arg8: memref<128x512xf32, #tpu.memory_space<vmem>>, %arg9: memref<1x512xf32, #tpu.memory_space<vmem>>, %arg10: memref<128x512xf32, #tpu.memory_space<vmem>>, %arg11: memref<128x512xf32, #tpu.memory_space<vmem>>, %arg12: memref<1x512xf32, #tpu.memory_space<vmem>>, %arg13: memref<128x256xf32, #tpu.memory_space<vmem>>, %arg14: memref<1x256xf32, #tpu.memory_space<vmem>>, %arg15: memref<256x128xf32, #tpu.memory_space<vmem>>, %arg16: memref<1x128xf32, #tpu.memory_space<vmem>>, %arg17: memref<128x128xf32, #tpu.memory_space<vmem>>, %arg18: memref<1x128xf32, #tpu.memory_space<vmem>>, %arg19: memref<2x128xf32, #tpu.memory_space<vmem>>, %arg20: memref<16x128xf32, #tpu.memory_space<vmem>>, %arg21: memref<16x512xf32, #tpu.memory_space<vmem>>) attributes {dimension_semantics = [], scalar_prefetch = 0 : i64, scratch_operands = 2 : i64, tpu.core_type = #tpu.core_type<tc>} {
    %c0 = arith.constant 0 : index
    %c0_0 = arith.constant 0 : index
    %0 = vector.load %arg0[%c0, %c0_0] : memref<16x128xf32, #tpu.memory_space<vmem>>, vector<16x128xf32>
    %c0_1 = arith.constant 0 : index
    %c0_2 = arith.constant 0 : index
    %1 = vector.load %arg1[%c0_1, %c0_2] : memref<128x512xf32, #tpu.memory_space<vmem>>, vector<128x512xf32>
    %cst = arith.constant dense<0.000000e+00> : vector<16x512xf32>
    %2 = tpu.matmul %0, %1, %cst {dimension_numbers = #tpu.dot_dimension_numbers<[1], [0], [0], [1], [0, 0, 1, 1], [], []>} : vector<16x128xf32>, vector<128x512xf32>, vector<16x512xf32> -> vector<16x512xf32>
    %c0_3 = arith.constant 0 : index
    %c0_4 = arith.constant 0 : index
    %3 = vector.load %arg3[%c0_3, %c0_4] : memref<1x512xf32, #tpu.memory_space<vmem>>, vector<1x512xf32>
    %4 = vector.broadcast %3 : vector<1x512xf32> to vector<16x512xf32>
    %5 = arith.addf %2, %4 : vector<16x512xf32>
    %c0_5 = arith.constant 0 : index
    %c0_6 = arith.constant 0 : index
    %6 = vector.load %arg21[%c0_5, %c0_6] : memref<16x512xf32, #tpu.memory_space<vmem>>, vector<16x512xf32>
    tpu.vector_store %arg21[%c0_5, %c0_6], %5 {strides = array<i32>} : memref<16x512xf32, #tpu.memory_space<vmem>>, vector<16x512xf32>,
    %cst_7 = arith.constant 0.000000e+00 : f32
    %7 = vector.broadcast %cst_7 : f32 to vector<2x128xf32>
    %cst_8 = arith.constant 0.000000e+00 : f32
    %8 = vector.broadcast %cst_8 : f32 to vector<2x128xf32>
    %c0_9 = arith.constant 0 : index
    %c0_10 = arith.constant 0 : index
    %9 = vector.load %arg21[%c0_9, %c0_10] : memref<16x512xf32, #tpu.memory_space<vmem>>, vector<2x512xf32>
    %c0_11 = arith.constant 0 : index
    %c0_12 = arith.constant 0 : index
    %10 = vector.load %arg2[%c0_11, %c0_12] : memref<128x512xf32, #tpu.memory_space<vmem>>, vector<128x512xf32>
    %cst_13 = arith.constant dense<0.000000e+00> : vector<2x512xf32>
    %11 = tpu.matmul %7, %10, %cst_13 {dimension_numbers = #tpu.dot_dimension_numbers<[1], [0], [0], [1], [0, 0, 1, 1], [], []>} : vector<2x128xf32>, vector<128x512xf32>, vector<2x512xf32> -> vector<2x512xf32>
    %12 = arith.addf %9, %11 : vector<2x512xf32>
    %13 = vector.extract_strided_slice %12 {offsets = [0, 0], sizes = [2, 384], strides = [1, 1]} : vector<2x512xf32> to vector<2x384xf32>
    %14 = arith.negf %13 : vector<2x384xf32>
    %15 = math.exp %14 : vector<2x384xf32>
    %cst_14 = arith.constant 1.000000e+00 : f32
    %16 = vector.broadcast %cst_14 : f32 to vector<2x384xf32>
    %17 = arith.addf %16, %15 : vector<2x384xf32>
    %18 = arith.divf %16, %17 : vector<2x384xf32>
    %19 = vector.extract_strided_slice %18 {offsets = [0, 0], sizes = [2, 128], strides = [1, 1]} : vector<2x384xf32> to vector<2x128xf32>
    %20 = vector.extract_strided_slice %18 {offsets = [0, 128], sizes = [2, 128], strides = [1, 1]} : vector<2x384xf32> to vector<2x128xf32>
    %21 = vector.extract_strided_slice %18 {offsets = [0, 256], sizes = [2, 128], strides = [1, 1]} : vector<2x384xf32> to vector<2x128xf32>
    %22 = vector.extract_strided_slice %12 {offsets = [0, 384], sizes = [2, 128], strides = [1, 1]} : vector<2x512xf32> to vector<2x128xf32>
    %23 = math.tanh %22 : vector<2x128xf32>
    %24 = arith.mulf %20, %8 : vector<2x128xf32>
    %25 = arith.mulf %19, %23 : vector<2x128xf32>
    %26 = arith.addf %24, %25 : vector<2x128xf32>
    %27 = math.tanh %26 : vector<2x128xf32>
    %28 = arith.mulf %21, %27 : vector<2x128xf32>
    %c0_15 = arith.constant 0 : index
    %c0_16 = arith.constant 0 : index
    %29 = vector.load %arg20[%c0_15, %c0_16] : memref<16x128xf32, #tpu.memory_space<vmem>>, vector<2x128xf32>
    tpu.vector_store %arg20[%c0_15, %c0_16], %28 {strides = array<i32>} : memref<16x128xf32, #tpu.memory_space<vmem>>, vector<2x128xf32>,
    %c2 = arith.constant 2 : index
    %c0_17 = arith.constant 0 : index
    %30 = vector.load %arg21[%c2, %c0_17] : memref<16x512xf32, #tpu.memory_space<vmem>>, vector<2x512xf32>
    %c0_18 = arith.constant 0 : index
    %c0_19 = arith.constant 0 : index
    %31 = vector.load %arg2[%c0_18, %c0_19] : memref<128x512xf32, #tpu.memory_space<vmem>>, vector<128x512xf32>
    %cst_20 = arith.constant dense<0.000000e+00> : vector<2x512xf32>
    %32 = tpu.matmul %28, %31, %cst_20 {dimension_numbers = #tpu.dot_dimension_numbers<[1], [0], [0], [1], [0, 0, 1, 1], [], []>} : vector<2x128xf32>, vector<128x512xf32>, vector<2x512xf32> -> vector<2x512xf32>
    %33 = arith.addf %30, %32 : vector<2x512xf32>
    %34 = vector.extract_strided_slice %33 {offsets = [0, 0], sizes = [2, 384], strides = [1, 1]} : vector<2x512xf32> to vector<2x384xf32>
    %35 = arith.negf %34 : vector<2x384xf32>
    %36 = math.exp %35 : vector<2x384xf32>
    %cst_21 = arith.constant 1.000000e+00 : f32
    %37 = vector.broadcast %cst_21 : f32 to vector<2x384xf32>
    %38 = arith.addf %37, %36 : vector<2x384xf32>
    %39 = arith.divf %37, %38 : vector<2x384xf32>
    %40 = vector.extract_strided_slice %39 {offsets = [0, 0], sizes = [2, 128], strides = [1, 1]} : vector<2x384xf32> to vector<2x128xf32>
    %41 = vector.extract_strided_slice %39 {offsets = [0, 128], sizes = [2, 128], strides = [1, 1]} : vector<2x384xf32> to vector<2x128xf32>
    %42 = vector.extract_strided_slice %39 {offsets = [0, 256], sizes = [2, 128], strides = [1, 1]} : vector<2x384xf32> to vector<2x128xf32>
    %43 = vector.extract_strided_slice %33 {offsets = [0, 384], sizes = [2, 128], strides = [1, 1]} : vector<2x512xf32> to vector<2x128xf32>
    %44 = math.tanh %43 : vector<2x128xf32>
    %45 = arith.mulf %41, %26 : vector<2x128xf32>
    %46 = arith.mulf %40, %44 : vector<2x128xf32>
    %47 = arith.addf %45, %46 : vector<2x128xf32>
    %48 = math.tanh %47 : vector<2x128xf32>
    %49 = arith.mulf %42, %48 : vector<2x128xf32>
    %c2_22 = arith.constant 2 : index
    %c0_23 = arith.constant 0 : index
    %50 = vector.load %arg20[%c2_22, %c0_23] : memref<16x128xf32, #tpu.memory_space<vmem>>, vector<2x128xf32>
    tpu.vector_store %arg20[%c2_22, %c0_23], %49 {strides = array<i32>} : memref<16x128xf32, #tpu.memory_space<vmem>>, vector<2x128xf32>,
    %c4 = arith.constant 4 : index
    %c0_24 = arith.constant 0 : index
    %51 = vector.load %arg21[%c4, %c0_24] : memref<16x512xf32, #tpu.memory_space<vmem>>, vector<2x512xf32>
    %c0_25 = arith.constant 0 : index
    %c0_26 = arith.constant 0 : index
    %52 = vector.load %arg2[%c0_25, %c0_26] : memref<128x512xf32, #tpu.memory_space<vmem>>, vector<128x512xf32>
    %cst_27 = arith.constant dense<0.000000e+00> : vector<2x512xf32>
    %53 = tpu.matmul %49, %52, %cst_27 {dimension_numbers = #tpu.dot_dimension_numbers<[1], [0], [0], [1], [0, 0, 1, 1], [], []>} : vector<2x128xf32>, vector<128x512xf32>, vector<2x512xf32> -> vector<2x512xf32>
    %54 = arith.addf %51, %53 : vector<2x512xf32>
    %55 = vector.extract_strided_slice %54 {offsets = [0, 0], sizes = [2, 384], strides = [1, 1]} : vector<2x512xf32> to vector<2x384xf32>
    %56 = arith.negf %55 : vector<2x384xf32>
    %57 = math.exp %56 : vector<2x384xf32>
    %cst_28 = arith.constant 1.000000e+00 : f32
    %58 = vector.broadcast %cst_28 : f32 to vector<2x384xf32>
    %59 = arith.addf %58, %57 : vector<2x384xf32>
    %60 = arith.divf %58, %59 : vector<2x384xf32>
    %61 = vector.extract_strided_slice %60 {offsets = [0, 0], sizes = [2, 128], strides = [1, 1]} : vector<2x384xf32> to vector<2x128xf32>
    %62 = vector.extract_strided_slice %60 {offsets = [0, 128], sizes = [2, 128], strides = [1, 1]} : vector<2x384xf32> to vector<2x128xf32>
    %63 = vector.extract_strided_slice %60 {offsets = [0, 256], sizes = [2, 128], strides = [1, 1]} : vector<2x384xf32> to vector<2x128xf32>
    %64 = vector.extract_strided_slice %54 {offsets = [0, 384], sizes = [2, 128], strides = [1, 1]} : vector<2x512xf32> to vector<2x128xf32>
    %65 = math.tanh %64 : vector<2x128xf32>
    %66 = arith.mulf %62, %47 : vector<2x128xf32>
    %67 = arith.mulf %61, %65 : vector<2x128xf32>
    %68 = arith.addf %66, %67 : vector<2x128xf32>
    %69 = math.tanh %68 : vector<2x128xf32>
    %70 = arith.mulf %63, %69 : vector<2x128xf32>
    %c4_29 = arith.constant 4 : index
    %c0_30 = arith.constant 0 : index
    %71 = vector.load %arg20[%c4_29, %c0_30] : memref<16x128xf32, #tpu.memory_space<vmem>>, vector<2x128xf32>
    tpu.vector_store %arg20[%c4_29, %c0_30], %70 {strides = array<i32>} : memref<16x128xf32, #tpu.memory_space<vmem>>, vector<2x128xf32>,
    %c6 = arith.constant 6 : index
    %c0_31 = arith.constant 0 : index
    %72 = vector.load %arg21[%c6, %c0_31] : memref<16x512xf32, #tpu.memory_space<vmem>>, vector<2x512xf32>
    %c0_32 = arith.constant 0 : index
    %c0_33 = arith.constant 0 : index
    %73 = vector.load %arg2[%c0_32, %c0_33] : memref<128x512xf32, #tpu.memory_space<vmem>>, vector<128x512xf32>
    %cst_34 = arith.constant dense<0.000000e+00> : vector<2x512xf32>
    %74 = tpu.matmul %70, %73, %cst_34 {dimension_numbers = #tpu.dot_dimension_numbers<[1], [0], [0], [1], [0, 0, 1, 1], [], []>} : vector<2x128xf32>, vector<128x512xf32>, vector<2x512xf32> -> vector<2x512xf32>
    %75 = arith.addf %72, %74 : vector<2x512xf32>
    %76 = vector.extract_strided_slice %75 {offsets = [0, 0], sizes = [2, 384], strides = [1, 1]} : vector<2x512xf32> to vector<2x384xf32>
    %77 = arith.negf %76 : vector<2x384xf32>
    %78 = math.exp %77 : vector<2x384xf32>
    %cst_35 = arith.constant 1.000000e+00 : f32
    %79 = vector.broadcast %cst_35 : f32 to vector<2x384xf32>
    %80 = arith.addf %79, %78 : vector<2x384xf32>
    %81 = arith.divf %79, %80 : vector<2x384xf32>
    %82 = vector.extract_strided_slice %81 {offsets = [0, 0], sizes = [2, 128], strides = [1, 1]} : vector<2x384xf32> to vector<2x128xf32>
    %83 = vector.extract_strided_slice %81 {offsets = [0, 128], sizes = [2, 128], strides = [1, 1]} : vector<2x384xf32> to vector<2x128xf32>
    %84 = vector.extract_strided_slice %81 {offsets = [0, 256], sizes = [2, 128], strides = [1, 1]} : vector<2x384xf32> to vector<2x128xf32>
    %85 = vector.extract_strided_slice %75 {offsets = [0, 384], sizes = [2, 128], strides = [1, 1]} : vector<2x512xf32> to vector<2x128xf32>
    %86 = math.tanh %85 : vector<2x128xf32>
    %87 = arith.mulf %83, %68 : vector<2x128xf32>
    %88 = arith.mulf %82, %86 : vector<2x128xf32>
    %89 = arith.addf %87, %88 : vector<2x128xf32>
    %90 = math.tanh %89 : vector<2x128xf32>
    %91 = arith.mulf %84, %90 : vector<2x128xf32>
    %c6_36 = arith.constant 6 : index
    %c0_37 = arith.constant 0 : index
    %92 = vector.load %arg20[%c6_36, %c0_37] : memref<16x128xf32, #tpu.memory_space<vmem>>, vector<2x128xf32>
    tpu.vector_store %arg20[%c6_36, %c0_37], %91 {strides = array<i32>} : memref<16x128xf32, #tpu.memory_space<vmem>>, vector<2x128xf32>,
    %c8 = arith.constant 8 : index
    %c0_38 = arith.constant 0 : index
    %93 = vector.load %arg21[%c8, %c0_38] : memref<16x512xf32, #tpu.memory_space<vmem>>, vector<2x512xf32>
    %c0_39 = arith.constant 0 : index
    %c0_40 = arith.constant 0 : index
    %94 = vector.load %arg2[%c0_39, %c0_40] : memref<128x512xf32, #tpu.memory_space<vmem>>, vector<128x512xf32>
    %cst_41 = arith.constant dense<0.000000e+00> : vector<2x512xf32>
    %95 = tpu.matmul %91, %94, %cst_41 {dimension_numbers = #tpu.dot_dimension_numbers<[1], [0], [0], [1], [0, 0, 1, 1], [], []>} : vector<2x128xf32>, vector<128x512xf32>, vector<2x512xf32> -> vector<2x512xf32>
    %96 = arith.addf %93, %95 : vector<2x512xf32>
    %97 = vector.extract_strided_slice %96 {offsets = [0, 0], sizes = [2, 384], strides = [1, 1]} : vector<2x512xf32> to vector<2x384xf32>
    %98 = arith.negf %97 : vector<2x384xf32>
    %99 = math.exp %98 : vector<2x384xf32>
    %cst_42 = arith.constant 1.000000e+00 : f32
    %100 = vector.broadcast %cst_42 : f32 to vector<2x384xf32>
    %101 = arith.addf %100, %99 : vector<2x384xf32>
    %102 = arith.divf %100, %101 : vector<2x384xf32>
    %103 = vector.extract_strided_slice %102 {offsets = [0, 0], sizes = [2, 128], strides = [1, 1]} : vector<2x384xf32> to vector<2x128xf32>
    %104 = vector.extract_strided_slice %102 {offsets = [0, 128], sizes = [2, 128], strides = [1, 1]} : vector<2x384xf32> to vector<2x128xf32>
    %105 = vector.extract_strided_slice %102 {offsets = [0, 256], sizes = [2, 128], strides = [1, 1]} : vector<2x384xf32> to vector<2x128xf32>
    %106 = vector.extract_strided_slice %96 {offsets = [0, 384], sizes = [2, 128], strides = [1, 1]} : vector<2x512xf32> to vector<2x128xf32>
    %107 = math.tanh %106 : vector<2x128xf32>
    %108 = arith.mulf %104, %89 : vector<2x128xf32>
    %109 = arith.mulf %103, %107 : vector<2x128xf32>
    %110 = arith.addf %108, %109 : vector<2x128xf32>
    %111 = math.tanh %110 : vector<2x128xf32>
    %112 = arith.mulf %105, %111 : vector<2x128xf32>
    %c8_43 = arith.constant 8 : index
    %c0_44 = arith.constant 0 : index
    %113 = vector.load %arg20[%c8_43, %c0_44] : memref<16x128xf32, #tpu.memory_space<vmem>>, vector<2x128xf32>
    tpu.vector_store %arg20[%c8_43, %c0_44], %112 {strides = array<i32>} : memref<16x128xf32, #tpu.memory_space<vmem>>, vector<2x128xf32>,
    %c10 = arith.constant 10 : index
    %c0_45 = arith.constant 0 : index
    %114 = vector.load %arg21[%c10, %c0_45] : memref<16x512xf32, #tpu.memory_space<vmem>>, vector<2x512xf32>
    %c0_46 = arith.constant 0 : index
    %c0_47 = arith.constant 0 : index
    %115 = vector.load %arg2[%c0_46, %c0_47] : memref<128x512xf32, #tpu.memory_space<vmem>>, vector<128x512xf32>
    %cst_48 = arith.constant dense<0.000000e+00> : vector<2x512xf32>
    %116 = tpu.matmul %112, %115, %cst_48 {dimension_numbers = #tpu.dot_dimension_numbers<[1], [0], [0], [1], [0, 0, 1, 1], [], []>} : vector<2x128xf32>, vector<128x512xf32>, vector<2x512xf32> -> vector<2x512xf32>
    %117 = arith.addf %114, %116 : vector<2x512xf32>
    %118 = vector.extract_strided_slice %117 {offsets = [0, 0], sizes = [2, 384], strides = [1, 1]} : vector<2x512xf32> to vector<2x384xf32>
    %119 = arith.negf %118 : vector<2x384xf32>
    %120 = math.exp %119 : vector<2x384xf32>
    %cst_49 = arith.constant 1.000000e+00 : f32
    %121 = vector.broadcast %cst_49 : f32 to vector<2x384xf32>
    %122 = arith.addf %121, %120 : vector<2x384xf32>
    %123 = arith.divf %121, %122 : vector<2x384xf32>
    %124 = vector.extract_strided_slice %123 {offsets = [0, 0], sizes = [2, 128], strides = [1, 1]} : vector<2x384xf32> to vector<2x128xf32>
    %125 = vector.extract_strided_slice %123 {offsets = [0, 128], sizes = [2, 128], strides = [1, 1]} : vector<2x384xf32> to vector<2x128xf32>
    %126 = vector.extract_strided_slice %123 {offsets = [0, 256], sizes = [2, 128], strides = [1, 1]} : vector<2x384xf32> to vector<2x128xf32>
    %127 = vector.extract_strided_slice %117 {offsets = [0, 384], sizes = [2, 128], strides = [1, 1]} : vector<2x512xf32> to vector<2x128xf32>
    %128 = math.tanh %127 : vector<2x128xf32>
    %129 = arith.mulf %125, %110 : vector<2x128xf32>
    %130 = arith.mulf %124, %128 : vector<2x128xf32>
    %131 = arith.addf %129, %130 : vector<2x128xf32>
    %132 = math.tanh %131 : vector<2x128xf32>
    %133 = arith.mulf %126, %132 : vector<2x128xf32>
    %c10_50 = arith.constant 10 : index
    %c0_51 = arith.constant 0 : index
    %134 = vector.load %arg20[%c10_50, %c0_51] : memref<16x128xf32, #tpu.memory_space<vmem>>, vector<2x128xf32>
    tpu.vector_store %arg20[%c10_50, %c0_51], %133 {strides = array<i32>} : memref<16x128xf32, #tpu.memory_space<vmem>>, vector<2x128xf32>,
    %c12 = arith.constant 12 : index
    %c0_52 = arith.constant 0 : index
    %135 = vector.load %arg21[%c12, %c0_52] : memref<16x512xf32, #tpu.memory_space<vmem>>, vector<2x512xf32>
    %c0_53 = arith.constant 0 : index
    %c0_54 = arith.constant 0 : index
    %136 = vector.load %arg2[%c0_53, %c0_54] : memref<128x512xf32, #tpu.memory_space<vmem>>, vector<128x512xf32>
    %cst_55 = arith.constant dense<0.000000e+00> : vector<2x512xf32>
    %137 = tpu.matmul %133, %136, %cst_55 {dimension_numbers = #tpu.dot_dimension_numbers<[1], [0], [0], [1], [0, 0, 1, 1], [], []>} : vector<2x128xf32>, vector<128x512xf32>, vector<2x512xf32> -> vector<2x512xf32>
    %138 = arith.addf %135, %137 : vector<2x512xf32>
    %139 = vector.extract_strided_slice %138 {offsets = [0, 0], sizes = [2, 384], strides = [1, 1]} : vector<2x512xf32> to vector<2x384xf32>
    %140 = arith.negf %139 : vector<2x384xf32>
    %141 = math.exp %140 : vector<2x384xf32>
    %cst_56 = arith.constant 1.000000e+00 : f32
    %142 = vector.broadcast %cst_56 : f32 to vector<2x384xf32>
    %143 = arith.addf %142, %141 : vector<2x384xf32>
    %144 = arith.divf %142, %143 : vector<2x384xf32>
    %145 = vector.extract_strided_slice %144 {offsets = [0, 0], sizes = [2, 128], strides = [1, 1]} : vector<2x384xf32> to vector<2x128xf32>
    %146 = vector.extract_strided_slice %144 {offsets = [0, 128], sizes = [2, 128], strides = [1, 1]} : vector<2x384xf32> to vector<2x128xf32>
    %147 = vector.extract_strided_slice %144 {offsets = [0, 256], sizes = [2, 128], strides = [1, 1]} : vector<2x384xf32> to vector<2x128xf32>
    %148 = vector.extract_strided_slice %138 {offsets = [0, 384], sizes = [2, 128], strides = [1, 1]} : vector<2x512xf32> to vector<2x128xf32>
    %149 = math.tanh %148 : vector<2x128xf32>
    %150 = arith.mulf %146, %131 : vector<2x128xf32>
    %151 = arith.mulf %145, %149 : vector<2x128xf32>
    %152 = arith.addf %150, %151 : vector<2x128xf32>
    %153 = math.tanh %152 : vector<2x128xf32>
    %154 = arith.mulf %147, %153 : vector<2x128xf32>
    %c12_57 = arith.constant 12 : index
    %c0_58 = arith.constant 0 : index
    %155 = vector.load %arg20[%c12_57, %c0_58] : memref<16x128xf32, #tpu.memory_space<vmem>>, vector<2x128xf32>
    tpu.vector_store %arg20[%c12_57, %c0_58], %154 {strides = array<i32>} : memref<16x128xf32, #tpu.memory_space<vmem>>, vector<2x128xf32>,
    %c14 = arith.constant 14 : index
    %c0_59 = arith.constant 0 : index
    %156 = vector.load %arg21[%c14, %c0_59] : memref<16x512xf32, #tpu.memory_space<vmem>>, vector<2x512xf32>
    %c0_60 = arith.constant 0 : index
    %c0_61 = arith.constant 0 : index
    %157 = vector.load %arg2[%c0_60, %c0_61] : memref<128x512xf32, #tpu.memory_space<vmem>>, vector<128x512xf32>
    %cst_62 = arith.constant dense<0.000000e+00> : vector<2x512xf32>
    %158 = tpu.matmul %154, %157, %cst_62 {dimension_numbers = #tpu.dot_dimension_numbers<[1], [0], [0], [1], [0, 0, 1, 1], [], []>} : vector<2x128xf32>, vector<128x512xf32>, vector<2x512xf32> -> vector<2x512xf32>
    %159 = arith.addf %156, %158 : vector<2x512xf32>
    %160 = vector.extract_strided_slice %159 {offsets = [0, 0], sizes = [2, 384], strides = [1, 1]} : vector<2x512xf32> to vector<2x384xf32>
    %161 = arith.negf %160 : vector<2x384xf32>
    %162 = math.exp %161 : vector<2x384xf32>
    %cst_63 = arith.constant 1.000000e+00 : f32
    %163 = vector.broadcast %cst_63 : f32 to vector<2x384xf32>
    %164 = arith.addf %163, %162 : vector<2x384xf32>
    %165 = arith.divf %163, %164 : vector<2x384xf32>
    %166 = vector.extract_strided_slice %165 {offsets = [0, 0], sizes = [2, 128], strides = [1, 1]} : vector<2x384xf32> to vector<2x128xf32>
    %167 = vector.extract_strided_slice %165 {offsets = [0, 128], sizes = [2, 128], strides = [1, 1]} : vector<2x384xf32> to vector<2x128xf32>
    %168 = vector.extract_strided_slice %165 {offsets = [0, 256], sizes = [2, 128], strides = [1, 1]} : vector<2x384xf32> to vector<2x128xf32>
    %169 = vector.extract_strided_slice %159 {offsets = [0, 384], sizes = [2, 128], strides = [1, 1]} : vector<2x512xf32> to vector<2x128xf32>
    %170 = math.tanh %169 : vector<2x128xf32>
    %171 = arith.mulf %167, %152 : vector<2x128xf32>
    %172 = arith.mulf %166, %170 : vector<2x128xf32>
    %173 = arith.addf %171, %172 : vector<2x128xf32>
    %174 = math.tanh %173 : vector<2x128xf32>
    %175 = arith.mulf %168, %174 : vector<2x128xf32>
    %c14_64 = arith.constant 14 : index
    %c0_65 = arith.constant 0 : index
    %176 = vector.load %arg20[%c14_64, %c0_65] : memref<16x128xf32, #tpu.memory_space<vmem>>, vector<2x128xf32>
    tpu.vector_store %arg20[%c14_64, %c0_65], %175 {strides = array<i32>} : memref<16x128xf32, #tpu.memory_space<vmem>>, vector<2x128xf32>,
    %c0_66 = arith.constant 0 : index
    %c0_67 = arith.constant 0 : index
    %177 = vector.load %arg20[%c0_66, %c0_67] : memref<16x128xf32, #tpu.memory_space<vmem>>, vector<16x128xf32>
    %c0_68 = arith.constant 0 : index
    %c0_69 = arith.constant 0 : index
    %178 = vector.load %arg4[%c0_68, %c0_69] : memref<128x512xf32, #tpu.memory_space<vmem>>, vector<128x512xf32>
    %cst_70 = arith.constant dense<0.000000e+00> : vector<16x512xf32>
    %179 = tpu.matmul %177, %178, %cst_70 {dimension_numbers = #tpu.dot_dimension_numbers<[1], [0], [0], [1], [0, 0, 1, 1], [], []>} : vector<16x128xf32>, vector<128x512xf32>, vector<16x512xf32> -> vector<16x512xf32>
    %c0_71 = arith.constant 0 : index
    %c0_72 = arith.constant 0 : index
    %180 = vector.load %arg6[%c0_71, %c0_72] : memref<1x512xf32, #tpu.memory_space<vmem>>, vector<1x512xf32>
    %181 = vector.broadcast %180 : vector<1x512xf32> to vector<16x512xf32>
    %182 = arith.addf %179, %181 : vector<16x512xf32>
    %c0_73 = arith.constant 0 : index
    %c0_74 = arith.constant 0 : index
    %183 = vector.load %arg21[%c0_73, %c0_74] : memref<16x512xf32, #tpu.memory_space<vmem>>, vector<16x512xf32>
    tpu.vector_store %arg21[%c0_73, %c0_74], %182 {strides = array<i32>} : memref<16x512xf32, #tpu.memory_space<vmem>>, vector<16x512xf32>,
    %cst_75 = arith.constant 0.000000e+00 : f32
    %184 = vector.broadcast %cst_75 : f32 to vector<2x128xf32>
    %cst_76 = arith.constant 0.000000e+00 : f32
    %185 = vector.broadcast %cst_76 : f32 to vector<2x128xf32>
    %c0_77 = arith.constant 0 : index
    %c0_78 = arith.constant 0 : index
    %186 = vector.load %arg21[%c0_77, %c0_78] : memref<16x512xf32, #tpu.memory_space<vmem>>, vector<2x512xf32>
    %c0_79 = arith.constant 0 : index
    %c0_80 = arith.constant 0 : index
    %187 = vector.load %arg5[%c0_79, %c0_80] : memref<128x512xf32, #tpu.memory_space<vmem>>, vector<128x512xf32>
    %cst_81 = arith.constant dense<0.000000e+00> : vector<2x512xf32>
    %188 = tpu.matmul %184, %187, %cst_81 {dimension_numbers = #tpu.dot_dimension_numbers<[1], [0], [0], [1], [0, 0, 1, 1], [], []>} : vector<2x128xf32>, vector<128x512xf32>, vector<2x512xf32> -> vector<2x512xf32>
    %189 = arith.addf %186, %188 : vector<2x512xf32>
    %190 = vector.extract_strided_slice %189 {offsets = [0, 0], sizes = [2, 384], strides = [1, 1]} : vector<2x512xf32> to vector<2x384xf32>
    %191 = arith.negf %190 : vector<2x384xf32>
    %192 = math.exp %191 : vector<2x384xf32>
    %cst_82 = arith.constant 1.000000e+00 : f32
    %193 = vector.broadcast %cst_82 : f32 to vector<2x384xf32>
    %194 = arith.addf %193, %192 : vector<2x384xf32>
    %195 = arith.divf %193, %194 : vector<2x384xf32>
    %196 = vector.extract_strided_slice %195 {offsets = [0, 0], sizes = [2, 128], strides = [1, 1]} : vector<2x384xf32> to vector<2x128xf32>
    %197 = vector.extract_strided_slice %195 {offsets = [0, 128], sizes = [2, 128], strides = [1, 1]} : vector<2x384xf32> to vector<2x128xf32>
    %198 = vector.extract_strided_slice %195 {offsets = [0, 256], sizes = [2, 128], strides = [1, 1]} : vector<2x384xf32> to vector<2x128xf32>
    %199 = vector.extract_strided_slice %189 {offsets = [0, 384], sizes = [2, 128], strides = [1, 1]} : vector<2x512xf32> to vector<2x128xf32>
    %200 = math.tanh %199 : vector<2x128xf32>
    %201 = arith.mulf %197, %185 : vector<2x128xf32>
    %202 = arith.mulf %196, %200 : vector<2x128xf32>
    %203 = arith.addf %201, %202 : vector<2x128xf32>
    %204 = math.tanh %203 : vector<2x128xf32>
    %205 = arith.mulf %198, %204 : vector<2x128xf32>
    %c0_83 = arith.constant 0 : index
    %c0_84 = arith.constant 0 : index
    %206 = vector.load %arg20[%c0_83, %c0_84] : memref<16x128xf32, #tpu.memory_space<vmem>>, vector<2x128xf32>
    tpu.vector_store %arg20[%c0_83, %c0_84], %205 {strides = array<i32>} : memref<16x128xf32, #tpu.memory_space<vmem>>, vector<2x128xf32>,
    %c2_85 = arith.constant 2 : index
    %c0_86 = arith.constant 0 : index
    %207 = vector.load %arg21[%c2_85, %c0_86] : memref<16x512xf32, #tpu.memory_space<vmem>>, vector<2x512xf32>
    %c0_87 = arith.constant 0 : index
    %c0_88 = arith.constant 0 : index
    %208 = vector.load %arg5[%c0_87, %c0_88] : memref<128x512xf32, #tpu.memory_space<vmem>>, vector<128x512xf32>
    %cst_89 = arith.constant dense<0.000000e+00> : vector<2x512xf32>
    %209 = tpu.matmul %205, %208, %cst_89 {dimension_numbers = #tpu.dot_dimension_numbers<[1], [0], [0], [1], [0, 0, 1, 1], [], []>} : vector<2x128xf32>, vector<128x512xf32>, vector<2x512xf32> -> vector<2x512xf32>
    %210 = arith.addf %207, %209 : vector<2x512xf32>
    %211 = vector.extract_strided_slice %210 {offsets = [0, 0], sizes = [2, 384], strides = [1, 1]} : vector<2x512xf32> to vector<2x384xf32>
    %212 = arith.negf %211 : vector<2x384xf32>
    %213 = math.exp %212 : vector<2x384xf32>
    %cst_90 = arith.constant 1.000000e+00 : f32
    %214 = vector.broadcast %cst_90 : f32 to vector<2x384xf32>
    %215 = arith.addf %214, %213 : vector<2x384xf32>
    %216 = arith.divf %214, %215 : vector<2x384xf32>
    %217 = vector.extract_strided_slice %216 {offsets = [0, 0], sizes = [2, 128], strides = [1, 1]} : vector<2x384xf32> to vector<2x128xf32>
    %218 = vector.extract_strided_slice %216 {offsets = [0, 128], sizes = [2, 128], strides = [1, 1]} : vector<2x384xf32> to vector<2x128xf32>
    %219 = vector.extract_strided_slice %216 {offsets = [0, 256], sizes = [2, 128], strides = [1, 1]} : vector<2x384xf32> to vector<2x128xf32>
    %220 = vector.extract_strided_slice %210 {offsets = [0, 384], sizes = [2, 128], strides = [1, 1]} : vector<2x512xf32> to vector<2x128xf32>
    %221 = math.tanh %220 : vector<2x128xf32>
    %222 = arith.mulf %218, %203 : vector<2x128xf32>
    %223 = arith.mulf %217, %221 : vector<2x128xf32>
    %224 = arith.addf %222, %223 : vector<2x128xf32>
    %225 = math.tanh %224 : vector<2x128xf32>
    %226 = arith.mulf %219, %225 : vector<2x128xf32>
    %c2_91 = arith.constant 2 : index
    %c0_92 = arith.constant 0 : index
    %227 = vector.load %arg20[%c2_91, %c0_92] : memref<16x128xf32, #tpu.memory_space<vmem>>, vector<2x128xf32>
    tpu.vector_store %arg20[%c2_91, %c0_92], %226 {strides = array<i32>} : memref<16x128xf32, #tpu.memory_space<vmem>>, vector<2x128xf32>,
    %c4_93 = arith.constant 4 : index
    %c0_94 = arith.constant 0 : index
    %228 = vector.load %arg21[%c4_93, %c0_94] : memref<16x512xf32, #tpu.memory_space<vmem>>, vector<2x512xf32>
    %c0_95 = arith.constant 0 : index
    %c0_96 = arith.constant 0 : index
    %229 = vector.load %arg5[%c0_95, %c0_96] : memref<128x512xf32, #tpu.memory_space<vmem>>, vector<128x512xf32>
    %cst_97 = arith.constant dense<0.000000e+00> : vector<2x512xf32>
    %230 = tpu.matmul %226, %229, %cst_97 {dimension_numbers = #tpu.dot_dimension_numbers<[1], [0], [0], [1], [0, 0, 1, 1], [], []>} : vector<2x128xf32>, vector<128x512xf32>, vector<2x512xf32> -> vector<2x512xf32>
    %231 = arith.addf %228, %230 : vector<2x512xf32>
    %232 = vector.extract_strided_slice %231 {offsets = [0, 0], sizes = [2, 384], strides = [1, 1]} : vector<2x512xf32> to vector<2x384xf32>
    %233 = arith.negf %232 : vector<2x384xf32>
    %234 = math.exp %233 : vector<2x384xf32>
    %cst_98 = arith.constant 1.000000e+00 : f32
    %235 = vector.broadcast %cst_98 : f32 to vector<2x384xf32>
    %236 = arith.addf %235, %234 : vector<2x384xf32>
    %237 = arith.divf %235, %236 : vector<2x384xf32>
    %238 = vector.extract_strided_slice %237 {offsets = [0, 0], sizes = [2, 128], strides = [1, 1]} : vector<2x384xf32> to vector<2x128xf32>
    %239 = vector.extract_strided_slice %237 {offsets = [0, 128], sizes = [2, 128], strides = [1, 1]} : vector<2x384xf32> to vector<2x128xf32>
    %240 = vector.extract_strided_slice %237 {offsets = [0, 256], sizes = [2, 128], strides = [1, 1]} : vector<2x384xf32> to vector<2x128xf32>
    %241 = vector.extract_strided_slice %231 {offsets = [0, 384], sizes = [2, 128], strides = [1, 1]} : vector<2x512xf32> to vector<2x128xf32>
    %242 = math.tanh %241 : vector<2x128xf32>
    %243 = arith.mulf %239, %224 : vector<2x128xf32>
    %244 = arith.mulf %238, %242 : vector<2x128xf32>
    %245 = arith.addf %243, %244 : vector<2x128xf32>
    %246 = math.tanh %245 : vector<2x128xf32>
    %247 = arith.mulf %240, %246 : vector<2x128xf32>
    %c4_99 = arith.constant 4 : index
    %c0_100 = arith.constant 0 : index
    %248 = vector.load %arg20[%c4_99, %c0_100] : memref<16x128xf32, #tpu.memory_space<vmem>>, vector<2x128xf32>
    tpu.vector_store %arg20[%c4_99, %c0_100], %247 {strides = array<i32>} : memref<16x128xf32, #tpu.memory_space<vmem>>, vector<2x128xf32>,
    %c6_101 = arith.constant 6 : index
    %c0_102 = arith.constant 0 : index
    %249 = vector.load %arg21[%c6_101, %c0_102] : memref<16x512xf32, #tpu.memory_space<vmem>>, vector<2x512xf32>
    %c0_103 = arith.constant 0 : index
    %c0_104 = arith.constant 0 : index
    %250 = vector.load %arg5[%c0_103, %c0_104] : memref<128x512xf32, #tpu.memory_space<vmem>>, vector<128x512xf32>
    %cst_105 = arith.constant dense<0.000000e+00> : vector<2x512xf32>
    %251 = tpu.matmul %247, %250, %cst_105 {dimension_numbers = #tpu.dot_dimension_numbers<[1], [0], [0], [1], [0, 0, 1, 1], [], []>} : vector<2x128xf32>, vector<128x512xf32>, vector<2x512xf32> -> vector<2x512xf32>
    %252 = arith.addf %249, %251 : vector<2x512xf32>
    %253 = vector.extract_strided_slice %252 {offsets = [0, 0], sizes = [2, 384], strides = [1, 1]} : vector<2x512xf32> to vector<2x384xf32>
    %254 = arith.negf %253 : vector<2x384xf32>
    %255 = math.exp %254 : vector<2x384xf32>
    %cst_106 = arith.constant 1.000000e+00 : f32
    %256 = vector.broadcast %cst_106 : f32 to vector<2x384xf32>
    %257 = arith.addf %256, %255 : vector<2x384xf32>
    %258 = arith.divf %256, %257 : vector<2x384xf32>
    %259 = vector.extract_strided_slice %258 {offsets = [0, 0], sizes = [2, 128], strides = [1, 1]} : vector<2x384xf32> to vector<2x128xf32>
    %260 = vector.extract_strided_slice %258 {offsets = [0, 128], sizes = [2, 128], strides = [1, 1]} : vector<2x384xf32> to vector<2x128xf32>
    %261 = vector.extract_strided_slice %258 {offsets = [0, 256], sizes = [2, 128], strides = [1, 1]} : vector<2x384xf32> to vector<2x128xf32>
    %262 = vector.extract_strided_slice %252 {offsets = [0, 384], sizes = [2, 128], strides = [1, 1]} : vector<2x512xf32> to vector<2x128xf32>
    %263 = math.tanh %262 : vector<2x128xf32>
    %264 = arith.mulf %260, %245 : vector<2x128xf32>
    %265 = arith.mulf %259, %263 : vector<2x128xf32>
    %266 = arith.addf %264, %265 : vector<2x128xf32>
    %267 = math.tanh %266 : vector<2x128xf32>
    %268 = arith.mulf %261, %267 : vector<2x128xf32>
    %c6_107 = arith.constant 6 : index
    %c0_108 = arith.constant 0 : index
    %269 = vector.load %arg20[%c6_107, %c0_108] : memref<16x128xf32, #tpu.memory_space<vmem>>, vector<2x128xf32>
    tpu.vector_store %arg20[%c6_107, %c0_108], %268 {strides = array<i32>} : memref<16x128xf32, #tpu.memory_space<vmem>>, vector<2x128xf32>,
    %c8_109 = arith.constant 8 : index
    %c0_110 = arith.constant 0 : index
    %270 = vector.load %arg21[%c8_109, %c0_110] : memref<16x512xf32, #tpu.memory_space<vmem>>, vector<2x512xf32>
    %c0_111 = arith.constant 0 : index
    %c0_112 = arith.constant 0 : index
    %271 = vector.load %arg5[%c0_111, %c0_112] : memref<128x512xf32, #tpu.memory_space<vmem>>, vector<128x512xf32>
    %cst_113 = arith.constant dense<0.000000e+00> : vector<2x512xf32>
    %272 = tpu.matmul %268, %271, %cst_113 {dimension_numbers = #tpu.dot_dimension_numbers<[1], [0], [0], [1], [0, 0, 1, 1], [], []>} : vector<2x128xf32>, vector<128x512xf32>, vector<2x512xf32> -> vector<2x512xf32>
    %273 = arith.addf %270, %272 : vector<2x512xf32>
    %274 = vector.extract_strided_slice %273 {offsets = [0, 0], sizes = [2, 384], strides = [1, 1]} : vector<2x512xf32> to vector<2x384xf32>
    %275 = arith.negf %274 : vector<2x384xf32>
    %276 = math.exp %275 : vector<2x384xf32>
    %cst_114 = arith.constant 1.000000e+00 : f32
    %277 = vector.broadcast %cst_114 : f32 to vector<2x384xf32>
    %278 = arith.addf %277, %276 : vector<2x384xf32>
    %279 = arith.divf %277, %278 : vector<2x384xf32>
    %280 = vector.extract_strided_slice %279 {offsets = [0, 0], sizes = [2, 128], strides = [1, 1]} : vector<2x384xf32> to vector<2x128xf32>
    %281 = vector.extract_strided_slice %279 {offsets = [0, 128], sizes = [2, 128], strides = [1, 1]} : vector<2x384xf32> to vector<2x128xf32>
    %282 = vector.extract_strided_slice %279 {offsets = [0, 256], sizes = [2, 128], strides = [1, 1]} : vector<2x384xf32> to vector<2x128xf32>
    %283 = vector.extract_strided_slice %273 {offsets = [0, 384], sizes = [2, 128], strides = [1, 1]} : vector<2x512xf32> to vector<2x128xf32>
    %284 = math.tanh %283 : vector<2x128xf32>
    %285 = arith.mulf %281, %266 : vector<2x128xf32>
    %286 = arith.mulf %280, %284 : vector<2x128xf32>
    %287 = arith.addf %285, %286 : vector<2x128xf32>
    %288 = math.tanh %287 : vector<2x128xf32>
    %289 = arith.mulf %282, %288 : vector<2x128xf32>
    %c8_115 = arith.constant 8 : index
    %c0_116 = arith.constant 0 : index
    %290 = vector.load %arg20[%c8_115, %c0_116] : memref<16x128xf32, #tpu.memory_space<vmem>>, vector<2x128xf32>
    tpu.vector_store %arg20[%c8_115, %c0_116], %289 {strides = array<i32>} : memref<16x128xf32, #tpu.memory_space<vmem>>, vector<2x128xf32>,
    %c10_117 = arith.constant 10 : index
    %c0_118 = arith.constant 0 : index
    %291 = vector.load %arg21[%c10_117, %c0_118] : memref<16x512xf32, #tpu.memory_space<vmem>>, vector<2x512xf32>
    %c0_119 = arith.constant 0 : index
    %c0_120 = arith.constant 0 : index
    %292 = vector.load %arg5[%c0_119, %c0_120] : memref<128x512xf32, #tpu.memory_space<vmem>>, vector<128x512xf32>
    %cst_121 = arith.constant dense<0.000000e+00> : vector<2x512xf32>
    %293 = tpu.matmul %289, %292, %cst_121 {dimension_numbers = #tpu.dot_dimension_numbers<[1], [0], [0], [1], [0, 0, 1, 1], [], []>} : vector<2x128xf32>, vector<128x512xf32>, vector<2x512xf32> -> vector<2x512xf32>
    %294 = arith.addf %291, %293 : vector<2x512xf32>
    %295 = vector.extract_strided_slice %294 {offsets = [0, 0], sizes = [2, 384], strides = [1, 1]} : vector<2x512xf32> to vector<2x384xf32>
    %296 = arith.negf %295 : vector<2x384xf32>
    %297 = math.exp %296 : vector<2x384xf32>
    %cst_122 = arith.constant 1.000000e+00 : f32
    %298 = vector.broadcast %cst_122 : f32 to vector<2x384xf32>
    %299 = arith.addf %298, %297 : vector<2x384xf32>
    %300 = arith.divf %298, %299 : vector<2x384xf32>
    %301 = vector.extract_strided_slice %300 {offsets = [0, 0], sizes = [2, 128], strides = [1, 1]} : vector<2x384xf32> to vector<2x128xf32>
    %302 = vector.extract_strided_slice %300 {offsets = [0, 128], sizes = [2, 128], strides = [1, 1]} : vector<2x384xf32> to vector<2x128xf32>
    %303 = vector.extract_strided_slice %300 {offsets = [0, 256], sizes = [2, 128], strides = [1, 1]} : vector<2x384xf32> to vector<2x128xf32>
    %304 = vector.extract_strided_slice %294 {offsets = [0, 384], sizes = [2, 128], strides = [1, 1]} : vector<2x512xf32> to vector<2x128xf32>
    %305 = math.tanh %304 : vector<2x128xf32>
    %306 = arith.mulf %302, %287 : vector<2x128xf32>
    %307 = arith.mulf %301, %305 : vector<2x128xf32>
    %308 = arith.addf %306, %307 : vector<2x128xf32>
    %309 = math.tanh %308 : vector<2x128xf32>
    %310 = arith.mulf %303, %309 : vector<2x128xf32>
    %c10_123 = arith.constant 10 : index
    %c0_124 = arith.constant 0 : index
    %311 = vector.load %arg20[%c10_123, %c0_124] : memref<16x128xf32, #tpu.memory_space<vmem>>, vector<2x128xf32>
    tpu.vector_store %arg20[%c10_123, %c0_124], %310 {strides = array<i32>} : memref<16x128xf32, #tpu.memory_space<vmem>>, vector<2x128xf32>,
    %c12_125 = arith.constant 12 : index
    %c0_126 = arith.constant 0 : index
    %312 = vector.load %arg21[%c12_125, %c0_126] : memref<16x512xf32, #tpu.memory_space<vmem>>, vector<2x512xf32>
    %c0_127 = arith.constant 0 : index
    %c0_128 = arith.constant 0 : index
    %313 = vector.load %arg5[%c0_127, %c0_128] : memref<128x512xf32, #tpu.memory_space<vmem>>, vector<128x512xf32>
    %cst_129 = arith.constant dense<0.000000e+00> : vector<2x512xf32>
    %314 = tpu.matmul %310, %313, %cst_129 {dimension_numbers = #tpu.dot_dimension_numbers<[1], [0], [0], [1], [0, 0, 1, 1], [], []>} : vector<2x128xf32>, vector<128x512xf32>, vector<2x512xf32> -> vector<2x512xf32>
    %315 = arith.addf %312, %314 : vector<2x512xf32>
    %316 = vector.extract_strided_slice %315 {offsets = [0, 0], sizes = [2, 384], strides = [1, 1]} : vector<2x512xf32> to vector<2x384xf32>
    %317 = arith.negf %316 : vector<2x384xf32>
    %318 = math.exp %317 : vector<2x384xf32>
    %cst_130 = arith.constant 1.000000e+00 : f32
    %319 = vector.broadcast %cst_130 : f32 to vector<2x384xf32>
    %320 = arith.addf %319, %318 : vector<2x384xf32>
    %321 = arith.divf %319, %320 : vector<2x384xf32>
    %322 = vector.extract_strided_slice %321 {offsets = [0, 0], sizes = [2, 128], strides = [1, 1]} : vector<2x384xf32> to vector<2x128xf32>
    %323 = vector.extract_strided_slice %321 {offsets = [0, 128], sizes = [2, 128], strides = [1, 1]} : vector<2x384xf32> to vector<2x128xf32>
    %324 = vector.extract_strided_slice %321 {offsets = [0, 256], sizes = [2, 128], strides = [1, 1]} : vector<2x384xf32> to vector<2x128xf32>
    %325 = vector.extract_strided_slice %315 {offsets = [0, 384], sizes = [2, 128], strides = [1, 1]} : vector<2x512xf32> to vector<2x128xf32>
    %326 = math.tanh %325 : vector<2x128xf32>
    %327 = arith.mulf %323, %308 : vector<2x128xf32>
    %328 = arith.mulf %322, %326 : vector<2x128xf32>
    %329 = arith.addf %327, %328 : vector<2x128xf32>
    %330 = math.tanh %329 : vector<2x128xf32>
    %331 = arith.mulf %324, %330 : vector<2x128xf32>
    %c12_131 = arith.constant 12 : index
    %c0_132 = arith.constant 0 : index
    %332 = vector.load %arg20[%c12_131, %c0_132] : memref<16x128xf32, #tpu.memory_space<vmem>>, vector<2x128xf32>
    tpu.vector_store %arg20[%c12_131, %c0_132], %331 {strides = array<i32>} : memref<16x128xf32, #tpu.memory_space<vmem>>, vector<2x128xf32>,
    %c14_133 = arith.constant 14 : index
    %c0_134 = arith.constant 0 : index
    %333 = vector.load %arg21[%c14_133, %c0_134] : memref<16x512xf32, #tpu.memory_space<vmem>>, vector<2x512xf32>
    %c0_135 = arith.constant 0 : index
    %c0_136 = arith.constant 0 : index
    %334 = vector.load %arg5[%c0_135, %c0_136] : memref<128x512xf32, #tpu.memory_space<vmem>>, vector<128x512xf32>
    %cst_137 = arith.constant dense<0.000000e+00> : vector<2x512xf32>
    %335 = tpu.matmul %331, %334, %cst_137 {dimension_numbers = #tpu.dot_dimension_numbers<[1], [0], [0], [1], [0, 0, 1, 1], [], []>} : vector<2x128xf32>, vector<128x512xf32>, vector<2x512xf32> -> vector<2x512xf32>
    %336 = arith.addf %333, %335 : vector<2x512xf32>
    %337 = vector.extract_strided_slice %336 {offsets = [0, 0], sizes = [2, 384], strides = [1, 1]} : vector<2x512xf32> to vector<2x384xf32>
    %338 = arith.negf %337 : vector<2x384xf32>
    %339 = math.exp %338 : vector<2x384xf32>
    %cst_138 = arith.constant 1.000000e+00 : f32
    %340 = vector.broadcast %cst_138 : f32 to vector<2x384xf32>
    %341 = arith.addf %340, %339 : vector<2x384xf32>
    %342 = arith.divf %340, %341 : vector<2x384xf32>
    %343 = vector.extract_strided_slice %342 {offsets = [0, 0], sizes = [2, 128], strides = [1, 1]} : vector<2x384xf32> to vector<2x128xf32>
    %344 = vector.extract_strided_slice %342 {offsets = [0, 128], sizes = [2, 128], strides = [1, 1]} : vector<2x384xf32> to vector<2x128xf32>
    %345 = vector.extract_strided_slice %342 {offsets = [0, 256], sizes = [2, 128], strides = [1, 1]} : vector<2x384xf32> to vector<2x128xf32>
    %346 = vector.extract_strided_slice %336 {offsets = [0, 384], sizes = [2, 128], strides = [1, 1]} : vector<2x512xf32> to vector<2x128xf32>
    %347 = math.tanh %346 : vector<2x128xf32>
    %348 = arith.mulf %344, %329 : vector<2x128xf32>
    %349 = arith.mulf %343, %347 : vector<2x128xf32>
    %350 = arith.addf %348, %349 : vector<2x128xf32>
    %351 = math.tanh %350 : vector<2x128xf32>
    %352 = arith.mulf %345, %351 : vector<2x128xf32>
    %c14_139 = arith.constant 14 : index
    %c0_140 = arith.constant 0 : index
    %353 = vector.load %arg20[%c14_139, %c0_140] : memref<16x128xf32, #tpu.memory_space<vmem>>, vector<2x128xf32>
    tpu.vector_store %arg20[%c14_139, %c0_140], %352 {strides = array<i32>} : memref<16x128xf32, #tpu.memory_space<vmem>>, vector<2x128xf32>,
    %c0_141 = arith.constant 0 : index
    %c0_142 = arith.constant 0 : index
    %354 = vector.load %arg20[%c0_141, %c0_142] : memref<16x128xf32, #tpu.memory_space<vmem>>, vector<16x128xf32>
    %c0_143 = arith.constant 0 : index
    %c0_144 = arith.constant 0 : index
    %355 = vector.load %arg7[%c0_143, %c0_144] : memref<128x512xf32, #tpu.memory_space<vmem>>, vector<128x512xf32>
    %cst_145 = arith.constant dense<0.000000e+00> : vector<16x512xf32>
    %356 = tpu.matmul %354, %355, %cst_145 {dimension_numbers = #tpu.dot_dimension_numbers<[1], [0], [0], [1], [0, 0, 1, 1], [], []>} : vector<16x128xf32>, vector<128x512xf32>, vector<16x512xf32> -> vector<16x512xf32>
    %c0_146 = arith.constant 0 : index
    %c0_147 = arith.constant 0 : index
    %357 = vector.load %arg9[%c0_146, %c0_147] : memref<1x512xf32, #tpu.memory_space<vmem>>, vector<1x512xf32>
    %358 = vector.broadcast %357 : vector<1x512xf32> to vector<16x512xf32>
    %359 = arith.addf %356, %358 : vector<16x512xf32>
    %c0_148 = arith.constant 0 : index
    %c0_149 = arith.constant 0 : index
    %360 = vector.load %arg21[%c0_148, %c0_149] : memref<16x512xf32, #tpu.memory_space<vmem>>, vector<16x512xf32>
    tpu.vector_store %arg21[%c0_148, %c0_149], %359 {strides = array<i32>} : memref<16x512xf32, #tpu.memory_space<vmem>>, vector<16x512xf32>,
    %cst_150 = arith.constant 0.000000e+00 : f32
    %361 = vector.broadcast %cst_150 : f32 to vector<2x128xf32>
    %cst_151 = arith.constant 0.000000e+00 : f32
    %362 = vector.broadcast %cst_151 : f32 to vector<2x128xf32>
    %c0_152 = arith.constant 0 : index
    %c0_153 = arith.constant 0 : index
    %363 = vector.load %arg21[%c0_152, %c0_153] : memref<16x512xf32, #tpu.memory_space<vmem>>, vector<2x512xf32>
    %c0_154 = arith.constant 0 : index
    %c0_155 = arith.constant 0 : index
    %364 = vector.load %arg8[%c0_154, %c0_155] : memref<128x512xf32, #tpu.memory_space<vmem>>, vector<128x512xf32>
    %cst_156 = arith.constant dense<0.000000e+00> : vector<2x512xf32>
    %365 = tpu.matmul %361, %364, %cst_156 {dimension_numbers = #tpu.dot_dimension_numbers<[1], [0], [0], [1], [0, 0, 1, 1], [], []>} : vector<2x128xf32>, vector<128x512xf32>, vector<2x512xf32> -> vector<2x512xf32>
    %366 = arith.addf %363, %365 : vector<2x512xf32>
    %367 = vector.extract_strided_slice %366 {offsets = [0, 0], sizes = [2, 384], strides = [1, 1]} : vector<2x512xf32> to vector<2x384xf32>
    %368 = arith.negf %367 : vector<2x384xf32>
    %369 = math.exp %368 : vector<2x384xf32>
    %cst_157 = arith.constant 1.000000e+00 : f32
    %370 = vector.broadcast %cst_157 : f32 to vector<2x384xf32>
    %371 = arith.addf %370, %369 : vector<2x384xf32>
    %372 = arith.divf %370, %371 : vector<2x384xf32>
    %373 = vector.extract_strided_slice %372 {offsets = [0, 0], sizes = [2, 128], strides = [1, 1]} : vector<2x384xf32> to vector<2x128xf32>
    %374 = vector.extract_strided_slice %372 {offsets = [0, 128], sizes = [2, 128], strides = [1, 1]} : vector<2x384xf32> to vector<2x128xf32>
    %375 = vector.extract_strided_slice %372 {offsets = [0, 256], sizes = [2, 128], strides = [1, 1]} : vector<2x384xf32> to vector<2x128xf32>
    %376 = vector.extract_strided_slice %366 {offsets = [0, 384], sizes = [2, 128], strides = [1, 1]} : vector<2x512xf32> to vector<2x128xf32>
    %377 = math.tanh %376 : vector<2x128xf32>
    %378 = arith.mulf %374, %362 : vector<2x128xf32>
    %379 = arith.mulf %373, %377 : vector<2x128xf32>
    %380 = arith.addf %378, %379 : vector<2x128xf32>
    %381 = math.tanh %380 : vector<2x128xf32>
    %382 = arith.mulf %375, %381 : vector<2x128xf32>
    %c0_158 = arith.constant 0 : index
    %c0_159 = arith.constant 0 : index
    %383 = vector.load %arg20[%c0_158, %c0_159] : memref<16x128xf32, #tpu.memory_space<vmem>>, vector<2x128xf32>
    tpu.vector_store %arg20[%c0_158, %c0_159], %382 {strides = array<i32>} : memref<16x128xf32, #tpu.memory_space<vmem>>, vector<2x128xf32>,
    %c2_160 = arith.constant 2 : index
    %c0_161 = arith.constant 0 : index
    %384 = vector.load %arg21[%c2_160, %c0_161] : memref<16x512xf32, #tpu.memory_space<vmem>>, vector<2x512xf32>
    %c0_162 = arith.constant 0 : index
    %c0_163 = arith.constant 0 : index
    %385 = vector.load %arg8[%c0_162, %c0_163] : memref<128x512xf32, #tpu.memory_space<vmem>>, vector<128x512xf32>
    %cst_164 = arith.constant dense<0.000000e+00> : vector<2x512xf32>
    %386 = tpu.matmul %382, %385, %cst_164 {dimension_numbers = #tpu.dot_dimension_numbers<[1], [0], [0], [1], [0, 0, 1, 1], [], []>} : vector<2x128xf32>, vector<128x512xf32>, vector<2x512xf32> -> vector<2x512xf32>
    %387 = arith.addf %384, %386 : vector<2x512xf32>
    %388 = vector.extract_strided_slice %387 {offsets = [0, 0], sizes = [2, 384], strides = [1, 1]} : vector<2x512xf32> to vector<2x384xf32>
    %389 = arith.negf %388 : vector<2x384xf32>
    %390 = math.exp %389 : vector<2x384xf32>
    %cst_165 = arith.constant 1.000000e+00 : f32
    %391 = vector.broadcast %cst_165 : f32 to vector<2x384xf32>
    %392 = arith.addf %391, %390 : vector<2x384xf32>
    %393 = arith.divf %391, %392 : vector<2x384xf32>
    %394 = vector.extract_strided_slice %393 {offsets = [0, 0], sizes = [2, 128], strides = [1, 1]} : vector<2x384xf32> to vector<2x128xf32>
    %395 = vector.extract_strided_slice %393 {offsets = [0, 128], sizes = [2, 128], strides = [1, 1]} : vector<2x384xf32> to vector<2x128xf32>
    %396 = vector.extract_strided_slice %393 {offsets = [0, 256], sizes = [2, 128], strides = [1, 1]} : vector<2x384xf32> to vector<2x128xf32>
    %397 = vector.extract_strided_slice %387 {offsets = [0, 384], sizes = [2, 128], strides = [1, 1]} : vector<2x512xf32> to vector<2x128xf32>
    %398 = math.tanh %397 : vector<2x128xf32>
    %399 = arith.mulf %395, %380 : vector<2x128xf32>
    %400 = arith.mulf %394, %398 : vector<2x128xf32>
    %401 = arith.addf %399, %400 : vector<2x128xf32>
    %402 = math.tanh %401 : vector<2x128xf32>
    %403 = arith.mulf %396, %402 : vector<2x128xf32>
    %c2_166 = arith.constant 2 : index
    %c0_167 = arith.constant 0 : index
    %404 = vector.load %arg20[%c2_166, %c0_167] : memref<16x128xf32, #tpu.memory_space<vmem>>, vector<2x128xf32>
    tpu.vector_store %arg20[%c2_166, %c0_167], %403 {strides = array<i32>} : memref<16x128xf32, #tpu.memory_space<vmem>>, vector<2x128xf32>,
    %c4_168 = arith.constant 4 : index
    %c0_169 = arith.constant 0 : index
    %405 = vector.load %arg21[%c4_168, %c0_169] : memref<16x512xf32, #tpu.memory_space<vmem>>, vector<2x512xf32>
    %c0_170 = arith.constant 0 : index
    %c0_171 = arith.constant 0 : index
    %406 = vector.load %arg8[%c0_170, %c0_171] : memref<128x512xf32, #tpu.memory_space<vmem>>, vector<128x512xf32>
    %cst_172 = arith.constant dense<0.000000e+00> : vector<2x512xf32>
    %407 = tpu.matmul %403, %406, %cst_172 {dimension_numbers = #tpu.dot_dimension_numbers<[1], [0], [0], [1], [0, 0, 1, 1], [], []>} : vector<2x128xf32>, vector<128x512xf32>, vector<2x512xf32> -> vector<2x512xf32>
    %408 = arith.addf %405, %407 : vector<2x512xf32>
    %409 = vector.extract_strided_slice %408 {offsets = [0, 0], sizes = [2, 384], strides = [1, 1]} : vector<2x512xf32> to vector<2x384xf32>
    %410 = arith.negf %409 : vector<2x384xf32>
    %411 = math.exp %410 : vector<2x384xf32>
    %cst_173 = arith.constant 1.000000e+00 : f32
    %412 = vector.broadcast %cst_173 : f32 to vector<2x384xf32>
    %413 = arith.addf %412, %411 : vector<2x384xf32>
    %414 = arith.divf %412, %413 : vector<2x384xf32>
    %415 = vector.extract_strided_slice %414 {offsets = [0, 0], sizes = [2, 128], strides = [1, 1]} : vector<2x384xf32> to vector<2x128xf32>
    %416 = vector.extract_strided_slice %414 {offsets = [0, 128], sizes = [2, 128], strides = [1, 1]} : vector<2x384xf32> to vector<2x128xf32>
    %417 = vector.extract_strided_slice %414 {offsets = [0, 256], sizes = [2, 128], strides = [1, 1]} : vector<2x384xf32> to vector<2x128xf32>
    %418 = vector.extract_strided_slice %408 {offsets = [0, 384], sizes = [2, 128], strides = [1, 1]} : vector<2x512xf32> to vector<2x128xf32>
    %419 = math.tanh %418 : vector<2x128xf32>
    %420 = arith.mulf %416, %401 : vector<2x128xf32>
    %421 = arith.mulf %415, %419 : vector<2x128xf32>
    %422 = arith.addf %420, %421 : vector<2x128xf32>
    %423 = math.tanh %422 : vector<2x128xf32>
    %424 = arith.mulf %417, %423 : vector<2x128xf32>
    %c4_174 = arith.constant 4 : index
    %c0_175 = arith.constant 0 : index
    %425 = vector.load %arg20[%c4_174, %c0_175] : memref<16x128xf32, #tpu.memory_space<vmem>>, vector<2x128xf32>
    tpu.vector_store %arg20[%c4_174, %c0_175], %424 {strides = array<i32>} : memref<16x128xf32, #tpu.memory_space<vmem>>, vector<2x128xf32>,
    %c6_176 = arith.constant 6 : index
    %c0_177 = arith.constant 0 : index
    %426 = vector.load %arg21[%c6_176, %c0_177] : memref<16x512xf32, #tpu.memory_space<vmem>>, vector<2x512xf32>
    %c0_178 = arith.constant 0 : index
    %c0_179 = arith.constant 0 : index
    %427 = vector.load %arg8[%c0_178, %c0_179] : memref<128x512xf32, #tpu.memory_space<vmem>>, vector<128x512xf32>
    %cst_180 = arith.constant dense<0.000000e+00> : vector<2x512xf32>
    %428 = tpu.matmul %424, %427, %cst_180 {dimension_numbers = #tpu.dot_dimension_numbers<[1], [0], [0], [1], [0, 0, 1, 1], [], []>} : vector<2x128xf32>, vector<128x512xf32>, vector<2x512xf32> -> vector<2x512xf32>
    %429 = arith.addf %426, %428 : vector<2x512xf32>
    %430 = vector.extract_strided_slice %429 {offsets = [0, 0], sizes = [2, 384], strides = [1, 1]} : vector<2x512xf32> to vector<2x384xf32>
    %431 = arith.negf %430 : vector<2x384xf32>
    %432 = math.exp %431 : vector<2x384xf32>
    %cst_181 = arith.constant 1.000000e+00 : f32
    %433 = vector.broadcast %cst_181 : f32 to vector<2x384xf32>
    %434 = arith.addf %433, %432 : vector<2x384xf32>
    %435 = arith.divf %433, %434 : vector<2x384xf32>
    %436 = vector.extract_strided_slice %435 {offsets = [0, 0], sizes = [2, 128], strides = [1, 1]} : vector<2x384xf32> to vector<2x128xf32>
    %437 = vector.extract_strided_slice %435 {offsets = [0, 128], sizes = [2, 128], strides = [1, 1]} : vector<2x384xf32> to vector<2x128xf32>
    %438 = vector.extract_strided_slice %435 {offsets = [0, 256], sizes = [2, 128], strides = [1, 1]} : vector<2x384xf32> to vector<2x128xf32>
    %439 = vector.extract_strided_slice %429 {offsets = [0, 384], sizes = [2, 128], strides = [1, 1]} : vector<2x512xf32> to vector<2x128xf32>
    %440 = math.tanh %439 : vector<2x128xf32>
    %441 = arith.mulf %437, %422 : vector<2x128xf32>
    %442 = arith.mulf %436, %440 : vector<2x128xf32>
    %443 = arith.addf %441, %442 : vector<2x128xf32>
    %444 = math.tanh %443 : vector<2x128xf32>
    %445 = arith.mulf %438, %444 : vector<2x128xf32>
    %c6_182 = arith.constant 6 : index
    %c0_183 = arith.constant 0 : index
    %446 = vector.load %arg20[%c6_182, %c0_183] : memref<16x128xf32, #tpu.memory_space<vmem>>, vector<2x128xf32>
    tpu.vector_store %arg20[%c6_182, %c0_183], %445 {strides = array<i32>} : memref<16x128xf32, #tpu.memory_space<vmem>>, vector<2x128xf32>,
    %c8_184 = arith.constant 8 : index
    %c0_185 = arith.constant 0 : index
    %447 = vector.load %arg21[%c8_184, %c0_185] : memref<16x512xf32, #tpu.memory_space<vmem>>, vector<2x512xf32>
    %c0_186 = arith.constant 0 : index
    %c0_187 = arith.constant 0 : index
    %448 = vector.load %arg8[%c0_186, %c0_187] : memref<128x512xf32, #tpu.memory_space<vmem>>, vector<128x512xf32>
    %cst_188 = arith.constant dense<0.000000e+00> : vector<2x512xf32>
    %449 = tpu.matmul %445, %448, %cst_188 {dimension_numbers = #tpu.dot_dimension_numbers<[1], [0], [0], [1], [0, 0, 1, 1], [], []>} : vector<2x128xf32>, vector<128x512xf32>, vector<2x512xf32> -> vector<2x512xf32>
    %450 = arith.addf %447, %449 : vector<2x512xf32>
    %451 = vector.extract_strided_slice %450 {offsets = [0, 0], sizes = [2, 384], strides = [1, 1]} : vector<2x512xf32> to vector<2x384xf32>
    %452 = arith.negf %451 : vector<2x384xf32>
    %453 = math.exp %452 : vector<2x384xf32>
    %cst_189 = arith.constant 1.000000e+00 : f32
    %454 = vector.broadcast %cst_189 : f32 to vector<2x384xf32>
    %455 = arith.addf %454, %453 : vector<2x384xf32>
    %456 = arith.divf %454, %455 : vector<2x384xf32>
    %457 = vector.extract_strided_slice %456 {offsets = [0, 0], sizes = [2, 128], strides = [1, 1]} : vector<2x384xf32> to vector<2x128xf32>
    %458 = vector.extract_strided_slice %456 {offsets = [0, 128], sizes = [2, 128], strides = [1, 1]} : vector<2x384xf32> to vector<2x128xf32>
    %459 = vector.extract_strided_slice %456 {offsets = [0, 256], sizes = [2, 128], strides = [1, 1]} : vector<2x384xf32> to vector<2x128xf32>
    %460 = vector.extract_strided_slice %450 {offsets = [0, 384], sizes = [2, 128], strides = [1, 1]} : vector<2x512xf32> to vector<2x128xf32>
    %461 = math.tanh %460 : vector<2x128xf32>
    %462 = arith.mulf %458, %443 : vector<2x128xf32>
    %463 = arith.mulf %457, %461 : vector<2x128xf32>
    %464 = arith.addf %462, %463 : vector<2x128xf32>
    %465 = math.tanh %464 : vector<2x128xf32>
    %466 = arith.mulf %459, %465 : vector<2x128xf32>
    %c8_190 = arith.constant 8 : index
    %c0_191 = arith.constant 0 : index
    %467 = vector.load %arg20[%c8_190, %c0_191] : memref<16x128xf32, #tpu.memory_space<vmem>>, vector<2x128xf32>
    tpu.vector_store %arg20[%c8_190, %c0_191], %466 {strides = array<i32>} : memref<16x128xf32, #tpu.memory_space<vmem>>, vector<2x128xf32>,
    %c10_192 = arith.constant 10 : index
    %c0_193 = arith.constant 0 : index
    %468 = vector.load %arg21[%c10_192, %c0_193] : memref<16x512xf32, #tpu.memory_space<vmem>>, vector<2x512xf32>
    %c0_194 = arith.constant 0 : index
    %c0_195 = arith.constant 0 : index
    %469 = vector.load %arg8[%c0_194, %c0_195] : memref<128x512xf32, #tpu.memory_space<vmem>>, vector<128x512xf32>
    %cst_196 = arith.constant dense<0.000000e+00> : vector<2x512xf32>
    %470 = tpu.matmul %466, %469, %cst_196 {dimension_numbers = #tpu.dot_dimension_numbers<[1], [0], [0], [1], [0, 0, 1, 1], [], []>} : vector<2x128xf32>, vector<128x512xf32>, vector<2x512xf32> -> vector<2x512xf32>
    %471 = arith.addf %468, %470 : vector<2x512xf32>
    %472 = vector.extract_strided_slice %471 {offsets = [0, 0], sizes = [2, 384], strides = [1, 1]} : vector<2x512xf32> to vector<2x384xf32>
    %473 = arith.negf %472 : vector<2x384xf32>
    %474 = math.exp %473 : vector<2x384xf32>
    %cst_197 = arith.constant 1.000000e+00 : f32
    %475 = vector.broadcast %cst_197 : f32 to vector<2x384xf32>
    %476 = arith.addf %475, %474 : vector<2x384xf32>
    %477 = arith.divf %475, %476 : vector<2x384xf32>
    %478 = vector.extract_strided_slice %477 {offsets = [0, 0], sizes = [2, 128], strides = [1, 1]} : vector<2x384xf32> to vector<2x128xf32>
    %479 = vector.extract_strided_slice %477 {offsets = [0, 128], sizes = [2, 128], strides = [1, 1]} : vector<2x384xf32> to vector<2x128xf32>
    %480 = vector.extract_strided_slice %477 {offsets = [0, 256], sizes = [2, 128], strides = [1, 1]} : vector<2x384xf32> to vector<2x128xf32>
    %481 = vector.extract_strided_slice %471 {offsets = [0, 384], sizes = [2, 128], strides = [1, 1]} : vector<2x512xf32> to vector<2x128xf32>
    %482 = math.tanh %481 : vector<2x128xf32>
    %483 = arith.mulf %479, %464 : vector<2x128xf32>
    %484 = arith.mulf %478, %482 : vector<2x128xf32>
    %485 = arith.addf %483, %484 : vector<2x128xf32>
    %486 = math.tanh %485 : vector<2x128xf32>
    %487 = arith.mulf %480, %486 : vector<2x128xf32>
    %c10_198 = arith.constant 10 : index
    %c0_199 = arith.constant 0 : index
    %488 = vector.load %arg20[%c10_198, %c0_199] : memref<16x128xf32, #tpu.memory_space<vmem>>, vector<2x128xf32>
    tpu.vector_store %arg20[%c10_198, %c0_199], %487 {strides = array<i32>} : memref<16x128xf32, #tpu.memory_space<vmem>>, vector<2x128xf32>,
    %c12_200 = arith.constant 12 : index
    %c0_201 = arith.constant 0 : index
    %489 = vector.load %arg21[%c12_200, %c0_201] : memref<16x512xf32, #tpu.memory_space<vmem>>, vector<2x512xf32>
    %c0_202 = arith.constant 0 : index
    %c0_203 = arith.constant 0 : index
    %490 = vector.load %arg8[%c0_202, %c0_203] : memref<128x512xf32, #tpu.memory_space<vmem>>, vector<128x512xf32>
    %cst_204 = arith.constant dense<0.000000e+00> : vector<2x512xf32>
    %491 = tpu.matmul %487, %490, %cst_204 {dimension_numbers = #tpu.dot_dimension_numbers<[1], [0], [0], [1], [0, 0, 1, 1], [], []>} : vector<2x128xf32>, vector<128x512xf32>, vector<2x512xf32> -> vector<2x512xf32>
    %492 = arith.addf %489, %491 : vector<2x512xf32>
    %493 = vector.extract_strided_slice %492 {offsets = [0, 0], sizes = [2, 384], strides = [1, 1]} : vector<2x512xf32> to vector<2x384xf32>
    %494 = arith.negf %493 : vector<2x384xf32>
    %495 = math.exp %494 : vector<2x384xf32>
    %cst_205 = arith.constant 1.000000e+00 : f32
    %496 = vector.broadcast %cst_205 : f32 to vector<2x384xf32>
    %497 = arith.addf %496, %495 : vector<2x384xf32>
    %498 = arith.divf %496, %497 : vector<2x384xf32>
    %499 = vector.extract_strided_slice %498 {offsets = [0, 0], sizes = [2, 128], strides = [1, 1]} : vector<2x384xf32> to vector<2x128xf32>
    %500 = vector.extract_strided_slice %498 {offsets = [0, 128], sizes = [2, 128], strides = [1, 1]} : vector<2x384xf32> to vector<2x128xf32>
    %501 = vector.extract_strided_slice %498 {offsets = [0, 256], sizes = [2, 128], strides = [1, 1]} : vector<2x384xf32> to vector<2x128xf32>
    %502 = vector.extract_strided_slice %492 {offsets = [0, 384], sizes = [2, 128], strides = [1, 1]} : vector<2x512xf32> to vector<2x128xf32>
    %503 = math.tanh %502 : vector<2x128xf32>
    %504 = arith.mulf %500, %485 : vector<2x128xf32>
    %505 = arith.mulf %499, %503 : vector<2x128xf32>
    %506 = arith.addf %504, %505 : vector<2x128xf32>
    %507 = math.tanh %506 : vector<2x128xf32>
    %508 = arith.mulf %501, %507 : vector<2x128xf32>
    %c12_206 = arith.constant 12 : index
    %c0_207 = arith.constant 0 : index
    %509 = vector.load %arg20[%c12_206, %c0_207] : memref<16x128xf32, #tpu.memory_space<vmem>>, vector<2x128xf32>
    tpu.vector_store %arg20[%c12_206, %c0_207], %508 {strides = array<i32>} : memref<16x128xf32, #tpu.memory_space<vmem>>, vector<2x128xf32>,
    %c14_208 = arith.constant 14 : index
    %c0_209 = arith.constant 0 : index
    %510 = vector.load %arg21[%c14_208, %c0_209] : memref<16x512xf32, #tpu.memory_space<vmem>>, vector<2x512xf32>
    %c0_210 = arith.constant 0 : index
    %c0_211 = arith.constant 0 : index
    %511 = vector.load %arg8[%c0_210, %c0_211] : memref<128x512xf32, #tpu.memory_space<vmem>>, vector<128x512xf32>
    %cst_212 = arith.constant dense<0.000000e+00> : vector<2x512xf32>
    %512 = tpu.matmul %508, %511, %cst_212 {dimension_numbers = #tpu.dot_dimension_numbers<[1], [0], [0], [1], [0, 0, 1, 1], [], []>} : vector<2x128xf32>, vector<128x512xf32>, vector<2x512xf32> -> vector<2x512xf32>
    %513 = arith.addf %510, %512 : vector<2x512xf32>
    %514 = vector.extract_strided_slice %513 {offsets = [0, 0], sizes = [2, 384], strides = [1, 1]} : vector<2x512xf32> to vector<2x384xf32>
    %515 = arith.negf %514 : vector<2x384xf32>
    %516 = math.exp %515 : vector<2x384xf32>
    %cst_213 = arith.constant 1.000000e+00 : f32
    %517 = vector.broadcast %cst_213 : f32 to vector<2x384xf32>
    %518 = arith.addf %517, %516 : vector<2x384xf32>
    %519 = arith.divf %517, %518 : vector<2x384xf32>
    %520 = vector.extract_strided_slice %519 {offsets = [0, 0], sizes = [2, 128], strides = [1, 1]} : vector<2x384xf32> to vector<2x128xf32>
    %521 = vector.extract_strided_slice %519 {offsets = [0, 128], sizes = [2, 128], strides = [1, 1]} : vector<2x384xf32> to vector<2x128xf32>
    %522 = vector.extract_strided_slice %519 {offsets = [0, 256], sizes = [2, 128], strides = [1, 1]} : vector<2x384xf32> to vector<2x128xf32>
    %523 = vector.extract_strided_slice %513 {offsets = [0, 384], sizes = [2, 128], strides = [1, 1]} : vector<2x512xf32> to vector<2x128xf32>
    %524 = math.tanh %523 : vector<2x128xf32>
    %525 = arith.mulf %521, %506 : vector<2x128xf32>
    %526 = arith.mulf %520, %524 : vector<2x128xf32>
    %527 = arith.addf %525, %526 : vector<2x128xf32>
    %528 = math.tanh %527 : vector<2x128xf32>
    %529 = arith.mulf %522, %528 : vector<2x128xf32>
    %c14_214 = arith.constant 14 : index
    %c0_215 = arith.constant 0 : index
    %530 = vector.load %arg20[%c14_214, %c0_215] : memref<16x128xf32, #tpu.memory_space<vmem>>, vector<2x128xf32>
    tpu.vector_store %arg20[%c14_214, %c0_215], %529 {strides = array<i32>} : memref<16x128xf32, #tpu.memory_space<vmem>>, vector<2x128xf32>,
    %c0_216 = arith.constant 0 : index
    %c0_217 = arith.constant 0 : index
    %531 = vector.load %arg20[%c0_216, %c0_217] : memref<16x128xf32, #tpu.memory_space<vmem>>, vector<16x128xf32>
    %c0_218 = arith.constant 0 : index
    %c0_219 = arith.constant 0 : index
    %532 = vector.load %arg10[%c0_218, %c0_219] : memref<128x512xf32, #tpu.memory_space<vmem>>, vector<128x512xf32>
    %cst_220 = arith.constant dense<0.000000e+00> : vector<16x512xf32>
    %533 = tpu.matmul %531, %532, %cst_220 {dimension_numbers = #tpu.dot_dimension_numbers<[1], [0], [0], [1], [0, 0, 1, 1], [], []>} : vector<16x128xf32>, vector<128x512xf32>, vector<16x512xf32> -> vector<16x512xf32>
    %c0_221 = arith.constant 0 : index
    %c0_222 = arith.constant 0 : index
    %534 = vector.load %arg12[%c0_221, %c0_222] : memref<1x512xf32, #tpu.memory_space<vmem>>, vector<1x512xf32>
    %535 = vector.broadcast %534 : vector<1x512xf32> to vector<16x512xf32>
    %536 = arith.addf %533, %535 : vector<16x512xf32>
    %c0_223 = arith.constant 0 : index
    %c0_224 = arith.constant 0 : index
    %537 = vector.load %arg21[%c0_223, %c0_224] : memref<16x512xf32, #tpu.memory_space<vmem>>, vector<16x512xf32>
    tpu.vector_store %arg21[%c0_223, %c0_224], %536 {strides = array<i32>} : memref<16x512xf32, #tpu.memory_space<vmem>>, vector<16x512xf32>,
    %cst_225 = arith.constant 0.000000e+00 : f32
    %538 = vector.broadcast %cst_225 : f32 to vector<2x128xf32>
    %cst_226 = arith.constant 0.000000e+00 : f32
    %539 = vector.broadcast %cst_226 : f32 to vector<2x128xf32>
    %c0_227 = arith.constant 0 : index
    %c0_228 = arith.constant 0 : index
    %540 = vector.load %arg21[%c0_227, %c0_228] : memref<16x512xf32, #tpu.memory_space<vmem>>, vector<2x512xf32>
    %c0_229 = arith.constant 0 : index
    %c0_230 = arith.constant 0 : index
    %541 = vector.load %arg11[%c0_229, %c0_230] : memref<128x512xf32, #tpu.memory_space<vmem>>, vector<128x512xf32>
    %cst_231 = arith.constant dense<0.000000e+00> : vector<2x512xf32>
    %542 = tpu.matmul %538, %541, %cst_231 {dimension_numbers = #tpu.dot_dimension_numbers<[1], [0], [0], [1], [0, 0, 1, 1], [], []>} : vector<2x128xf32>, vector<128x512xf32>, vector<2x512xf32> -> vector<2x512xf32>
    %543 = arith.addf %540, %542 : vector<2x512xf32>
    %544 = vector.extract_strided_slice %543 {offsets = [0, 0], sizes = [2, 384], strides = [1, 1]} : vector<2x512xf32> to vector<2x384xf32>
    %545 = arith.negf %544 : vector<2x384xf32>
    %546 = math.exp %545 : vector<2x384xf32>
    %cst_232 = arith.constant 1.000000e+00 : f32
    %547 = vector.broadcast %cst_232 : f32 to vector<2x384xf32>
    %548 = arith.addf %547, %546 : vector<2x384xf32>
    %549 = arith.divf %547, %548 : vector<2x384xf32>
    %550 = vector.extract_strided_slice %549 {offsets = [0, 0], sizes = [2, 128], strides = [1, 1]} : vector<2x384xf32> to vector<2x128xf32>
    %551 = vector.extract_strided_slice %549 {offsets = [0, 128], sizes = [2, 128], strides = [1, 1]} : vector<2x384xf32> to vector<2x128xf32>
    %552 = vector.extract_strided_slice %549 {offsets = [0, 256], sizes = [2, 128], strides = [1, 1]} : vector<2x384xf32> to vector<2x128xf32>
    %553 = vector.extract_strided_slice %543 {offsets = [0, 384], sizes = [2, 128], strides = [1, 1]} : vector<2x512xf32> to vector<2x128xf32>
    %554 = math.tanh %553 : vector<2x128xf32>
    %555 = arith.mulf %551, %539 : vector<2x128xf32>
    %556 = arith.mulf %550, %554 : vector<2x128xf32>
    %557 = arith.addf %555, %556 : vector<2x128xf32>
    %558 = math.tanh %557 : vector<2x128xf32>
    %559 = arith.mulf %552, %558 : vector<2x128xf32>
    %c2_233 = arith.constant 2 : index
    %c0_234 = arith.constant 0 : index
    %560 = vector.load %arg21[%c2_233, %c0_234] : memref<16x512xf32, #tpu.memory_space<vmem>>, vector<2x512xf32>
    %c0_235 = arith.constant 0 : index
    %c0_236 = arith.constant 0 : index
    %561 = vector.load %arg11[%c0_235, %c0_236] : memref<128x512xf32, #tpu.memory_space<vmem>>, vector<128x512xf32>
    %cst_237 = arith.constant dense<0.000000e+00> : vector<2x512xf32>
    %562 = tpu.matmul %559, %561, %cst_237 {dimension_numbers = #tpu.dot_dimension_numbers<[1], [0], [0], [1], [0, 0, 1, 1], [], []>} : vector<2x128xf32>, vector<128x512xf32>, vector<2x512xf32> -> vector<2x512xf32>
    %563 = arith.addf %560, %562 : vector<2x512xf32>
    %564 = vector.extract_strided_slice %563 {offsets = [0, 0], sizes = [2, 384], strides = [1, 1]} : vector<2x512xf32> to vector<2x384xf32>
    %565 = arith.negf %564 : vector<2x384xf32>
    %566 = math.exp %565 : vector<2x384xf32>
    %cst_238 = arith.constant 1.000000e+00 : f32
    %567 = vector.broadcast %cst_238 : f32 to vector<2x384xf32>
    %568 = arith.addf %567, %566 : vector<2x384xf32>
    %569 = arith.divf %567, %568 : vector<2x384xf32>
    %570 = vector.extract_strided_slice %569 {offsets = [0, 0], sizes = [2, 128], strides = [1, 1]} : vector<2x384xf32> to vector<2x128xf32>
    %571 = vector.extract_strided_slice %569 {offsets = [0, 128], sizes = [2, 128], strides = [1, 1]} : vector<2x384xf32> to vector<2x128xf32>
    %572 = vector.extract_strided_slice %569 {offsets = [0, 256], sizes = [2, 128], strides = [1, 1]} : vector<2x384xf32> to vector<2x128xf32>
    %573 = vector.extract_strided_slice %563 {offsets = [0, 384], sizes = [2, 128], strides = [1, 1]} : vector<2x512xf32> to vector<2x128xf32>
    %574 = math.tanh %573 : vector<2x128xf32>
    %575 = arith.mulf %571, %557 : vector<2x128xf32>
    %576 = arith.mulf %570, %574 : vector<2x128xf32>
    %577 = arith.addf %575, %576 : vector<2x128xf32>
    %578 = math.tanh %577 : vector<2x128xf32>
    %579 = arith.mulf %572, %578 : vector<2x128xf32>
    %c4_239 = arith.constant 4 : index
    %c0_240 = arith.constant 0 : index
    %580 = vector.load %arg21[%c4_239, %c0_240] : memref<16x512xf32, #tpu.memory_space<vmem>>, vector<2x512xf32>
    %c0_241 = arith.constant 0 : index
    %c0_242 = arith.constant 0 : index
    %581 = vector.load %arg11[%c0_241, %c0_242] : memref<128x512xf32, #tpu.memory_space<vmem>>, vector<128x512xf32>
    %cst_243 = arith.constant dense<0.000000e+00> : vector<2x512xf32>
    %582 = tpu.matmul %579, %581, %cst_243 {dimension_numbers = #tpu.dot_dimension_numbers<[1], [0], [0], [1], [0, 0, 1, 1], [], []>} : vector<2x128xf32>, vector<128x512xf32>, vector<2x512xf32> -> vector<2x512xf32>
    %583 = arith.addf %580, %582 : vector<2x512xf32>
    %584 = vector.extract_strided_slice %583 {offsets = [0, 0], sizes = [2, 384], strides = [1, 1]} : vector<2x512xf32> to vector<2x384xf32>
    %585 = arith.negf %584 : vector<2x384xf32>
    %586 = math.exp %585 : vector<2x384xf32>
    %cst_244 = arith.constant 1.000000e+00 : f32
    %587 = vector.broadcast %cst_244 : f32 to vector<2x384xf32>
    %588 = arith.addf %587, %586 : vector<2x384xf32>
    %589 = arith.divf %587, %588 : vector<2x384xf32>
    %590 = vector.extract_strided_slice %589 {offsets = [0, 0], sizes = [2, 128], strides = [1, 1]} : vector<2x384xf32> to vector<2x128xf32>
    %591 = vector.extract_strided_slice %589 {offsets = [0, 128], sizes = [2, 128], strides = [1, 1]} : vector<2x384xf32> to vector<2x128xf32>
    %592 = vector.extract_strided_slice %589 {offsets = [0, 256], sizes = [2, 128], strides = [1, 1]} : vector<2x384xf32> to vector<2x128xf32>
    %593 = vector.extract_strided_slice %583 {offsets = [0, 384], sizes = [2, 128], strides = [1, 1]} : vector<2x512xf32> to vector<2x128xf32>
    %594 = math.tanh %593 : vector<2x128xf32>
    %595 = arith.mulf %591, %577 : vector<2x128xf32>
    %596 = arith.mulf %590, %594 : vector<2x128xf32>
    %597 = arith.addf %595, %596 : vector<2x128xf32>
    %598 = math.tanh %597 : vector<2x128xf32>
    %599 = arith.mulf %592, %598 : vector<2x128xf32>
    %c6_245 = arith.constant 6 : index
    %c0_246 = arith.constant 0 : index
    %600 = vector.load %arg21[%c6_245, %c0_246] : memref<16x512xf32, #tpu.memory_space<vmem>>, vector<2x512xf32>
    %c0_247 = arith.constant 0 : index
    %c0_248 = arith.constant 0 : index
    %601 = vector.load %arg11[%c0_247, %c0_248] : memref<128x512xf32, #tpu.memory_space<vmem>>, vector<128x512xf32>
    %cst_249 = arith.constant dense<0.000000e+00> : vector<2x512xf32>
    %602 = tpu.matmul %599, %601, %cst_249 {dimension_numbers = #tpu.dot_dimension_numbers<[1], [0], [0], [1], [0, 0, 1, 1], [], []>} : vector<2x128xf32>, vector<128x512xf32>, vector<2x512xf32> -> vector<2x512xf32>
    %603 = arith.addf %600, %602 : vector<2x512xf32>
    %604 = vector.extract_strided_slice %603 {offsets = [0, 0], sizes = [2, 384], strides = [1, 1]} : vector<2x512xf32> to vector<2x384xf32>
    %605 = arith.negf %604 : vector<2x384xf32>
    %606 = math.exp %605 : vector<2x384xf32>
    %cst_250 = arith.constant 1.000000e+00 : f32
    %607 = vector.broadcast %cst_250 : f32 to vector<2x384xf32>
    %608 = arith.addf %607, %606 : vector<2x384xf32>
    %609 = arith.divf %607, %608 : vector<2x384xf32>
    %610 = vector.extract_strided_slice %609 {offsets = [0, 0], sizes = [2, 128], strides = [1, 1]} : vector<2x384xf32> to vector<2x128xf32>
    %611 = vector.extract_strided_slice %609 {offsets = [0, 128], sizes = [2, 128], strides = [1, 1]} : vector<2x384xf32> to vector<2x128xf32>
    %612 = vector.extract_strided_slice %609 {offsets = [0, 256], sizes = [2, 128], strides = [1, 1]} : vector<2x384xf32> to vector<2x128xf32>
    %613 = vector.extract_strided_slice %603 {offsets = [0, 384], sizes = [2, 128], strides = [1, 1]} : vector<2x512xf32> to vector<2x128xf32>
    %614 = math.tanh %613 : vector<2x128xf32>
    %615 = arith.mulf %611, %597 : vector<2x128xf32>
    %616 = arith.mulf %610, %614 : vector<2x128xf32>
    %617 = arith.addf %615, %616 : vector<2x128xf32>
    %618 = math.tanh %617 : vector<2x128xf32>
    %619 = arith.mulf %612, %618 : vector<2x128xf32>
    %c8_251 = arith.constant 8 : index
    %c0_252 = arith.constant 0 : index
    %620 = vector.load %arg21[%c8_251, %c0_252] : memref<16x512xf32, #tpu.memory_space<vmem>>, vector<2x512xf32>
    %c0_253 = arith.constant 0 : index
    %c0_254 = arith.constant 0 : index
    %621 = vector.load %arg11[%c0_253, %c0_254] : memref<128x512xf32, #tpu.memory_space<vmem>>, vector<128x512xf32>
    %cst_255 = arith.constant dense<0.000000e+00> : vector<2x512xf32>
    %622 = tpu.matmul %619, %621, %cst_255 {dimension_numbers = #tpu.dot_dimension_numbers<[1], [0], [0], [1], [0, 0, 1, 1], [], []>} : vector<2x128xf32>, vector<128x512xf32>, vector<2x512xf32> -> vector<2x512xf32>
    %623 = arith.addf %620, %622 : vector<2x512xf32>
    %624 = vector.extract_strided_slice %623 {offsets = [0, 0], sizes = [2, 384], strides = [1, 1]} : vector<2x512xf32> to vector<2x384xf32>
    %625 = arith.negf %624 : vector<2x384xf32>
    %626 = math.exp %625 : vector<2x384xf32>
    %cst_256 = arith.constant 1.000000e+00 : f32
    %627 = vector.broadcast %cst_256 : f32 to vector<2x384xf32>
    %628 = arith.addf %627, %626 : vector<2x384xf32>
    %629 = arith.divf %627, %628 : vector<2x384xf32>
    %630 = vector.extract_strided_slice %629 {offsets = [0, 0], sizes = [2, 128], strides = [1, 1]} : vector<2x384xf32> to vector<2x128xf32>
    %631 = vector.extract_strided_slice %629 {offsets = [0, 128], sizes = [2, 128], strides = [1, 1]} : vector<2x384xf32> to vector<2x128xf32>
    %632 = vector.extract_strided_slice %629 {offsets = [0, 256], sizes = [2, 128], strides = [1, 1]} : vector<2x384xf32> to vector<2x128xf32>
    %633 = vector.extract_strided_slice %623 {offsets = [0, 384], sizes = [2, 128], strides = [1, 1]} : vector<2x512xf32> to vector<2x128xf32>
    %634 = math.tanh %633 : vector<2x128xf32>
    %635 = arith.mulf %631, %617 : vector<2x128xf32>
    %636 = arith.mulf %630, %634 : vector<2x128xf32>
    %637 = arith.addf %635, %636 : vector<2x128xf32>
    %638 = math.tanh %637 : vector<2x128xf32>
    %639 = arith.mulf %632, %638 : vector<2x128xf32>
    %c10_257 = arith.constant 10 : index
    %c0_258 = arith.constant 0 : index
    %640 = vector.load %arg21[%c10_257, %c0_258] : memref<16x512xf32, #tpu.memory_space<vmem>>, vector<2x512xf32>
    %c0_259 = arith.constant 0 : index
    %c0_260 = arith.constant 0 : index
    %641 = vector.load %arg11[%c0_259, %c0_260] : memref<128x512xf32, #tpu.memory_space<vmem>>, vector<128x512xf32>
    %cst_261 = arith.constant dense<0.000000e+00> : vector<2x512xf32>
    %642 = tpu.matmul %639, %641, %cst_261 {dimension_numbers = #tpu.dot_dimension_numbers<[1], [0], [0], [1], [0, 0, 1, 1], [], []>} : vector<2x128xf32>, vector<128x512xf32>, vector<2x512xf32> -> vector<2x512xf32>
    %643 = arith.addf %640, %642 : vector<2x512xf32>
    %644 = vector.extract_strided_slice %643 {offsets = [0, 0], sizes = [2, 384], strides = [1, 1]} : vector<2x512xf32> to vector<2x384xf32>
    %645 = arith.negf %644 : vector<2x384xf32>
    %646 = math.exp %645 : vector<2x384xf32>
    %cst_262 = arith.constant 1.000000e+00 : f32
    %647 = vector.broadcast %cst_262 : f32 to vector<2x384xf32>
    %648 = arith.addf %647, %646 : vector<2x384xf32>
    %649 = arith.divf %647, %648 : vector<2x384xf32>
    %650 = vector.extract_strided_slice %649 {offsets = [0, 0], sizes = [2, 128], strides = [1, 1]} : vector<2x384xf32> to vector<2x128xf32>
    %651 = vector.extract_strided_slice %649 {offsets = [0, 128], sizes = [2, 128], strides = [1, 1]} : vector<2x384xf32> to vector<2x128xf32>
    %652 = vector.extract_strided_slice %649 {offsets = [0, 256], sizes = [2, 128], strides = [1, 1]} : vector<2x384xf32> to vector<2x128xf32>
    %653 = vector.extract_strided_slice %643 {offsets = [0, 384], sizes = [2, 128], strides = [1, 1]} : vector<2x512xf32> to vector<2x128xf32>
    %654 = math.tanh %653 : vector<2x128xf32>
    %655 = arith.mulf %651, %637 : vector<2x128xf32>
    %656 = arith.mulf %650, %654 : vector<2x128xf32>
    %657 = arith.addf %655, %656 : vector<2x128xf32>
    %658 = math.tanh %657 : vector<2x128xf32>
    %659 = arith.mulf %652, %658 : vector<2x128xf32>
    %c12_263 = arith.constant 12 : index
    %c0_264 = arith.constant 0 : index
    %660 = vector.load %arg21[%c12_263, %c0_264] : memref<16x512xf32, #tpu.memory_space<vmem>>, vector<2x512xf32>
    %c0_265 = arith.constant 0 : index
    %c0_266 = arith.constant 0 : index
    %661 = vector.load %arg11[%c0_265, %c0_266] : memref<128x512xf32, #tpu.memory_space<vmem>>, vector<128x512xf32>
    %cst_267 = arith.constant dense<0.000000e+00> : vector<2x512xf32>
    %662 = tpu.matmul %659, %661, %cst_267 {dimension_numbers = #tpu.dot_dimension_numbers<[1], [0], [0], [1], [0, 0, 1, 1], [], []>} : vector<2x128xf32>, vector<128x512xf32>, vector<2x512xf32> -> vector<2x512xf32>
    %663 = arith.addf %660, %662 : vector<2x512xf32>
    %664 = vector.extract_strided_slice %663 {offsets = [0, 0], sizes = [2, 384], strides = [1, 1]} : vector<2x512xf32> to vector<2x384xf32>
    %665 = arith.negf %664 : vector<2x384xf32>
    %666 = math.exp %665 : vector<2x384xf32>
    %cst_268 = arith.constant 1.000000e+00 : f32
    %667 = vector.broadcast %cst_268 : f32 to vector<2x384xf32>
    %668 = arith.addf %667, %666 : vector<2x384xf32>
    %669 = arith.divf %667, %668 : vector<2x384xf32>
    %670 = vector.extract_strided_slice %669 {offsets = [0, 0], sizes = [2, 128], strides = [1, 1]} : vector<2x384xf32> to vector<2x128xf32>
    %671 = vector.extract_strided_slice %669 {offsets = [0, 128], sizes = [2, 128], strides = [1, 1]} : vector<2x384xf32> to vector<2x128xf32>
    %672 = vector.extract_strided_slice %669 {offsets = [0, 256], sizes = [2, 128], strides = [1, 1]} : vector<2x384xf32> to vector<2x128xf32>
    %673 = vector.extract_strided_slice %663 {offsets = [0, 384], sizes = [2, 128], strides = [1, 1]} : vector<2x512xf32> to vector<2x128xf32>
    %674 = math.tanh %673 : vector<2x128xf32>
    %675 = arith.mulf %671, %657 : vector<2x128xf32>
    %676 = arith.mulf %670, %674 : vector<2x128xf32>
    %677 = arith.addf %675, %676 : vector<2x128xf32>
    %678 = math.tanh %677 : vector<2x128xf32>
    %679 = arith.mulf %672, %678 : vector<2x128xf32>
    %c14_269 = arith.constant 14 : index
    %c0_270 = arith.constant 0 : index
    %680 = vector.load %arg21[%c14_269, %c0_270] : memref<16x512xf32, #tpu.memory_space<vmem>>, vector<2x512xf32>
    %c0_271 = arith.constant 0 : index
    %c0_272 = arith.constant 0 : index
    %681 = vector.load %arg11[%c0_271, %c0_272] : memref<128x512xf32, #tpu.memory_space<vmem>>, vector<128x512xf32>
    %cst_273 = arith.constant dense<0.000000e+00> : vector<2x512xf32>
    %682 = tpu.matmul %679, %681, %cst_273 {dimension_numbers = #tpu.dot_dimension_numbers<[1], [0], [0], [1], [0, 0, 1, 1], [], []>} : vector<2x128xf32>, vector<128x512xf32>, vector<2x512xf32> -> vector<2x512xf32>
    %683 = arith.addf %680, %682 : vector<2x512xf32>
    %684 = vector.extract_strided_slice %683 {offsets = [0, 0], sizes = [2, 384], strides = [1, 1]} : vector<2x512xf32> to vector<2x384xf32>
    %685 = arith.negf %684 : vector<2x384xf32>
    %686 = math.exp %685 : vector<2x384xf32>
    %cst_274 = arith.constant 1.000000e+00 : f32
    %687 = vector.broadcast %cst_274 : f32 to vector<2x384xf32>
    %688 = arith.addf %687, %686 : vector<2x384xf32>
    %689 = arith.divf %687, %688 : vector<2x384xf32>
    %690 = vector.extract_strided_slice %689 {offsets = [0, 0], sizes = [2, 128], strides = [1, 1]} : vector<2x384xf32> to vector<2x128xf32>
    %691 = vector.extract_strided_slice %689 {offsets = [0, 128], sizes = [2, 128], strides = [1, 1]} : vector<2x384xf32> to vector<2x128xf32>
    %692 = vector.extract_strided_slice %689 {offsets = [0, 256], sizes = [2, 128], strides = [1, 1]} : vector<2x384xf32> to vector<2x128xf32>
    %693 = vector.extract_strided_slice %683 {offsets = [0, 384], sizes = [2, 128], strides = [1, 1]} : vector<2x512xf32> to vector<2x128xf32>
    %694 = math.tanh %693 : vector<2x128xf32>
    %695 = arith.mulf %691, %677 : vector<2x128xf32>
    %696 = arith.mulf %690, %694 : vector<2x128xf32>
    %697 = arith.addf %695, %696 : vector<2x128xf32>
    %698 = math.tanh %697 : vector<2x128xf32>
    %699 = arith.mulf %692, %698 : vector<2x128xf32>
    %c0_275 = arith.constant 0 : index
    %c0_276 = arith.constant 0 : index
    %700 = vector.load %arg13[%c0_275, %c0_276] : memref<128x256xf32, #tpu.memory_space<vmem>>, vector<128x256xf32>
    %cst_277 = arith.constant dense<0.000000e+00> : vector<2x256xf32>
    %701 = tpu.matmul %699, %700, %cst_277 {dimension_numbers = #tpu.dot_dimension_numbers<[1], [0], [0], [1], [0, 0, 1, 1], [], []>} : vector<2x128xf32>, vector<128x256xf32>, vector<2x256xf32> -> vector<2x256xf32>
    %c0_278 = arith.constant 0 : index
    %c0_279 = arith.constant 0 : index
    %702 = vector.load %arg14[%c0_278, %c0_279] : memref<1x256xf32, #tpu.memory_space<vmem>>, vector<1x256xf32>
    %703 = vector.broadcast %702 : vector<1x256xf32> to vector<2x256xf32>
    %704 = arith.addf %701, %703 : vector<2x256xf32>
    %cst_280 = arith.constant 0.000000e+00 : f32
    %705 = vector.broadcast %cst_280 : f32 to vector<2x256xf32>
    %706 = arith.maximumf %704, %705 : vector<2x256xf32>
    %c0_281 = arith.constant 0 : index
    %c0_282 = arith.constant 0 : index
    %707 = vector.load %arg15[%c0_281, %c0_282] : memref<256x128xf32, #tpu.memory_space<vmem>>, vector<256x128xf32>
    %cst_283 = arith.constant dense<0.000000e+00> : vector<2x128xf32>
    %708 = tpu.matmul %706, %707, %cst_283 {dimension_numbers = #tpu.dot_dimension_numbers<[1], [0], [0], [1], [0, 0, 1, 1], [], []>} : vector<2x256xf32>, vector<256x128xf32>, vector<2x128xf32> -> vector<2x128xf32>
    %c0_284 = arith.constant 0 : index
    %c0_285 = arith.constant 0 : index
    %709 = vector.load %arg16[%c0_284, %c0_285] : memref<1x128xf32, #tpu.memory_space<vmem>>, vector<1x128xf32>
    %710 = vector.broadcast %709 : vector<1x128xf32> to vector<2x128xf32>
    %711 = arith.addf %708, %710 : vector<2x128xf32>
    %cst_286 = arith.constant 0.000000e+00 : f32
    %712 = vector.broadcast %cst_286 : f32 to vector<2x128xf32>
    %713 = arith.maximumf %711, %712 : vector<2x128xf32>
    %c0_287 = arith.constant 0 : index
    %c0_288 = arith.constant 0 : index
    %714 = vector.load %arg17[%c0_287, %c0_288] : memref<128x128xf32, #tpu.memory_space<vmem>>, vector<128x128xf32>
    %cst_289 = arith.constant dense<0.000000e+00> : vector<2x128xf32>
    %715 = tpu.matmul %713, %714, %cst_289 {dimension_numbers = #tpu.dot_dimension_numbers<[1], [0], [0], [1], [0, 0, 1, 1], [], []>} : vector<2x128xf32>, vector<128x128xf32>, vector<2x128xf32> -> vector<2x128xf32>
    %c0_290 = arith.constant 0 : index
    %c0_291 = arith.constant 0 : index
    %716 = vector.load %arg18[%c0_290, %c0_291] : memref<1x128xf32, #tpu.memory_space<vmem>>, vector<1x128xf32>
    %717 = vector.broadcast %716 : vector<1x128xf32> to vector<2x128xf32>
    %718 = arith.addf %715, %717 : vector<2x128xf32>
    %c0_292 = arith.constant 0 : index
    %c0_293 = arith.constant 0 : index
    %719 = vector.load %arg19[%c0_292, %c0_293] : memref<2x128xf32, #tpu.memory_space<vmem>>, vector<2x128xf32>
    tpu.vector_store %arg19[%c0_292, %c0_293], %718 {strides = array<i32>} : memref<2x128xf32, #tpu.memory_space<vmem>>, vector<2x128xf32>,
    return
  }
}

</mosaic_0001>

<llo_original>
// kernel: tpu_custom_call.1
$region0: #{tpu_custom_call.1}
  #allocation0 [shape = 'u32[]', space=smem, size = 0x4, offset = 0x4, fixed_abs, tag = 'smem constant byte address 0x4 - core index']
  #allocation1 [shape = 'u32[144,128]{1,0:T(1,128)}', space=vmem, size = 0x12000, scoped, tag = 'internal scratch']
  #allocation2 [shape = 'f32[16,128]{1,0:T(8,128)}', space=vmem, size = 0x2000, scoped, tag = 'scratch operand']
  #allocation3 [shape = 'f32[16,512]{1,0:T(8,128)}', space=vmem, size = 0x8000, scoped, tag = 'scratch operand']
  %s0 = inlined_call_operand.hbm [shape: f32[16,128], index: 0, kind: input, shape index: {}]
  %s1 = inlined_call_operand.hbm [shape: f32[128,512], index: 1, kind: input, shape index: {}]
  %s2 = inlined_call_operand.hbm [shape: f32[128,512], index: 2, kind: input, shape index: {}]
  %s3 = inlined_call_operand.vmem [shape: f32[1,512], index: 3, kind: input, shape index: {}]
  %s4 = inlined_call_operand.hbm [shape: f32[128,512], index: 4, kind: input, shape index: {}]
  %s5 = inlined_call_operand.hbm [shape: f32[128,512], index: 5, kind: input, shape index: {}]
  %s6 = inlined_call_operand.vmem [shape: f32[1,512], index: 6, kind: input, shape index: {}]
  %s7 = inlined_call_operand.hbm [shape: f32[128,512], index: 7, kind: input, shape index: {}]
  %s8 = inlined_call_operand.hbm [shape: f32[128,512], index: 8, kind: input, shape index: {}]
  %s9 = inlined_call_operand.vmem [shape: f32[1,512], index: 9, kind: input, shape index: {}]
  %s10 = inlined_call_operand.hbm [shape: f32[128,512], index: 10, kind: input, shape index: {}]
  %s11 = inlined_call_operand.hbm [shape: f32[128,512], index: 11, kind: input, shape index: {}]
  %s12 = inlined_call_operand.vmem [shape: f32[1,512], index: 12, kind: input, shape index: {}]
  %s13 = inlined_call_operand.hbm [shape: f32[128,256], index: 13, kind: input, shape index: {}]
  %s14 = inlined_call_operand.vmem [shape: f32[1,256], index: 14, kind: input, shape index: {}]
  %s15 = inlined_call_operand.hbm [shape: f32[256,128], index: 15, kind: input, shape index: {}]
  %s16 = inlined_call_operand.vmem [shape: f32[1,128], index: 16, kind: input, shape index: {}]
  %s17 = inlined_call_operand.hbm [shape: f32[128,128], index: 17, kind: input, shape index: {}]
  %s18 = inlined_call_operand.vmem [shape: f32[1,128], index: 18, kind: input, shape index: {}]
  %s19 = inlined_call_operand.hbm [shape: f32[2,128], index: 19, kind: output, shape index: {}]
  %s20 = sld [smem:[#allocation0]]
  $region134: #{tpu_custom_call.1} parent=0
    _
  %s22 = ssub.s32 1, %s20
  %s23 = scalar_select 0, %s22, %s20
  $region1: #{tpu_custom_call.1} parent=0
    #allocation4 [shape = 'u8[8192]{0}', space=vmem, size = 0x2000, scoped, tag = 'input window, operand 0, single buffered']
    #allocation5 [shape = 's32[1]{0}', space=sflag, size = 0x4, scoped, tag = 'scoped memory for tpu_custom_call.1']
    #allocation6 [shape = 's32[1]{0}', space=sflag, size = 0x4, scoped, tag = 'scoped memory for tpu_custom_call.1']
    #allocation7 [shape = 'u8[262144]{0}', space=vmem, size = 0x40000, scoped, tag = 'input window, operand 1, single buffered']
    #allocation8 [shape = 's32[1]{0}', space=sflag, size = 0x4, scoped, tag = 'scoped memory for tpu_custom_call.1']
    #allocation9 [shape = 'u8[262144]{0}', space=vmem, size = 0x40000, scoped, tag = 'input window, operand 2, single buffered']
    #allocation10 [shape = 'u8[262144]{0}', space=vmem, size = 0x40000, scoped, tag = 'input window, operand 4, single buffered']
    #allocation11 [shape = 's32[1]{0}', space=sflag, size = 0x4, scoped, tag = 'scoped memory for tpu_custom_call.1']
    #allocation12 [shape = 'u8[262144]{0}', space=vmem, size = 0x40000, scoped, tag = 'input window, operand 5, single buffered']
    #allocation13 [shape = 'u8[262144]{0}', space=vmem, size = 0x40000, scoped, tag = 'input window, operand 7, single buffered']
    #allocation14 [shape = 's32[1]{0}', space=sflag, size = 0x4, scoped, tag = 'scoped memory for tpu_custom_call.1']
    #allocation15 [shape = 'u8[262144]{0}', space=vmem, size = 0x40000, scoped, tag = 'input window, operand 8, single buffered']
    #allocation16 [shape = 'u8[262144]{0}', space=vmem, size = 0x40000, scoped, tag = 'input window, operand 10, single buffered']
    #allocation17 [shape = 's32[1]{0}', space=sflag, size = 0x4, scoped, tag = 'scoped memory for tpu_custom_call.1']
    #allocation18 [shape = 'u8[262144]{0}', space=vmem, size = 0x40000, scoped, tag = 'input window, operand 11, single buffered']
    #allocation19 [shape = 'u8[131072]{0}', space=vmem, size = 0x20000, scoped, tag = 'input window, operand 13, single buffered']
    #allocation20 [shape = 's32[1]{0}', space=sflag, size = 0x4, scoped, tag = 'scoped memory for tpu_custom_call.1']
    #allocation21 [shape = 'u8[131072]{0}', space=vmem, size = 0x20000, scoped, tag = 'input window, operand 15, single buffered']
    #allocation22 [shape = 'u8[65536]{0}', space=vmem, size = 0x10000, scoped, tag = 'input window, operand 17, single buffered']
    #allocation23 [shape = 's32[1]{0}', space=sflag, size = 0x4, scoped, tag = 'scoped memory for tpu_custom_call.1']
    #allocation24 [shape = 'u8[1024]{0}', space=vmem, size = 0x400, scoped, tag = 'output window, operand 0, single buffered']
    %24 = vsyncpa [#allocation5], 0
    %25 = vsyncpa [#allocation8], 0
    %26 = vsyncpa [#allocation11], 0
    %27 = vsyncpa [#allocation14], 0
    %28 = vsyncpa [#allocation17], 0
    %29 = vsyncpa [#allocation20], 0
    %30 = vsyncpa [#allocation23], 0
    %31 = vsyncpa [#allocation6], 0
    // Predicated region
    $region2: #{tpu_custom_call.1} parent=1 // pred_check
      _
    $region3: #{tpu_custom_call.1} parent=1 // pred_check_branch
      %33 = sbr.rel (0) target = $region5
    $region4: #{tpu_custom_call.1} parent=1 // pred_region
      %s35 = ssub.s32 256, 256
      %36 = vsyncadd [#allocation5], %s35
      %s37 = sshll.u32 [#allocation4], 4
      %s38 = int_to_ptr.vmem [resolvable:$true] %s37
      %43 = dma.hbm_to_vmem [thread:$0]  %s0, 256, %s38, [#allocation5], 128, 128, 8
    $region5: #{tpu_custom_call.1} parent=1 // pred_fallthru
      _
    // Predicated region
    $region6: #{tpu_custom_call.1} parent=1 // pred_check
      _
    $region7: #{tpu_custom_call.1} parent=1 // pred_check_branch
      %45 = sbr.rel (0) target = $region9
    $region8: #{tpu_custom_call.1} parent=1 // pred_region
      %s47 = ssub.s32 8192, 8192
      %48 = vsyncadd [#allocation8], %s47
      %s49 = sshll.u32 [#allocation7], 4
      %s50 = int_to_ptr.vmem [resolvable:$true] %s49
      %55 = dma.hbm_to_vmem [thread:$0]  %s1, 8192, %s50, [#allocation8], 512, 512, 32
    $region9: #{tpu_custom_call.1} parent=1 // pred_fallthru
      _
    // Predicated region
    $region10: #{tpu_custom_call.1} parent=1 // pred_check
      _
    $region11: #{tpu_custom_call.1} parent=1 // pred_check_branch
      %57 = sbr.rel (0) target = $region13
    $region12: #{tpu_custom_call.1} parent=1 // pred_region
      %s59 = ssub.s32 8192, 8192
      %60 = vsyncadd [#allocation8], %s59
      %s61 = sshll.u32 [#allocation9], 4
      %s62 = int_to_ptr.vmem [resolvable:$true] %s61
      %67 = dma.hbm_to_vmem [thread:$0]  %s2, 8192, %s62, [#allocation8], 512, 512, 32
    $region13: #{tpu_custom_call.1} parent=1 // pred_fallthru
      _
    // Predicated region
    $region14: #{tpu_custom_call.1} parent=1 // pred_check
      _
    $region15: #{tpu_custom_call.1} parent=1 // pred_check_branch
      %69 = sbr.rel (0) target = $region17
    $region16: #{tpu_custom_call.1} parent=1 // pred_region
      _
    $region17: #{tpu_custom_call.1} parent=1 // pred_fallthru
      _
    // Predicated region
    $region18: #{tpu_custom_call.1} parent=1 // pred_check
      _
    $region19: #{tpu_custom_call.1} parent=1 // pred_check_branch
      %71 = sbr.rel (0) target = $region21
    $region20: #{tpu_custom_call.1} parent=1 // pred_region
      %s73 = ssub.s32 8192, 8192
      %74 = vsyncadd [#allocation11], %s73
      %s75 = sshll.u32 [#allocation10], 4
      %s76 = int_to_ptr.vmem [resolvable:$true] %s75
      %81 = dma.hbm_to_vmem [thread:$0]  %s4, 8192, %s76, [#allocation11], 512, 512, 32
    $region21: #{tpu_custom_call.1} parent=1 // pred_fallthru
      _
    // Predicated region
    $region22: #{tpu_custom_call.1} parent=1 // pred_check
      _
    $region23: #{tpu_custom_call.1} parent=1 // pred_check_branch
      %83 = sbr.rel (0) target = $region25
    $region24: #{tpu_custom_call.1} parent=1 // pred_region
      %s85 = ssub.s32 8192, 8192
      %86 = vsyncadd [#allocation11], %s85
      %s87 = sshll.u32 [#allocation12], 4
      %s88 = int_to_ptr.vmem [resolvable:$true] %s87
      %93 = dma.hbm_to_vmem [thread:$0]  %s5, 8192, %s88, [#allocation11], 512, 512, 32
    $region25: #{tpu_custom_call.1} parent=1 // pred_fallthru
      _
    // Predicated region
    $region26: #{tpu_custom_call.1} parent=1 // pred_check
      _
    $region27: #{tpu_custom_call.1} parent=1 // pred_check_branch
      %95 = sbr.rel (0) target = $region29
    $region28: #{tpu_custom_call.1} parent=1 // pred_region
      _
    $region29: #{tpu_custom_call.1} parent=1 // pred_fallthru
      _
    // Predicated region
    $region30: #{tpu_custom_call.1} parent=1 // pred_check
      _
    $region31: #{tpu_custom_call.1} parent=1 // pred_check_branch
      %97 = sbr.rel (0) target = $region33
    $region32: #{tpu_custom_call.1} parent=1 // pred_region
      %s99 = ssub.s32 8192, 8192
      %100 = vsyncadd [#allocation14], %s99
      %s101 = sshll.u32 [#allocation13], 4
      %s102 = int_to_ptr.vmem [resolvable:$true] %s101
      %107 = dma.hbm_to_vmem [thread:$0]  %s7, 8192, %s102, [#allocation14], 512, 512, 32
    $region33: #{tpu_custom_call.1} parent=1 // pred_fallthru
      _
    // Predicated region
    $region34: #{tpu_custom_call.1} parent=1 // pred_check
      _
    $region35: #{tpu_custom_call.1} parent=1 // pred_check_branch
      %109 = sbr.rel (0) target = $region37
    $region36: #{tpu_custom_call.1} parent=1 // pred_region
      %s111 = ssub.s32 8192, 8192
      %112 = vsyncadd [#allocation14], %s111
      %s113 = sshll.u32 [#allocation15], 4
      %s114 = int_to_ptr.vmem [resolvable:$true] %s113
      %119 = dma.hbm_to_vmem [thread:$0]  %s8, 8192, %s114, [#allocation14], 512, 512, 32
    $region37: #{tpu_custom_call.1} parent=1 // pred_fallthru
      _
    // Predicated region
    $region38: #{tpu_custom_call.1} parent=1 // pred_check
      _
    $region39: #{tpu_custom_call.1} parent=1 // pred_check_branch
      %121 = sbr.rel (0) target = $region41
    $region40: #{tpu_custom_call.1} parent=1 // pred_region
      _
    $region41: #{tpu_custom_call.1} parent=1 // pred_fallthru
      _
    // Predicated region
    $region42: #{tpu_custom_call.1} parent=1 // pred_check
      _
    $region43: #{tpu_custom_call.1} parent=1 // pred_check_branch
      %123 = sbr.rel (0) target = $region45
    $region44: #{tpu_custom_call.1} parent=1 // pred_region
      %s125 = ssub.s32 8192, 8192
      %126 = vsyncadd [#allocation17], %s125
      %s127 = sshll.u32 [#allocation16], 4
      %s128 = int_to_ptr.vmem [resolvable:$true] %s127
      %133 = dma.hbm_to_vmem [thread:$0]  %s10, 8192, %s128, [#allocation17], 512, 512, 32
    $region45: #{tpu_custom_call.1} parent=1 // pred_fallthru
      _
    // Predicated region
    $region46: #{tpu_custom_call.1} parent=1 // pred_check
      _
    $region47: #{tpu_custom_call.1} parent=1 // pred_check_branch
      %135 = sbr.rel (0) target = $region49
    $region48: #{tpu_custom_call.1} parent=1 // pred_region
      %s137 = ssub.s32 8192, 8192
      %138 = vsyncadd [#allocation17], %s137
      %s139 = sshll.u32 [#allocation18], 4
      %s140 = int_to_ptr.vmem [resolvable:$true] %s139
      %145 = dma.hbm_to_vmem [thread:$0]  %s11, 8192, %s140, [#allocation17], 512, 512, 32
    $region49: #{tpu_custom_call.1} parent=1 // pred_fallthru
      _
    // Predicated region
    $region50: #{tpu_custom_call.1} parent=1 // pred_check
      _
    $region51: #{tpu_custom_call.1} parent=1 // pred_check_branch
      %147 = sbr.rel (0) target = $region53
    $region52: #{tpu_custom_call.1} parent=1 // pred_region
      _
    $region53: #{tpu_custom_call.1} parent=1 // pred_fallthru
      _
    // Predicated region
    $region54: #{tpu_custom_call.1} parent=1 // pred_check
      _
    $region55: #{tpu_custom_call.1} parent=1 // pred_check_branch
      %149 = sbr.rel (0) target = $region57
    $region56: #{tpu_custom_call.1} parent=1 // pred_region
      %s151 = ssub.s32 4096, 4096
      %152 = vsyncadd [#allocation20], %s151
      %s153 = sshll.u32 [#allocation19], 4
      %s154 = int_to_ptr.vmem [resolvable:$true] %s153
      %159 = dma.hbm_to_vmem [thread:$0]  %s13, 4096, %s154, [#allocation20], 256, 256, 16
    $region57: #{tpu_custom_call.1} parent=1 // pred_fallthru
      _
    // Predicated region
    $region58: #{tpu_custom_call.1} parent=1 // pred_check
      _
    $region59: #{tpu_custom_call.1} parent=1 // pred_check_branch
      %161 = sbr.rel (0) target = $region61
    $region60: #{tpu_custom_call.1} parent=1 // pred_region
      _
    $region61: #{tpu_custom_call.1} parent=1 // pred_fallthru
      _
    // Predicated region
    $region62: #{tpu_custom_call.1} parent=1 // pred_check
      _
    $region63: #{tpu_custom_call.1} parent=1 // pred_check_branch
      %163 = sbr.rel (0) target = $region65
    $region64: #{tpu_custom_call.1} parent=1 // pred_region
      %s165 = ssub.s32 4096, 4096
      %166 = vsyncadd [#allocation20], %s165
      %s167 = sshll.u32 [#allocation21], 4
      %s168 = int_to_ptr.vmem [resolvable:$true] %s167
      %173 = dma.hbm_to_vmem [thread:$0]  %s15, 4096, %s168, [#allocation20], 128, 128, 8
    $region65: #{tpu_custom_call.1} parent=1 // pred_fallthru
      _
    // Predicated region
    $region66: #{tpu_custom_call.1} parent=1 // pred_check
      _
    $region67: #{tpu_custom_call.1} parent=1 // pred_check_branch
      %175 = sbr.rel (0) target = $region69
    $region68: #{tpu_custom_call.1} parent=1 // pred_region
      _
    $region69: #{tpu_custom_call.1} parent=1 // pred_fallthru
      _
    // Predicated region
    $region70: #{tpu_custom_call.1} parent=1 // pred_check
      _
    $region71: #{tpu_custom_call.1} parent=1 // pred_check_branch
      %177 = sbr.rel (0) target = $region73
    $region72: #{tpu_custom_call.1} parent=1 // pred_region
      %s179 = ssub.s32 2048, 2048
      %180 = vsyncadd [#allocation23], %s179
      %s181 = sshll.u32 [#allocation22], 4
      %s182 = int_to_ptr.vmem [resolvable:$true] %s181
      %187 = dma.hbm_to_vmem [thread:$0]  %s17, 2048, %s182, [#allocation23], 128, 128, 8
    $region73: #{tpu_custom_call.1} parent=1 // pred_fallthru
      _
    // Predicated region
    $region74: #{tpu_custom_call.1} parent=1 // pred_check
      _
    $region75: #{tpu_custom_call.1} parent=1 // pred_check_branch
      %189 = sbr.rel (0) target = $region77
    $region76: #{tpu_custom_call.1} parent=1 // pred_region
      _
    $region77: #{tpu_custom_call.1} parent=1 // pred_fallthru
      _
    // Predicated region
    $region78: #{tpu_custom_call.1} parent=1 // pred_check
      _
    $region79: #{tpu_custom_call.1} parent=1 // pred_check_branch
      %191 = sbr.rel (0) target = $region81
    $region80: #{tpu_custom_call.1} parent=1 // pred_region
      %192 = dma.done [#allocation5], 256
    $region81: #{tpu_custom_call.1} parent=1 // pred_fallthru
      _
    // Predicated region
    $region82: #{tpu_custom_call.1} parent=1 // pred_check
      _
    $region83: #{tpu_custom_call.1} parent=1 // pred_check_branch
      %194 = sbr.rel (0) target = $region85
    $region84: #{tpu_custom_call.1} parent=1 // pred_region
      %195 = dma.done [#allocation8], 8192
    $region85: #{tpu_custom_call.1} parent=1 // pred_fallthru
      _
    // Predicated region
    $region86: #{tpu_custom_call.1} parent=1 // pred_check
      _
    $region87: #{tpu_custom_call.1} parent=1 // pred_check_branch
      %197 = sbr.rel (0) target = $region89
    $region88: #{tpu_custom_call.1} parent=1 // pred_region
      %198 = dma.done [#allocation8], 8192
    $region89: #{tpu_custom_call.1} parent=1 // pred_fallthru
      _
    // Predicated region
    $region90: #{tpu_custom_call.1} parent=1 // pred_check
      _
    $region91: #{tpu_custom_call.1} parent=1 // pred_check_branch
      %200 = sbr.rel (0) target = $region93
    $region92: #{tpu_custom_call.1} parent=1 // pred_region
      %201 = dma.done [#allocation11], 8192
    $region93: #{tpu_custom_call.1} parent=1 // pred_fallthru
      _
    // Predicated region
    $region94: #{tpu_custom_call.1} parent=1 // pred_check
      _
    $region95: #{tpu_custom_call.1} parent=1 // pred_check_branch
      %203 = sbr.rel (0) target = $region97
    $region96: #{tpu_custom_call.1} parent=1 // pred_region
      %204 = dma.done [#allocation11], 8192
    $region97: #{tpu_custom_call.1} parent=1 // pred_fallthru
      _
    // Predicated region
    $region98: #{tpu_custom_call.1} parent=1 // pred_check
      _
    $region99: #{tpu_custom_call.1} parent=1 // pred_check_branch
      %206 = sbr.rel (0) target = $region101
    $region100: #{tpu_custom_call.1} parent=1 // pred_region
      %207 = dma.done [#allocation14], 8192
    $region101: #{tpu_custom_call.1} parent=1 // pred_fallthru
      _
    // Predicated region
    $region102: #{tpu_custom_call.1} parent=1 // pred_check
      _
    $region103: #{tpu_custom_call.1} parent=1 // pred_check_branch
      %209 = sbr.rel (0) target = $region105
    $region104: #{tpu_custom_call.1} parent=1 // pred_region
      %210 = dma.done [#allocation14], 8192
    $region105: #{tpu_custom_call.1} parent=1 // pred_fallthru
      _
    // Predicated region
    $region106: #{tpu_custom_call.1} parent=1 // pred_check
      _
    $region107: #{tpu_custom_call.1} parent=1 // pred_check_branch
      %212 = sbr.rel (0) target = $region109
    $region108: #{tpu_custom_call.1} parent=1 // pred_region
      %213 = dma.done [#allocation17], 8192
    $region109: #{tpu_custom_call.1} parent=1 // pred_fallthru
      _
    // Predicated region
    $region110: #{tpu_custom_call.1} parent=1 // pred_check
      _
    $region111: #{tpu_custom_call.1} parent=1 // pred_check_branch
      %215 = sbr.rel (0) target = $region113
    $region112: #{tpu_custom_call.1} parent=1 // pred_region
      %216 = dma.done [#allocation17], 8192
    $region113: #{tpu_custom_call.1} parent=1 // pred_fallthru
      _
    // Predicated region
    $region114: #{tpu_custom_call.1} parent=1 // pred_check
      _
    $region115: #{tpu_custom_call.1} parent=1 // pred_check_branch
      %218 = sbr.rel (0) target = $region117
    $region116: #{tpu_custom_call.1} parent=1 // pred_region
      %219 = dma.done [#allocation20], 4096
    $region117: #{tpu_custom_call.1} parent=1 // pred_fallthru
      _
    // Predicated region
    $region118: #{tpu_custom_call.1} parent=1 // pred_check
      _
    $region119: #{tpu_custom_call.1} parent=1 // pred_check_branch
      %221 = sbr.rel (0) target = $region121
    $region120: #{tpu_custom_call.1} parent=1 // pred_region
      %222 = dma.done [#allocation20], 4096
    $region121: #{tpu_custom_call.1} parent=1 // pred_fallthru
      _
    // Predicated region
    $region122: #{tpu_custom_call.1} parent=1 // pred_check
      _
    $region123: #{tpu_custom_call.1} parent=1 // pred_check_branch
      %224 = sbr.rel (0) target = $region125
    $region124: #{tpu_custom_call.1} parent=1 // pred_region
      %225 = dma.done [#allocation23], 2048
    $region125: #{tpu_custom_call.1} parent=1 // pred_fallthru
      _
    %v226 = vld [vmem:[#allocation4] sm:$0xff]
    %v227 = vld [vmem:[#allocation4 + $0x8] sm:$0xff]
    %v228 = vld [vmem:[#allocation7] sm:$0xff]
    %v229 = vld [vmem:[#allocation7 + $0x8] sm:$0xff]
    %v230 = vld [vmem:[#allocation7 + $0x10] sm:$0xff]
    %v231 = vld [vmem:[#allocation7 + $0x18] sm:$0xff]
    %v232 = vld [vmem:[#allocation7 + $0x20] sm:$0xff]
    %v233 = vld [vmem:[#allocation7 + $0x28] sm:$0xff]
    %v234 = vld [vmem:[#allocation7 + $0x30] sm:$0xff]
    %v235 = vld [vmem:[#allocation7 + $0x38] sm:$0xff]
    %v236 = vld [vmem:[#allocation7 + $0x40] sm:$0xff]
    %v237 = vld [vmem:[#allocation7 + $0x48] sm:$0xff]
    %v238 = vld [vmem:[#allocation7 + $0x50] sm:$0xff]
    %v239 = vld [vmem:[#allocation7 + $0x58] sm:$0xff]
    %v240 = vld [vmem:[#allocation7 + $0x60] sm:$0xff]
    %v241 = vld [vmem:[#allocation7 + $0x68] sm:$0xff]
    %v242 = vld [vmem:[#allocation7 + $0x70] sm:$0xff]
    %v243 = vld [vmem:[#allocation7 + $0x78] sm:$0xff]
    %v244 = vld [vmem:[#allocation7 + $0x80] sm:$0xff]
    %v245 = vld [vmem:[#allocation7 + $0x88] sm:$0xff]
    %v246 = vld [vmem:[#allocation7 + $0x90] sm:$0xff]
    %v247 = vld [vmem:[#allocation7 + $0x98] sm:$0xff]
    %v248 = vld [vmem:[#allocation7 + $0xa0] sm:$0xff]
    %v249 = vld [vmem:[#allocation7 + $0xa8] sm:$0xff]
    %v250 = vld [vmem:[#allocation7 + $0xb0] sm:$0xff]
    %v251 = vld [vmem:[#allocation7 + $0xb8] sm:$0xff]
    %v252 = vld [vmem:[#allocation7 + $0xc0] sm:$0xff]
    %v253 = vld [vmem:[#allocation7 + $0xc8] sm:$0xff]
    %v254 = vld [vmem:[#allocation7 + $0xd0] sm:$0xff]
    %v255 = vld [vmem:[#allocation7 + $0xd8] sm:$0xff]
    %v256 = vld [vmem:[#allocation7 + $0xe0] sm:$0xff]
    %v257 = vld [vmem:[#allocation7 + $0xe8] sm:$0xff]
    %v258 = vld [vmem:[#allocation7 + $0xf0] sm:$0xff]
    %v259 = vld [vmem:[#allocation7 + $0xf8] sm:$0xff]
    %v260 = vld [vmem:[#allocation7 + $0x100] sm:$0xff]
    %v261 = vld [vmem:[#allocation7 + $0x108] sm:$0xff]
    %v262 = vld [vmem:[#allocation7 + $0x110] sm:$0xff]
    %v263 = vld [vmem:[#allocation7 + $0x118] sm:$0xff]
    %v264 = vld [vmem:[#allocation7 + $0x120] sm:$0xff]
    %v265 = vld [vmem:[#allocation7 + $0x128] sm:$0xff]
    %v266 = vld [vmem:[#allocation7 + $0x130] sm:$0xff]
    %v267 = vld [vmem:[#allocation7 + $0x138] sm:$0xff]
    %v268 = vld [vmem:[#allocation7 + $0x140] sm:$0xff]
    %v269 = vld [vmem:[#allocation7 + $0x148] sm:$0xff]
    %v270 = vld [vmem:[#allocation7 + $0x150] sm:$0xff]
    %v271 = vld [vmem:[#allocation7 + $0x158] sm:$0xff]
    %v272 = vld [vmem:[#allocation7 + $0x160] sm:$0xff]
    %v273 = vld [vmem:[#allocation7 + $0x168] sm:$0xff]
    %v274 = vld [vmem:[#allocation7 + $0x170] sm:$0xff]
    %v275 = vld [vmem:[#allocation7 + $0x178] sm:$0xff]
    %v276 = vld [vmem:[#allocation7 + $0x180] sm:$0xff]
    %v277 = vld [vmem:[#allocation7 + $0x188] sm:$0xff]
    %v278 = vld [vmem:[#allocation7 + $0x190] sm:$0xff]
    %v279 = vld [vmem:[#allocation7 + $0x198] sm:$0xff]
    %v280 = vld [vmem:[#allocation7 + $0x1a0] sm:$0xff]
    %v281 = vld [vmem:[#allocation7 + $0x1a8] sm:$0xff]
    %v282 = vld [vmem:[#allocation7 + $0x1b0] sm:$0xff]
    %v283 = vld [vmem:[#allocation7 + $0x1b8] sm:$0xff]
    %v284 = vld [vmem:[#allocation7 + $0x1c0] sm:$0xff]
    %v285 = vld [vmem:[#allocation7 + $0x1c8] sm:$0xff]
    %v286 = vld [vmem:[#allocation7 + $0x1d0] sm:$0xff]
    %v287 = vld [vmem:[#allocation7 + $0x1d8] sm:$0xff]
    %v288 = vld [vmem:[#allocation7 + $0x1e0] sm:$0xff]
    %v289 = vld [vmem:[#allocation7 + $0x1e8] sm:$0xff]
    %v290 = vld [vmem:[#allocation7 + $0x1f0] sm:$0xff]
    %v291 = vld [vmem:[#allocation7 + $0x1f8] sm:$0xff]
    %v292 = vld [vmem:[%s3] sm:$0xf]
    %v294 = vlaneseq
    %v295 = vshrl.u32 %v294, 7
    %v296 = vsub.s32 0, %v295
    %v297 = vrot.slane %v292, %v296
    %v298 = vlaneseq
    %v299 = vshrl.u32 %v298, 7
    %v300 = vsub.s32 1, %v299
    %v301 = vrot.slane %v292, %v300
    %v302 = vlaneseq
    %v303 = vshrl.u32 %v302, 7
    %v304 = vsub.s32 2, %v303
    %v305 = vrot.slane %v292, %v304
    %v306 = vlaneseq
    %v307 = vshrl.u32 %v306, 7
    %v308 = vsub.s32 3, %v307
    %v309 = vrot.slane %v292, %v308
    %314 = vmatprep.subr.mxu0 %v229
    %315 = vmatpush1.msra.mxu0 %v228
    %316 = vmatprep.subr.mxu0 %v233
    %317 = vmatpush1.msra.mxu0 %v232
    %318 = vmatprep.subr.mxu0 %v237
    %319 = vmatpush1.msra.mxu0 %v236
    %320 = vmatprep.subr.mxu0 %v241
    %321 = vmatpush1.msra.mxu0 %v240
    %322 = vmatprep.subr.mxu0 %v245
    %323 = vmatpush1.msra.mxu0 %v244
    %324 = vmatprep.subr.mxu0 %v249
    %325 = vmatpush1.msra.mxu0 %v248
    %326 = vmatprep.subr.mxu0 %v253
    %327 = vmatpush1.msra.mxu0 %v252
    %328 = vmatprep.subr.mxu0 %v257
    %329 = vmatpush1.msra.mxu0 %v256
    %330 = vmatprep.subr.mxu0 %v261
    %331 = vmatpush1.msra.mxu0 %v260
    %332 = vmatprep.subr.mxu0 %v265
    %333 = vmatpush1.msra.mxu0 %v264
    %334 = vmatprep.subr.mxu0 %v269
    %335 = vmatpush1.msra.mxu0 %v268
    %336 = vmatprep.subr.mxu0 %v273
    %337 = vmatpush1.msra.mxu0 %v272
    %338 = vmatprep.subr.mxu0 %v277
    %339 = vmatpush1.msra.mxu0 %v276
    %340 = vmatprep.subr.mxu0 %v281
    %341 = vmatpush1.msra.mxu0 %v280
    %342 = vmatprep.subr.mxu0 %v285
    %343 = vmatpush1.msra.mxu0 %v284
    %344 = vmatprep.subr.mxu0 %v289
    %345 = vmatpush1.msra.mxu0 %v288
    %346 = vmatprep.subr.mxu0 0.0
    %347 = vmatpush1.msra.mxu0 0.0
    %348 = vmatprep.subr.mxu0 0.0
    %349 = vmatpush1.msra.mxu0 0.0
    %350 = vmatprep.subr.mxu0 0.0
    %351 = vmatpush1.msra.mxu0 0.0
    %352 = vmatprep.subr.mxu0 0.0
    %353 = vmatpush1.msra.mxu0 0.0
    %354 = vmatprep.subr.mxu0 0.0
    %355 = vmatpush1.msra.mxu0 0.0
    %356 = vmatprep.subr.mxu0 0.0
    %357 = vmatpush1.msra.mxu0 0.0
    %358 = vmatprep.subr.mxu0 0.0
    %359 = vmatpush1.msra.mxu0 0.0
    %360 = vmatprep.subr.mxu0 0.0
    %361 = vmatpush1.msra.mxu0 0.0
    %362 = vmatprep.subr.mxu0 0.0
    %363 = vmatpush1.msra.mxu0 0.0
    %364 = vmatprep.subr.mxu0 0.0
    %365 = vmatpush1.msra.mxu0 0.0
    %366 = vmatprep.subr.mxu0 0.0
    %367 = vmatpush1.msra.mxu0 0.0
    %368 = vmatprep.subr.mxu0 0.0
    %369 = vmatpush1.msra.mxu0 0.0
    %370 = vmatprep.subr.mxu0 0.0
    %371 = vmatpush1.msra.mxu0 0.0
    %372 = vmatprep.subr.mxu0 0.0
    %373 = vmatpush1.msra.mxu0 0.0
    %374 = vmatprep.subr.mxu0 0.0
    %375 = vmatpush1.msra.mxu0 0.0
    %376 = vmatprep.subr.mxu0 0.0
    %377 = vmatpush1.msra.mxu0 0.0
    %378 = vmatprep.mubr.f32.mxu0 0.0
    %379 = vmatmul.mubr.f32.gmra.mrb[0].mxu0 %v226
    %v380 = vpop.f32.mrb[0].mxu0
    %v381 = vadd.f32 %v297, %v380
    %v382 = vpop.f32.mrb[0].mxu0
    %v383 = vadd.f32 %v301, %v382
    %384 = vmatprep.mubr.f32.mxu0 0.0
    %385 = vmatmul.mubr.f32.gmra.mrb[0].mxu0 %v227
    %v386 = vpop.f32.mrb[0].mxu0
    %v387 = vadd.f32 %v297, %v386
    %v388 = vpop.f32.mrb[0].mxu0
    %v389 = vadd.f32 %v301, %v388
    %390 = vdwg.mxu0
    %391 = vmatprep.subr.mxu0 %v231
    %392 = vmatpush1.msra.mxu0 %v230
    %393 = vmatprep.subr.mxu0 %v235
    %394 = vmatpush1.msra.mxu0 %v234
    %395 = vmatprep.subr.mxu0 %v239
    %396 = vmatpush1.msra.mxu0 %v238
    %397 = vmatprep.subr.mxu0 %v243
    %398 = vmatpush1.msra.mxu0 %v242
    %399 = vmatprep.subr.mxu0 %v247
    %400 = vmatpush1.msra.mxu0 %v246
    %401 = vmatprep.subr.mxu0 %v251
    %402 = vmatpush1.msra.mxu0 %v250
    %403 = vmatprep.subr.mxu0 %v255
    %404 = vmatpush1.msra.mxu0 %v254
    %405 = vmatprep.subr.mxu0 %v259
    %406 = vmatpush1.msra.mxu0 %v258
    %407 = vmatprep.subr.mxu0 %v263
    %408 = vmatpush1.msra.mxu0 %v262
    %409 = vmatprep.subr.mxu0 %v267
    %410 = vmatpush1.msra.mxu0 %v266
    %411 = vmatprep.subr.mxu0 %v271
    %412 = vmatpush1.msra.mxu0 %v270
    %413 = vmatprep.subr.mxu0 %v275
    %414 = vmatpush1.msra.mxu0 %v274
    %415 = vmatprep.subr.mxu0 %v279
    %416 = vmatpush1.msra.mxu0 %v278
    %417 = vmatprep.subr.mxu0 %v283
    %418 = vmatpush1.msra.mxu0 %v282
    %419 = vmatprep.subr.mxu0 %v287
    %420 = vmatpush1.msra.mxu0 %v286
    %421 = vmatprep.subr.mxu0 %v291
    %422 = vmatpush1.msra.mxu0 %v290
    %423 = vmatprep.subr.mxu0 0.0
    %424 = vmatpush1.msra.mxu0 0.0
    %425 = vmatprep.subr.mxu0 0.0
    %426 = vmatpush1.msra.mxu0 0.0
    %427 = vmatprep.subr.mxu0 0.0
    %428 = vmatpush1.msra.mxu0 0.0
    %429 = vmatprep.subr.mxu0 0.0
    %430 = vmatpush1.msra.mxu0 0.0
    %431 = vmatprep.subr.mxu0 0.0
    %432 = vmatpush1.msra.mxu0 0.0
    %433 = vmatprep.subr.mxu0 0.0
    %434 = vmatpush1.msra.mxu0 0.0
    %435 = vmatprep.subr.mxu0 0.0
    %436 = vmatpush1.msra.mxu0 0.0
    %437 = vmatprep.subr.mxu0 0.0
    %438 = vmatpush1.msra.mxu0 0.0
    %439 = vmatprep.subr.mxu0 0.0
    %440 = vmatpush1.msra.mxu0 0.0
    %441 = vmatprep.subr.mxu0 0.0
    %442 = vmatpush1.msra.mxu0 0.0
    %443 = vmatprep.subr.mxu0 0.0
    %444 = vmatpush1.msra.mxu0 0.0
    %445 = vmatprep.subr.mxu0 0.0
    %446 = vmatpush1.msra.mxu0 0.0
    %447 = vmatprep.subr.mxu0 0.0
    %448 = vmatpush1.msra.mxu0 0.0
    %449 = vmatprep.subr.mxu0 0.0
    %450 = vmatpush1.msra.mxu0 0.0
    %451 = vmatprep.subr.mxu0 0.0
    %452 = vmatpush1.msra.mxu0 0.0
    %453 = vmatprep.subr.mxu0 0.0
    %454 = vmatpush1.msra.mxu0 0.0
    %455 = vmatprep.mubr.f32.mxu0 0.0
    %456 = vmatmul.mubr.f32.gmra.mrb[0].mxu0 %v226
    %v457 = vpop.f32.mrb[0].mxu0
    %v458 = vadd.f32 %v305, %v457
    %v459 = vpop.f32.mrb[0].mxu0
    %v460 = vadd.f32 %v309, %v459
    %461 = vmatprep.mubr.f32.mxu0 0.0
    %462 = vmatmul.mubr.f32.gmra.mrb[0].mxu0 %v227
    %v463 = vpop.f32.mrb[0].mxu0
    %v464 = vadd.f32 %v305, %v463
    %v465 = vpop.f32.mrb[0].mxu0
    %v466 = vadd.f32 %v309, %v465
    %467 = vdwg.mxu0
    %468 = vst [vmem:[#allocation3] sm:$0xff] %v381
    %469 = vst [vmem:[#allocation3 + $0x8] sm:$0xff] %v383
    %470 = vst [vmem:[#allocation3 + $0x10] sm:$0xff] %v458
    %471 = vst [vmem:[#allocation3 + $0x18] sm:$0xff] %v460
    %472 = vst [vmem:[#allocation3 + $0x20] sm:$0xff] %v387
    %473 = vst [vmem:[#allocation3 + $0x28] sm:$0xff] %v389
    %474 = vst [vmem:[#allocation3 + $0x30] sm:$0xff] %v464
    %475 = vst [vmem:[#allocation3 + $0x38] sm:$0xff] %v466
    %v476 = vld [vmem:[#allocation3] sm:$0x3]
    %v477 = vld [vmem:[#allocation3 + $0x8] sm:$0x3]
    %v478 = vld [vmem:[#allocation3 + $0x10] sm:$0x3]
    %v479 = vld [vmem:[#allocation3 + $0x18] sm:$0x3]
    %v480 = vld [vmem:[#allocation9] sm:$0xff]
    %v481 = vld [vmem:[#allocation9 + $0x8] sm:$0xff]
    %v482 = vld [vmem:[#allocation9 + $0x10] sm:$0xff]
    %v483 = vld [vmem:[#allocation9 + $0x18] sm:$0xff]
    %v484 = vld [vmem:[#allocation9 + $0x20] sm:$0xff]
    %v485 = vld [vmem:[#allocation9 + $0x28] sm:$0xff]
    %v486 = vld [vmem:[#allocation9 + $0x30] sm:$0xff]
    %v487 = vld [vmem:[#allocation9 + $0x38] sm:$0xff]
    %v488 = vld [vmem:[#allocation9 + $0x40] sm:$0xff]
    %v489 = vld [vmem:[#allocation9 + $0x48] sm:$0xff]
    %v490 = vld [vmem:[#allocation9 + $0x50] sm:$0xff]
    %v491 = vld [vmem:[#allocation9 + $0x58] sm:$0xff]
    %v492 = vld [vmem:[#allocation9 + $0x60] sm:$0xff]
    %v493 = vld [vmem:[#allocation9 + $0x68] sm:$0xff]
    %v494 = vld [vmem:[#allocation9 + $0x70] sm:$0xff]
    %v495 = vld [vmem:[#allocation9 + $0x78] sm:$0xff]
    %v496 = vld [vmem:[#allocation9 + $0x80] sm:$0xff]
    %v497 = vld [vmem:[#allocation9 + $0x88] sm:$0xff]
    %v498 = vld [vmem:[#allocation9 + $0x90] sm:$0xff]
    %v499 = vld [vmem:[#allocation9 + $0x98] sm:$0xff]
    %v500 = vld [vmem:[#allocation9 + $0xa0] sm:$0xff]
    %v501 = vld [vmem:[#allocation9 + $0xa8] sm:$0xff]
    %v502 = vld [vmem:[#allocation9 + $0xb0] sm:$0xff]
    %v503 = vld [vmem:[#allocation9 + $0xb8] sm:$0xff]
    %v504 = vld [vmem:[#allocation9 + $0xc0] sm:$0xff]
    %v505 = vld [vmem:[#allocation9 + $0xc8] sm:$0xff]
    %v506 = vld [vmem:[#allocation9 + $0xd0] sm:$0xff]
    %v507 = vld [vmem:[#allocation9 + $0xd8] sm:$0xff]
    %v508 = vld [vmem:[#allocation9 + $0xe0] sm:$0xff]
    %v509 = vld [vmem:[#allocation9 + $0xe8] sm:$0xff]
    %v510 = vld [vmem:[#allocation9 + $0xf0] sm:$0xff]
    %v511 = vld [vmem:[#allocation9 + $0xf8] sm:$0xff]
    %v512 = vld [vmem:[#allocation9 + $0x100] sm:$0xff]
    %v513 = vld [vmem:[#allocation9 + $0x108] sm:$0xff]
    %v514 = vld [vmem:[#allocation9 + $0x110] sm:$0xff]
    %v515 = vld [vmem:[#allocation9 + $0x118] sm:$0xff]
    %v516 = vld [vmem:[#allocation9 + $0x120] sm:$0xff]
    %v517 = vld [vmem:[#allocation9 + $0x128] sm:$0xff]
    %v518 = vld [vmem:[#allocation9 + $0x130] sm:$0xff]
    %v519 = vld [vmem:[#allocation9 + $0x138] sm:$0xff]
    %v520 = vld [vmem:[#allocation9 + $0x140] sm:$0xff]
    %v521 = vld [vmem:[#allocation9 + $0x148] sm:$0xff]
    %v522 = vld [vmem:[#allocation9 + $0x150] sm:$0xff]
    %v523 = vld [vmem:[#allocation9 + $0x158] sm:$0xff]
    %v524 = vld [vmem:[#allocation9 + $0x160] sm:$0xff]
    %v525 = vld [vmem:[#allocation9 + $0x168] sm:$0xff]
    %v526 = vld [vmem:[#allocation9 + $0x170] sm:$0xff]
    %v527 = vld [vmem:[#allocation9 + $0x178] sm:$0xff]
    %v528 = vld [vmem:[#allocation9 + $0x180] sm:$0xff]
    %v529 = vld [vmem:[#allocation9 + $0x188] sm:$0xff]
    %v530 = vld [vmem:[#allocation9 + $0x190] sm:$0xff]
    %v531 = vld [vmem:[#allocation9 + $0x198] sm:$0xff]
    %v532 = vld [vmem:[#allocation9 + $0x1a0] sm:$0xff]
    %v533 = vld [vmem:[#allocation9 + $0x1a8] sm:$0xff]
    %v534 = vld [vmem:[#allocation9 + $0x1b0] sm:$0xff]
    %v535 = vld [vmem:[#allocation9 + $0x1b8] sm:$0xff]
    %v536 = vld [vmem:[#allocation9 + $0x1c0] sm:$0xff]
    %v537 = vld [vmem:[#allocation9 + $0x1c8] sm:$0xff]
    %v538 = vld [vmem:[#allocation9 + $0x1d0] sm:$0xff]
    %v539 = vld [vmem:[#allocation9 + $0x1d8] sm:$0xff]
    %v540 = vld [vmem:[#allocation9 + $0x1e0] sm:$0xff]
    %v541 = vld [vmem:[#allocation9 + $0x1e8] sm:$0xff]
    %v542 = vld [vmem:[#allocation9 + $0x1f0] sm:$0xff]
    %v543 = vld [vmem:[#allocation9 + $0x1f8] sm:$0xff]
    %544 = vmatprep.subr.mxu0 %v481
    %545 = vmatpush1.msra.mxu0 %v480
    %546 = vmatprep.subr.mxu0 %v485
    %547 = vmatpush1.msra.mxu0 %v484
    %548 = vmatprep.subr.mxu0 %v489
    %549 = vmatpush1.msra.mxu0 %v488
    %550 = vmatprep.subr.mxu0 %v493
    %551 = vmatpush1.msra.mxu0 %v492
    %552 = vmatprep.subr.mxu0 %v497
    %553 = vmatpush1.msra.mxu0 %v496
    %554 = vmatprep.subr.mxu0 %v501
    %555 = vmatpush1.msra.mxu0 %v500
    %556 = vmatprep.subr.mxu0 %v505
    %557 = vmatpush1.msra.mxu0 %v504
    %558 = vmatprep.subr.mxu0 %v509
    %559 = vmatpush1.msra.mxu0 %v508
    %560 = vmatprep.subr.mxu0 %v513
    %561 = vmatpush1.msra.mxu0 %v512
    %562 = vmatprep.subr.mxu0 %v517
    %563 = vmatpush1.msra.mxu0 %v516
    %564 = vmatprep.subr.mxu0 %v521
    %565 = vmatpush1.msra.mxu0 %v520
    %566 = vmatprep.subr.mxu0 %v525
    %567 = vmatpush1.msra.mxu0 %v524
    %568 = vmatprep.subr.mxu0 %v529
    %569 = vmatpush1.msra.mxu0 %v528
    %570 = vmatprep.subr.mxu0 %v533
    %571 = vmatpush1.msra.mxu0 %v532
    %572 = vmatprep.subr.mxu0 %v537
    %573 = vmatpush1.msra.mxu0 %v536
    %574 = vmatprep.subr.mxu0 %v541
    %575 = vmatpush1.msra.mxu0 %v540
    %576 = vmatprep.subr.mxu0 0.0
    %577 = vmatpush1.msra.mxu0 0.0
    %578 = vmatprep.subr.mxu0 0.0
    %579 = vmatpush1.msra.mxu0 0.0
    %580 = vmatprep.subr.mxu0 0.0
    %581 = vmatpush1.msra.mxu0 0.0
    %582 = vmatprep.subr.mxu0 0.0
    %583 = vmatpush1.msra.mxu0 0.0
    %584 = vmatprep.subr.mxu0 0.0
    %585 = vmatpush1.msra.mxu0 0.0
    %586 = vmatprep.subr.mxu0 0.0
    %587 = vmatpush1.msra.mxu0 0.0
    %588 = vmatprep.subr.mxu0 0.0
    %589 = vmatpush1.msra.mxu0 0.0
    %590 = vmatprep.subr.mxu0 0.0
    %591 = vmatpush1.msra.mxu0 0.0
    %592 = vmatprep.subr.mxu0 0.0
    %593 = vmatpush1.msra.mxu0 0.0
    %594 = vmatprep.subr.mxu0 0.0
    %595 = vmatpush1.msra.mxu0 0.0
    %596 = vmatprep.subr.mxu0 0.0
    %597 = vmatpush1.msra.mxu0 0.0
    %598 = vmatprep.subr.mxu0 0.0
    %599 = vmatpush1.msra.mxu0 0.0
    %600 = vmatprep.subr.mxu0 0.0
    %601 = vmatpush1.msra.mxu0 0.0
    %602 = vmatprep.subr.mxu0 0.0
    %603 = vmatpush1.msra.mxu0 0.0
    %604 = vmatprep.subr.mxu0 0.0
    %605 = vmatpush1.msra.mxu0 0.0
    %606 = vmatprep.subr.mxu0 0.0
    %607 = vmatpush1.msra.mxu0 0.0
    %608 = vmatprep.mubr.f32.mxu0 0.0
    %609 = vmatmul.mubr.f32.gmra.mrb[0].mxu0 0.0
    %v610 = vpop.f32.mrb[0].mxu0
    %v611 = vadd.f32 0.0, %v610
    %v612 = vpop.f32.mrb[0].mxu0
    %v613 = vadd.f32 0.0, %v612
    %614 = vdwg.mxu0
    %615 = vmatprep.subr.mxu0 %v483
    %616 = vmatpush1.msra.mxu0 %v482
    %617 = vmatprep.subr.mxu0 %v487
    %618 = vmatpush1.msra.mxu0 %v486
    %619 = vmatprep.subr.mxu0 %v491
    %620 = vmatpush1.msra.mxu0 %v490
    %621 = vmatprep.subr.mxu0 %v495
    %622 = vmatpush1.msra.mxu0 %v494
    %623 = vmatprep.subr.mxu0 %v499
    %624 = vmatpush1.msra.mxu0 %v498
    %625 = vmatprep.subr.mxu0 %v503
    %626 = vmatpush1.msra.mxu0 %v502
    %627 = vmatprep.subr.mxu0 %v507
    %628 = vmatpush1.msra.mxu0 %v506
    %629 = vmatprep.subr.mxu0 %v511
    %630 = vmatpush1.msra.mxu0 %v510
    %631 = vmatprep.subr.mxu0 %v515
    %632 = vmatpush1.msra.mxu0 %v514
    %633 = vmatprep.subr.mxu0 %v519
    %634 = vmatpush1.msra.mxu0 %v518
    %635 = vmatprep.subr.mxu0 %v523
    %636 = vmatpush1.msra.mxu0 %v522
    %637 = vmatprep.subr.mxu0 %v527
    %638 = vmatpush1.msra.mxu0 %v526
    %639 = vmatprep.subr.mxu0 %v531
    %640 = vmatpush1.msra.mxu0 %v530
    %641 = vmatprep.subr.mxu0 %v535
    %642 = vmatpush1.msra.mxu0 %v534
    %643 = vmatprep.subr.mxu0 %v539
    %644 = vmatpush1.msra.mxu0 %v538
    %645 = vmatprep.subr.mxu0 %v543
    %646 = vmatpush1.msra.mxu0 %v542
    %647 = vmatprep.subr.mxu0 0.0
    %648 = vmatpush1.msra.mxu0 0.0
    %649 = vmatprep.subr.mxu0 0.0
    %650 = vmatpush1.msra.mxu0 0.0
    %651 = vmatprep.subr.mxu0 0.0
    %652 = vmatpush1.msra.mxu0 0.0
    %653 = vmatprep.subr.mxu0 0.0
    %654 = vmatpush1.msra.mxu0 0.0
    %655 = vmatprep.subr.mxu0 0.0
    %656 = vmatpush1.msra.mxu0 0.0
    %657 = vmatprep.subr.mxu0 0.0
    %658 = vmatpush1.msra.mxu0 0.0
    %659 = vmatprep.subr.mxu0 0.0
    %660 = vmatpush1.msra.mxu0 0.0
    %661 = vmatprep.subr.mxu0 0.0
    %662 = vmatpush1.msra.mxu0 0.0
    %663 = vmatprep.subr.mxu0 0.0
    %664 = vmatpush1.msra.mxu0 0.0
    %665 = vmatprep.subr.mxu0 0.0
    %666 = vmatpush1.msra.mxu0 0.0
    %667 = vmatprep.subr.mxu0 0.0
    %668 = vmatpush1.msra.mxu0 0.0
    %669 = vmatprep.subr.mxu0 0.0
    %670 = vmatpush1.msra.mxu0 0.0
    %671 = vmatprep.subr.mxu0 0.0
    %672 = vmatpush1.msra.mxu0 0.0
    %673 = vmatprep.subr.mxu0 0.0
    %674 = vmatpush1.msra.mxu0 0.0
    %675 = vmatprep.subr.mxu0 0.0
    %676 = vmatpush1.msra.mxu0 0.0
    %677 = vmatprep.subr.mxu0 0.0
    %678 = vmatpush1.msra.mxu0 0.0
    %679 = vmatprep.mubr.f32.mxu0 0.0
    %680 = vmatmul.mubr.f32.gmra.mrb[0].mxu0 0.0
    %v681 = vpop.f32.mrb[0].mxu0
    %v682 = vadd.f32 0.0, %v681
    %v683 = vpop.f32.mrb[0].mxu0
    %v684 = vadd.f32 0.0, %v683
    %685 = vdwg.mxu0
    %v686 = vadd.f32 %v476, %v611
    %v687 = vadd.f32 %v477, %v613
    %v688 = vadd.f32 %v478, %v682
    %v689 = vadd.f32 %v479, %v684
    %v690 = vxor.u32 %v686, 2147483648
    %v691 = vxor.u32 %v687, 2147483648
    %v692 = vxor.u32 %v688, 2147483648
    %v693 = vmul.f32 %v690, 1.442695
    %v694 = vpow.pop %v693
    %v695 = vmul.f32 %v691, 1.442695
    %v696 = vpow.pop %v695
    %v697 = vmul.f32 %v692, 1.442695
    %v698 = vpow.pop %v697
    %v699 = vadd.f32 %v694, 1.0
    %v700 = vadd.f32 %v696, 1.0
    %v701 = vadd.f32 %v698, 1.0
    %v702 = vrcp.pop %v699
    %v703 = vmul.f32 1.0, %v702
    %v704 = vrcp.pop %v700
    %v705 = vmul.f32 1.0, %v704
    %v706 = vrcp.pop %v701
    %v707 = vmul.f32 1.0, %v706
    %v708 = vtanh.pop %v689
    %v709 = vmul.f32 %v705, 0.0
    %v710 = vmul.f32 %v703, %v708
    %v711 = vadd.f32 %v709, %v710
    %v712 = vtanh.pop %v711
    %v713 = vmul.f32 %v707, %v712
    %714 = vst [vmem:[#allocation2] sm:$0x3] %v713
    %v715 = vld [vmem:[#allocation3] sm:$0xc]
    %v716 = vld [vmem:[#allocation3 + $0x8] sm:$0xc]
    %v717 = vld [vmem:[#allocation3 + $0x10] sm:$0xc]
    %v718 = vld [vmem:[#allocation3 + $0x18] sm:$0xc]
    %v719 = vld [vmem:[#allocation9] sm:$0xff]
    %v720 = vld [vmem:[#allocation9 + $0x8] sm:$0xff]
    %v721 = vld [vmem:[#allocation9 + $0x10] sm:$0xff]
    %v722 = vld [vmem:[#allocation9 + $0x18] sm:$0xff]
    %v723 = vld [vmem:[#allocation9 + $0x20] sm:$0xff]
    %v724 = vld [vmem:[#allocation9 + $0x28] sm:$0xff]
    %v725 = vld [vmem:[#allocation9 + $0x30] sm:$0xff]
    %v726 = vld [vmem:[#allocation9 + $0x38] sm:$0xff]
    %v727 = vld [vmem:[#allocation9 + $0x40] sm:$0xff]
    %v728 = vld [vmem:[#allocation9 + $0x48] sm:$0xff]
    %v729 = vld [vmem:[#allocation9 + $0x50] sm:$0xff]
    %v730 = vld [vmem:[#allocation9 + $0x58] sm:$0xff]
    %v731 = vld [vmem:[#allocation9 + $0x60] sm:$0xff]
    %v732 = vld [vmem:[#allocation9 + $0x68] sm:$0xff]
    %v733 = vld [vmem:[#allocation9 + $0x70] sm:$0xff]
    %v734 = vld [vmem:[#allocation9 + $0x78] sm:$0xff]
    %v735 = vld [vmem:[#allocation9 + $0x80] sm:$0xff]
    %v736 = vld [vmem:[#allocation9 + $0x88] sm:$0xff]
    %v737 = vld [vmem:[#allocation9 + $0x90] sm:$0xff]
    %v738 = vld [vmem:[#allocation9 + $0x98] sm:$0xff]
    %v739 = vld [vmem:[#allocation9 + $0xa0] sm:$0xff]
    %v740 = vld [vmem:[#allocation9 + $0xa8] sm:$0xff]
    %v741 = vld [vmem:[#allocation9 + $0xb0] sm:$0xff]
    %v742 = vld [vmem:[#allocation9 + $0xb8] sm:$0xff]
    %v743 = vld [vmem:[#allocation9 + $0xc0] sm:$0xff]
    %v744 = vld [vmem:[#allocation9 + $0xc8] sm:$0xff]
    %v745 = vld [vmem:[#allocation9 + $0xd0] sm:$0xff]
    %v746 = vld [vmem:[#allocation9 + $0xd8] sm:$0xff]
    %v747 = vld [vmem:[#allocation9 + $0xe0] sm:$0xff]
    %v748 = vld [vmem:[#allocation9 + $0xe8] sm:$0xff]
    %v749 = vld [vmem:[#allocation9 + $0xf0] sm:$0xff]
    %v750 = vld [vmem:[#allocation9 + $0xf8] sm:$0xff]
    %v751 = vld [vmem:[#allocation9 + $0x100] sm:$0xff]
    %v752 = vld [vmem:[#allocation9 + $0x108] sm:$0xff]
    %v753 = vld [vmem:[#allocation9 + $0x110] sm:$0xff]
    %v754 = vld [vmem:[#allocation9 + $0x118] sm:$0xff]
    %v755 = vld [vmem:[#allocation9 + $0x120] sm:$0xff]
    %v756 = vld [vmem:[#allocation9 + $0x128] sm:$0xff]
    %v757 = vld [vmem:[#allocation9 + $0x130] sm:$0xff]
    %v758 = vld [vmem:[#allocation9 + $0x138] sm:$0xff]
    %v759 = vld [vmem:[#allocation9 + $0x140] sm:$0xff]
    %v760 = vld [vmem:[#allocation9 + $0x148] sm:$0xff]
    %v761 = vld [vmem:[#allocation9 + $0x150] sm:$0xff]
    %v762 = vld [vmem:[#allocation9 + $0x158] sm:$0xff]
    %v763 = vld [vmem:[#allocation9 + $0x160] sm:$0xff]
    %v764 = vld [vmem:[#allocation9 + $0x168] sm:$0xff]
    %v765 = vld [vmem:[#allocation9 + $0x170] sm:$0xff]
    %v766 = vld [vmem:[#allocation9 + $0x178] sm:$0xff]
    %v767 = vld [vmem:[#allocation9 + $0x180] sm:$0xff]
    %v768 = vld [vmem:[#allocation9 + $0x188] sm:$0xff]
    %v769 = vld [vmem:[#allocation9 + $0x190] sm:$0xff]
    %v770 = vld [vmem:[#allocation9 + $0x198] sm:$0xff]
    %v771 = vld [vmem:[#allocation9 + $0x1a0] sm:$0xff]
    %v772 = vld [vmem:[#allocation9 + $0x1a8] sm:$0xff]
    %v773 = vld [vmem:[#allocation9 + $0x1b0] sm:$0xff]
    %v774 = vld [vmem:[#allocation9 + $0x1b8] sm:$0xff]
    %v775 = vld [vmem:[#allocation9 + $0x1c0] sm:$0xff]
    %v776 = vld [vmem:[#allocation9 + $0x1c8] sm:$0xff]
    %v777 = vld [vmem:[#allocation9 + $0x1d0] sm:$0xff]
    %v778 = vld [vmem:[#allocation9 + $0x1d8] sm:$0xff]
    %v779 = vld [vmem:[#allocation9 + $0x1e0] sm:$0xff]
    %v780 = vld [vmem:[#allocation9 + $0x1e8] sm:$0xff]
    %v781 = vld [vmem:[#allocation9 + $0x1f0] sm:$0xff]
    %v782 = vld [vmem:[#allocation9 + $0x1f8] sm:$0xff]
    %783 = vmatprep.subr.mxu0 %v720
    %784 = vmatpush1.msra.mxu0 %v719
    %785 = vmatprep.subr.mxu0 %v724
    %786 = vmatpush1.msra.mxu0 %v723
    %787 = vmatprep.subr.mxu0 %v728
    %788 = vmatpush1.msra.mxu0 %v727
    %789 = vmatprep.subr.mxu0 %v732
    %790 = vmatpush1.msra.mxu0 %v731
    %791 = vmatprep.subr.mxu0 %v736
    %792 = vmatpush1.msra.mxu0 %v735
    %793 = vmatprep.subr.mxu0 %v740
    %794 = vmatpush1.msra.mxu0 %v739
    %795 = vmatprep.subr.mxu0 %v744
    %796 = vmatpush1.msra.mxu0 %v743
    %797 = vmatprep.subr.mxu0 %v748
    %798 = vmatpush1.msra.mxu0 %v747
    %799 = vmatprep.subr.mxu0 %v752
    %800 = vmatpush1.msra.mxu0 %v751
    %801 = vmatprep.subr.mxu0 %v756
    %802 = vmatpush1.msra.mxu0 %v755
    %803 = vmatprep.subr.mxu0 %v760
    %804 = vmatpush1.msra.mxu0 %v759
    %805 = vmatprep.subr.mxu0 %v764
    %806 = vmatpush1.msra.mxu0 %v763
    %807 = vmatprep.subr.mxu0 %v768
    %808 = vmatpush1.msra.mxu0 %v767
    %809 = vmatprep.subr.mxu0 %v772
    %810 = vmatpush1.msra.mxu0 %v771
    %811 = vmatprep.subr.mxu0 %v776
    %812 = vmatpush1.msra.mxu0 %v775
    %813 = vmatprep.subr.mxu0 %v780
    %814 = vmatpush1.msra.mxu0 %v779
    %815 = vmatprep.subr.mxu0 0.0
    %816 = vmatpush1.msra.mxu0 0.0
    %817 = vmatprep.subr.mxu0 0.0
    %818 = vmatpush1.msra.mxu0 0.0
    %819 = vmatprep.subr.mxu0 0.0
    %820 = vmatpush1.msra.mxu0 0.0
    %821 = vmatprep.subr.mxu0 0.0
    %822 = vmatpush1.msra.mxu0 0.0
    %823 = vmatprep.subr.mxu0 0.0
    %824 = vmatpush1.msra.mxu0 0.0
    %825 = vmatprep.subr.mxu0 0.0
    %826 = vmatpush1.msra.mxu0 0.0
    %827 = vmatprep.subr.mxu0 0.0
    %828 = vmatpush1.msra.mxu0 0.0
    %829 = vmatprep.subr.mxu0 0.0
    %830 = vmatpush1.msra.mxu0 0.0
    %831 = vmatprep.subr.mxu0 0.0
    %832 = vmatpush1.msra.mxu0 0.0
    %833 = vmatprep.subr.mxu0 0.0
    %834 = vmatpush1.msra.mxu0 0.0
    %835 = vmatprep.subr.mxu0 0.0
    %836 = vmatpush1.msra.mxu0 0.0
    %837 = vmatprep.subr.mxu0 0.0
    %838 = vmatpush1.msra.mxu0 0.0
    %839 = vmatprep.subr.mxu0 0.0
    %840 = vmatpush1.msra.mxu0 0.0
    %841 = vmatprep.subr.mxu0 0.0
    %842 = vmatpush1.msra.mxu0 0.0
    %843 = vmatprep.subr.mxu0 0.0
    %844 = vmatpush1.msra.mxu0 0.0
    %845 = vmatprep.subr.mxu0 0.0
    %846 = vmatpush1.msra.mxu0 0.0
    %847 = vmatprep.mubr.f32.mxu0 0.0
    %848 = vmatmul.mubr.f32.gmra.mrb[0].mxu0 %v713
    %v849 = vpop.f32.mrb[0].mxu0
    %v850 = vadd.f32 0.0, %v849
    %v851 = vpop.f32.mrb[0].mxu0
    %v852 = vadd.f32 0.0, %v851
    %853 = vdwg.mxu0
    %854 = vmatprep.subr.mxu0 %v722
    %855 = vmatpush1.msra.mxu0 %v721
    %856 = vmatprep.subr.mxu0 %v726
    %857 = vmatpush1.msra.mxu0 %v725
    %858 = vmatprep.subr.mxu0 %v730
    %859 = vmatpush1.msra.mxu0 %v729
    %860 = vmatprep.subr.mxu0 %v734
    %861 = vmatpush1.msra.mxu0 %v733
    %862 = vmatprep.subr.mxu0 %v738
    %863 = vmatpush1.msra.mxu0 %v737
    %864 = vmatprep.subr.mxu0 %v742
    %865 = vmatpush1.msra.mxu0 %v741
    %866 = vmatprep.subr.mxu0 %v746
    %867 = vmatpush1.msra.mxu0 %v745
    %868 = vmatprep.subr.mxu0 %v750
    %869 = vmatpush1.msra.mxu0 %v749
    %870 = vmatprep.subr.mxu0 %v754
    %871 = vmatpush1.msra.mxu0 %v753
    %872 = vmatprep.subr.mxu0 %v758
    %873 = vmatpush1.msra.mxu0 %v757
    %874 = vmatprep.subr.mxu0 %v762
    %875 = vmatpush1.msra.mxu0 %v761
    %876 = vmatprep.subr.mxu0 %v766
    %877 = vmatpush1.msra.mxu0 %v765
    %878 = vmatprep.subr.mxu0 %v770
    %879 = vmatpush1.msra.mxu0 %v769
    %880 = vmatprep.subr.mxu0 %v774
    %881 = vmatpush1.msra.mxu0 %v773
    %882 = vmatprep.subr.mxu0 %v778
    %883 = vmatpush1.msra.mxu0 %v777
    %884 = vmatprep.subr.mxu0 %v782
    %885 = vmatpush1.msra.mxu0 %v781
    %886 = vmatprep.subr.mxu0 0.0
    %887 = vmatpush1.msra.mxu0 0.0
    %888 = vmatprep.subr.mxu0 0.0
    %889 = vmatpush1.msra.mxu0 0.0
    %890 = vmatprep.subr.mxu0 0.0
    %891 = vmatpush1.msra.mxu0 0.0
    %892 = vmatprep.subr.mxu0 0.0
    %893 = vmatpush1.msra.mxu0 0.0
    %894 = vmatprep.subr.mxu0 0.0
    %895 = vmatpush1.msra.mxu0 0.0
    %896 = vmatprep.subr.mxu0 0.0
    %897 = vmatpush1.msra.mxu0 0.0
    %898 = vmatprep.subr.mxu0 0.0
    %899 = vmatpush1.msra.mxu0 0.0
    %900 = vmatprep.subr.mxu0 0.0
    %901 = vmatpush1.msra.mxu0 0.0
    %902 = vmatprep.subr.mxu0 0.0
    %903 = vmatpush1.msra.mxu0 0.0
    %904 = vmatprep.subr.mxu0 0.0
    %905 = vmatpush1.msra.mxu0 0.0
    %906 = vmatprep.subr.mxu0 0.0
    %907 = vmatpush1.msra.mxu0 0.0
    %908 = vmatprep.subr.mxu0 0.0
    %909 = vmatpush1.msra.mxu0 0.0
    %910 = vmatprep.subr.mxu0 0.0
    %911 = vmatpush1.msra.mxu0 0.0
    %912 = vmatprep.subr.mxu0 0.0
    %913 = vmatpush1.msra.mxu0 0.0
    %914 = vmatprep.subr.mxu0 0.0
    %915 = vmatpush1.msra.mxu0 0.0
    %916 = vmatprep.subr.mxu0 0.0
    %917 = vmatpush1.msra.mxu0 0.0
    %918 = vmatprep.mubr.f32.mxu0 0.0
    %919 = vmatmul.mubr.f32.gmra.mrb[0].mxu0 %v713
    %v920 = vpop.f32.mrb[0].mxu0
    %v921 = vadd.f32 0.0, %v920
    %v922 = vpop.f32.mrb[0].mxu0
    %v923 = vadd.f32 0.0, %v922
    %924 = vdwg.mxu0
    %v929 = vrot.slane %v850, 6
    %v930 = vrot.slane %v852, 6
    %v931 = vrot.slane %v921, 6
    %v932 = vrot.slane %v923, 6
    %v937 = vadd.f32 %v715, %v929
    %v938 = vadd.f32 %v716, %v930
    %v939 = vadd.f32 %v717, %v931
    %v940 = vadd.f32 %v718, %v932
    %v941 = vxor.u32 %v937, 2147483648
    %v942 = vxor.u32 %v938, 2147483648
    %v943 = vxor.u32 %v939, 2147483648
    %v944 = vmul.f32 %v941, 1.442695
    %v945 = vpow.pop %v944
    %v946 = vmul.f32 %v942, 1.442695
    %v947 = vpow.pop %v946
    %v948 = vmul.f32 %v943, 1.442695
    %v949 = vpow.pop %v948
    %v950 = vadd.f32 %v945, 1.0
    %v951 = vadd.f32 %v947, 1.0
    %v952 = vadd.f32 %v949, 1.0
    %v953 = vrcp.pop %v950
    %v954 = vmul.f32 1.0, %v953
    %v955 = vrcp.pop %v951
    %v956 = vmul.f32 1.0, %v955
    %v957 = vrcp.pop %v952
    %v958 = vmul.f32 1.0, %v957
    %v959 = vtanh.pop %v940
    %v961 = vrot.slane %v711, 6
    %v963 = vmul.f32 %v956, %v961
    %v964 = vmul.f32 %v954, %v959
    %v965 = vadd.f32 %v963, %v964
    %v966 = vtanh.pop %v965
    %v967 = vmul.f32 %v958, %v966
    %968 = vst [vmem:[#allocation2] sm:$0xc] %v967
    %v969 = vld [vmem:[#allocation3] sm:$0x30]
    %v970 = vld [vmem:[#allocation3 + $0x8] sm:$0x30]
    %v971 = vld [vmem:[#allocation3 + $0x10] sm:$0x30]
    %v972 = vld [vmem:[#allocation3 + $0x18] sm:$0x30]
    %v973 = vld [vmem:[#allocation9] sm:$0xff]
    %v974 = vld [vmem:[#allocation9 + $0x8] sm:$0xff]
    %v975 = vld [vmem:[#allocation9 + $0x10] sm:$0xff]
    %v976 = vld [vmem:[#allocation9 + $0x18] sm:$0xff]
    %v977 = vld [vmem:[#allocation9 + $0x20] sm:$0xff]
    %v978 = vld [vmem:[#allocation9 + $0x28] sm:$0xff]
    %v979 = vld [vmem:[#allocation9 + $0x30] sm:$0xff]
    %v980 = vld [vmem:[#allocation9 + $0x38] sm:$0xff]
    %v981 = vld [vmem:[#allocation9 + $0x40] sm:$0xff]
    %v982 = vld [vmem:[#allocation9 + $0x48] sm:$0xff]
    %v983 = vld [vmem:[#allocation9 + $0x50] sm:$0xff]
    %v984 = vld [vmem:[#allocation9 + $0x58] sm:$0xff]
    %v985 = vld [vmem:[#allocation9 + $0x60] sm:$0xff]
    %v986 = vld [vmem:[#allocation9 + $0x68] sm:$0xff]
    %v987 = vld [vmem:[#allocation9 + $0x70] sm:$0xff]
    %v988 = vld [vmem:[#allocation9 + $0x78] sm:$0xff]
    %v989 = vld [vmem:[#allocation9 + $0x80] sm:$0xff]
    %v990 = vld [vmem:[#allocation9 + $0x88] sm:$0xff]
    %v991 = vld [vmem:[#allocation9 + $0x90] sm:$0xff]
    %v992 = vld [vmem:[#allocation9 + $0x98] sm:$0xff]
    %v993 = vld [vmem:[#allocation9 + $0xa0] sm:$0xff]
    %v994 = vld [vmem:[#allocation9 + $0xa8] sm:$0xff]
    %v995 = vld [vmem:[#allocation9 + $0xb0] sm:$0xff]
    %v996 = vld [vmem:[#allocation9 + $0xb8] sm:$0xff]
    %v997 = vld [vmem:[#allocation9 + $0xc0] sm:$0xff]
    %v998 = vld [vmem:[#allocation9 + $0xc8] sm:$0xff]
    %v999 = vld [vmem:[#allocation9 + $0xd0] sm:$0xff]
    %v1000 = vld [vmem:[#allocation9 + $0xd8] sm:$0xff]
    %v1001 = vld [vmem:[#allocation9 + $0xe0] sm:$0xff]
    %v1002 = vld [vmem:[#allocation9 + $0xe8] sm:$0xff]
    %v1003 = vld [vmem:[#allocation9 + $0xf0] sm:$0xff]
    %v1004 = vld [vmem:[#allocation9 + $0xf8] sm:$0xff]
    %v1005 = vld [vmem:[#allocation9 + $0x100] sm:$0xff]
    %v1006 = vld [vmem:[#allocation9 + $0x108] sm:$0xff]
    %v1007 = vld [vmem:[#allocation9 + $0x110] sm:$0xff]
    %v1008 = vld [vmem:[#allocation9 + $0x118] sm:$0xff]
    %v1009 = vld [vmem:[#allocation9 + $0x120] sm:$0xff]
    %v1010 = vld [vmem:[#allocation9 + $0x128] sm:$0xff]
    %v1011 = vld [vmem:[#allocation9 + $0x130] sm:$0xff]
    %v1012 = vld [vmem:[#allocation9 + $0x138] sm:$0xff]
    %v1013 = vld [vmem:[#allocation9 + $0x140] sm:$0xff]
    %v1014 = vld [vmem:[#allocation9 + $0x148] sm:$0xff]
    %v1015 = vld [vmem:[#allocation9 + $0x150] sm:$0xff]
    %v1016 = vld [vmem:[#allocation9 + $0x158] sm:$0xff]
    %v1017 = vld [vmem:[#allocation9 + $0x160] sm:$0xff]
    %v1018 = vld [vmem:[#allocation9 + $0x168] sm:$0xff]
    %v1019 = vld [vmem:[#allocation9 + $0x170] sm:$0xff]
    %v1020 = vld [vmem:[#allocation9 + $0x178] sm:$0xff]
    %v1021 = vld [vmem:[#allocation9 + $0x180] sm:$0xff]
    %v1022 = vld [vmem:[#allocation9 + $0x188] sm:$0xff]
    %v1023 = vld [vmem:[#allocation9 + $0x190] sm:$0xff]
    %v1024 = vld [vmem:[#allocation9 + $0x198] sm:$0xff]
    %v1025 = vld [vmem:[#allocation9 + $0x1a0] sm:$0xff]
    %v1026 = vld [vmem:[#allocation9 + $0x1a8] sm:$0xff]
    %v1027 = vld [vmem:[#allocation9 + $0x1b0] sm:$0xff]
    %v1028 = vld [vmem:[#allocation9 + $0x1b8] sm:$0xff]
    %v1029 = vld [vmem:[#allocation9 + $0x1c0] sm:$0xff]
    %v1030 = vld [vmem:[#allocation9 + $0x1c8] sm:$0xff]
    %v1031 = vld [vmem:[#allocation9 + $0x1d0] sm:$0xff]
    %v1032 = vld [vmem:[#allocation9 + $0x1d8] sm:$0xff]
    %v1033 = vld [vmem:[#allocation9 + $0x1e0] sm:$0xff]
    %v1034 = vld [vmem:[#allocation9 + $0x1e8] sm:$0xff]
    %v1035 = vld [vmem:[#allocation9 + $0x1f0] sm:$0xff]
    %v1036 = vld [vmem:[#allocation9 + $0x1f8] sm:$0xff]
    %v1038 = vrot.slane %v967, 2
    %1040 = vmatprep.subr.mxu0 %v974
    %1041 = vmatpush1.msra.mxu0 %v973
    %1042 = vmatprep.subr.mxu0 %v978
    %1043 = vmatpush1.msra.mxu0 %v977
    %1044 = vmatprep.subr.mxu0 %v982
    %1045 = vmatpush1.msra.mxu0 %v981
    %1046 = vmatprep.subr.mxu0 %v986
    %1047 = vmatpush1.msra.mxu0 %v985
    %1048 = vmatprep.subr.mxu0 %v990
    %1049 = vmatpush1.msra.mxu0 %v989
    %1050 = vmatprep.subr.mxu0 %v994
    %1051 = vmatpush1.msra.mxu0 %v993
    %1052 = vmatprep.subr.mxu0 %v998
    %1053 = vmatpush1.msra.mxu0 %v997
    %1054 = vmatprep.subr.mxu0 %v1002
    %1055 = vmatpush1.msra.mxu0 %v1001
    %1056 = vmatprep.subr.mxu0 %v1006
    %1057 = vmatpush1.msra.mxu0 %v1005
    %1058 = vmatprep.subr.mxu0 %v1010
    %1059 = vmatpush1.msra.mxu0 %v1009
    %1060 = vmatprep.subr.mxu0 %v1014
    %1061 = vmatpush1.msra.mxu0 %v1013
    %1062 = vmatprep.subr.mxu0 %v1018
    %1063 = vmatpush1.msra.mxu0 %v1017
    %1064 = vmatprep.subr.mxu0 %v1022
    %1065 = vmatpush1.msra.mxu0 %v1021
    %1066 = vmatprep.subr.mxu0 %v1026
    %1067 = vmatpush1.msra.mxu0 %v1025
    %1068 = vmatprep.subr.mxu0 %v1030
    %1069 = vmatpush1.msra.mxu0 %v1029
    %1070 = vmatprep.subr.mxu0 %v1034
    %1071 = vmatpush1.msra.mxu0 %v1033
    %1072 = vmatprep.subr.mxu0 0.0
    %1073 = vmatpush1.msra.mxu0 0.0
    %1074 = vmatprep.subr.mxu0 0.0
    %1075 = vmatpush1.msra.mxu0 0.0
    %1076 = vmatprep.subr.mxu0 0.0
    %1077 = vmatpush1.msra.mxu0 0.0
    %1078 = vmatprep.subr.mxu0 0.0
    %1079 = vmatpush1.msra.mxu0 0.0
    %1080 = vmatprep.subr.mxu0 0.0
    %1081 = vmatpush1.msra.mxu0 0.0
    %1082 = vmatprep.subr.mxu0 0.0
    %1083 = vmatpush1.msra.mxu0 0.0
    %1084 = vmatprep.subr.mxu0 0.0
    %1085 = vmatpush1.msra.mxu0 0.0
    %1086 = vmatprep.subr.mxu0 0.0
    %1087 = vmatpush1.msra.mxu0 0.0
    %1088 = vmatprep.subr.mxu0 0.0
    %1089 = vmatpush1.msra.mxu0 0.0
    %1090 = vmatprep.subr.mxu0 0.0
    %1091 = vmatpush1.msra.mxu0 0.0
    %1092 = vmatprep.subr.mxu0 0.0
    %1093 = vmatpush1.msra.mxu0 0.0
    %1094 = vmatprep.subr.mxu0 0.0
    %1095 = vmatpush1.msra.mxu0 0.0
    %1096 = vmatprep.subr.mxu0 0.0
    %1097 = vmatpush1.msra.mxu0 0.0
    %1098 = vmatprep.subr.mxu0 0.0
    %1099 = vmatpush1.msra.mxu0 0.0
    %1100 = vmatprep.subr.mxu0 0.0
    %1101 = vmatpush1.msra.mxu0 0.0
    %1102 = vmatprep.subr.mxu0 0.0
    %1103 = vmatpush1.msra.mxu0 0.0
    %1104 = vmatprep.mubr.f32.mxu0 0.0
    %1105 = vmatmul.mubr.f32.gmra.mrb[0].mxu0 %v1038
    %v1106 = vpop.f32.mrb[0].mxu0
    %v1107 = vadd.f32 0.0, %v1106
    %v1108 = vpop.f32.mrb[0].mxu0
    %v1109 = vadd.f32 0.0, %v1108
    %1110 = vdwg.mxu0
    %1111 = vmatprep.subr.mxu0 %v976
    %1112 = vmatpush1.msra.mxu0 %v975
    %1113 = vmatprep.subr.mxu0 %v980
    %1114 = vmatpush1.msra.mxu0 %v979
    %1115 = vmatprep.subr.mxu0 %v984
    %1116 = vmatpush1.msra.mxu0 %v983
    %1117 = vmatprep.subr.mxu0 %v988
    %1118 = vmatpush1.msra.mxu0 %v987
    %1119 = vmatprep.subr.mxu0 %v992
    %1120 = vmatpush1.msra.mxu0 %v991
    %1121 = vmatprep.subr.mxu0 %v996
    %1122 = vmatpush1.msra.mxu0 %v995
    %1123 = vmatprep.subr.mxu0 %v1000
    %1124 = vmatpush1.msra.mxu0 %v999
    %1125 = vmatprep.subr.mxu0 %v1004
    %1126 = vmatpush1.msra.mxu0 %v1003
    %1127 = vmatprep.subr.mxu0 %v1008
    %1128 = vmatpush1.msra.mxu0 %v1007
    %1129 = vmatprep.subr.mxu0 %v1012
    %1130 = vmatpush1.msra.mxu0 %v1011
    %1131 = vmatprep.subr.mxu0 %v1016
    %1132 = vmatpush1.msra.mxu0 %v1015
    %1133 = vmatprep.subr.mxu0 %v1020
    %1134 = vmatpush1.msra.mxu0 %v1019
    %1135 = vmatprep.subr.mxu0 %v1024
    %1136 = vmatpush1.msra.mxu0 %v1023
    %1137 = vmatprep.subr.mxu0 %v1028
    %1138 = vmatpush1.msra.mxu0 %v1027
    %1139 = vmatprep.subr.mxu0 %v1032
    %1140 = vmatpush1.msra.mxu0 %v1031
    %1141 = vmatprep.subr.mxu0 %v1036
    %1142 = vmatpush1.msra.mxu0 %v1035
    %1143 = vmatprep.subr.mxu0 0.0
    %1144 = vmatpush1.msra.mxu0 0.0
    %1145 = vmatprep.subr.mxu0 0.0
    %1146 = vmatpush1.msra.mxu0 0.0
    %1147 = vmatprep.subr.mxu0 0.0
    %1148 = vmatpush1.msra.mxu0 0.0
    %1149 = vmatprep.subr.mxu0 0.0
    %1150 = vmatpush1.msra.mxu0 0.0
    %1151 = vmatprep.subr.mxu0 0.0
    %1152 = vmatpush1.msra.mxu0 0.0
    %1153 = vmatprep.subr.mxu0 0.0
    %1154 = vmatpush1.msra.mxu0 0.0
    %1155 = vmatprep.subr.mxu0 0.0
    %1156 = vmatpush1.msra.mxu0 0.0
    %1157 = vmatprep.subr.mxu0 0.0
    %1158 = vmatpush1.msra.mxu0 0.0
    %1159 = vmatprep.subr.mxu0 0.0
    %1160 = vmatpush1.msra.mxu0 0.0
    %1161 = vmatprep.subr.mxu0 0.0
    %1162 = vmatpush1.msra.mxu0 0.0
    %1163 = vmatprep.subr.mxu0 0.0
    %1164 = vmatpush1.msra.mxu0 0.0
    %1165 = vmatprep.subr.mxu0 0.0
    %1166 = vmatpush1.msra.mxu0 0.0
    %1167 = vmatprep.subr.mxu0 0.0
    %1168 = vmatpush1.msra.mxu0 0.0
    %1169 = vmatprep.subr.mxu0 0.0
    %1170 = vmatpush1.msra.mxu0 0.0
    %1171 = vmatprep.subr.mxu0 0.0
    %1172 = vmatpush1.msra.mxu0 0.0
    %1173 = vmatprep.subr.mxu0 0.0
    %1174 = vmatpush1.msra.mxu0 0.0
    %1175 = vmatprep.mubr.f32.mxu0 0.0
    %1176 = vmatmul.mubr.f32.gmra.mrb[0].mxu0 %v1038
    %v1177 = vpop.f32.mrb[0].mxu0
    %v1178 = vadd.f32 0.0, %v1177
    %v1179 = vpop.f32.mrb[0].mxu0
    %v1180 = vadd.f32 0.0, %v1179
    %1181 = vdwg.mxu0
    %v1186 = vrot.slane %v1107, 4
    %v1187 = vrot.slane %v1109, 4
    %v1188 = vrot.slane %v1178, 4
    %v1189 = vrot.slane %v1180, 4
    %v1194 = vadd.f32 %v969, %v1186
    %v1195 = vadd.f32 %v970, %v1187
    %v1196 = vadd.f32 %v971, %v1188
    %v1197 = vadd.f32 %v972, %v1189
    %v1198 = vxor.u32 %v1194, 2147483648
    %v1199 = vxor.u32 %v1195, 2147483648
    %v1200 = vxor.u32 %v1196, 2147483648
    %v1201 = vmul.f32 %v1198, 1.442695
    %v1202 = vpow.pop %v1201
    %v1203 = vmul.f32 %v1199, 1.442695
    %v1204 = vpow.pop %v1203
    %v1205 = vmul.f32 %v1200, 1.442695
    %v1206 = vpow.pop %v1205
    %v1207 = vadd.f32 %v1202, 1.0
    %v1208 = vadd.f32 %v1204, 1.0
    %v1209 = vadd.f32 %v1206, 1.0
    %v1210 = vrcp.pop %v1207
    %v1211 = vmul.f32 1.0, %v1210
    %v1212 = vrcp.pop %v1208
    %v1213 = vmul.f32 1.0, %v1212
    %v1214 = vrcp.pop %v1209
    %v1215 = vmul.f32 1.0, %v1214
    %v1216 = vtanh.pop %v1197
    %v1218 = vrot.slane %v965, 6
    %v1220 = vmul.f32 %v1213, %v1218
    %v1221 = vmul.f32 %v1211, %v1216
    %v1222 = vadd.f32 %v1220, %v1221
    %v1223 = vtanh.pop %v1222
    %v1224 = vmul.f32 %v1215, %v1223
    %1225 = vst [vmem:[#allocation2] sm:$0x30] %v1224
    %v1226 = vld [vmem:[#allocation3] sm:$0xc0]
    %v1227 = vld [vmem:[#allocation3 + $0x8] sm:$0xc0]
    %v1228 = vld [vmem:[#allocation3 + $0x10] sm:$0xc0]
    %v1229 = vld [vmem:[#allocation3 + $0x18] sm:$0xc0]
    %v1230 = vld [vmem:[#allocation9] sm:$0xff]
    %v1231 = vld [vmem:[#allocation9 + $0x8] sm:$0xff]
    %v1232 = vld [vmem:[#allocation9 + $0x10] sm:$0xff]
    %v1233 = vld [vmem:[#allocation9 + $0x18] sm:$0xff]
    %v1234 = vld [vmem:[#allocation9 + $0x20] sm:$0xff]
    %v1235 = vld [vmem:[#allocation9 + $0x28] sm:$0xff]
    %v1236 = vld [vmem:[#allocation9 + $0x30] sm:$0xff]
    %v1237 = vld [vmem:[#allocation9 + $0x38] sm:$0xff]
    %v1238 = vld [vmem:[#allocation9 + $0x40] sm:$0xff]
    %v1239 = vld [vmem:[#allocation9 + $0x48] sm:$0xff]
    %v1240 = vld [vmem:[#allocation9 + $0x50] sm:$0xff]
    %v1241 = vld [vmem:[#allocation9 + $0x58] sm:$0xff]
    %v1242 = vld [vmem:[#allocation9 + $0x60] sm:$0xff]
    %v1243 = vld [vmem:[#allocation9 + $0x68] sm:$0xff]
    %v1244 = vld [vmem:[#allocation9 + $0x70] sm:$0xff]
    %v1245 = vld [vmem:[#allocation9 + $0x78] sm:$0xff]
    %v1246 = vld [vmem:[#allocation9 + $0x80] sm:$0xff]
    %v1247 = vld [vmem:[#allocation9 + $0x88] sm:$0xff]
    %v1248 = vld [vmem:[#allocation9 + $0x90] sm:$0xff]
    %v1249 = vld [vmem:[#allocation9 + $0x98] sm:$0xff]
    %v1250 = vld [vmem:[#allocation9 + $0xa0] sm:$0xff]
    %v1251 = vld [vmem:[#allocation9 + $0xa8] sm:$0xff]
    %v1252 = vld [vmem:[#allocation9 + $0xb0] sm:$0xff]
    %v1253 = vld [vmem:[#allocation9 + $0xb8] sm:$0xff]
    %v1254 = vld [vmem:[#allocation9 + $0xc0] sm:$0xff]
    %v1255 = vld [vmem:[#allocation9 + $0xc8] sm:$0xff]
    %v1256 = vld [vmem:[#allocation9 + $0xd0] sm:$0xff]
    %v1257 = vld [vmem:[#allocation9 + $0xd8] sm:$0xff]
    %v1258 = vld [vmem:[#allocation9 + $0xe0] sm:$0xff]
    %v1259 = vld [vmem:[#allocation9 + $0xe8] sm:$0xff]
    %v1260 = vld [vmem:[#allocation9 + $0xf0] sm:$0xff]
    %v1261 = vld [vmem:[#allocation9 + $0xf8] sm:$0xff]
    %v1262 = vld [vmem:[#allocation9 + $0x100] sm:$0xff]
    %v1263 = vld [vmem:[#allocation9 + $0x108] sm:$0xff]
    %v1264 = vld [vmem:[#allocation9 + $0x110] sm:$0xff]
    %v1265 = vld [vmem:[#allocation9 + $0x118] sm:$0xff]
    %v1266 = vld [vmem:[#allocation9 + $0x120] sm:$0xff]
    %v1267 = vld [vmem:[#allocation9 + $0x128] sm:$0xff]
    %v1268 = vld [vmem:[#allocation9 + $0x130] sm:$0xff]
    %v1269 = vld [vmem:[#allocation9 + $0x138] sm:$0xff]
    %v1270 = vld [vmem:[#allocation9 + $0x140] sm:$0xff]
    %v1271 = vld [vmem:[#allocation9 + $0x148] sm:$0xff]
    %v1272 = vld [vmem:[#allocation9 + $0x150] sm:$0xff]
    %v1273 = vld [vmem:[#allocation9 + $0x158] sm:$0xff]
    %v1274 = vld [vmem:[#allocation9 + $0x160] sm:$0xff]
    %v1275 = vld [vmem:[#allocation9 + $0x168] sm:$0xff]
    %v1276 = vld [vmem:[#allocation9 + $0x170] sm:$0xff]
    %v1277 = vld [vmem:[#allocation9 + $0x178] sm:$0xff]
    %v1278 = vld [vmem:[#allocation9 + $0x180] sm:$0xff]
    %v1279 = vld [vmem:[#allocation9 + $0x188] sm:$0xff]
    %v1280 = vld [vmem:[#allocation9 + $0x190] sm:$0xff]
    %v1281 = vld [vmem:[#allocation9 + $0x198] sm:$0xff]
    %v1282 = vld [vmem:[#allocation9 + $0x1a0] sm:$0xff]
    %v1283 = vld [vmem:[#allocation9 + $0x1a8] sm:$0xff]
    %v1284 = vld [vmem:[#allocation9 + $0x1b0] sm:$0xff]
    %v1285 = vld [vmem:[#allocation9 + $0x1b8] sm:$0xff]
    %v1286 = vld [vmem:[#allocation9 + $0x1c0] sm:$0xff]
    %v1287 = vld [vmem:[#allocation9 + $0x1c8] sm:$0xff]
    %v1288 = vld [vmem:[#allocation9 + $0x1d0] sm:$0xff]
    %v1289 = vld [vmem:[#allocation9 + $0x1d8] sm:$0xff]
    %v1290 = vld [vmem:[#allocation9 + $0x1e0] sm:$0xff]
    %v1291 = vld [vmem:[#allocation9 + $0x1e8] sm:$0xff]
    %v1292 = vld [vmem:[#allocation9 + $0x1f0] sm:$0xff]
    %v1293 = vld [vmem:[#allocation9 + $0x1f8] sm:$0xff]
    %v1295 = vrot.slane %v1224, 4
    %1297 = vmatprep.subr.mxu0 %v1231
    %1298 = vmatpush1.msra.mxu0 %v1230
    %1299 = vmatprep.subr.mxu0 %v1235
    %1300 = vmatpush1.msra.mxu0 %v1234
    %1301 = vmatprep.subr.mxu0 %v1239
    %1302 = vmatpush1.msra.mxu0 %v1238
    %1303 = vmatprep.subr.mxu0 %v1243
    %1304 = vmatpush1.msra.mxu0 %v1242
    %1305 = vmatprep.subr.mxu0 %v1247
    %1306 = vmatpush1.msra.mxu0 %v1246
    %1307 = vmatprep.subr.mxu0 %v1251
    %1308 = vmatpush1.msra.mxu0 %v1250
    %1309 = vmatprep.subr.mxu0 %v1255
    %1310 = vmatpush1.msra.mxu0 %v1254
    %1311 = vmatprep.subr.mxu0 %v1259
    %1312 = vmatpush1.msra.mxu0 %v1258
    %1313 = vmatprep.subr.mxu0 %v1263
    %1314 = vmatpush1.msra.mxu0 %v1262
    %1315 = vmatprep.subr.mxu0 %v1267
    %1316 = vmatpush1.msra.mxu0 %v1266
    %1317 = vmatprep.subr.mxu0 %v1271
    %1318 = vmatpush1.msra.mxu0 %v1270
    %1319 = vmatprep.subr.mxu0 %v1275
    %1320 = vmatpush1.msra.mxu0 %v1274
    %1321 = vmatprep.subr.mxu0 %v1279
    %1322 = vmatpush1.msra.mxu0 %v1278
    %1323 = vmatprep.subr.mxu0 %v1283
    %1324 = vmatpush1.msra.mxu0 %v1282
    %1325 = vmatprep.subr.mxu0 %v1287
    %1326 = vmatpush1.msra.mxu0 %v1286
    %1327 = vmatprep.subr.mxu0 %v1291
    %1328 = vmatpush1.msra.mxu0 %v1290
    %1329 = vmatprep.subr.mxu0 0.0
    %1330 = vmatpush1.msra.mxu0 0.0
    %1331 = vmatprep.subr.mxu0 0.0
    %1332 = vmatpush1.msra.mxu0 0.0
    %1333 = vmatprep.subr.mxu0 0.0
    %1334 = vmatpush1.msra.mxu0 0.0
    %1335 = vmatprep.subr.mxu0 0.0
    %1336 = vmatpush1.msra.mxu0 0.0
    %1337 = vmatprep.subr.mxu0 0.0
    %1338 = vmatpush1.msra.mxu0 0.0
    %1339 = vmatprep.subr.mxu0 0.0
    %1340 = vmatpush1.msra.mxu0 0.0
    %1341 = vmatprep.subr.mxu0 0.0
    %1342 = vmatpush1.msra.mxu0 0.0
    %1343 = vmatprep.subr.mxu0 0.0
    %1344 = vmatpush1.msra.mxu0 0.0
    %1345 = vmatprep.subr.mxu0 0.0
    %1346 = vmatpush1.msra.mxu0 0.0
    %1347 = vmatprep.subr.mxu0 0.0
    %1348 = vmatpush1.msra.mxu0 0.0
    %1349 = vmatprep.subr.mxu0 0.0
    %1350 = vmatpush1.msra.mxu0 0.0
    %1351 = vmatprep.subr.mxu0 0.0
    %1352 = vmatpush1.msra.mxu0 0.0
    %1353 = vmatprep.subr.mxu0 0.0
    %1354 = vmatpush1.msra.mxu0 0.0
    %1355 = vmatprep.subr.mxu0 0.0
    %1356 = vmatpush1.msra.mxu0 0.0
    %1357 = vmatprep.subr.mxu0 0.0
    %1358 = vmatpush1.msra.mxu0 0.0
    %1359 = vmatprep.subr.mxu0 0.0
    %1360 = vmatpush1.msra.mxu0 0.0
    %1361 = vmatprep.mubr.f32.mxu0 0.0
    %1362 = vmatmul.mubr.f32.gmra.mrb[0].mxu0 %v1295
    %v1363 = vpop.f32.mrb[0].mxu0
    %v1364 = vadd.f32 0.0, %v1363
    %v1365 = vpop.f32.mrb[0].mxu0
    %v1366 = vadd.f32 0.0, %v1365
    %1367 = vdwg.mxu0
    %1368 = vmatprep.subr.mxu0 %v1233
    %1369 = vmatpush1.msra.mxu0 %v1232
    %1370 = vmatprep.subr.mxu0 %v1237
    %1371 = vmatpush1.msra.mxu0 %v1236
    %1372 = vmatprep.subr.mxu0 %v1241
    %1373 = vmatpush1.msra.mxu0 %v1240
    %1374 = vmatprep.subr.mxu0 %v1245
    %1375 = vmatpush1.msra.mxu0 %v1244
    %1376 = vmatprep.subr.mxu0 %v1249
    %1377 = vmatpush1.msra.mxu0 %v1248
    %1378 = vmatprep.subr.mxu0 %v1253
    %1379 = vmatpush1.msra.mxu0 %v1252
    %1380 = vmatprep.subr.mxu0 %v1257
    %1381 = vmatpush1.msra.mxu0 %v1256
    %1382 = vmatprep.subr.mxu0 %v1261
    %1383 = vmatpush1.msra.mxu0 %v1260
    %1384 = vmatprep.subr.mxu0 %v1265
    %1385 = vmatpush1.msra.mxu0 %v1264
    %1386 = vmatprep.subr.mxu0 %v1269
    %1387 = vmatpush1.msra.mxu0 %v1268
    %1388 = vmatprep.subr.mxu0 %v1273
    %1389 = vmatpush1.msra.mxu0 %v1272
    %1390 = vmatprep.subr.mxu0 %v1277
    %1391 = vmatpush1.msra.mxu0 %v1276
    %1392 = vmatprep.subr.mxu0 %v1281
    %1393 = vmatpush1.msra.mxu0 %v1280
    %1394 = vmatprep.subr.mxu0 %v1285
    %1395 = vmatpush1.msra.mxu0 %v1284
    %1396 = vmatprep.subr.mxu0 %v1289
    %1397 = vmatpush1.msra.mxu0 %v1288
    %1398 = vmatprep.subr.mxu0 %v1293
    %1399 = vmatpush1.msra.mxu0 %v1292
    %1400 = vmatprep.subr.mxu0 0.0
    %1401 = vmatpush1.msra.mxu0 0.0
    %1402 = vmatprep.subr.mxu0 0.0
    %1403 = vmatpush1.msra.mxu0 0.0
    %1404 = vmatprep.subr.mxu0 0.0
    %1405 = vmatpush1.msra.mxu0 0.0
    %1406 = vmatprep.subr.mxu0 0.0
    %1407 = vmatpush1.msra.mxu0 0.0
    %1408 = vmatprep.subr.mxu0 0.0
    %1409 = vmatpush1.msra.mxu0 0.0
    %1410 = vmatprep.subr.mxu0 0.0
    %1411 = vmatpush1.msra.mxu0 0.0
    %1412 = vmatprep.subr.mxu0 0.0
    %1413 = vmatpush1.msra.mxu0 0.0
    %1414 = vmatprep.subr.mxu0 0.0
    %1415 = vmatpush1.msra.mxu0 0.0
    %1416 = vmatprep.subr.mxu0 0.0
    %1417 = vmatpush1.msra.mxu0 0.0
    %1418 = vmatprep.subr.mxu0 0.0
    %1419 = vmatpush1.msra.mxu0 0.0
    %1420 = vmatprep.subr.mxu0 0.0
    %1421 = vmatpush1.msra.mxu0 0.0
    %1422 = vmatprep.subr.mxu0 0.0
    %1423 = vmatpush1.msra.mxu0 0.0
    %1424 = vmatprep.subr.mxu0 0.0
    %1425 = vmatpush1.msra.mxu0 0.0
    %1426 = vmatprep.subr.mxu0 0.0
    %1427 = vmatpush1.msra.mxu0 0.0
    %1428 = vmatprep.subr.mxu0 0.0
    %1429 = vmatpush1.msra.mxu0 0.0
    %1430 = vmatprep.subr.mxu0 0.0
    %1431 = vmatpush1.msra.mxu0 0.0
    %1432 = vmatprep.mubr.f32.mxu0 0.0
    %1433 = vmatmul.mubr.f32.gmra.mrb[0].mxu0 %v1295
    %v1434 = vpop.f32.mrb[0].mxu0
    %v1435 = vadd.f32 0.0, %v1434
    %v1436 = vpop.f32.mrb[0].mxu0
    %v1437 = vadd.f32 0.0, %v1436
    %1438 = vdwg.mxu0
    %v1443 = vrot.slane %v1364, 2
    %v1444 = vrot.slane %v1366, 2
    %v1445 = vrot.slane %v1435, 2
    %v1446 = vrot.slane %v1437, 2
    %v1451 = vadd.f32 %v1226, %v1443
    %v1452 = vadd.f32 %v1227, %v1444
    %v1453 = vadd.f32 %v1228, %v1445
    %v1454 = vadd.f32 %v1229, %v1446
    %v1455 = vxor.u32 %v1451, 2147483648
    %v1456 = vxor.u32 %v1452, 2147483648
    %v1457 = vxor.u32 %v1453, 2147483648
    %v1458 = vmul.f32 %v1455, 1.442695
    %v1459 = vpow.pop %v1458
    %v1460 = vmul.f32 %v1456, 1.442695
    %v1461 = vpow.pop %v1460
    %v1462 = vmul.f32 %v1457, 1.442695
    %v1463 = vpow.pop %v1462
    %v1464 = vadd.f32 %v1459, 1.0
    %v1465 = vadd.f32 %v1461, 1.0
    %v1466 = vadd.f32 %v1463, 1.0
    %v1467 = vrcp.pop %v1464
    %v1468 = vmul.f32 1.0, %v1467
    %v1469 = vrcp.pop %v1465
    %v1470 = vmul.f32 1.0, %v1469
    %v1471 = vrcp.pop %v1466
    %v1472 = vmul.f32 1.0, %v1471
    %v1473 = vtanh.pop %v1454
    %v1475 = vrot.slane %v1222, 6
    %v1477 = vmul.f32 %v1470, %v1475
    %v1478 = vmul.f32 %v1468, %v1473
    %v1479 = vadd.f32 %v1477, %v1478
    %v1480 = vtanh.pop %v1479
    %v1481 = vmul.f32 %v1472, %v1480
    %1482 = vst [vmem:[#allocation2] sm:$0xc0] %v1481
    %v1483 = vld [vmem:[#allocation3 + $0x20] sm:$0x3]
    %v1484 = vld [vmem:[#allocation3 + $0x28] sm:$0x3]
    %v1485 = vld [vmem:[#allocation3 + $0x30] sm:$0x3]
    %v1486 = vld [vmem:[#allocation3 + $0x38] sm:$0x3]
    %v1487 = vld [vmem:[#allocation9] sm:$0xff]
    %v1488 = vld [vmem:[#allocation9 + $0x8] sm:$0xff]
    %v1489 = vld [vmem:[#allocation9 + $0x10] sm:$0xff]
    %v1490 = vld [vmem:[#allocation9 + $0x18] sm:$0xff]
    %v1491 = vld [vmem:[#allocation9 + $0x20] sm:$0xff]
    %v1492 = vld [vmem:[#allocation9 + $0x28] sm:$0xff]
    %v1493 = vld [vmem:[#allocation9 + $0x30] sm:$0xff]
    %v1494 = vld [vmem:[#allocation9 + $0x38] sm:$0xff]
    %v1495 = vld [vmem:[#allocation9 + $0x40] sm:$0xff]
    %v1496 = vld [vmem:[#allocation9 + $0x48] sm:$0xff]
    %v1497 = vld [vmem:[#allocation9 + $0x50] sm:$0xff]
    %v1498 = vld [vmem:[#allocation9 + $0x58] sm:$0xff]
    %v1499 = vld [vmem:[#allocation9 + $0x60] sm:$0xff]
    %v1500 = vld [vmem:[#allocation9 + $0x68] sm:$0xff]
    %v1501 = vld [vmem:[#allocation9 + $0x70] sm:$0xff]
    %v1502 = vld [vmem:[#allocation9 + $0x78] sm:$0xff]
    %v1503 = vld [vmem:[#allocation9 + $0x80] sm:$0xff]
    %v1504 = vld [vmem:[#allocation9 + $0x88] sm:$0xff]
    %v1505 = vld [vmem:[#allocation9 + $0x90] sm:$0xff]
    %v1506 = vld [vmem:[#allocation9 + $0x98] sm:$0xff]
    %v1507 = vld [vmem:[#allocation9 + $0xa0] sm:$0xff]
    %v1508 = vld [vmem:[#allocation9 + $0xa8] sm:$0xff]
    %v1509 = vld [vmem:[#allocation9 + $0xb0] sm:$0xff]
    %v1510 = vld [vmem:[#allocation9 + $0xb8] sm:$0xff]
    %v1511 = vld [vmem:[#allocation9 + $0xc0] sm:$0xff]
    %v1512 = vld [vmem:[#allocation9 + $0xc8] sm:$0xff]
    %v1513 = vld [vmem:[#allocation9 + $0xd0] sm:$0xff]
    %v1514 = vld [vmem:[#allocation9 + $0xd8] sm:$0xff]
    %v1515 = vld [vmem:[#allocation9 + $0xe0] sm:$0xff]
    %v1516 = vld [vmem:[#allocation9 + $0xe8] sm:$0xff]
    %v1517 = vld [vmem:[#allocation9 + $0xf0] sm:$0xff]
    %v1518 = vld [vmem:[#allocation9 + $0xf8] sm:$0xff]
    %v1519 = vld [vmem:[#allocation9 + $0x100] sm:$0xff]
    %v1520 = vld [vmem:[#allocation9 + $0x108] sm:$0xff]
    %v1521 = vld [vmem:[#allocation9 + $0x110] sm:$0xff]
    %v1522 = vld [vmem:[#allocation9 + $0x118] sm:$0xff]
    %v1523 = vld [vmem:[#allocation9 + $0x120] sm:$0xff]
    %v1524 = vld [vmem:[#allocation9 + $0x128] sm:$0xff]
    %v1525 = vld [vmem:[#allocation9 + $0x130] sm:$0xff]
    %v1526 = vld [vmem:[#allocation9 + $0x138] sm:$0xff]
    %v1527 = vld [vmem:[#allocation9 + $0x140] sm:$0xff]
    %v1528 = vld [vmem:[#allocation9 + $0x148] sm:$0xff]
    %v1529 = vld [vmem:[#allocation9 + $0x150] sm:$0xff]
    %v1530 = vld [vmem:[#allocation9 + $0x158] sm:$0xff]
    %v1531 = vld [vmem:[#allocation9 + $0x160] sm:$0xff]
    %v1532 = vld [vmem:[#allocation9 + $0x168] sm:$0xff]
    %v1533 = vld [vmem:[#allocation9 + $0x170] sm:$0xff]
    %v1534 = vld [vmem:[#allocation9 + $0x178] sm:$0xff]
    %v1535 = vld [vmem:[#allocation9 + $0x180] sm:$0xff]
    %v1536 = vld [vmem:[#allocation9 + $0x188] sm:$0xff]
    %v1537 = vld [vmem:[#allocation9 + $0x190] sm:$0xff]
    %v1538 = vld [vmem:[#allocation9 + $0x198] sm:$0xff]
    %v1539 = vld [vmem:[#allocation9 + $0x1a0] sm:$0xff]
    %v1540 = vld [vmem:[#allocation9 + $0x1a8] sm:$0xff]
    %v1541 = vld [vmem:[#allocation9 + $0x1b0] sm:$0xff]
    %v1542 = vld [vmem:[#allocation9 + $0x1b8] sm:$0xff]
    %v1543 = vld [vmem:[#allocation9 + $0x1c0] sm:$0xff]
    %v1544 = vld [vmem:[#allocation9 + $0x1c8] sm:$0xff]
    %v1545 = vld [vmem:[#allocation9 + $0x1d0] sm:$0xff]
    %v1546 = vld [vmem:[#allocation9 + $0x1d8] sm:$0xff]
    %v1547 = vld [vmem:[#allocation9 + $0x1e0] sm:$0xff]
    %v1548 = vld [vmem:[#allocation9 + $0x1e8] sm:$0xff]
    %v1549 = vld [vmem:[#allocation9 + $0x1f0] sm:$0xff]
    %v1550 = vld [vmem:[#allocation9 + $0x1f8] sm:$0xff]
    %v1552 = vrot.slane %v1481, 6
    %1554 = vmatprep.subr.mxu0 %v1488
    %1555 = vmatpush1.msra.mxu0 %v1487
    %1556 = vmatprep.subr.mxu0 %v1492
    %1557 = vmatpush1.msra.mxu0 %v1491
    %1558 = vmatprep.subr.mxu0 %v1496
    %1559 = vmatpush1.msra.mxu0 %v1495
    %1560 = vmatprep.subr.mxu0 %v1500
    %1561 = vmatpush1.msra.mxu0 %v1499
    %1562 = vmatprep.subr.mxu0 %v1504
    %1563 = vmatpush1.msra.mxu0 %v1503
    %1564 = vmatprep.subr.mxu0 %v1508
    %1565 = vmatpush1.msra.mxu0 %v1507
    %1566 = vmatprep.subr.mxu0 %v1512
    %1567 = vmatpush1.msra.mxu0 %v1511
    %1568 = vmatprep.subr.mxu0 %v1516
    %1569 = vmatpush1.msra.mxu0 %v1515
    %1570 = vmatprep.subr.mxu0 %v1520
    %1571 = vmatpush1.msra.mxu0 %v1519
    %1572 = vmatprep.subr.mxu0 %v1524
    %1573 = vmatpush1.msra.mxu0 %v1523
    %1574 = vmatprep.subr.mxu0 %v1528
    %1575 = vmatpush1.msra.mxu0 %v1527
    %1576 = vmatprep.subr.mxu0 %v1532
    %1577 = vmatpush1.msra.mxu0 %v1531
    %1578 = vmatprep.subr.mxu0 %v1536
    %1579 = vmatpush1.msra.mxu0 %v1535
    %1580 = vmatprep.subr.mxu0 %v1540
    %1581 = vmatpush1.msra.mxu0 %v1539
    %1582 = vmatprep.subr.mxu0 %v1544
    %1583 = vmatpush1.msra.mxu0 %v1543
    %1584 = vmatprep.subr.mxu0 %v1548
    %1585 = vmatpush1.msra.mxu0 %v1547
    %1586 = vmatprep.subr.mxu0 0.0
    %1587 = vmatpush1.msra.mxu0 0.0
    %1588 = vmatprep.subr.mxu0 0.0
    %1589 = vmatpush1.msra.mxu0 0.0
    %1590 = vmatprep.subr.mxu0 0.0
    %1591 = vmatpush1.msra.mxu0 0.0
    %1592 = vmatprep.subr.mxu0 0.0
    %1593 = vmatpush1.msra.mxu0 0.0
    %1594 = vmatprep.subr.mxu0 0.0
    %1595 = vmatpush1.msra.mxu0 0.0
    %1596 = vmatprep.subr.mxu0 0.0
    %1597 = vmatpush1.msra.mxu0 0.0
    %1598 = vmatprep.subr.mxu0 0.0
    %1599 = vmatpush1.msra.mxu0 0.0
    %1600 = vmatprep.subr.mxu0 0.0
    %1601 = vmatpush1.msra.mxu0 0.0
    %1602 = vmatprep.subr.mxu0 0.0
    %1603 = vmatpush1.msra.mxu0 0.0
    %1604 = vmatprep.subr.mxu0 0.0
    %1605 = vmatpush1.msra.mxu0 0.0
    %1606 = vmatprep.subr.mxu0 0.0
    %1607 = vmatpush1.msra.mxu0 0.0
    %1608 = vmatprep.subr.mxu0 0.0
    %1609 = vmatpush1.msra.mxu0 0.0
    %1610 = vmatprep.subr.mxu0 0.0
    %1611 = vmatpush1.msra.mxu0 0.0
    %1612 = vmatprep.subr.mxu0 0.0
    %1613 = vmatpush1.msra.mxu0 0.0
    %1614 = vmatprep.subr.mxu0 0.0
    %1615 = vmatpush1.msra.mxu0 0.0
    %1616 = vmatprep.subr.mxu0 0.0
    %1617 = vmatpush1.msra.mxu0 0.0
    %1618 = vmatprep.mubr.f32.mxu0 0.0
    %1619 = vmatmul.mubr.f32.gmra.mrb[0].mxu0 %v1552
    %v1620 = vpop.f32.mrb[0].mxu0
    %v1621 = vadd.f32 0.0, %v1620
    %v1622 = vpop.f32.mrb[0].mxu0
    %v1623 = vadd.f32 0.0, %v1622
    %1624 = vdwg.mxu0
    %1625 = vmatprep.subr.mxu0 %v1490
    %1626 = vmatpush1.msra.mxu0 %v1489
    %1627 = vmatprep.subr.mxu0 %v1494
    %1628 = vmatpush1.msra.mxu0 %v1493
    %1629 = vmatprep.subr.mxu0 %v1498
    %1630 = vmatpush1.msra.mxu0 %v1497
    %1631 = vmatprep.subr.mxu0 %v1502
    %1632 = vmatpush1.msra.mxu0 %v1501
    %1633 = vmatprep.subr.mxu0 %v1506
    %1634 = vmatpush1.msra.mxu0 %v1505
    %1635 = vmatprep.subr.mxu0 %v1510
    %1636 = vmatpush1.msra.mxu0 %v1509
    %1637 = vmatprep.subr.mxu0 %v1514
    %1638 = vmatpush1.msra.mxu0 %v1513
    %1639 = vmatprep.subr.mxu0 %v1518
    %1640 = vmatpush1.msra.mxu0 %v1517
    %1641 = vmatprep.subr.mxu0 %v1522
    %1642 = vmatpush1.msra.mxu0 %v1521
    %1643 = vmatprep.subr.mxu0 %v1526
    %1644 = vmatpush1.msra.mxu0 %v1525
    %1645 = vmatprep.subr.mxu0 %v1530
    %1646 = vmatpush1.msra.mxu0 %v1529
    %1647 = vmatprep.subr.mxu0 %v1534
    %1648 = vmatpush1.msra.mxu0 %v1533
    %1649 = vmatprep.subr.mxu0 %v1538
    %1650 = vmatpush1.msra.mxu0 %v1537
    %1651 = vmatprep.subr.mxu0 %v1542
    %1652 = vmatpush1.msra.mxu0 %v1541
    %1653 = vmatprep.subr.mxu0 %v1546
    %1654 = vmatpush1.msra.mxu0 %v1545
    %1655 = vmatprep.subr.mxu0 %v1550
    %1656 = vmatpush1.msra.mxu0 %v1549
    %1657 = vmatprep.subr.mxu0 0.0
    %1658 = vmatpush1.msra.mxu0 0.0
    %1659 = vmatprep.subr.mxu0 0.0
    %1660 = vmatpush1.msra.mxu0 0.0
    %1661 = vmatprep.subr.mxu0 0.0
    %1662 = vmatpush1.msra.mxu0 0.0
    %1663 = vmatprep.subr.mxu0 0.0
    %1664 = vmatpush1.msra.mxu0 0.0
    %1665 = vmatprep.subr.mxu0 0.0
    %1666 = vmatpush1.msra.mxu0 0.0
    %1667 = vmatprep.subr.mxu0 0.0
    %1668 = vmatpush1.msra.mxu0 0.0
    %1669 = vmatprep.subr.mxu0 0.0
    %1670 = vmatpush1.msra.mxu0 0.0
    %1671 = vmatprep.subr.mxu0 0.0
    %1672 = vmatpush1.msra.mxu0 0.0
    %1673 = vmatprep.subr.mxu0 0.0
    %1674 = vmatpush1.msra.mxu0 0.0
    %1675 = vmatprep.subr.mxu0 0.0
    %1676 = vmatpush1.msra.mxu0 0.0
    %1677 = vmatprep.subr.mxu0 0.0
    %1678 = vmatpush1.msra.mxu0 0.0
    %1679 = vmatprep.subr.mxu0 0.0
    %1680 = vmatpush1.msra.mxu0 0.0
    %1681 = vmatprep.subr.mxu0 0.0
    %1682 = vmatpush1.msra.mxu0 0.0
    %1683 = vmatprep.subr.mxu0 0.0
    %1684 = vmatpush1.msra.mxu0 0.0
    %1685 = vmatprep.subr.mxu0 0.0
    %1686 = vmatpush1.msra.mxu0 0.0
    %1687 = vmatprep.subr.mxu0 0.0
    %1688 = vmatpush1.msra.mxu0 0.0
    %1689 = vmatprep.mubr.f32.mxu0 0.0
    %1690 = vmatmul.mubr.f32.gmra.mrb[0].mxu0 %v1552
    %v1691 = vpop.f32.mrb[0].mxu0
    %v1692 = vadd.f32 0.0, %v1691
    %v1693 = vpop.f32.mrb[0].mxu0
    %v1694 = vadd.f32 0.0, %v1693
    %1695 = vdwg.mxu0
    %v1696 = vadd.f32 %v1483, %v1621
    %v1697 = vadd.f32 %v1484, %v1623
    %v1698 = vadd.f32 %v1485, %v1692
    %v1699 = vadd.f32 %v1486, %v1694
    %v1700 = vxor.u32 %v1696, 2147483648
    %v1701 = vxor.u32 %v1697, 2147483648
    %v1702 = vxor.u32 %v1698, 2147483648
    %v1703 = vmul.f32 %v1700, 1.442695
    %v1704 = vpow.pop %v1703
    %v1705 = vmul.f32 %v1701, 1.442695
    %v1706 = vpow.pop %v1705
    %v1707 = vmul.f32 %v1702, 1.442695
    %v1708 = vpow.pop %v1707
    %v1709 = vadd.f32 %v1704, 1.0
    %v1710 = vadd.f32 %v1706, 1.0
    %v1711 = vadd.f32 %v1708, 1.0
    %v1712 = vrcp.pop %v1709
    %v1713 = vmul.f32 1.0, %v1712
    %v1714 = vrcp.pop %v1710
    %v1715 = vmul.f32 1.0, %v1714
    %v1716 = vrcp.pop %v1711
    %v1717 = vmul.f32 1.0, %v1716
    %v1718 = vtanh.pop %v1699
    %v1720 = vrot.slane %v1479, 6
    %v1722 = vmul.f32 %v1715, %v1720
    %v1723 = vmul.f32 %v1713, %v1718
    %v1724 = vadd.f32 %v1722, %v1723
    %v1725 = vtanh.pop %v1724
    %v1726 = vmul.f32 %v1717, %v1725
    %1727 = vst [vmem:[#allocation2 + $0x8] sm:$0x3] %v1726
    %v1728 = vld [vmem:[#allocation3 + $0x20] sm:$0xc]
    %v1729 = vld [vmem:[#allocation3 + $0x28] sm:$0xc]
    %v1730 = vld [vmem:[#allocation3 + $0x30] sm:$0xc]
    %v1731 = vld [vmem:[#allocation3 + $0x38] sm:$0xc]
    %v1732 = vld [vmem:[#allocation9] sm:$0xff]
    %v1733 = vld [vmem:[#allocation9 + $0x8] sm:$0xff]
    %v1734 = vld [vmem:[#allocation9 + $0x10] sm:$0xff]
    %v1735 = vld [vmem:[#allocation9 + $0x18] sm:$0xff]
    %v1736 = vld [vmem:[#allocation9 + $0x20] sm:$0xff]
    %v1737 = vld [vmem:[#allocation9 + $0x28] sm:$0xff]
    %v1738 = vld [vmem:[#allocation9 + $0x30] sm:$0xff]
    %v1739 = vld [vmem:[#allocation9 + $0x38] sm:$0xff]
    %v1740 = vld [vmem:[#allocation9 + $0x40] sm:$0xff]
    %v1741 = vld [vmem:[#allocation9 + $0x48] sm:$0xff]
    %v1742 = vld [vmem:[#allocation9 + $0x50] sm:$0xff]
    %v1743 = vld [vmem:[#allocation9 + $0x58] sm:$0xff]
    %v1744 = vld [vmem:[#allocation9 + $0x60] sm:$0xff]
    %v1745 = vld [vmem:[#allocation9 + $0x68] sm:$0xff]
    %v1746 = vld [vmem:[#allocation9 + $0x70] sm:$0xff]
    %v1747 = vld [vmem:[#allocation9 + $0x78] sm:$0xff]
    %v1748 = vld [vmem:[#allocation9 + $0x80] sm:$0xff]
    %v1749 = vld [vmem:[#allocation9 + $0x88] sm:$0xff]
    %v1750 = vld [vmem:[#allocation9 + $0x90] sm:$0xff]
    %v1751 = vld [vmem:[#allocation9 + $0x98] sm:$0xff]
    %v1752 = vld [vmem:[#allocation9 + $0xa0] sm:$0xff]
    %v1753 = vld [vmem:[#allocation9 + $0xa8] sm:$0xff]
    %v1754 = vld [vmem:[#allocation9 + $0xb0] sm:$0xff]
    %v1755 = vld [vmem:[#allocation9 + $0xb8] sm:$0xff]
    %v1756 = vld [vmem:[#allocation9 + $0xc0] sm:$0xff]
    %v1757 = vld [vmem:[#allocation9 + $0xc8] sm:$0xff]
    %v1758 = vld [vmem:[#allocation9 + $0xd0] sm:$0xff]
    %v1759 = vld [vmem:[#allocation9 + $0xd8] sm:$0xff]
    %v1760 = vld [vmem:[#allocation9 + $0xe0] sm:$0xff]
    %v1761 = vld [vmem:[#allocation9 + $0xe8] sm:$0xff]
    %v1762 = vld [vmem:[#allocation9 + $0xf0] sm:$0xff]
    %v1763 = vld [vmem:[#allocation9 + $0xf8] sm:$0xff]
    %v1764 = vld [vmem:[#allocation9 + $0x100] sm:$0xff]
    %v1765 = vld [vmem:[#allocation9 + $0x108] sm:$0xff]
    %v1766 = vld [vmem:[#allocation9 + $0x110] sm:$0xff]
    %v1767 = vld [vmem:[#allocation9 + $0x118] sm:$0xff]
    %v1768 = vld [vmem:[#allocation9 + $0x120] sm:$0xff]
    %v1769 = vld [vmem:[#allocation9 + $0x128] sm:$0xff]
    %v1770 = vld [vmem:[#allocation9 + $0x130] sm:$0xff]
    %v1771 = vld [vmem:[#allocation9 + $0x138] sm:$0xff]
    %v1772 = vld [vmem:[#allocation9 + $0x140] sm:$0xff]
    %v1773 = vld [vmem:[#allocation9 + $0x148] sm:$0xff]
    %v1774 = vld [vmem:[#allocation9 + $0x150] sm:$0xff]
    %v1775 = vld [vmem:[#allocation9 + $0x158] sm:$0xff]
    %v1776 = vld [vmem:[#allocation9 + $0x160] sm:$0xff]
    %v1777 = vld [vmem:[#allocation9 + $0x168] sm:$0xff]
    %v1778 = vld [vmem:[#allocation9 + $0x170] sm:$0xff]
    %v1779 = vld [vmem:[#allocation9 + $0x178] sm:$0xff]
    %v1780 = vld [vmem:[#allocation9 + $0x180] sm:$0xff]
    %v1781 = vld [vmem:[#allocation9 + $0x188] sm:$0xff]
    %v1782 = vld [vmem:[#allocation9 + $0x190] sm:$0xff]
    %v1783 = vld [vmem:[#allocation9 + $0x198] sm:$0xff]
    %v1784 = vld [vmem:[#allocation9 + $0x1a0] sm:$0xff]
    %v1785 = vld [vmem:[#allocation9 + $0x1a8] sm:$0xff]
    %v1786 = vld [vmem:[#allocation9 + $0x1b0] sm:$0xff]
    %v1787 = vld [vmem:[#allocation9 + $0x1b8] sm:$0xff]
    %v1788 = vld [vmem:[#allocation9 + $0x1c0] sm:$0xff]
    %v1789 = vld [vmem:[#allocation9 + $0x1c8] sm:$0xff]
    %v1790 = vld [vmem:[#allocation9 + $0x1d0] sm:$0xff]
    %v1791 = vld [vmem:[#allocation9 + $0x1d8] sm:$0xff]
    %v1792 = vld [vmem:[#allocation9 + $0x1e0] sm:$0xff]
    %v1793 = vld [vmem:[#allocation9 + $0x1e8] sm:$0xff]
    %v1794 = vld [vmem:[#allocation9 + $0x1f0] sm:$0xff]
    %v1795 = vld [vmem:[#allocation9 + $0x1f8] sm:$0xff]
    %1796 = vmatprep.subr.mxu0 %v1733
    %1797 = vmatpush1.msra.mxu0 %v1732
    %1798 = vmatprep.subr.mxu0 %v1737
    %1799 = vmatpush1.msra.mxu0 %v1736
    %1800 = vmatprep.subr.mxu0 %v1741
    %1801 = vmatpush1.msra.mxu0 %v1740
    %1802 = vmatprep.subr.mxu0 %v1745
    %1803 = vmatpush1.msra.mxu0 %v1744
    %1804 = vmatprep.subr.mxu0 %v1749
    %1805 = vmatpush1.msra.mxu0 %v1748
    %1806 = vmatprep.subr.mxu0 %v1753
    %1807 = vmatpush1.msra.mxu0 %v1752
    %1808 = vmatprep.subr.mxu0 %v1757
    %1809 = vmatpush1.msra.mxu0 %v1756
    %1810 = vmatprep.subr.mxu0 %v1761
    %1811 = vmatpush1.msra.mxu0 %v1760
    %1812 = vmatprep.subr.mxu0 %v1765
    %1813 = vmatpush1.msra.mxu0 %v1764
    %1814 = vmatprep.subr.mxu0 %v1769
    %1815 = vmatpush1.msra.mxu0 %v1768
    %1816 = vmatprep.subr.mxu0 %v1773
    %1817 = vmatpush1.msra.mxu0 %v1772
    %1818 = vmatprep.subr.mxu0 %v1777
    %1819 = vmatpush1.msra.mxu0 %v1776
    %1820 = vmatprep.subr.mxu0 %v1781
    %1821 = vmatpush1.msra.mxu0 %v1780
    %1822 = vmatprep.subr.mxu0 %v1785
    %1823 = vmatpush1.msra.mxu0 %v1784
    %1824 = vmatprep.subr.mxu0 %v1789
    %1825 = vmatpush1.msra.mxu0 %v1788
    %1826 = vmatprep.subr.mxu0 %v1793
    %1827 = vmatpush1.msra.mxu0 %v1792
    %1828 = vmatprep.subr.mxu0 0.0
    %1829 = vmatpush1.msra.mxu0 0.0
    %1830 = vmatprep.subr.mxu0 0.0
    %1831 = vmatpush1.msra.mxu0 0.0
    %1832 = vmatprep.subr.mxu0 0.0
    %1833 = vmatpush1.msra.mxu0 0.0
    %1834 = vmatprep.subr.mxu0 0.0
    %1835 = vmatpush1.msra.mxu0 0.0
    %1836 = vmatprep.subr.mxu0 0.0
    %1837 = vmatpush1.msra.mxu0 0.0
    %1838 = vmatprep.subr.mxu0 0.0
    %1839 = vmatpush1.msra.mxu0 0.0
    %1840 = vmatprep.subr.mxu0 0.0
    %1841 = vmatpush1.msra.mxu0 0.0
    %1842 = vmatprep.subr.mxu0 0.0
    %1843 = vmatpush1.msra.mxu0 0.0
    %1844 = vmatprep.subr.mxu0 0.0
    %1845 = vmatpush1.msra.mxu0 0.0
    %1846 = vmatprep.subr.mxu0 0.0
    %1847 = vmatpush1.msra.mxu0 0.0
    %1848 = vmatprep.subr.mxu0 0.0
    %1849 = vmatpush1.msra.mxu0 0.0
    %1850 = vmatprep.subr.mxu0 0.0
    %1851 = vmatpush1.msra.mxu0 0.0
    %1852 = vmatprep.subr.mxu0 0.0
    %1853 = vmatpush1.msra.mxu0 0.0
    %1854 = vmatprep.subr.mxu0 0.0
    %1855 = vmatpush1.msra.mxu0 0.0
    %1856 = vmatprep.subr.mxu0 0.0
    %1857 = vmatpush1.msra.mxu0 0.0
    %1858 = vmatprep.subr.mxu0 0.0
    %1859 = vmatpush1.msra.mxu0 0.0
    %1860 = vmatprep.mubr.f32.mxu0 0.0
    %1861 = vmatmul.mubr.f32.gmra.mrb[0].mxu0 %v1726
    %v1862 = vpop.f32.mrb[0].mxu0
    %v1863 = vadd.f32 0.0, %v1862
    %v1864 = vpop.f32.mrb[0].mxu0
    %v1865 = vadd.f32 0.0, %v1864
    %1866 = vdwg.mxu0
    %1867 = vmatprep.subr.mxu0 %v1735
    %1868 = vmatpush1.msra.mxu0 %v1734
    %1869 = vmatprep.subr.mxu0 %v1739
    %1870 = vmatpush1.msra.mxu0 %v1738
    %1871 = vmatprep.subr.mxu0 %v1743
    %1872 = vmatpush1.msra.mxu0 %v1742
    %1873 = vmatprep.subr.mxu0 %v1747
    %1874 = vmatpush1.msra.mxu0 %v1746
    %1875 = vmatprep.subr.mxu0 %v1751
    %1876 = vmatpush1.msra.mxu0 %v1750
    %1877 = vmatprep.subr.mxu0 %v1755
    %1878 = vmatpush1.msra.mxu0 %v1754
    %1879 = vmatprep.subr.mxu0 %v1759
    %1880 = vmatpush1.msra.mxu0 %v1758
    %1881 = vmatprep.subr.mxu0 %v1763
    %1882 = vmatpush1.msra.mxu0 %v1762
    %1883 = vmatprep.subr.mxu0 %v1767
    %1884 = vmatpush1.msra.mxu0 %v1766
    %1885 = vmatprep.subr.mxu0 %v1771
    %1886 = vmatpush1.msra.mxu0 %v1770
    %1887 = vmatprep.subr.mxu0 %v1775
    %1888 = vmatpush1.msra.mxu0 %v1774
    %1889 = vmatprep.subr.mxu0 %v1779
    %1890 = vmatpush1.msra.mxu0 %v1778
    %1891 = vmatprep.subr.mxu0 %v1783
    %1892 = vmatpush1.msra.mxu0 %v1782
    %1893 = vmatprep.subr.mxu0 %v1787
    %1894 = vmatpush1.msra.mxu0 %v1786
    %1895 = vmatprep.subr.mxu0 %v1791
    %1896 = vmatpush1.msra.mxu0 %v1790
    %1897 = vmatprep.subr.mxu0 %v1795
    %1898 = vmatpush1.msra.mxu0 %v1794
    %1899 = vmatprep.subr.mxu0 0.0
    %1900 = vmatpush1.msra.mxu0 0.0
    %1901 = vmatprep.subr.mxu0 0.0
    %1902 = vmatpush1.msra.mxu0 0.0
    %1903 = vmatprep.subr.mxu0 0.0
    %1904 = vmatpush1.msra.mxu0 0.0
    %1905 = vmatprep.subr.mxu0 0.0
    %1906 = vmatpush1.msra.mxu0 0.0
    %1907 = vmatprep.subr.mxu0 0.0
    %1908 = vmatpush1.msra.mxu0 0.0
    %1909 = vmatprep.subr.mxu0 0.0
    %1910 = vmatpush1.msra.mxu0 0.0
    %1911 = vmatprep.subr.mxu0 0.0
    %1912 = vmatpush1.msra.mxu0 0.0
    %1913 = vmatprep.subr.mxu0 0.0
    %1914 = vmatpush1.msra.mxu0 0.0
    %1915 = vmatprep.subr.mxu0 0.0
    %1916 = vmatpush1.msra.mxu0 0.0
    %1917 = vmatprep.subr.mxu0 0.0
    %1918 = vmatpush1.msra.mxu0 0.0
    %1919 = vmatprep.subr.mxu0 0.0
    %1920 = vmatpush1.msra.mxu0 0.0
    %1921 = vmatprep.subr.mxu0 0.0
    %1922 = vmatpush1.msra.mxu0 0.0
    %1923 = vmatprep.subr.mxu0 0.0
    %1924 = vmatpush1.msra.mxu0 0.0
    %1925 = vmatprep.subr.mxu0 0.0
    %1926 = vmatpush1.msra.mxu0 0.0
    %1927 = vmatprep.subr.mxu0 0.0
    %1928 = vmatpush1.msra.mxu0 0.0
    %1929 = vmatprep.subr.mxu0 0.0
    %1930 = vmatpush1.msra.mxu0 0.0
    %1931 = vmatprep.mubr.f32.mxu0 0.0
    %1932 = vmatmul.mubr.f32.gmra.mrb[0].mxu0 %v1726
    %v1933 = vpop.f32.mrb[0].mxu0
    %v1934 = vadd.f32 0.0, %v1933
    %v1935 = vpop.f32.mrb[0].mxu0
    %v1936 = vadd.f32 0.0, %v1935
    %1937 = vdwg.mxu0
    %v1942 = vrot.slane %v1863, 6
    %v1943 = vrot.slane %v1865, 6
    %v1944 = vrot.slane %v1934, 6
    %v1945 = vrot.slane %v1936, 6
    %v1950 = vadd.f32 %v1728, %v1942
    %v1951 = vadd.f32 %v1729, %v1943
    %v1952 = vadd.f32 %v1730, %v1944
    %v1953 = vadd.f32 %v1731, %v1945
    %v1954 = vxor.u32 %v1950, 2147483648
    %v1955 = vxor.u32 %v1951, 2147483648
    %v1956 = vxor.u32 %v1952, 2147483648
    %v1957 = vmul.f32 %v1954, 1.442695
    %v1958 = vpow.pop %v1957
    %v1959 = vmul.f32 %v1955, 1.442695
    %v1960 = vpow.pop %v1959
    %v1961 = vmul.f32 %v1956, 1.442695
    %v1962 = vpow.pop %v1961
    %v1963 = vadd.f32 %v1958, 1.0
    %v1964 = vadd.f32 %v1960, 1.0
    %v1965 = vadd.f32 %v1962, 1.0
    %v1966 = vrcp.pop %v1963
    %v1967 = vmul.f32 1.0, %v1966
    %v1968 = vrcp.pop %v1964
    %v1969 = vmul.f32 1.0, %v1968
    %v1970 = vrcp.pop %v1965
    %v1971 = vmul.f32 1.0, %v1970
    %v1972 = vtanh.pop %v1953
    %v1974 = vrot.slane %v1724, 6
    %v1976 = vmul.f32 %v1969, %v1974
    %v1977 = vmul.f32 %v1967, %v1972
    %v1978 = vadd.f32 %v1976, %v1977
    %v1979 = vtanh.pop %v1978
    %v1980 = vmul.f32 %v1971, %v1979
    %1981 = vst [vmem:[#allocation2 + $0x8] sm:$0xc] %v1980
    %v1982 = vld [vmem:[#allocation3 + $0x20] sm:$0x30]
    %v1983 = vld [vmem:[#allocation3 + $0x28] sm:$0x30]
    %v1984 = vld [vmem:[#allocation3 + $0x30] sm:$0x30]
    %v1985 = vld [vmem:[#allocation3 + $0x38] sm:$0x30]
    %v1986 = vld [vmem:[#allocation9] sm:$0xff]
    %v1987 = vld [vmem:[#allocation9 + $0x8] sm:$0xff]
    %v1988 = vld [vmem:[#allocation9 + $0x10] sm:$0xff]
    %v1989 = vld [vmem:[#allocation9 + $0x18] sm:$0xff]
    %v1990 = vld [vmem:[#allocation9 + $0x20] sm:$0xff]
    %v1991 = vld [vmem:[#allocation9 + $0x28] sm:$0xff]
    %v1992 = vld [vmem:[#allocation9 + $0x30] sm:$0xff]
    %v1993 = vld [vmem:[#allocation9 + $0x38] sm:$0xff]
    %v1994 = vld [vmem:[#allocation9 + $0x40] sm:$0xff]
    %v1995 = vld [vmem:[#allocation9 + $0x48] sm:$0xff]
    %v1996 = vld [vmem:[#allocation9 + $0x50] sm:$0xff]
    %v1997 = vld [vmem:[#allocation9 + $0x58] sm:$0xff]
    %v1998 = vld [vmem:[#allocation9 + $0x60] sm:$0xff]
    %v1999 = vld [vmem:[#allocation9 + $0x68] sm:$0xff]
    %v2000 = vld [vmem:[#allocation9 + $0x70] sm:$0xff]
    %v2001 = vld [vmem:[#allocation9 + $0x78] sm:$0xff]
    %v2002 = vld [vmem:[#allocation9 + $0x80] sm:$0xff]
    %v2003 = vld [vmem:[#allocation9 + $0x88] sm:$0xff]
    %v2004 = vld [vmem:[#allocation9 + $0x90] sm:$0xff]
    %v2005 = vld [vmem:[#allocation9 + $0x98] sm:$0xff]
    %v2006 = vld [vmem:[#allocation9 + $0xa0] sm:$0xff]
    %v2007 = vld [vmem:[#allocation9 + $0xa8] sm:$0xff]
    %v2008 = vld [vmem:[#allocation9 + $0xb0] sm:$0xff]
    %v2009 = vld [vmem:[#allocation9 + $0xb8] sm:$0xff]
    %v2010 = vld [vmem:[#allocation9 + $0xc0] sm:$0xff]
    %v2011 = vld [vmem:[#allocation9 + $0xc8] sm:$0xff]
    %v2012 = vld [vmem:[#allocation9 + $0xd0] sm:$0xff]
    %v2013 = vld [vmem:[#allocation9 + $0xd8] sm:$0xff]
    %v2014 = vld [vmem:[#allocation9 + $0xe0] sm:$0xff]
    %v2015 = vld [vmem:[#allocation9 + $0xe8] sm:$0xff]
    %v2016 = vld [vmem:[#allocation9 + $0xf0] sm:$0xff]
    %v2017 = vld [vmem:[#allocation9 + $0xf8] sm:$0xff]
    %v2018 = vld [vmem:[#allocation9 + $0x100] sm:$0xff]
    %v2019 = vld [vmem:[#allocation9 + $0x108] sm:$0xff]
    %v2020 = vld [vmem:[#allocation9 + $0x110] sm:$0xff]
    %v2021 = vld [vmem:[#allocation9 + $0x118] sm:$0xff]
    %v2022 = vld [vmem:[#allocation9 + $0x120] sm:$0xff]
    %v2023 = vld [vmem:[#allocation9 + $0x128] sm:$0xff]
    %v2024 = vld [vmem:[#allocation9 + $0x130] sm:$0xff]
    %v2025 = vld [vmem:[#allocation9 + $0x138] sm:$0xff]
    %v2026 = vld [vmem:[#allocation9 + $0x140] sm:$0xff]
    %v2027 = vld [vmem:[#allocation9 + $0x148] sm:$0xff]
    %v2028 = vld [vmem:[#allocation9 + $0x150] sm:$0xff]
    %v2029 = vld [vmem:[#allocation9 + $0x158] sm:$0xff]
    %v2030 = vld [vmem:[#allocation9 + $0x160] sm:$0xff]
    %v2031 = vld [vmem:[#allocation9 + $0x168] sm:$0xff]
    %v2032 = vld [vmem:[#allocation9 + $0x170] sm:$0xff]
    %v2033 = vld [vmem:[#allocation9 + $0x178] sm:$0xff]
    %v2034 = vld [vmem:[#allocation9 + $0x180] sm:$0xff]
    %v2035 = vld [vmem:[#allocation9 + $0x188] sm:$0xff]
    %v2036 = vld [vmem:[#allocation9 + $0x190] sm:$0xff]
    %v2037 = vld [vmem:[#allocation9 + $0x198] sm:$0xff]
    %v2038 = vld [vmem:[#allocation9 + $0x1a0] sm:$0xff]
    %v2039 = vld [vmem:[#allocation9 + $0x1a8] sm:$0xff]
    %v2040 = vld [vmem:[#allocation9 + $0x1b0] sm:$0xff]
    %v2041 = vld [vmem:[#allocation9 + $0x1b8] sm:$0xff]
    %v2042 = vld [vmem:[#allocation9 + $0x1c0] sm:$0xff]
    %v2043 = vld [vmem:[#allocation9 + $0x1c8] sm:$0xff]
    %v2044 = vld [vmem:[#allocation9 + $0x1d0] sm:$0xff]
    %v2045 = vld [vmem:[#allocation9 + $0x1d8] sm:$0xff]
    %v2046 = vld [vmem:[#allocation9 + $0x1e0] sm:$0xff]
    %v2047 = vld [vmem:[#allocation9 + $0x1e8] sm:$0xff]
    %v2048 = vld [vmem:[#allocation9 + $0x1f0] sm:$0xff]
    %v2049 = vld [vmem:[#allocation9 + $0x1f8] sm:$0xff]
    %v2051 = vrot.slane %v1980, 2
    %2053 = vmatprep.subr.mxu0 %v1987
    %2054 = vmatpush1.msra.mxu0 %v1986
    %2055 = vmatprep.subr.mxu0 %v1991
    %2056 = vmatpush1.msra.mxu0 %v1990
    %2057 = vmatprep.subr.mxu0 %v1995
    %2058 = vmatpush1.msra.mxu0 %v1994
    %2059 = vmatprep.subr.mxu0 %v1999
    %2060 = vmatpush1.msra.mxu0 %v1998
    %2061 = vmatprep.subr.mxu0 %v2003
    %2062 = vmatpush1.msra.mxu0 %v2002
    %2063 = vmatprep.subr.mxu0 %v2007
    %2064 = vmatpush1.msra.mxu0 %v2006
    %2065 = vmatprep.subr.mxu0 %v2011
    %2066 = vmatpush1.msra.mxu0 %v2010
    %2067 = vmatprep.subr.mxu0 %v2015
    %2068 = vmatpush1.msra.mxu0 %v2014
    %2069 = vmatprep.subr.mxu0 %v2019
    %2070 = vmatpush1.msra.mxu0 %v2018
    %2071 = vmatprep.subr.mxu0 %v2023
    %2072 = vmatpush1.msra.mxu0 %v2022
    %2073 = vmatprep.subr.mxu0 %v2027
    %2074 = vmatpush1.msra.mxu0 %v2026
    %2075 = vmatprep.subr.mxu0 %v2031
    %2076 = vmatpush1.msra.mxu0 %v2030
    %2077 = vmatprep.subr.mxu0 %v2035
    %2078 = vmatpush1.msra.mxu0 %v2034
    %2079 = vmatprep.subr.mxu0 %v2039
    %2080 = vmatpush1.msra.mxu0 %v2038
    %2081 = vmatprep.subr.mxu0 %v2043
    %2082 = vmatpush1.msra.mxu0 %v2042
    %2083 = vmatprep.subr.mxu0 %v2047
    %2084 = vmatpush1.msra.mxu0 %v2046
    %2085 = vmatprep.subr.mxu0 0.0
    %2086 = vmatpush1.msra.mxu0 0.0
    %2087 = vmatprep.subr.mxu0 0.0
    %2088 = vmatpush1.msra.mxu0 0.0
    %2089 = vmatprep.subr.mxu0 0.0
    %2090 = vmatpush1.msra.mxu0 0.0
    %2091 = vmatprep.subr.mxu0 0.0
    %2092 = vmatpush1.msra.mxu0 0.0
    %2093 = vmatprep.subr.mxu0 0.0
    %2094 = vmatpush1.msra.mxu0 0.0
    %2095 = vmatprep.subr.mxu0 0.0
    %2096 = vmatpush1.msra.mxu0 0.0
    %2097 = vmatprep.subr.mxu0 0.0
    %2098 = vmatpush1.msra.mxu0 0.0
    %2099 = vmatprep.subr.mxu0 0.0
    %2100 = vmatpush1.msra.mxu0 0.0
    %2101 = vmatprep.subr.mxu0 0.0
    %2102 = vmatpush1.msra.mxu0 0.0
    %2103 = vmatprep.subr.mxu0 0.0
    %2104 = vmatpush1.msra.mxu0 0.0
    %2105 = vmatprep.subr.mxu0 0.0
    %2106 = vmatpush1.msra.mxu0 0.0
    %2107 = vmatprep.subr.mxu0 0.0
    %2108 = vmatpush1.msra.mxu0 0.0
    %2109 = vmatprep.subr.mxu0 0.0
    %2110 = vmatpush1.msra.mxu0 0.0
    %2111 = vmatprep.subr.mxu0 0.0
    %2112 = vmatpush1.msra.mxu0 0.0
    %2113 = vmatprep.subr.mxu0 0.0
    %2114 = vmatpush1.msra.mxu0 0.0
    %2115 = vmatprep.subr.mxu0 0.0
    %2116 = vmatpush1.msra.mxu0 0.0
    %2117 = vmatprep.mubr.f32.mxu0 0.0
    %2118 = vmatmul.mubr.f32.gmra.mrb[0].mxu0 %v2051
    %v2119 = vpop.f32.mrb[0].mxu0
    %v2120 = vadd.f32 0.0, %v2119
    %v2121 = vpop.f32.mrb[0].mxu0
    %v2122 = vadd.f32 0.0, %v2121
    %2123 = vdwg.mxu0
    %2124 = vmatprep.subr.mxu0 %v1989
    %2125 = vmatpush1.msra.mxu0 %v1988
    %2126 = vmatprep.subr.mxu0 %v1993
    %2127 = vmatpush1.msra.mxu0 %v1992
    %2128 = vmatprep.subr.mxu0 %v1997
    %2129 = vmatpush1.msra.mxu0 %v1996
    %2130 = vmatprep.subr.mxu0 %v2001
    %2131 = vmatpush1.msra.mxu0 %v2000
    %2132 = vmatprep.subr.mxu0 %v2005
    %2133 = vmatpush1.msra.mxu0 %v2004
    %2134 = vmatprep.subr.mxu0 %v2009
    %2135 = vmatpush1.msra.mxu0 %v2008
    %2136 = vmatprep.subr.mxu0 %v2013
    %2137 = vmatpush1.msra.mxu0 %v2012
    %2138 = vmatprep.subr.mxu0 %v2017
    %2139 = vmatpush1.msra.mxu0 %v2016
    %2140 = vmatprep.subr.mxu0 %v2021
    %2141 = vmatpush1.msra.mxu0 %v2020
    %2142 = vmatprep.subr.mxu0 %v2025
    %2143 = vmatpush1.msra.mxu0 %v2024
    %2144 = vmatprep.subr.mxu0 %v2029
    %2145 = vmatpush1.msra.mxu0 %v2028
    %2146 = vmatprep.subr.mxu0 %v2033
    %2147 = vmatpush1.msra.mxu0 %v2032
    %2148 = vmatprep.subr.mxu0 %v2037
    %2149 = vmatpush1.msra.mxu0 %v2036
    %2150 = vmatprep.subr.mxu0 %v2041
    %2151 = vmatpush1.msra.mxu0 %v2040
    %2152 = vmatprep.subr.mxu0 %v2045
    %2153 = vmatpush1.msra.mxu0 %v2044
    %2154 = vmatprep.subr.mxu0 %v2049
    %2155 = vmatpush1.msra.mxu0 %v2048
    %2156 = vmatprep.subr.mxu0 0.0
    %2157 = vmatpush1.msra.mxu0 0.0
    %2158 = vmatprep.subr.mxu0 0.0
    %2159 = vmatpush1.msra.mxu0 0.0
    %2160 = vmatprep.subr.mxu0 0.0
    %2161 = vmatpush1.msra.mxu0 0.0
    %2162 = vmatprep.subr.mxu0 0.0
    %2163 = vmatpush1.msra.mxu0 0.0
    %2164 = vmatprep.subr.mxu0 0.0
    %2165 = vmatpush1.msra.mxu0 0.0
    %2166 = vmatprep.subr.mxu0 0.0
    %2167 = vmatpush1.msra.mxu0 0.0
    %2168 = vmatprep.subr.mxu0 0.0
    %2169 = vmatpush1.msra.mxu0 0.0
    %2170 = vmatprep.subr.mxu0 0.0
    %2171 = vmatpush1.msra.mxu0 0.0
    %2172 = vmatprep.subr.mxu0 0.0
    %2173 = vmatpush1.msra.mxu0 0.0
    %2174 = vmatprep.subr.mxu0 0.0
    %2175 = vmatpush1.msra.mxu0 0.0
    %2176 = vmatprep.subr.mxu0 0.0
    %2177 = vmatpush1.msra.mxu0 0.0
    %2178 = vmatprep.subr.mxu0 0.0
    %2179 = vmatpush1.msra.mxu0 0.0
    %2180 = vmatprep.subr.mxu0 0.0
    %2181 = vmatpush1.msra.mxu0 0.0
    %2182 = vmatprep.subr.mxu0 0.0
    %2183 = vmatpush1.msra.mxu0 0.0
    %2184 = vmatprep.subr.mxu0 0.0
    %2185 = vmatpush1.msra.mxu0 0.0
    %2186 = vmatprep.subr.mxu0 0.0
    %2187 = vmatpush1.msra.mxu0 0.0
    %2188 = vmatprep.mubr.f32.mxu0 0.0
    %2189 = vmatmul.mubr.f32.gmra.mrb[0].mxu0 %v2051
    %v2190 = vpop.f32.mrb[0].mxu0
    %v2191 = vadd.f32 0.0, %v2190
    %v2192 = vpop.f32.mrb[0].mxu0
    %v2193 = vadd.f32 0.0, %v2192
    %2194 = vdwg.mxu0
    %v2199 = vrot.slane %v2120, 4
    %v2200 = vrot.slane %v2122, 4
    %v2201 = vrot.slane %v2191, 4
    %v2202 = vrot.slane %v2193, 4
    %v2207 = vadd.f32 %v1982, %v2199
    %v2208 = vadd.f32 %v1983, %v2200
    %v2209 = vadd.f32 %v1984, %v2201
    %v2210 = vadd.f32 %v1985, %v2202
    %v2211 = vxor.u32 %v2207, 2147483648
    %v2212 = vxor.u32 %v2208, 2147483648
    %v2213 = vxor.u32 %v2209, 2147483648
    %v2214 = vmul.f32 %v2211, 1.442695
    %v2215 = vpow.pop %v2214
    %v2216 = vmul.f32 %v2212, 1.442695
    %v2217 = vpow.pop %v2216
    %v2218 = vmul.f32 %v2213, 1.442695
    %v2219 = vpow.pop %v2218
    %v2220 = vadd.f32 %v2215, 1.0
    %v2221 = vadd.f32 %v2217, 1.0
    %v2222 = vadd.f32 %v2219, 1.0
    %v2223 = vrcp.pop %v2220
    %v2224 = vmul.f32 1.0, %v2223
    %v2225 = vrcp.pop %v2221
    %v2226 = vmul.f32 1.0, %v2225
    %v2227 = vrcp.pop %v2222
    %v2228 = vmul.f32 1.0, %v2227
    %v2229 = vtanh.pop %v2210
    %v2231 = vrot.slane %v1978, 6
    %v2233 = vmul.f32 %v2226, %v2231
    %v2234 = vmul.f32 %v2224, %v2229
    %v2235 = vadd.f32 %v2233, %v2234
    %v2236 = vtanh.pop %v2235
    %v2237 = vmul.f32 %v2228, %v2236
    %2238 = vst [vmem:[#allocation2 + $0x8] sm:$0x30] %v2237
    %v2239 = vld [vmem:[#allocation3 + $0x20] sm:$0xc0]
    %v2240 = vld [vmem:[#allocation3 + $0x28] sm:$0xc0]
    %v2241 = vld [vmem:[#allocation3 + $0x30] sm:$0xc0]
    %v2242 = vld [vmem:[#allocation3 + $0x38] sm:$0xc0]
    %v2243 = vld [vmem:[#allocation9] sm:$0xff]
    %v2244 = vld [vmem:[#allocation9 + $0x8] sm:$0xff]
    %v2245 = vld [vmem:[#allocation9 + $0x10] sm:$0xff]
    %v2246 = vld [vmem:[#allocation9 + $0x18] sm:$0xff]
    %v2247 = vld [vmem:[#allocation9 + $0x20] sm:$0xff]
    %v2248 = vld [vmem:[#allocation9 + $0x28] sm:$0xff]
    %v2249 = vld [vmem:[#allocation9 + $0x30] sm:$0xff]
    %v2250 = vld [vmem:[#allocation9 + $0x38] sm:$0xff]
    %v2251 = vld [vmem:[#allocation9 + $0x40] sm:$0xff]
    %v2252 = vld [vmem:[#allocation9 + $0x48] sm:$0xff]
    %v2253 = vld [vmem:[#allocation9 + $0x50] sm:$0xff]
    %v2254 = vld [vmem:[#allocation9 + $0x58] sm:$0xff]
    %v2255 = vld [vmem:[#allocation9 + $0x60] sm:$0xff]
    %v2256 = vld [vmem:[#allocation9 + $0x68] sm:$0xff]
    %v2257 = vld [vmem:[#allocation9 + $0x70] sm:$0xff]
    %v2258 = vld [vmem:[#allocation9 + $0x78] sm:$0xff]
    %v2259 = vld [vmem:[#allocation9 + $0x80] sm:$0xff]
    %v2260 = vld [vmem:[#allocation9 + $0x88] sm:$0xff]
    %v2261 = vld [vmem:[#allocation9 + $0x90] sm:$0xff]
    %v2262 = vld [vmem:[#allocation9 + $0x98] sm:$0xff]
    %v2263 = vld [vmem:[#allocation9 + $0xa0] sm:$0xff]
    %v2264 = vld [vmem:[#allocation9 + $0xa8] sm:$0xff]
    %v2265 = vld [vmem:[#allocation9 + $0xb0] sm:$0xff]
    %v2266 = vld [vmem:[#allocation9 + $0xb8] sm:$0xff]
    %v2267 = vld [vmem:[#allocation9 + $0xc0] sm:$0xff]
    %v2268 = vld [vmem:[#allocation9 + $0xc8] sm:$0xff]
    %v2269 = vld [vmem:[#allocation9 + $0xd0] sm:$0xff]
    %v2270 = vld [vmem:[#allocation9 + $0xd8] sm:$0xff]
    %v2271 = vld [vmem:[#allocation9 + $0xe0] sm:$0xff]
    %v2272 = vld [vmem:[#allocation9 + $0xe8] sm:$0xff]
    %v2273 = vld [vmem:[#allocation9 + $0xf0] sm:$0xff]
    %v2274 = vld [vmem:[#allocation9 + $0xf8] sm:$0xff]
    %v2275 = vld [vmem:[#allocation9 + $0x100] sm:$0xff]
    %v2276 = vld [vmem:[#allocation9 + $0x108] sm:$0xff]
    %v2277 = vld [vmem:[#allocation9 + $0x110] sm:$0xff]
    %v2278 = vld [vmem:[#allocation9 + $0x118] sm:$0xff]
    %v2279 = vld [vmem:[#allocation9 + $0x120] sm:$0xff]
    %v2280 = vld [vmem:[#allocation9 + $0x128] sm:$0xff]
    %v2281 = vld [vmem:[#allocation9 + $0x130] sm:$0xff]
    %v2282 = vld [vmem:[#allocation9 + $0x138] sm:$0xff]
    %v2283 = vld [vmem:[#allocation9 + $0x140] sm:$0xff]
    %v2284 = vld [vmem:[#allocation9 + $0x148] sm:$0xff]
    %v2285 = vld [vmem:[#allocation9 + $0x150] sm:$0xff]
    %v2286 = vld [vmem:[#allocation9 + $0x158] sm:$0xff]
    %v2287 = vld [vmem:[#allocation9 + $0x160] sm:$0xff]
    %v2288 = vld [vmem:[#allocation9 + $0x168] sm:$0xff]
    %v2289 = vld [vmem:[#allocation9 + $0x170] sm:$0xff]
    %v2290 = vld [vmem:[#allocation9 + $0x178] sm:$0xff]
    %v2291 = vld [vmem:[#allocation9 + $0x180] sm:$0xff]
    %v2292 = vld [vmem:[#allocation9 + $0x188] sm:$0xff]
    %v2293 = vld [vmem:[#allocation9 + $0x190] sm:$0xff]
    %v2294 = vld [vmem:[#allocation9 + $0x198] sm:$0xff]
    %v2295 = vld [vmem:[#allocation9 + $0x1a0] sm:$0xff]
    %v2296 = vld [vmem:[#allocation9 + $0x1a8] sm:$0xff]
    %v2297 = vld [vmem:[#allocation9 + $0x1b0] sm:$0xff]
    %v2298 = vld [vmem:[#allocation9 + $0x1b8] sm:$0xff]
    %v2299 = vld [vmem:[#allocation9 + $0x1c0] sm:$0xff]
    %v2300 = vld [vmem:[#allocation9 + $0x1c8] sm:$0xff]
    %v2301 = vld [vmem:[#allocation9 + $0x1d0] sm:$0xff]
    %v2302 = vld [vmem:[#allocation9 + $0x1d8] sm:$0xff]
    %v2303 = vld [vmem:[#allocation9 + $0x1e0] sm:$0xff]
    %v2304 = vld [vmem:[#allocation9 + $0x1e8] sm:$0xff]
    %v2305 = vld [vmem:[#allocation9 + $0x1f0] sm:$0xff]
    %v2306 = vld [vmem:[#allocation9 + $0x1f8] sm:$0xff]
    %v2308 = vrot.slane %v2237, 4
    %2310 = vmatprep.subr.mxu0 %v2244
    %2311 = vmatpush1.msra.mxu0 %v2243
    %2312 = vmatprep.subr.mxu0 %v2248
    %2313 = vmatpush1.msra.mxu0 %v2247
    %2314 = vmatprep.subr.mxu0 %v2252
    %2315 = vmatpush1.msra.mxu0 %v2251
    %2316 = vmatprep.subr.mxu0 %v2256
    %2317 = vmatpush1.msra.mxu0 %v2255
    %2318 = vmatprep.subr.mxu0 %v2260
    %2319 = vmatpush1.msra.mxu0 %v2259
    %2320 = vmatprep.subr.mxu0 %v2264
    %2321 = vmatpush1.msra.mxu0 %v2263
    %2322 = vmatprep.subr.mxu0 %v2268
    %2323 = vmatpush1.msra.mxu0 %v2267
    %2324 = vmatprep.subr.mxu0 %v2272
    %2325 = vmatpush1.msra.mxu0 %v2271
    %2326 = vmatprep.subr.mxu0 %v2276
    %2327 = vmatpush1.msra.mxu0 %v2275
    %2328 = vmatprep.subr.mxu0 %v2280
    %2329 = vmatpush1.msra.mxu0 %v2279
    %2330 = vmatprep.subr.mxu0 %v2284
    %2331 = vmatpush1.msra.mxu0 %v2283
    %2332 = vmatprep.subr.mxu0 %v2288
    %2333 = vmatpush1.msra.mxu0 %v2287
    %2334 = vmatprep.subr.mxu0 %v2292
    %2335 = vmatpush1.msra.mxu0 %v2291
    %2336 = vmatprep.subr.mxu0 %v2296
    %2337 = vmatpush1.msra.mxu0 %v2295
    %2338 = vmatprep.subr.mxu0 %v2300
    %2339 = vmatpush1.msra.mxu0 %v2299
    %2340 = vmatprep.subr.mxu0 %v2304
    %2341 = vmatpush1.msra.mxu0 %v2303
    %2342 = vmatprep.subr.mxu0 0.0
    %2343 = vmatpush1.msra.mxu0 0.0
    %2344 = vmatprep.subr.mxu0 0.0
    %2345 = vmatpush1.msra.mxu0 0.0
    %2346 = vmatprep.subr.mxu0 0.0
    %2347 = vmatpush1.msra.mxu0 0.0
    %2348 = vmatprep.subr.mxu0 0.0
    %2349 = vmatpush1.msra.mxu0 0.0
    %2350 = vmatprep.subr.mxu0 0.0
    %2351 = vmatpush1.msra.mxu0 0.0
    %2352 = vmatprep.subr.mxu0 0.0
    %2353 = vmatpush1.msra.mxu0 0.0
    %2354 = vmatprep.subr.mxu0 0.0
    %2355 = vmatpush1.msra.mxu0 0.0
    %2356 = vmatprep.subr.mxu0 0.0
    %2357 = vmatpush1.msra.mxu0 0.0
    %2358 = vmatprep.subr.mxu0 0.0
    %2359 = vmatpush1.msra.mxu0 0.0
    %2360 = vmatprep.subr.mxu0 0.0
    %2361 = vmatpush1.msra.mxu0 0.0
    %2362 = vmatprep.subr.mxu0 0.0
    %2363 = vmatpush1.msra.mxu0 0.0
    %2364 = vmatprep.subr.mxu0 0.0
    %2365 = vmatpush1.msra.mxu0 0.0
    %2366 = vmatprep.subr.mxu0 0.0
    %2367 = vmatpush1.msra.mxu0 0.0
    %2368 = vmatprep.subr.mxu0 0.0
    %2369 = vmatpush1.msra.mxu0 0.0
    %2370 = vmatprep.subr.mxu0 0.0
    %2371 = vmatpush1.msra.mxu0 0.0
    %2372 = vmatprep.subr.mxu0 0.0
    %2373 = vmatpush1.msra.mxu0 0.0
    %2374 = vmatprep.mubr.f32.mxu0 0.0
    %2375 = vmatmul.mubr.f32.gmra.mrb[0].mxu0 %v2308
    %v2376 = vpop.f32.mrb[0].mxu0
    %v2377 = vadd.f32 0.0, %v2376
    %v2378 = vpop.f32.mrb[0].mxu0
    %v2379 = vadd.f32 0.0, %v2378
    %2380 = vdwg.mxu0
    %2381 = vmatprep.subr.mxu0 %v2246
    %2382 = vmatpush1.msra.mxu0 %v2245
    %2383 = vmatprep.subr.mxu0 %v2250
    %2384 = vmatpush1.msra.mxu0 %v2249
    %2385 = vmatprep.subr.mxu0 %v2254
    %2386 = vmatpush1.msra.mxu0 %v2253
    %2387 = vmatprep.subr.mxu0 %v2258
    %2388 = vmatpush1.msra.mxu0 %v2257
    %2389 = vmatprep.subr.mxu0 %v2262
    %2390 = vmatpush1.msra.mxu0 %v2261
    %2391 = vmatprep.subr.mxu0 %v2266
    %2392 = vmatpush1.msra.mxu0 %v2265
    %2393 = vmatprep.subr.mxu0 %v2270
    %2394 = vmatpush1.msra.mxu0 %v2269
    %2395 = vmatprep.subr.mxu0 %v2274
    %2396 = vmatpush1.msra.mxu0 %v2273
    %2397 = vmatprep.subr.mxu0 %v2278
    %2398 = vmatpush1.msra.mxu0 %v2277
    %2399 = vmatprep.subr.mxu0 %v2282
    %2400 = vmatpush1.msra.mxu0 %v2281
    %2401 = vmatprep.subr.mxu0 %v2286
    %2402 = vmatpush1.msra.mxu0 %v2285
    %2403 = vmatprep.subr.mxu0 %v2290
    %2404 = vmatpush1.msra.mxu0 %v2289
    %2405 = vmatprep.subr.mxu0 %v2294
    %2406 = vmatpush1.msra.mxu0 %v2293
    %2407 = vmatprep.subr.mxu0 %v2298
    %2408 = vmatpush1.msra.mxu0 %v2297
    %2409 = vmatprep.subr.mxu0 %v2302
    %2410 = vmatpush1.msra.mxu0 %v2301
    %2411 = vmatprep.subr.mxu0 %v2306
    %2412 = vmatpush1.msra.mxu0 %v2305
    %2413 = vmatprep.subr.mxu0 0.0
    %2414 = vmatpush1.msra.mxu0 0.0
    %2415 = vmatprep.subr.mxu0 0.0
    %2416 = vmatpush1.msra.mxu0 0.0
    %2417 = vmatprep.subr.mxu0 0.0
    %2418 = vmatpush1.msra.mxu0 0.0
    %2419 = vmatprep.subr.mxu0 0.0
    %2420 = vmatpush1.msra.mxu0 0.0
    %2421 = vmatprep.subr.mxu0 0.0
    %2422 = vmatpush1.msra.mxu0 0.0
    %2423 = vmatprep.subr.mxu0 0.0
    %2424 = vmatpush1.msra.mxu0 0.0
    %2425 = vmatprep.subr.mxu0 0.0
    %2426 = vmatpush1.msra.mxu0 0.0
    %2427 = vmatprep.subr.mxu0 0.0
    %2428 = vmatpush1.msra.mxu0 0.0
    %2429 = vmatprep.subr.mxu0 0.0
    %2430 = vmatpush1.msra.mxu0 0.0
    %2431 = vmatprep.subr.mxu0 0.0
    %2432 = vmatpush1.msra.mxu0 0.0
    %2433 = vmatprep.subr.mxu0 0.0
    %2434 = vmatpush1.msra.mxu0 0.0
    %2435 = vmatprep.subr.mxu0 0.0
    %2436 = vmatpush1.msra.mxu0 0.0
    %2437 = vmatprep.subr.mxu0 0.0
    %2438 = vmatpush1.msra.mxu0 0.0
    %2439 = vmatprep.subr.mxu0 0.0
    %2440 = vmatpush1.msra.mxu0 0.0
    %2441 = vmatprep.subr.mxu0 0.0
    %2442 = vmatpush1.msra.mxu0 0.0
    %2443 = vmatprep.subr.mxu0 0.0
    %2444 = vmatpush1.msra.mxu0 0.0
    %2445 = vmatprep.mubr.f32.mxu0 0.0
    %2446 = vmatmul.mubr.f32.gmra.mrb[0].mxu0 %v2308
    %v2447 = vpop.f32.mrb[0].mxu0
    %v2448 = vadd.f32 0.0, %v2447
    %v2449 = vpop.f32.mrb[0].mxu0
    %v2450 = vadd.f32 0.0, %v2449
    %2451 = vdwg.mxu0
    %v2456 = vrot.slane %v2377, 2
    %v2457 = vrot.slane %v2379, 2
    %v2458 = vrot.slane %v2448, 2
    %v2459 = vrot.slane %v2450, 2
    %v2464 = vadd.f32 %v2239, %v2456
    %v2465 = vadd.f32 %v2240, %v2457
    %v2466 = vadd.f32 %v2241, %v2458
    %v2467 = vadd.f32 %v2242, %v2459
    %v2468 = vxor.u32 %v2464, 2147483648
    %v2469 = vxor.u32 %v2465, 2147483648
    %v2470 = vxor.u32 %v2466, 2147483648
    %v2471 = vmul.f32 %v2468, 1.442695
    %v2472 = vpow.pop %v2471
    %v2473 = vmul.f32 %v2469, 1.442695
    %v2474 = vpow.pop %v2473
    %v2475 = vmul.f32 %v2470, 1.442695
    %v2476 = vpow.pop %v2475
    %v2477 = vadd.f32 %v2472, 1.0
    %v2478 = vadd.f32 %v2474, 1.0
    %v2479 = vadd.f32 %v2476, 1.0
    %v2480 = vrcp.pop %v2477
    %v2481 = vmul.f32 1.0, %v2480
    %v2482 = vrcp.pop %v2478
    %v2483 = vmul.f32 1.0, %v2482
    %v2484 = vrcp.pop %v2479
    %v2485 = vmul.f32 1.0, %v2484
    %v2486 = vtanh.pop %v2467
    %v2488 = vrot.slane %v2235, 6
    %v2490 = vmul.f32 %v2483, %v2488
    %v2491 = vmul.f32 %v2481, %v2486
    %v2492 = vadd.f32 %v2490, %v2491
    %v2493 = vtanh.pop %v2492
    %v2494 = vmul.f32 %v2485, %v2493
    %2495 = vst [vmem:[#allocation2 + $0x8] sm:$0xc0] %v2494
    %v2496 = vld [vmem:[#allocation2] sm:$0xff]
    %v2497 = vld [vmem:[#allocation2 + $0x8] sm:$0xff]
    %v2498 = vld [vmem:[#allocation10] sm:$0xff]
    %v2499 = vld [vmem:[#allocation10 + $0x8] sm:$0xff]
    %v2500 = vld [vmem:[#allocation10 + $0x10] sm:$0xff]
    %v2501 = vld [vmem:[#allocation10 + $0x18] sm:$0xff]
    %v2502 = vld [vmem:[#allocation10 + $0x20] sm:$0xff]
    %v2503 = vld [vmem:[#allocation10 + $0x28] sm:$0xff]
    %v2504 = vld [vmem:[#allocation10 + $0x30] sm:$0xff]
    %v2505 = vld [vmem:[#allocation10 + $0x38] sm:$0xff]
    %v2506 = vld [vmem:[#allocation10 + $0x40] sm:$0xff]
    %v2507 = vld [vmem:[#allocation10 + $0x48] sm:$0xff]
    %v2508 = vld [vmem:[#allocation10 + $0x50] sm:$0xff]
    %v2509 = vld [vmem:[#allocation10 + $0x58] sm:$0xff]
    %v2510 = vld [vmem:[#allocation10 + $0x60] sm:$0xff]
    %v2511 = vld [vmem:[#allocation10 + $0x68] sm:$0xff]
    %v2512 = vld [vmem:[#allocation10 + $0x70] sm:$0xff]
    %v2513 = vld [vmem:[#allocation10 + $0x78] sm:$0xff]
    %v2514 = vld [vmem:[#allocation10 + $0x80] sm:$0xff]
    %v2515 = vld [vmem:[#allocation10 + $0x88] sm:$0xff]
    %v2516 = vld [vmem:[#allocation10 + $0x90] sm:$0xff]
    %v2517 = vld [vmem:[#allocation10 + $0x98] sm:$0xff]
    %v2518 = vld [vmem:[#allocation10 + $0xa0] sm:$0xff]
    %v2519 = vld [vmem:[#allocation10 + $0xa8] sm:$0xff]
    %v2520 = vld [vmem:[#allocation10 + $0xb0] sm:$0xff]
    %v2521 = vld [vmem:[#allocation10 + $0xb8] sm:$0xff]
    %v2522 = vld [vmem:[#allocation10 + $0xc0] sm:$0xff]
    %v2523 = vld [vmem:[#allocation10 + $0xc8] sm:$0xff]
    %v2524 = vld [vmem:[#allocation10 + $0xd0] sm:$0xff]
    %v2525 = vld [vmem:[#allocation10 + $0xd8] sm:$0xff]
    %v2526 = vld [vmem:[#allocation10 + $0xe0] sm:$0xff]
    %v2527 = vld [vmem:[#allocation10 + $0xe8] sm:$0xff]
    %v2528 = vld [vmem:[#allocation10 + $0xf0] sm:$0xff]
    %v2529 = vld [vmem:[#allocation10 + $0xf8] sm:$0xff]
    %v2530 = vld [vmem:[#allocation10 + $0x100] sm:$0xff]
    %v2531 = vld [vmem:[#allocation10 + $0x108] sm:$0xff]
    %v2532 = vld [vmem:[#allocation10 + $0x110] sm:$0xff]
    %v2533 = vld [vmem:[#allocation10 + $0x118] sm:$0xff]
    %v2534 = vld [vmem:[#allocation10 + $0x120] sm:$0xff]
    %v2535 = vld [vmem:[#allocation10 + $0x128] sm:$0xff]
    %v2536 = vld [vmem:[#allocation10 + $0x130] sm:$0xff]
    %v2537 = vld [vmem:[#allocation10 + $0x138] sm:$0xff]
    %v2538 = vld [vmem:[#allocation10 + $0x140] sm:$0xff]
    %v2539 = vld [vmem:[#allocation10 + $0x148] sm:$0xff]
    %v2540 = vld [vmem:[#allocation10 + $0x150] sm:$0xff]
    %v2541 = vld [vmem:[#allocation10 + $0x158] sm:$0xff]
    %v2542 = vld [vmem:[#allocation10 + $0x160] sm:$0xff]
    %v2543 = vld [vmem:[#allocation10 + $0x168] sm:$0xff]
    %v2544 = vld [vmem:[#allocation10 + $0x170] sm:$0xff]
    %v2545 = vld [vmem:[#allocation10 + $0x178] sm:$0xff]
    %v2546 = vld [vmem:[#allocation10 + $0x180] sm:$0xff]
    %v2547 = vld [vmem:[#allocation10 + $0x188] sm:$0xff]
    %v2548 = vld [vmem:[#allocation10 + $0x190] sm:$0xff]
    %v2549 = vld [vmem:[#allocation10 + $0x198] sm:$0xff]
    %v2550 = vld [vmem:[#allocation10 + $0x1a0] sm:$0xff]
    %v2551 = vld [vmem:[#allocation10 + $0x1a8] sm:$0xff]
    %v2552 = vld [vmem:[#allocation10 + $0x1b0] sm:$0xff]
    %v2553 = vld [vmem:[#allocation10 + $0x1b8] sm:$0xff]
    %v2554 = vld [vmem:[#allocation10 + $0x1c0] sm:$0xff]
    %v2555 = vld [vmem:[#allocation10 + $0x1c8] sm:$0xff]
    %v2556 = vld [vmem:[#allocation10 + $0x1d0] sm:$0xff]
    %v2557 = vld [vmem:[#allocation10 + $0x1d8] sm:$0xff]
    %v2558 = vld [vmem:[#allocation10 + $0x1e0] sm:$0xff]
    %v2559 = vld [vmem:[#allocation10 + $0x1e8] sm:$0xff]
    %v2560 = vld [vmem:[#allocation10 + $0x1f0] sm:$0xff]
    %v2561 = vld [vmem:[#allocation10 + $0x1f8] sm:$0xff]
    %v2562 = vld [vmem:[%s6] sm:$0xf]
    %v2564 = vlaneseq
    %v2565 = vshrl.u32 %v2564, 7
    %v2566 = vsub.s32 0, %v2565
    %v2567 = vrot.slane %v2562, %v2566
    %v2568 = vlaneseq
    %v2569 = vshrl.u32 %v2568, 7
    %v2570 = vsub.s32 1, %v2569
    %v2571 = vrot.slane %v2562, %v2570
    %v2572 = vlaneseq
    %v2573 = vshrl.u32 %v2572, 7
    %v2574 = vsub.s32 2, %v2573
    %v2575 = vrot.slane %v2562, %v2574
    %v2576 = vlaneseq
    %v2577 = vshrl.u32 %v2576, 7
    %v2578 = vsub.s32 3, %v2577
    %v2579 = vrot.slane %v2562, %v2578
    %2584 = vmatprep.subr.mxu0 %v2499
    %2585 = vmatpush1.msra.mxu0 %v2498
    %2586 = vmatprep.subr.mxu0 %v2503
    %2587 = vmatpush1.msra.mxu0 %v2502
    %2588 = vmatprep.subr.mxu0 %v2507
    %2589 = vmatpush1.msra.mxu0 %v2506
    %2590 = vmatprep.subr.mxu0 %v2511
    %2591 = vmatpush1.msra.mxu0 %v2510
    %2592 = vmatprep.subr.mxu0 %v2515
    %2593 = vmatpush1.msra.mxu0 %v2514
    %2594 = vmatprep.subr.mxu0 %v2519
    %2595 = vmatpush1.msra.mxu0 %v2518
    %2596 = vmatprep.subr.mxu0 %v2523
    %2597 = vmatpush1.msra.mxu0 %v2522
    %2598 = vmatprep.subr.mxu0 %v2527
    %2599 = vmatpush1.msra.mxu0 %v2526
    %2600 = vmatprep.subr.mxu0 %v2531
    %2601 = vmatpush1.msra.mxu0 %v2530
    %2602 = vmatprep.subr.mxu0 %v2535
    %2603 = vmatpush1.msra.mxu0 %v2534
    %2604 = vmatprep.subr.mxu0 %v2539
    %2605 = vmatpush1.msra.mxu0 %v2538
    %2606 = vmatprep.subr.mxu0 %v2543
    %2607 = vmatpush1.msra.mxu0 %v2542
    %2608 = vmatprep.subr.mxu0 %v2547
    %2609 = vmatpush1.msra.mxu0 %v2546
    %2610 = vmatprep.subr.mxu0 %v2551
    %2611 = vmatpush1.msra.mxu0 %v2550
    %2612 = vmatprep.subr.mxu0 %v2555
    %2613 = vmatpush1.msra.mxu0 %v2554
    %2614 = vmatprep.subr.mxu0 %v2559
    %2615 = vmatpush1.msra.mxu0 %v2558
    %2616 = vmatprep.subr.mxu0 0.0
    %2617 = vmatpush1.msra.mxu0 0.0
    %2618 = vmatprep.subr.mxu0 0.0
    %2619 = vmatpush1.msra.mxu0 0.0
    %2620 = vmatprep.subr.mxu0 0.0
    %2621 = vmatpush1.msra.mxu0 0.0
    %2622 = vmatprep.subr.mxu0 0.0
    %2623 = vmatpush1.msra.mxu0 0.0
    %2624 = vmatprep.subr.mxu0 0.0
    %2625 = vmatpush1.msra.mxu0 0.0
    %2626 = vmatprep.subr.mxu0 0.0
    %2627 = vmatpush1.msra.mxu0 0.0
    %2628 = vmatprep.subr.mxu0 0.0
    %2629 = vmatpush1.msra.mxu0 0.0
    %2630 = vmatprep.subr.mxu0 0.0
    %2631 = vmatpush1.msra.mxu0 0.0
    %2632 = vmatprep.subr.mxu0 0.0
    %2633 = vmatpush1.msra.mxu0 0.0
    %2634 = vmatprep.subr.mxu0 0.0
    %2635 = vmatpush1.msra.mxu0 0.0
    %2636 = vmatprep.subr.mxu0 0.0
    %2637 = vmatpush1.msra.mxu0 0.0
    %2638 = vmatprep.subr.mxu0 0.0
    %2639 = vmatpush1.msra.mxu0 0.0
    %2640 = vmatprep.subr.mxu0 0.0
    %2641 = vmatpush1.msra.mxu0 0.0
    %2642 = vmatprep.subr.mxu0 0.0
    %2643 = vmatpush1.msra.mxu0 0.0
    %2644 = vmatprep.subr.mxu0 0.0
    %2645 = vmatpush1.msra.mxu0 0.0
    %2646 = vmatprep.subr.mxu0 0.0
    %2647 = vmatpush1.msra.mxu0 0.0
    %2648 = vmatprep.mubr.f32.mxu0 0.0
    %2649 = vmatmul.mubr.f32.gmra.mrb[0].mxu0 %v2496
    %v2650 = vpop.f32.mrb[0].mxu0
    %v2651 = vadd.f32 %v2567, %v2650
    %v2652 = vpop.f32.mrb[0].mxu0
    %v2653 = vadd.f32 %v2571, %v2652
    %2654 = vmatprep.mubr.f32.mxu0 0.0
    %2655 = vmatmul.mubr.f32.gmra.mrb[0].mxu0 %v2497
    %v2656 = vpop.f32.mrb[0].mxu0
    %v2657 = vadd.f32 %v2567, %v2656
    %v2658 = vpop.f32.mrb[0].mxu0
    %v2659 = vadd.f32 %v2571, %v2658
    %2660 = vdwg.mxu0
    %2661 = vmatprep.subr.mxu0 %v2501
    %2662 = vmatpush1.msra.mxu0 %v2500
    %2663 = vmatprep.subr.mxu0 %v2505
    %2664 = vmatpush1.msra.mxu0 %v2504
    %2665 = vmatprep.subr.mxu0 %v2509
    %2666 = vmatpush1.msra.mxu0 %v2508
    %2667 = vmatprep.subr.mxu0 %v2513
    %2668 = vmatpush1.msra.mxu0 %v2512
    %2669 = vmatprep.subr.mxu0 %v2517
    %2670 = vmatpush1.msra.mxu0 %v2516
    %2671 = vmatprep.subr.mxu0 %v2521
    %2672 = vmatpush1.msra.mxu0 %v2520
    %2673 = vmatprep.subr.mxu0 %v2525
    %2674 = vmatpush1.msra.mxu0 %v2524
    %2675 = vmatprep.subr.mxu0 %v2529
    %2676 = vmatpush1.msra.mxu0 %v2528
    %2677 = vmatprep.subr.mxu0 %v2533
    %2678 = vmatpush1.msra.mxu0 %v2532
    %2679 = vmatprep.subr.mxu0 %v2537
    %2680 = vmatpush1.msra.mxu0 %v2536
    %2681 = vmatprep.subr.mxu0 %v2541
    %2682 = vmatpush1.msra.mxu0 %v2540
    %2683 = vmatprep.subr.mxu0 %v2545
    %2684 = vmatpush1.msra.mxu0 %v2544
    %2685 = vmatprep.subr.mxu0 %v2549
    %2686 = vmatpush1.msra.mxu0 %v2548
    %2687 = vmatprep.subr.mxu0 %v2553
    %2688 = vmatpush1.msra.mxu0 %v2552
    %2689 = vmatprep.subr.mxu0 %v2557
    %2690 = vmatpush1.msra.mxu0 %v2556
    %2691 = vmatprep.subr.mxu0 %v2561
    %2692 = vmatpush1.msra.mxu0 %v2560
    %2693 = vmatprep.subr.mxu0 0.0
    %2694 = vmatpush1.msra.mxu0 0.0
    %2695 = vmatprep.subr.mxu0 0.0
    %2696 = vmatpush1.msra.mxu0 0.0
    %2697 = vmatprep.subr.mxu0 0.0
    %2698 = vmatpush1.msra.mxu0 0.0
    %2699 = vmatprep.subr.mxu0 0.0
    %2700 = vmatpush1.msra.mxu0 0.0
    %2701 = vmatprep.subr.mxu0 0.0
    %2702 = vmatpush1.msra.mxu0 0.0
    %2703 = vmatprep.subr.mxu0 0.0
    %2704 = vmatpush1.msra.mxu0 0.0
    %2705 = vmatprep.subr.mxu0 0.0
    %2706 = vmatpush1.msra.mxu0 0.0
    %2707 = vmatprep.subr.mxu0 0.0
    %2708 = vmatpush1.msra.mxu0 0.0
    %2709 = vmatprep.subr.mxu0 0.0
    %2710 = vmatpush1.msra.mxu0 0.0
    %2711 = vmatprep.subr.mxu0 0.0
    %2712 = vmatpush1.msra.mxu0 0.0
    %2713 = vmatprep.subr.mxu0 0.0
    %2714 = vmatpush1.msra.mxu0 0.0
    %2715 = vmatprep.subr.mxu0 0.0
    %2716 = vmatpush1.msra.mxu0 0.0
    %2717 = vmatprep.subr.mxu0 0.0
    %2718 = vmatpush1.msra.mxu0 0.0
    %2719 = vmatprep.subr.mxu0 0.0
    %2720 = vmatpush1.msra.mxu0 0.0
    %2721 = vmatprep.subr.mxu0 0.0
    %2722 = vmatpush1.msra.mxu0 0.0
    %2723 = vmatprep.subr.mxu0 0.0
    %2724 = vmatpush1.msra.mxu0 0.0
    %2725 = vmatprep.mubr.f32.mxu0 0.0
    %2726 = vmatmul.mubr.f32.gmra.mrb[0].mxu0 %v2496
    %v2727 = vpop.f32.mrb[0].mxu0
    %v2728 = vadd.f32 %v2575, %v2727
    %v2729 = vpop.f32.mrb[0].mxu0
    %v2730 = vadd.f32 %v2579, %v2729
    %2731 = vmatprep.mubr.f32.mxu0 0.0
    %2732 = vmatmul.mubr.f32.gmra.mrb[0].mxu0 %v2497
    %v2733 = vpop.f32.mrb[0].mxu0
    %v2734 = vadd.f32 %v2575, %v2733
    %v2735 = vpop.f32.mrb[0].mxu0
    %v2736 = vadd.f32 %v2579, %v2735
    %2737 = vdwg.mxu0
    %2738 = vst [vmem:[#allocation3] sm:$0xff] %v2651
    %2739 = vst [vmem:[#allocation3 + $0x8] sm:$0xff] %v2653
    %2740 = vst [vmem:[#allocation3 + $0x10] sm:$0xff] %v2728
    %2741 = vst [vmem:[#allocation3 + $0x18] sm:$0xff] %v2730
    %2742 = vst [vmem:[#allocation3 + $0x20] sm:$0xff] %v2657
    %2743 = vst [vmem:[#allocation3 + $0x28] sm:$0xff] %v2659
    %2744 = vst [vmem:[#allocation3 + $0x30] sm:$0xff] %v2734
    %2745 = vst [vmem:[#allocation3 + $0x38] sm:$0xff] %v2736
    %v2746 = vld [vmem:[#allocation3] sm:$0x3]
    %v2747 = vld [vmem:[#allocation3 + $0x8] sm:$0x3]
    %v2748 = vld [vmem:[#allocation3 + $0x10] sm:$0x3]
    %v2749 = vld [vmem:[#allocation3 + $0x18] sm:$0x3]
    %v2750 = vld [vmem:[#allocation12] sm:$0xff]
    %v2751 = vld [vmem:[#allocation12 + $0x8] sm:$0xff]
    %v2752 = vld [vmem:[#allocation12 + $0x10] sm:$0xff]
    %v2753 = vld [vmem:[#allocation12 + $0x18] sm:$0xff]
    %v2754 = vld [vmem:[#allocation12 + $0x20] sm:$0xff]
    %v2755 = vld [vmem:[#allocation12 + $0x28] sm:$0xff]
    %v2756 = vld [vmem:[#allocation12 + $0x30] sm:$0xff]
    %v2757 = vld [vmem:[#allocation12 + $0x38] sm:$0xff]
    %v2758 = vld [vmem:[#allocation12 + $0x40] sm:$0xff]
    %v2759 = vld [vmem:[#allocation12 + $0x48] sm:$0xff]
    %v2760 = vld [vmem:[#allocation12 + $0x50] sm:$0xff]
    %v2761 = vld [vmem:[#allocation12 + $0x58] sm:$0xff]
    %v2762 = vld [vmem:[#allocation12 + $0x60] sm:$0xff]
    %v2763 = vld [vmem:[#allocation12 + $0x68] sm:$0xff]
    %v2764 = vld [vmem:[#allocation12 + $0x70] sm:$0xff]
    %v2765 = vld [vmem:[#allocation12 + $0x78] sm:$0xff]
    %v2766 = vld [vmem:[#allocation12 + $0x80] sm:$0xff]
    %v2767 = vld [vmem:[#allocation12 + $0x88] sm:$0xff]
    %v2768 = vld [vmem:[#allocation12 + $0x90] sm:$0xff]
    %v2769 = vld [vmem:[#allocation12 + $0x98] sm:$0xff]
    %v2770 = vld [vmem:[#allocation12 + $0xa0] sm:$0xff]
    %v2771 = vld [vmem:[#allocation12 + $0xa8] sm:$0xff]
    %v2772 = vld [vmem:[#allocation12 + $0xb0] sm:$0xff]
    %v2773 = vld [vmem:[#allocation12 + $0xb8] sm:$0xff]
    %v2774 = vld [vmem:[#allocation12 + $0xc0] sm:$0xff]
    %v2775 = vld [vmem:[#allocation12 + $0xc8] sm:$0xff]
    %v2776 = vld [vmem:[#allocation12 + $0xd0] sm:$0xff]
    %v2777 = vld [vmem:[#allocation12 + $0xd8] sm:$0xff]
    %v2778 = vld [vmem:[#allocation12 + $0xe0] sm:$0xff]
    %v2779 = vld [vmem:[#allocation12 + $0xe8] sm:$0xff]
    %v2780 = vld [vmem:[#allocation12 + $0xf0] sm:$0xff]
    %v2781 = vld [vmem:[#allocation12 + $0xf8] sm:$0xff]
    %v2782 = vld [vmem:[#allocation12 + $0x100] sm:$0xff]
    %v2783 = vld [vmem:[#allocation12 + $0x108] sm:$0xff]
    %v2784 = vld [vmem:[#allocation12 + $0x110] sm:$0xff]
    %v2785 = vld [vmem:[#allocation12 + $0x118] sm:$0xff]
    %v2786 = vld [vmem:[#allocation12 + $0x120] sm:$0xff]
    %v2787 = vld [vmem:[#allocation12 + $0x128] sm:$0xff]
    %v2788 = vld [vmem:[#allocation12 + $0x130] sm:$0xff]
    %v2789 = vld [vmem:[#allocation12 + $0x138] sm:$0xff]
    %v2790 = vld [vmem:[#allocation12 + $0x140] sm:$0xff]
    %v2791 = vld [vmem:[#allocation12 + $0x148] sm:$0xff]
    %v2792 = vld [vmem:[#allocation12 + $0x150] sm:$0xff]
    %v2793 = vld [vmem:[#allocation12 + $0x158] sm:$0xff]
    %v2794 = vld [vmem:[#allocation12 + $0x160] sm:$0xff]
    %v2795 = vld [vmem:[#allocation12 + $0x168] sm:$0xff]
    %v2796 = vld [vmem:[#allocation12 + $0x170] sm:$0xff]
    %v2797 = vld [vmem:[#allocation12 + $0x178] sm:$0xff]
    %v2798 = vld [vmem:[#allocation12 + $0x180] sm:$0xff]
    %v2799 = vld [vmem:[#allocation12 + $0x188] sm:$0xff]
    %v2800 = vld [vmem:[#allocation12 + $0x190] sm:$0xff]
    %v2801 = vld [vmem:[#allocation12 + $0x198] sm:$0xff]
    %v2802 = vld [vmem:[#allocation12 + $0x1a0] sm:$0xff]
    %v2803 = vld [vmem:[#allocation12 + $0x1a8] sm:$0xff]
    %v2804 = vld [vmem:[#allocation12 + $0x1b0] sm:$0xff]
    %v2805 = vld [vmem:[#allocation12 + $0x1b8] sm:$0xff]
    %v2806 = vld [vmem:[#allocation12 + $0x1c0] sm:$0xff]
    %v2807 = vld [vmem:[#allocation12 + $0x1c8] sm:$0xff]
    %v2808 = vld [vmem:[#allocation12 + $0x1d0] sm:$0xff]
    %v2809 = vld [vmem:[#allocation12 + $0x1d8] sm:$0xff]
    %v2810 = vld [vmem:[#allocation12 + $0x1e0] sm:$0xff]
    %v2811 = vld [vmem:[#allocation12 + $0x1e8] sm:$0xff]
    %v2812 = vld [vmem:[#allocation12 + $0x1f0] sm:$0xff]
    %v2813 = vld [vmem:[#allocation12 + $0x1f8] sm:$0xff]
    %2814 = vmatprep.subr.mxu0 %v2751
    %2815 = vmatpush1.msra.mxu0 %v2750
    %2816 = vmatprep.subr.mxu0 %v2755
    %2817 = vmatpush1.msra.mxu0 %v2754
    %2818 = vmatprep.subr.mxu0 %v2759
    %2819 = vmatpush1.msra.mxu0 %v2758
    %2820 = vmatprep.subr.mxu0 %v2763
    %2821 = vmatpush1.msra.mxu0 %v2762
    %2822 = vmatprep.subr.mxu0 %v2767
    %2823 = vmatpush1.msra.mxu0 %v2766
    %2824 = vmatprep.subr.mxu0 %v2771
    %2825 = vmatpush1.msra.mxu0 %v2770
    %2826 = vmatprep.subr.mxu0 %v2775
    %2827 = vmatpush1.msra.mxu0 %v2774
    %2828 = vmatprep.subr.mxu0 %v2779
    %2829 = vmatpush1.msra.mxu0 %v2778
    %2830 = vmatprep.subr.mxu0 %v2783
    %2831 = vmatpush1.msra.mxu0 %v2782
    %2832 = vmatprep.subr.mxu0 %v2787
    %2833 = vmatpush1.msra.mxu0 %v2786
    %2834 = vmatprep.subr.mxu0 %v2791
    %2835 = vmatpush1.msra.mxu0 %v2790
    %2836 = vmatprep.subr.mxu0 %v2795
    %2837 = vmatpush1.msra.mxu0 %v2794
    %2838 = vmatprep.subr.mxu0 %v2799
    %2839 = vmatpush1.msra.mxu0 %v2798
    %2840 = vmatprep.subr.mxu0 %v2803
    %2841 = vmatpush1.msra.mxu0 %v2802
    %2842 = vmatprep.subr.mxu0 %v2807
    %2843 = vmatpush1.msra.mxu0 %v2806
    %2844 = vmatprep.subr.mxu0 %v2811
    %2845 = vmatpush1.msra.mxu0 %v2810
    %2846 = vmatprep.subr.mxu0 0.0
    %2847 = vmatpush1.msra.mxu0 0.0
    %2848 = vmatprep.subr.mxu0 0.0
    %2849 = vmatpush1.msra.mxu0 0.0
    %2850 = vmatprep.subr.mxu0 0.0
    %2851 = vmatpush1.msra.mxu0 0.0
    %2852 = vmatprep.subr.mxu0 0.0
    %2853 = vmatpush1.msra.mxu0 0.0
    %2854 = vmatprep.subr.mxu0 0.0
    %2855 = vmatpush1.msra.mxu0 0.0
    %2856 = vmatprep.subr.mxu0 0.0
    %2857 = vmatpush1.msra.mxu0 0.0
    %2858 = vmatprep.subr.mxu0 0.0
    %2859 = vmatpush1.msra.mxu0 0.0
    %2860 = vmatprep.subr.mxu0 0.0
    %2861 = vmatpush1.msra.mxu0 0.0
    %2862 = vmatprep.subr.mxu0 0.0
    %2863 = vmatpush1.msra.mxu0 0.0
    %2864 = vmatprep.subr.mxu0 0.0
    %2865 = vmatpush1.msra.mxu0 0.0
    %2866 = vmatprep.subr.mxu0 0.0
    %2867 = vmatpush1.msra.mxu0 0.0
    %2868 = vmatprep.subr.mxu0 0.0
    %2869 = vmatpush1.msra.mxu0 0.0
    %2870 = vmatprep.subr.mxu0 0.0
    %2871 = vmatpush1.msra.mxu0 0.0
    %2872 = vmatprep.subr.mxu0 0.0
    %2873 = vmatpush1.msra.mxu0 0.0
    %2874 = vmatprep.subr.mxu0 0.0
    %2875 = vmatpush1.msra.mxu0 0.0
    %2876 = vmatprep.subr.mxu0 0.0
    %2877 = vmatpush1.msra.mxu0 0.0
    %2878 = vmatprep.mubr.f32.mxu0 0.0
    %2879 = vmatmul.mubr.f32.gmra.mrb[0].mxu0 0.0
    %v2880 = vpop.f32.mrb[0].mxu0
    %v2881 = vadd.f32 0.0, %v2880
    %v2882 = vpop.f32.mrb[0].mxu0
    %v2883 = vadd.f32 0.0, %v2882
    %2884 = vdwg.mxu0
    %2885 = vmatprep.subr.mxu0 %v2753
    %2886 = vmatpush1.msra.mxu0 %v2752
    %2887 = vmatprep.subr.mxu0 %v2757
    %2888 = vmatpush1.msra.mxu0 %v2756
    %2889 = vmatprep.subr.mxu0 %v2761
    %2890 = vmatpush1.msra.mxu0 %v2760
    %2891 = vmatprep.subr.mxu0 %v2765
    %2892 = vmatpush1.msra.mxu0 %v2764
    %2893 = vmatprep.subr.mxu0 %v2769
    %2894 = vmatpush1.msra.mxu0 %v2768
    %2895 = vmatprep.subr.mxu0 %v2773
    %2896 = vmatpush1.msra.mxu0 %v2772
    %2897 = vmatprep.subr.mxu0 %v2777
    %2898 = vmatpush1.msra.mxu0 %v2776
    %2899 = vmatprep.subr.mxu0 %v2781
    %2900 = vmatpush1.msra.mxu0 %v2780
    %2901 = vmatprep.subr.mxu0 %v2785
    %2902 = vmatpush1.msra.mxu0 %v2784
    %2903 = vmatprep.subr.mxu0 %v2789
    %2904 = vmatpush1.msra.mxu0 %v2788
    %2905 = vmatprep.subr.mxu0 %v2793
    %2906 = vmatpush1.msra.mxu0 %v2792
    %2907 = vmatprep.subr.mxu0 %v2797
    %2908 = vmatpush1.msra.mxu0 %v2796
    %2909 = vmatprep.subr.mxu0 %v2801
    %2910 = vmatpush1.msra.mxu0 %v2800
    %2911 = vmatprep.subr.mxu0 %v2805
    %2912 = vmatpush1.msra.mxu0 %v2804
    %2913 = vmatprep.subr.mxu0 %v2809
    %2914 = vmatpush1.msra.mxu0 %v2808
    %2915 = vmatprep.subr.mxu0 %v2813
    %2916 = vmatpush1.msra.mxu0 %v2812
    %2917 = vmatprep.subr.mxu0 0.0
    %2918 = vmatpush1.msra.mxu0 0.0
    %2919 = vmatprep.subr.mxu0 0.0
    %2920 = vmatpush1.msra.mxu0 0.0
    %2921 = vmatprep.subr.mxu0 0.0
    %2922 = vmatpush1.msra.mxu0 0.0
    %2923 = vmatprep.subr.mxu0 0.0
    %2924 = vmatpush1.msra.mxu0 0.0
    %2925 = vmatprep.subr.mxu0 0.0
    %2926 = vmatpush1.msra.mxu0 0.0
    %2927 = vmatprep.subr.mxu0 0.0
    %2928 = vmatpush1.msra.mxu0 0.0
    %2929 = vmatprep.subr.mxu0 0.0
    %2930 = vmatpush1.msra.mxu0 0.0
    %2931 = vmatprep.subr.mxu0 0.0
    %2932 = vmatpush1.msra.mxu0 0.0
    %2933 = vmatprep.subr.mxu0 0.0
    %2934 = vmatpush1.msra.mxu0 0.0
    %2935 = vmatprep.subr.mxu0 0.0
    %2936 = vmatpush1.msra.mxu0 0.0
    %2937 = vmatprep.subr.mxu0 0.0
    %2938 = vmatpush1.msra.mxu0 0.0
    %2939 = vmatprep.subr.mxu0 0.0
    %2940 = vmatpush1.msra.mxu0 0.0
    %2941 = vmatprep.subr.mxu0 0.0
    %2942 = vmatpush1.msra.mxu0 0.0
    %2943 = vmatprep.subr.mxu0 0.0
    %2944 = vmatpush1.msra.mxu0 0.0
    %2945 = vmatprep.subr.mxu0 0.0
    %2946 = vmatpush1.msra.mxu0 0.0
    %2947 = vmatprep.subr.mxu0 0.0
    %2948 = vmatpush1.msra.mxu0 0.0
    %2949 = vmatprep.mubr.f32.mxu0 0.0
    %2950 = vmatmul.mubr.f32.gmra.mrb[0].mxu0 0.0
    %v2951 = vpop.f32.mrb[0].mxu0
    %v2952 = vadd.f32 0.0, %v2951
    %v2953 = vpop.f32.mrb[0].mxu0
    %v2954 = vadd.f32 0.0, %v2953
    %2955 = vdwg.mxu0
    %v2956 = vadd.f32 %v2746, %v2881
    %v2957 = vadd.f32 %v2747, %v2883
    %v2958 = vadd.f32 %v2748, %v2952
    %v2959 = vadd.f32 %v2749, %v2954
    %v2960 = vxor.u32 %v2956, 2147483648
    %v2961 = vxor.u32 %v2957, 2147483648
    %v2962 = vxor.u32 %v2958, 2147483648
    %v2963 = vmul.f32 %v2960, 1.442695
    %v2964 = vpow.pop %v2963
    %v2965 = vmul.f32 %v2961, 1.442695
    %v2966 = vpow.pop %v2965
    %v2967 = vmul.f32 %v2962, 1.442695
    %v2968 = vpow.pop %v2967
    %v2969 = vadd.f32 %v2964, 1.0
    %v2970 = vadd.f32 %v2966, 1.0
    %v2971 = vadd.f32 %v2968, 1.0
    %v2972 = vrcp.pop %v2969
    %v2973 = vmul.f32 1.0, %v2972
    %v2974 = vrcp.pop %v2970
    %v2975 = vmul.f32 1.0, %v2974
    %v2976 = vrcp.pop %v2971
    %v2977 = vmul.f32 1.0, %v2976
    %v2978 = vtanh.pop %v2959
    %v2979 = vmul.f32 %v2975, 0.0
    %v2980 = vmul.f32 %v2973, %v2978
    %v2981 = vadd.f32 %v2979, %v2980
    %v2982 = vtanh.pop %v2981
    %v2983 = vmul.f32 %v2977, %v2982
    %2984 = vst [vmem:[#allocation2] sm:$0x3] %v2983
    %v2985 = vld [vmem:[#allocation3] sm:$0xc]
    %v2986 = vld [vmem:[#allocation3 + $0x8] sm:$0xc]
    %v2987 = vld [vmem:[#allocation3 + $0x10] sm:$0xc]
    %v2988 = vld [vmem:[#allocation3 + $0x18] sm:$0xc]
    %v2989 = vld [vmem:[#allocation12] sm:$0xff]
    %v2990 = vld [vmem:[#allocation12 + $0x8] sm:$0xff]
    %v2991 = vld [vmem:[#allocation12 + $0x10] sm:$0xff]
    %v2992 = vld [vmem:[#allocation12 + $0x18] sm:$0xff]
    %v2993 = vld [vmem:[#allocation12 + $0x20] sm:$0xff]
    %v2994 = vld [vmem:[#allocation12 + $0x28] sm:$0xff]
    %v2995 = vld [vmem:[#allocation12 + $0x30] sm:$0xff]
    %v2996 = vld [vmem:[#allocation12 + $0x38] sm:$0xff]
    %v2997 = vld [vmem:[#allocation12 + $0x40] sm:$0xff]
    %v2998 = vld [vmem:[#allocation12 + $0x48] sm:$0xff]
    %v2999 = vld [vmem:[#allocation12 + $0x50] sm:$0xff]
    %v3000 = vld [vmem:[#allocation12 + $0x58] sm:$0xff]
    %v3001 = vld [vmem:[#allocation12 + $0x60] sm:$0xff]
    %v3002 = vld [vmem:[#allocation12 + $0x68] sm:$0xff]
    %v3003 = vld [vmem:[#allocation12 + $0x70] sm:$0xff]
    %v3004 = vld [vmem:[#allocation12 + $0x78] sm:$0xff]
    %v3005 = vld [vmem:[#allocation12 + $0x80] sm:$0xff]
    %v3006 = vld [vmem:[#allocation12 + $0x88] sm:$0xff]
    %v3007 = vld [vmem:[#allocation12 + $0x90] sm:$0xff]
    %v3008 = vld [vmem:[#allocation12 + $0x98] sm:$0xff]
    %v3009 = vld [vmem:[#allocation12 + $0xa0] sm:$0xff]
    %v3010 = vld [vmem:[#allocation12 + $0xa8] sm:$0xff]
    %v3011 = vld [vmem:[#allocation12 + $0xb0] sm:$0xff]
    %v3012 = vld [vmem:[#allocation12 + $0xb8] sm:$0xff]
    %v3013 = vld [vmem:[#allocation12 + $0xc0] sm:$0xff]
    %v3014 = vld [vmem:[#allocation12 + $0xc8] sm:$0xff]
    %v3015 = vld [vmem:[#allocation12 + $0xd0] sm:$0xff]
    %v3016 = vld [vmem:[#allocation12 + $0xd8] sm:$0xff]
    %v3017 = vld [vmem:[#allocation12 + $0xe0] sm:$0xff]
    %v3018 = vld [vmem:[#allocation12 + $0xe8] sm:$0xff]
    %v3019 = vld [vmem:[#allocation12 + $0xf0] sm:$0xff]
    %v3020 = vld [vmem:[#allocation12 + $0xf8] sm:$0xff]
    %v3021 = vld [vmem:[#allocation12 + $0x100] sm:$0xff]
    %v3022 = vld [vmem:[#allocation12 + $0x108] sm:$0xff]
    %v3023 = vld [vmem:[#allocation12 + $0x110] sm:$0xff]
    %v3024 = vld [vmem:[#allocation12 + $0x118] sm:$0xff]
    %v3025 = vld [vmem:[#allocation12 + $0x120] sm:$0xff]
    %v3026 = vld [vmem:[#allocation12 + $0x128] sm:$0xff]
    %v3027 = vld [vmem:[#allocation12 + $0x130] sm:$0xff]
    %v3028 = vld [vmem:[#allocation12 + $0x138] sm:$0xff]
    %v3029 = vld [vmem:[#allocation12 + $0x140] sm:$0xff]
    %v3030 = vld [vmem:[#allocation12 + $0x148] sm:$0xff]
    %v3031 = vld [vmem:[#allocation12 + $0x150] sm:$0xff]
    %v3032 = vld [vmem:[#allocation12 + $0x158] sm:$0xff]
    %v3033 = vld [vmem:[#allocation12 + $0x160] sm:$0xff]
    %v3034 = vld [vmem:[#allocation12 + $0x168] sm:$0xff]
    %v3035 = vld [vmem:[#allocation12 + $0x170] sm:$0xff]
    %v3036 = vld [vmem:[#allocation12 + $0x178] sm:$0xff]
    %v3037 = vld [vmem:[#allocation12 + $0x180] sm:$0xff]
    %v3038 = vld [vmem:[#allocation12 + $0x188] sm:$0xff]
    %v3039 = vld [vmem:[#allocation12 + $0x190] sm:$0xff]
    %v3040 = vld [vmem:[#allocation12 + $0x198] sm:$0xff]
    %v3041 = vld [vmem:[#allocation12 + $0x1a0] sm:$0xff]
    %v3042 = vld [vmem:[#allocation12 + $0x1a8] sm:$0xff]
    %v3043 = vld [vmem:[#allocation12 + $0x1b0] sm:$0xff]
    %v3044 = vld [vmem:[#allocation12 + $0x1b8] sm:$0xff]
    %v3045 = vld [vmem:[#allocation12 + $0x1c0] sm:$0xff]
    %v3046 = vld [vmem:[#allocation12 + $0x1c8] sm:$0xff]
    %v3047 = vld [vmem:[#allocation12 + $0x1d0] sm:$0xff]
    %v3048 = vld [vmem:[#allocation12 + $0x1d8] sm:$0xff]
    %v3049 = vld [vmem:[#allocation12 + $0x1e0] sm:$0xff]
    %v3050 = vld [vmem:[#allocation12 + $0x1e8] sm:$0xff]
    %v3051 = vld [vmem:[#allocation12 + $0x1f0] sm:$0xff]
    %v3052 = vld [vmem:[#allocation12 + $0x1f8] sm:$0xff]
    %3053 = vmatprep.subr.mxu0 %v2990
    %3054 = vmatpush1.msra.mxu0 %v2989
    %3055 = vmatprep.subr.mxu0 %v2994
    %3056 = vmatpush1.msra.mxu0 %v2993
    %3057 = vmatprep.subr.mxu0 %v2998
    %3058 = vmatpush1.msra.mxu0 %v2997
    %3059 = vmatprep.subr.mxu0 %v3002
    %3060 = vmatpush1.msra.mxu0 %v3001
    %3061 = vmatprep.subr.mxu0 %v3006
    %3062 = vmatpush1.msra.mxu0 %v3005
    %3063 = vmatprep.subr.mxu0 %v3010
    %3064 = vmatpush1.msra.mxu0 %v3009
    %3065 = vmatprep.subr.mxu0 %v3014
    %3066 = vmatpush1.msra.mxu0 %v3013
    %3067 = vmatprep.subr.mxu0 %v3018
    %3068 = vmatpush1.msra.mxu0 %v3017
    %3069 = vmatprep.subr.mxu0 %v3022
    %3070 = vmatpush1.msra.mxu0 %v3021
    %3071 = vmatprep.subr.mxu0 %v3026
    %3072 = vmatpush1.msra.mxu0 %v3025
    %3073 = vmatprep.subr.mxu0 %v3030
    %3074 = vmatpush1.msra.mxu0 %v3029
    %3075 = vmatprep.subr.mxu0 %v3034
    %3076 = vmatpush1.msra.mxu0 %v3033
    %3077 = vmatprep.subr.mxu0 %v3038
    %3078 = vmatpush1.msra.mxu0 %v3037
    %3079 = vmatprep.subr.mxu0 %v3042
    %3080 = vmatpush1.msra.mxu0 %v3041
    %3081 = vmatprep.subr.mxu0 %v3046
    %3082 = vmatpush1.msra.mxu0 %v3045
    %3083 = vmatprep.subr.mxu0 %v3050
    %3084 = vmatpush1.msra.mxu0 %v3049
    %3085 = vmatprep.subr.mxu0 0.0
    %3086 = vmatpush1.msra.mxu0 0.0
    %3087 = vmatprep.subr.mxu0 0.0
    %3088 = vmatpush1.msra.mxu0 0.0
    %3089 = vmatprep.subr.mxu0 0.0
    %3090 = vmatpush1.msra.mxu0 0.0
    %3091 = vmatprep.subr.mxu0 0.0
    %3092 = vmatpush1.msra.mxu0 0.0
    %3093 = vmatprep.subr.mxu0 0.0
    %3094 = vmatpush1.msra.mxu0 0.0
    %3095 = vmatprep.subr.mxu0 0.0
    %3096 = vmatpush1.msra.mxu0 0.0
    %3097 = vmatprep.subr.mxu0 0.0
    %3098 = vmatpush1.msra.mxu0 0.0
    %3099 = vmatprep.subr.mxu0 0.0
    %3100 = vmatpush1.msra.mxu0 0.0
    %3101 = vmatprep.subr.mxu0 0.0
    %3102 = vmatpush1.msra.mxu0 0.0
    %3103 = vmatprep.subr.mxu0 0.0
    %3104 = vmatpush1.msra.mxu0 0.0
    %3105 = vmatprep.subr.mxu0 0.0
    %3106 = vmatpush1.msra.mxu0 0.0
    %3107 = vmatprep.subr.mxu0 0.0
    %3108 = vmatpush1.msra.mxu0 0.0
    %3109 = vmatprep.subr.mxu0 0.0
    %3110 = vmatpush1.msra.mxu0 0.0
    %3111 = vmatprep.subr.mxu0 0.0
    %3112 = vmatpush1.msra.mxu0 0.0
    %3113 = vmatprep.subr.mxu0 0.0
    %3114 = vmatpush1.msra.mxu0 0.0
    %3115 = vmatprep.subr.mxu0 0.0
    %3116 = vmatpush1.msra.mxu0 0.0
    %3117 = vmatprep.mubr.f32.mxu0 0.0
    %3118 = vmatmul.mubr.f32.gmra.mrb[0].mxu0 %v2983
    %v3119 = vpop.f32.mrb[0].mxu0
    %v3120 = vadd.f32 0.0, %v3119
    %v3121 = vpop.f32.mrb[0].mxu0
    %v3122 = vadd.f32 0.0, %v3121
    %3123 = vdwg.mxu0
    %3124 = vmatprep.subr.mxu0 %v2992
    %3125 = vmatpush1.msra.mxu0 %v2991
    %3126 = vmatprep.subr.mxu0 %v2996
    %3127 = vmatpush1.msra.mxu0 %v2995
    %3128 = vmatprep.subr.mxu0 %v3000
    %3129 = vmatpush1.msra.mxu0 %v2999
    %3130 = vmatprep.subr.mxu0 %v3004
    %3131 = vmatpush1.msra.mxu0 %v3003
    %3132 = vmatprep.subr.mxu0 %v3008
    %3133 = vmatpush1.msra.mxu0 %v3007
    %3134 = vmatprep.subr.mxu0 %v3012
    %3135 = vmatpush1.msra.mxu0 %v3011
    %3136 = vmatprep.subr.mxu0 %v3016
    %3137 = vmatpush1.msra.mxu0 %v3015
    %3138 = vmatprep.subr.mxu0 %v3020
    %3139 = vmatpush1.msra.mxu0 %v3019
    %3140 = vmatprep.subr.mxu0 %v3024
    %3141 = vmatpush1.msra.mxu0 %v3023
    %3142 = vmatprep.subr.mxu0 %v3028
    %3143 = vmatpush1.msra.mxu0 %v3027
    %3144 = vmatprep.subr.mxu0 %v3032
    %3145 = vmatpush1.msra.mxu0 %v3031
    %3146 = vmatprep.subr.mxu0 %v3036
    %3147 = vmatpush1.msra.mxu0 %v3035
    %3148 = vmatprep.subr.mxu0 %v3040
    %3149 = vmatpush1.msra.mxu0 %v3039
    %3150 = vmatprep.subr.mxu0 %v3044
    %3151 = vmatpush1.msra.mxu0 %v3043
    %3152 = vmatprep.subr.mxu0 %v3048
    %3153 = vmatpush1.msra.mxu0 %v3047
    %3154 = vmatprep.subr.mxu0 %v3052
    %3155 = vmatpush1.msra.mxu0 %v3051
    %3156 = vmatprep.subr.mxu0 0.0
    %3157 = vmatpush1.msra.mxu0 0.0
    %3158 = vmatprep.subr.mxu0 0.0
    %3159 = vmatpush1.msra.mxu0 0.0
    %3160 = vmatprep.subr.mxu0 0.0
    %3161 = vmatpush1.msra.mxu0 0.0
    %3162 = vmatprep.subr.mxu0 0.0
    %3163 = vmatpush1.msra.mxu0 0.0
    %3164 = vmatprep.subr.mxu0 0.0
    %3165 = vmatpush1.msra.mxu0 0.0
    %3166 = vmatprep.subr.mxu0 0.0
    %3167 = vmatpush1.msra.mxu0 0.0
    %3168 = vmatprep.subr.mxu0 0.0
    %3169 = vmatpush1.msra.mxu0 0.0
    %3170 = vmatprep.subr.mxu0 0.0
    %3171 = vmatpush1.msra.mxu0 0.0
    %3172 = vmatprep.subr.mxu0 0.0
    %3173 = vmatpush1.msra.mxu0 0.0
    %3174 = vmatprep.subr.mxu0 0.0
    %3175 = vmatpush1.msra.mxu0 0.0
    %3176 = vmatprep.subr.mxu0 0.0
    %3177 = vmatpush1.msra.mxu0 0.0
    %3178 = vmatprep.subr.mxu0 0.0
    %3179 = vmatpush1.msra.mxu0 0.0
    %3180 = vmatprep.subr.mxu0 0.0
    %3181 = vmatpush1.msra.mxu0 0.0
    %3182 = vmatprep.subr.mxu0 0.0
    %3183 = vmatpush1.msra.mxu0 0.0
    %3184 = vmatprep.subr.mxu0 0.0
    %3185 = vmatpush1.msra.mxu0 0.0
    %3186 = vmatprep.subr.mxu0 0.0
    %3187 = vmatpush1.msra.mxu0 0.0
    %3188 = vmatprep.mubr.f32.mxu0 0.0
    %3189 = vmatmul.mubr.f32.gmra.mrb[0].mxu0 %v2983
    %v3190 = vpop.f32.mrb[0].mxu0
    %v3191 = vadd.f32 0.0, %v3190
    %v3192 = vpop.f32.mrb[0].mxu0
    %v3193 = vadd.f32 0.0, %v3192
    %3194 = vdwg.mxu0
    %v3199 = vrot.slane %v3120, 6
    %v3200 = vrot.slane %v3122, 6
    %v3201 = vrot.slane %v3191, 6
    %v3202 = vrot.slane %v3193, 6
    %v3207 = vadd.f32 %v2985, %v3199
    %v3208 = vadd.f32 %v2986, %v3200
    %v3209 = vadd.f32 %v2987, %v3201
    %v3210 = vadd.f32 %v2988, %v3202
    %v3211 = vxor.u32 %v3207, 2147483648
    %v3212 = vxor.u32 %v3208, 2147483648
    %v3213 = vxor.u32 %v3209, 2147483648
    %v3214 = vmul.f32 %v3211, 1.442695
    %v3215 = vpow.pop %v3214
    %v3216 = vmul.f32 %v3212, 1.442695
    %v3217 = vpow.pop %v3216
    %v3218 = vmul.f32 %v3213, 1.442695
    %v3219 = vpow.pop %v3218
    %v3220 = vadd.f32 %v3215, 1.0
    %v3221 = vadd.f32 %v3217, 1.0
    %v3222 = vadd.f32 %v3219, 1.0
    %v3223 = vrcp.pop %v3220
    %v3224 = vmul.f32 1.0, %v3223
    %v3225 = vrcp.pop %v3221
    %v3226 = vmul.f32 1.0, %v3225
    %v3227 = vrcp.pop %v3222
    %v3228 = vmul.f32 1.0, %v3227
    %v3229 = vtanh.pop %v3210
    %v3231 = vrot.slane %v2981, 6
    %v3233 = vmul.f32 %v3226, %v3231
    %v3234 = vmul.f32 %v3224, %v3229
    %v3235 = vadd.f32 %v3233, %v3234
    %v3236 = vtanh.pop %v3235
    %v3237 = vmul.f32 %v3228, %v3236
    %3238 = vst [vmem:[#allocation2] sm:$0xc] %v3237
    %v3239 = vld [vmem:[#allocation3] sm:$0x30]
    %v3240 = vld [vmem:[#allocation3 + $0x8] sm:$0x30]
    %v3241 = vld [vmem:[#allocation3 + $0x10] sm:$0x30]
    %v3242 = vld [vmem:[#allocation3 + $0x18] sm:$0x30]
    %v3243 = vld [vmem:[#allocation12] sm:$0xff]
    %v3244 = vld [vmem:[#allocation12 + $0x8] sm:$0xff]
    %v3245 = vld [vmem:[#allocation12 + $0x10] sm:$0xff]
    %v3246 = vld [vmem:[#allocation12 + $0x18] sm:$0xff]
    %v3247 = vld [vmem:[#allocation12 + $0x20] sm:$0xff]
    %v3248 = vld [vmem:[#allocation12 + $0x28] sm:$0xff]
    %v3249 = vld [vmem:[#allocation12 + $0x30] sm:$0xff]
    %v3250 = vld [vmem:[#allocation12 + $0x38] sm:$0xff]
    %v3251 = vld [vmem:[#allocation12 + $0x40] sm:$0xff]
    %v3252 = vld [vmem:[#allocation12 + $0x48] sm:$0xff]
    %v3253 = vld [vmem:[#allocation12 + $0x50] sm:$0xff]
    %v3254 = vld [vmem:[#allocation12 + $0x58] sm:$0xff]
    %v3255 = vld [vmem:[#allocation12 + $0x60] sm:$0xff]
    %v3256 = vld [vmem:[#allocation12 + $0x68] sm:$0xff]
    %v3257 = vld [vmem:[#allocation12 + $0x70] sm:$0xff]
    %v3258 = vld [vmem:[#allocation12 + $0x78] sm:$0xff]
    %v3259 = vld [vmem:[#allocation12 + $0x80] sm:$0xff]
    %v3260 = vld [vmem:[#allocation12 + $0x88] sm:$0xff]
    %v3261 = vld [vmem:[#allocation12 + $0x90] sm:$0xff]
    %v3262 = vld [vmem:[#allocation12 + $0x98] sm:$0xff]
    %v3263 = vld [vmem:[#allocation12 + $0xa0] sm:$0xff]
    %v3264 = vld [vmem:[#allocation12 + $0xa8] sm:$0xff]
    %v3265 = vld [vmem:[#allocation12 + $0xb0] sm:$0xff]
    %v3266 = vld [vmem:[#allocation12 + $0xb8] sm:$0xff]
    %v3267 = vld [vmem:[#allocation12 + $0xc0] sm:$0xff]
    %v3268 = vld [vmem:[#allocation12 + $0xc8] sm:$0xff]
    %v3269 = vld [vmem:[#allocation12 + $0xd0] sm:$0xff]
    %v3270 = vld [vmem:[#allocation12 + $0xd8] sm:$0xff]
    %v3271 = vld [vmem:[#allocation12 + $0xe0] sm:$0xff]
    %v3272 = vld [vmem:[#allocation12 + $0xe8] sm:$0xff]
    %v3273 = vld [vmem:[#allocation12 + $0xf0] sm:$0xff]
    %v3274 = vld [vmem:[#allocation12 + $0xf8] sm:$0xff]
    %v3275 = vld [vmem:[#allocation12 + $0x100] sm:$0xff]
    %v3276 = vld [vmem:[#allocation12 + $0x108] sm:$0xff]
    %v3277 = vld [vmem:[#allocation12 + $0x110] sm:$0xff]
    %v3278 = vld [vmem:[#allocation12 + $0x118] sm:$0xff]
    %v3279 = vld [vmem:[#allocation12 + $0x120] sm:$0xff]
    %v3280 = vld [vmem:[#allocation12 + $0x128] sm:$0xff]
    %v3281 = vld [vmem:[#allocation12 + $0x130] sm:$0xff]
    %v3282 = vld [vmem:[#allocation12 + $0x138] sm:$0xff]
    %v3283 = vld [vmem:[#allocation12 + $0x140] sm:$0xff]
    %v3284 = vld [vmem:[#allocation12 + $0x148] sm:$0xff]
    %v3285 = vld [vmem:[#allocation12 + $0x150] sm:$0xff]
    %v3286 = vld [vmem:[#allocation12 + $0x158] sm:$0xff]
    %v3287 = vld [vmem:[#allocation12 + $0x160] sm:$0xff]
    %v3288 = vld [vmem:[#allocation12 + $0x168] sm:$0xff]
    %v3289 = vld [vmem:[#allocation12 + $0x170] sm:$0xff]
    %v3290 = vld [vmem:[#allocation12 + $0x178] sm:$0xff]
    %v3291 = vld [vmem:[#allocation12 + $0x180] sm:$0xff]
    %v3292 = vld [vmem:[#allocation12 + $0x188] sm:$0xff]
    %v3293 = vld [vmem:[#allocation12 + $0x190] sm:$0xff]
    %v3294 = vld [vmem:[#allocation12 + $0x198] sm:$0xff]
    %v3295 = vld [vmem:[#allocation12 + $0x1a0] sm:$0xff]
    %v3296 = vld [vmem:[#allocation12 + $0x1a8] sm:$0xff]
    %v3297 = vld [vmem:[#allocation12 + $0x1b0] sm:$0xff]
    %v3298 = vld [vmem:[#allocation12 + $0x1b8] sm:$0xff]
    %v3299 = vld [vmem:[#allocation12 + $0x1c0] sm:$0xff]
    %v3300 = vld [vmem:[#allocation12 + $0x1c8] sm:$0xff]
    %v3301 = vld [vmem:[#allocation12 + $0x1d0] sm:$0xff]
    %v3302 = vld [vmem:[#allocation12 + $0x1d8] sm:$0xff]
    %v3303 = vld [vmem:[#allocation12 + $0x1e0] sm:$0xff]
    %v3304 = vld [vmem:[#allocation12 + $0x1e8] sm:$0xff]
    %v3305 = vld [vmem:[#allocation12 + $0x1f0] sm:$0xff]
    %v3306 = vld [vmem:[#allocation12 + $0x1f8] sm:$0xff]
    %v3308 = vrot.slane %v3237, 2
    %3310 = vmatprep.subr.mxu0 %v3244
    %3311 = vmatpush1.msra.mxu0 %v3243
    %3312 = vmatprep.subr.mxu0 %v3248
    %3313 = vmatpush1.msra.mxu0 %v3247
    %3314 = vmatprep.subr.mxu0 %v3252
    %3315 = vmatpush1.msra.mxu0 %v3251
    %3316 = vmatprep.subr.mxu0 %v3256
    %3317 = vmatpush1.msra.mxu0 %v3255
    %3318 = vmatprep.subr.mxu0 %v3260
    %3319 = vmatpush1.msra.mxu0 %v3259
    %3320 = vmatprep.subr.mxu0 %v3264
    %3321 = vmatpush1.msra.mxu0 %v3263
    %3322 = vmatprep.subr.mxu0 %v3268
    %3323 = vmatpush1.msra.mxu0 %v3267
    %3324 = vmatprep.subr.mxu0 %v3272
    %3325 = vmatpush1.msra.mxu0 %v3271
    %3326 = vmatprep.subr.mxu0 %v3276
    %3327 = vmatpush1.msra.mxu0 %v3275
    %3328 = vmatprep.subr.mxu0 %v3280
    %3329 = vmatpush1.msra.mxu0 %v3279
    %3330 = vmatprep.subr.mxu0 %v3284
    %3331 = vmatpush1.msra.mxu0 %v3283
    %3332 = vmatprep.subr.mxu0 %v3288
    %3333 = vmatpush1.msra.mxu0 %v3287
    %3334 = vmatprep.subr.mxu0 %v3292
    %3335 = vmatpush1.msra.mxu0 %v3291
    %3336 = vmatprep.subr.mxu0 %v3296
    %3337 = vmatpush1.msra.mxu0 %v3295
    %3338 = vmatprep.subr.mxu0 %v3300
    %3339 = vmatpush1.msra.mxu0 %v3299
    %3340 = vmatprep.subr.mxu0 %v3304
    %3341 = vmatpush1.msra.mxu0 %v3303
    %3342 = vmatprep.subr.mxu0 0.0
    %3343 = vmatpush1.msra.mxu0 0.0
    %3344 = vmatprep.subr.mxu0 0.0
    %3345 = vmatpush1.msra.mxu0 0.0
    %3346 = vmatprep.subr.mxu0 0.0
    %3347 = vmatpush1.msra.mxu0 0.0
    %3348 = vmatprep.subr.mxu0 0.0
    %3349 = vmatpush1.msra.mxu0 0.0
    %3350 = vmatprep.subr.mxu0 0.0
    %3351 = vmatpush1.msra.mxu0 0.0
    %3352 = vmatprep.subr.mxu0 0.0
    %3353 = vmatpush1.msra.mxu0 0.0
    %3354 = vmatprep.subr.mxu0 0.0
    %3355 = vmatpush1.msra.mxu0 0.0
    %3356 = vmatprep.subr.mxu0 0.0
    %3357 = vmatpush1.msra.mxu0 0.0
    %3358 = vmatprep.subr.mxu0 0.0
    %3359 = vmatpush1.msra.mxu0 0.0
    %3360 = vmatprep.subr.mxu0 0.0
    %3361 = vmatpush1.msra.mxu0 0.0
    %3362 = vmatprep.subr.mxu0 0.0
    %3363 = vmatpush1.msra.mxu0 0.0
    %3364 = vmatprep.subr.mxu0 0.0
    %3365 = vmatpush1.msra.mxu0 0.0
    %3366 = vmatprep.subr.mxu0 0.0
    %3367 = vmatpush1.msra.mxu0 0.0
    %3368 = vmatprep.subr.mxu0 0.0
    %3369 = vmatpush1.msra.mxu0 0.0
    %3370 = vmatprep.subr.mxu0 0.0
    %3371 = vmatpush1.msra.mxu0 0.0
    %3372 = vmatprep.subr.mxu0 0.0
    %3373 = vmatpush1.msra.mxu0 0.0
    %3374 = vmatprep.mubr.f32.mxu0 0.0
    %3375 = vmatmul.mubr.f32.gmra.mrb[0].mxu0 %v3308
    %v3376 = vpop.f32.mrb[0].mxu0
    %v3377 = vadd.f32 0.0, %v3376
    %v3378 = vpop.f32.mrb[0].mxu0
    %v3379 = vadd.f32 0.0, %v3378
    %3380 = vdwg.mxu0
    %3381 = vmatprep.subr.mxu0 %v3246
    %3382 = vmatpush1.msra.mxu0 %v3245
    %3383 = vmatprep.subr.mxu0 %v3250
    %3384 = vmatpush1.msra.mxu0 %v3249
    %3385 = vmatprep.subr.mxu0 %v3254
    %3386 = vmatpush1.msra.mxu0 %v3253
    %3387 = vmatprep.subr.mxu0 %v3258
    %3388 = vmatpush1.msra.mxu0 %v3257
    %3389 = vmatprep.subr.mxu0 %v3262
    %3390 = vmatpush1.msra.mxu0 %v3261
    %3391 = vmatprep.subr.mxu0 %v3266
    %3392 = vmatpush1.msra.mxu0 %v3265
    %3393 = vmatprep.subr.mxu0 %v3270
    %3394 = vmatpush1.msra.mxu0 %v3269
    %3395 = vmatprep.subr.mxu0 %v3274
    %3396 = vmatpush1.msra.mxu0 %v3273
    %3397 = vmatprep.subr.mxu0 %v3278
    %3398 = vmatpush1.msra.mxu0 %v3277
    %3399 = vmatprep.subr.mxu0 %v3282
    %3400 = vmatpush1.msra.mxu0 %v3281
    %3401 = vmatprep.subr.mxu0 %v3286
    %3402 = vmatpush1.msra.mxu0 %v3285
    %3403 = vmatprep.subr.mxu0 %v3290
    %3404 = vmatpush1.msra.mxu0 %v3289
    %3405 = vmatprep.subr.mxu0 %v3294
    %3406 = vmatpush1.msra.mxu0 %v3293
    %3407 = vmatprep.subr.mxu0 %v3298
    %3408 = vmatpush1.msra.mxu0 %v3297
    %3409 = vmatprep.subr.mxu0 %v3302
    %3410 = vmatpush1.msra.mxu0 %v3301
    %3411 = vmatprep.subr.mxu0 %v3306
    %3412 = vmatpush1.msra.mxu0 %v3305
    %3413 = vmatprep.subr.mxu0 0.0
    %3414 = vmatpush1.msra.mxu0 0.0
    %3415 = vmatprep.subr.mxu0 0.0
    %3416 = vmatpush1.msra.mxu0 0.0
    %3417 = vmatprep.subr.mxu0 0.0
    %3418 = vmatpush1.msra.mxu0 0.0
    %3419 = vmatprep.subr.mxu0 0.0
    %3420 = vmatpush1.msra.mxu0 0.0
    %3421 = vmatprep.subr.mxu0 0.0
    %3422 = vmatpush1.msra.mxu0 0.0
    %3423 = vmatprep.subr.mxu0 0.0
    %3424 = vmatpush1.msra.mxu0 0.0
    %3425 = vmatprep.subr.mxu0 0.0
    %3426 = vmatpush1.msra.mxu0 0.0
    %3427 = vmatprep.subr.mxu0 0.0
    %3428 = vmatpush1.msra.mxu0 0.0
    %3429 = vmatprep.subr.mxu0 0.0
    %3430 = vmatpush1.msra.mxu0 0.0
    %3431 = vmatprep.subr.mxu0 0.0
    %3432 = vmatpush1.msra.mxu0 0.0
    %3433 = vmatprep.subr.mxu0 0.0
    %3434 = vmatpush1.msra.mxu0 0.0
    %3435 = vmatprep.subr.mxu0 0.0
    %3436 = vmatpush1.msra.mxu0 0.0
    %3437 = vmatprep.subr.mxu0 0.0
    %3438 = vmatpush1.msra.mxu0 0.0
    %3439 = vmatprep.subr.mxu0 0.0
    %3440 = vmatpush1.msra.mxu0 0.0
    %3441 = vmatprep.subr.mxu0 0.0
    %3442 = vmatpush1.msra.mxu0 0.0
    %3443 = vmatprep.subr.mxu0 0.0
    %3444 = vmatpush1.msra.mxu0 0.0
    %3445 = vmatprep.mubr.f32.mxu0 0.0
    %3446 = vmatmul.mubr.f32.gmra.mrb[0].mxu0 %v3308
    %v3447 = vpop.f32.mrb[0].mxu0
    %v3448 = vadd.f32 0.0, %v3447
    %v3449 = vpop.f32.mrb[0].mxu0
    %v3450 = vadd.f32 0.0, %v3449
    %3451 = vdwg.mxu0
    %v3456 = vrot.slane %v3377, 4
    %v3457 = vrot.slane %v3379, 4
    %v3458 = vrot.slane %v3448, 4
    %v3459 = vrot.slane %v3450, 4
    %v3464 = vadd.f32 %v3239, %v3456
    %v3465 = vadd.f32 %v3240, %v3457
    %v3466 = vadd.f32 %v3241, %v3458
    %v3467 = vadd.f32 %v3242, %v3459
    %v3468 = vxor.u32 %v3464, 2147483648
    %v3469 = vxor.u32 %v3465, 2147483648
    %v3470 = vxor.u32 %v3466, 2147483648
    %v3471 = vmul.f32 %v3468, 1.442695
    %v3472 = vpow.pop %v3471
    %v3473 = vmul.f32 %v3469, 1.442695
    %v3474 = vpow.pop %v3473
    %v3475 = vmul.f32 %v3470, 1.442695
    %v3476 = vpow.pop %v3475
    %v3477 = vadd.f32 %v3472, 1.0
    %v3478 = vadd.f32 %v3474, 1.0
    %v3479 = vadd.f32 %v3476, 1.0
    %v3480 = vrcp.pop %v3477
    %v3481 = vmul.f32 1.0, %v3480
    %v3482 = vrcp.pop %v3478
    %v3483 = vmul.f32 1.0, %v3482
    %v3484 = vrcp.pop %v3479
    %v3485 = vmul.f32 1.0, %v3484
    %v3486 = vtanh.pop %v3467
    %v3488 = vrot.slane %v3235, 6
    %v3490 = vmul.f32 %v3483, %v3488
    %v3491 = vmul.f32 %v3481, %v3486
    %v3492 = vadd.f32 %v3490, %v3491
    %v3493 = vtanh.pop %v3492
    %v3494 = vmul.f32 %v3485, %v3493
    %3495 = vst [vmem:[#allocation2] sm:$0x30] %v3494
    %v3496 = vld [vmem:[#allocation3] sm:$0xc0]
    %v3497 = vld [vmem:[#allocation3 + $0x8] sm:$0xc0]
    %v3498 = vld [vmem:[#allocation3 + $0x10] sm:$0xc0]
    %v3499 = vld [vmem:[#allocation3 + $0x18] sm:$0xc0]
    %v3500 = vld [vmem:[#allocation12] sm:$0xff]
    %v3501 = vld [vmem:[#allocation12 + $0x8] sm:$0xff]
    %v3502 = vld [vmem:[#allocation12 + $0x10] sm:$0xff]
    %v3503 = vld [vmem:[#allocation12 + $0x18] sm:$0xff]
    %v3504 = vld [vmem:[#allocation12 + $0x20] sm:$0xff]
    %v3505 = vld [vmem:[#allocation12 + $0x28] sm:$0xff]
    %v3506 = vld [vmem:[#allocation12 + $0x30] sm:$0xff]
    %v3507 = vld [vmem:[#allocation12 + $0x38] sm:$0xff]
    %v3508 = vld [vmem:[#allocation12 + $0x40] sm:$0xff]
    %v3509 = vld [vmem:[#allocation12 + $0x48] sm:$0xff]
    %v3510 = vld [vmem:[#allocation12 + $0x50] sm:$0xff]
    %v3511 = vld [vmem:[#allocation12 + $0x58] sm:$0xff]
    %v3512 = vld [vmem:[#allocation12 + $0x60] sm:$0xff]
    %v3513 = vld [vmem:[#allocation12 + $0x68] sm:$0xff]
    %v3514 = vld [vmem:[#allocation12 + $0x70] sm:$0xff]
    %v3515 = vld [vmem:[#allocation12 + $0x78] sm:$0xff]
    %v3516 = vld [vmem:[#allocation12 + $0x80] sm:$0xff]
    %v3517 = vld [vmem:[#allocation12 + $0x88] sm:$0xff]
    %v3518 = vld [vmem:[#allocation12 + $0x90] sm:$0xff]
    %v3519 = vld [vmem:[#allocation12 + $0x98] sm:$0xff]
    %v3520 = vld [vmem:[#allocation12 + $0xa0] sm:$0xff]
    %v3521 = vld [vmem:[#allocation12 + $0xa8] sm:$0xff]
    %v3522 = vld [vmem:[#allocation12 + $0xb0] sm:$0xff]
    %v3523 = vld [vmem:[#allocation12 + $0xb8] sm:$0xff]
    %v3524 = vld [vmem:[#allocation12 + $0xc0] sm:$0xff]
    %v3525 = vld [vmem:[#allocation12 + $0xc8] sm:$0xff]
    %v3526 = vld [vmem:[#allocation12 + $0xd0] sm:$0xff]
    %v3527 = vld [vmem:[#allocation12 + $0xd8] sm:$0xff]
    %v3528 = vld [vmem:[#allocation12 + $0xe0] sm:$0xff]
    %v3529 = vld [vmem:[#allocation12 + $0xe8] sm:$0xff]
    %v3530 = vld [vmem:[#allocation12 + $0xf0] sm:$0xff]
    %v3531 = vld [vmem:[#allocation12 + $0xf8] sm:$0xff]
    %v3532 = vld [vmem:[#allocation12 + $0x100] sm:$0xff]
    %v3533 = vld [vmem:[#allocation12 + $0x108] sm:$0xff]
    %v3534 = vld [vmem:[#allocation12 + $0x110] sm:$0xff]
    %v3535 = vld [vmem:[#allocation12 + $0x118] sm:$0xff]
    %v3536 = vld [vmem:[#allocation12 + $0x120] sm:$0xff]
    %v3537 = vld [vmem:[#allocation12 + $0x128] sm:$0xff]
    %v3538 = vld [vmem:[#allocation12 + $0x130] sm:$0xff]
    %v3539 = vld [vmem:[#allocation12 + $0x138] sm:$0xff]
    %v3540 = vld [vmem:[#allocation12 + $0x140] sm:$0xff]
    %v3541 = vld [vmem:[#allocation12 + $0x148] sm:$0xff]
    %v3542 = vld [vmem:[#allocation12 + $0x150] sm:$0xff]
    %v3543 = vld [vmem:[#allocation12 + $0x158] sm:$0xff]
    %v3544 = vld [vmem:[#allocation12 + $0x160] sm:$0xff]
    %v3545 = vld [vmem:[#allocation12 + $0x168] sm:$0xff]
    %v3546 = vld [vmem:[#allocation12 + $0x170] sm:$0xff]
    %v3547 = vld [vmem:[#allocation12 + $0x178] sm:$0xff]
    %v3548 = vld [vmem:[#allocation12 + $0x180] sm:$0xff]
    %v3549 = vld [vmem:[#allocation12 + $0x188] sm:$0xff]
    %v3550 = vld [vmem:[#allocation12 + $0x190] sm:$0xff]
    %v3551 = vld [vmem:[#allocation12 + $0x198] sm:$0xff]
    %v3552 = vld [vmem:[#allocation12 + $0x1a0] sm:$0xff]
    %v3553 = vld [vmem:[#allocation12 + $0x1a8] sm:$0xff]
    %v3554 = vld [vmem:[#allocation12 + $0x1b0] sm:$0xff]
    %v3555 = vld [vmem:[#allocation12 + $0x1b8] sm:$0xff]
    %v3556 = vld [vmem:[#allocation12 + $0x1c0] sm:$0xff]
    %v3557 = vld [vmem:[#allocation12 + $0x1c8] sm:$0xff]
    %v3558 = vld [vmem:[#allocation12 + $0x1d0] sm:$0xff]
    %v3559 = vld [vmem:[#allocation12 + $0x1d8] sm:$0xff]
    %v3560 = vld [vmem:[#allocation12 + $0x1e0] sm:$0xff]
    %v3561 = vld [vmem:[#allocation12 + $0x1e8] sm:$0xff]
    %v3562 = vld [vmem:[#allocation12 + $0x1f0] sm:$0xff]
    %v3563 = vld [vmem:[#allocation12 + $0x1f8] sm:$0xff]
    %v3565 = vrot.slane %v3494, 4
    %3567 = vmatprep.subr.mxu0 %v3501
    %3568 = vmatpush1.msra.mxu0 %v3500
    %3569 = vmatprep.subr.mxu0 %v3505
    %3570 = vmatpush1.msra.mxu0 %v3504
    %3571 = vmatprep.subr.mxu0 %v3509
    %3572 = vmatpush1.msra.mxu0 %v3508
    %3573 = vmatprep.subr.mxu0 %v3513
    %3574 = vmatpush1.msra.mxu0 %v3512
    %3575 = vmatprep.subr.mxu0 %v3517
    %3576 = vmatpush1.msra.mxu0 %v3516
    %3577 = vmatprep.subr.mxu0 %v3521
    %3578 = vmatpush1.msra.mxu0 %v3520
    %3579 = vmatprep.subr.mxu0 %v3525
    %3580 = vmatpush1.msra.mxu0 %v3524
    %3581 = vmatprep.subr.mxu0 %v3529
    %3582 = vmatpush1.msra.mxu0 %v3528
    %3583 = vmatprep.subr.mxu0 %v3533
    %3584 = vmatpush1.msra.mxu0 %v3532
    %3585 = vmatprep.subr.mxu0 %v3537
    %3586 = vmatpush1.msra.mxu0 %v3536
    %3587 = vmatprep.subr.mxu0 %v3541
    %3588 = vmatpush1.msra.mxu0 %v3540
    %3589 = vmatprep.subr.mxu0 %v3545
    %3590 = vmatpush1.msra.mxu0 %v3544
    %3591 = vmatprep.subr.mxu0 %v3549
    %3592 = vmatpush1.msra.mxu0 %v3548
    %3593 = vmatprep.subr.mxu0 %v3553
    %3594 = vmatpush1.msra.mxu0 %v3552
    %3595 = vmatprep.subr.mxu0 %v3557
    %3596 = vmatpush1.msra.mxu0 %v3556
    %3597 = vmatprep.subr.mxu0 %v3561
    %3598 = vmatpush1.msra.mxu0 %v3560
    %3599 = vmatprep.subr.mxu0 0.0
    %3600 = vmatpush1.msra.mxu0 0.0
    %3601 = vmatprep.subr.mxu0 0.0
    %3602 = vmatpush1.msra.mxu0 0.0
    %3603 = vmatprep.subr.mxu0 0.0
    %3604 = vmatpush1.msra.mxu0 0.0
    %3605 = vmatprep.subr.mxu0 0.0
    %3606 = vmatpush1.msra.mxu0 0.0
    %3607 = vmatprep.subr.mxu0 0.0
    %3608 = vmatpush1.msra.mxu0 0.0
    %3609 = vmatprep.subr.mxu0 0.0
    %3610 = vmatpush1.msra.mxu0 0.0
    %3611 = vmatprep.subr.mxu0 0.0
    %3612 = vmatpush1.msra.mxu0 0.0
    %3613 = vmatprep.subr.mxu0 0.0
    %3614 = vmatpush1.msra.mxu0 0.0
    %3615 = vmatprep.subr.mxu0 0.0
    %3616 = vmatpush1.msra.mxu0 0.0
    %3617 = vmatprep.subr.mxu0 0.0
    %3618 = vmatpush1.msra.mxu0 0.0
    %3619 = vmatprep.subr.mxu0 0.0
    %3620 = vmatpush1.msra.mxu0 0.0
    %3621 = vmatprep.subr.mxu0 0.0
    %3622 = vmatpush1.msra.mxu0 0.0
    %3623 = vmatprep.subr.mxu0 0.0
    %3624 = vmatpush1.msra.mxu0 0.0
    %3625 = vmatprep.subr.mxu0 0.0
    %3626 = vmatpush1.msra.mxu0 0.0
    %3627 = vmatprep.subr.mxu0 0.0
    %3628 = vmatpush1.msra.mxu0 0.0
    %3629 = vmatprep.subr.mxu0 0.0
    %3630 = vmatpush1.msra.mxu0 0.0
    %3631 = vmatprep.mubr.f32.mxu0 0.0
    %3632 = vmatmul.mubr.f32.gmra.mrb[0].mxu0 %v3565
    %v3633 = vpop.f32.mrb[0].mxu0
    %v3634 = vadd.f32 0.0, %v3633
    %v3635 = vpop.f32.mrb[0].mxu0
    %v3636 = vadd.f32 0.0, %v3635
    %3637 = vdwg.mxu0
    %3638 = vmatprep.subr.mxu0 %v3503
    %3639 = vmatpush1.msra.mxu0 %v3502
    %3640 = vmatprep.subr.mxu0 %v3507
    %3641 = vmatpush1.msra.mxu0 %v3506
    %3642 = vmatprep.subr.mxu0 %v3511
    %3643 = vmatpush1.msra.mxu0 %v3510
    %3644 = vmatprep.subr.mxu0 %v3515
    %3645 = vmatpush1.msra.mxu0 %v3514
    %3646 = vmatprep.subr.mxu0 %v3519
    %3647 = vmatpush1.msra.mxu0 %v3518
    %3648 = vmatprep.subr.mxu0 %v3523
    %3649 = vmatpush1.msra.mxu0 %v3522
    %3650 = vmatprep.subr.mxu0 %v3527
    %3651 = vmatpush1.msra.mxu0 %v3526
    %3652 = vmatprep.subr.mxu0 %v3531
    %3653 = vmatpush1.msra.mxu0 %v3530
    %3654 = vmatprep.subr.mxu0 %v3535
    %3655 = vmatpush1.msra.mxu0 %v3534
    %3656 = vmatprep.subr.mxu0 %v3539
    %3657 = vmatpush1.msra.mxu0 %v3538
    %3658 = vmatprep.subr.mxu0 %v3543
    %3659 = vmatpush1.msra.mxu0 %v3542
    %3660 = vmatprep.subr.mxu0 %v3547
    %3661 = vmatpush1.msra.mxu0 %v3546
    %3662 = vmatprep.subr.mxu0 %v3551
    %3663 = vmatpush1.msra.mxu0 %v3550
    %3664 = vmatprep.subr.mxu0 %v3555
    %3665 = vmatpush1.msra.mxu0 %v3554
    %3666 = vmatprep.subr.mxu0 %v3559
    %3667 = vmatpush1.msra.mxu0 %v3558
    %3668 = vmatprep.subr.mxu0 %v3563
    %3669 = vmatpush1.msra.mxu0 %v3562
    %3670 = vmatprep.subr.mxu0 0.0
    %3671 = vmatpush1.msra.mxu0 0.0
    %3672 = vmatprep.subr.mxu0 0.0
    %3673 = vmatpush1.msra.mxu0 0.0
    %3674 = vmatprep.subr.mxu0 0.0
    %3675 = vmatpush1.msra.mxu0 0.0
    %3676 = vmatprep.subr.mxu0 0.0
    %3677 = vmatpush1.msra.mxu0 0.0
    %3678 = vmatprep.subr.mxu0 0.0
    %3679 = vmatpush1.msra.mxu0 0.0
    %3680 = vmatprep.subr.mxu0 0.0
    %3681 = vmatpush1.msra.mxu0 0.0
    %3682 = vmatprep.subr.mxu0 0.0
    %3683 = vmatpush1.msra.mxu0 0.0
    %3684 = vmatprep.subr.mxu0 0.0
    %3685 = vmatpush1.msra.mxu0 0.0
    %3686 = vmatprep.subr.mxu0 0.0
    %3687 = vmatpush1.msra.mxu0 0.0
    %3688 = vmatprep.subr.mxu0 0.0
    %3689 = vmatpush1.msra.mxu0 0.0
    %3690 = vmatprep.subr.mxu0 0.0
    %3691 = vmatpush1.msra.mxu0 0.0
    %3692 = vmatprep.subr.mxu0 0.0
    %3693 = vmatpush1.msra.mxu0 0.0
    %3694 = vmatprep.subr.mxu0 0.0
    %3695 = vmatpush1.msra.mxu0 0.0
    %3696 = vmatprep.subr.mxu0 0.0
    %3697 = vmatpush1.msra.mxu0 0.0
    %3698 = vmatprep.subr.mxu0 0.0
    %3699 = vmatpush1.msra.mxu0 0.0
    %3700 = vmatprep.subr.mxu0 0.0
    %3701 = vmatpush1.msra.mxu0 0.0
    %3702 = vmatprep.mubr.f32.mxu0 0.0
    %3703 = vmatmul.mubr.f32.gmra.mrb[0].mxu0 %v3565
    %v3704 = vpop.f32.mrb[0].mxu0
    %v3705 = vadd.f32 0.0, %v3704
    %v3706 = vpop.f32.mrb[0].mxu0
    %v3707 = vadd.f32 0.0, %v3706
    %3708 = vdwg.mxu0
    %v3713 = vrot.slane %v3634, 2
    %v3714 = vrot.slane %v3636, 2
    %v3715 = vrot.slane %v3705, 2
    %v3716 = vrot.slane %v3707, 2
    %v3721 = vadd.f32 %v3496, %v3713
    %v3722 = vadd.f32 %v3497, %v3714
    %v3723 = vadd.f32 %v3498, %v3715
    %v3724 = vadd.f32 %v3499, %v3716
    %v3725 = vxor.u32 %v3721, 2147483648
    %v3726 = vxor.u32 %v3722, 2147483648
    %v3727 = vxor.u32 %v3723, 2147483648
    %v3728 = vmul.f32 %v3725, 1.442695
    %v3729 = vpow.pop %v3728
    %v3730 = vmul.f32 %v3726, 1.442695
    %v3731 = vpow.pop %v3730
    %v3732 = vmul.f32 %v3727, 1.442695
    %v3733 = vpow.pop %v3732
    %v3734 = vadd.f32 %v3729, 1.0
    %v3735 = vadd.f32 %v3731, 1.0
    %v3736 = vadd.f32 %v3733, 1.0
    %v3737 = vrcp.pop %v3734
    %v3738 = vmul.f32 1.0, %v3737
    %v3739 = vrcp.pop %v3735
    %v3740 = vmul.f32 1.0, %v3739
    %v3741 = vrcp.pop %v3736
    %v3742 = vmul.f32 1.0, %v3741
    %v3743 = vtanh.pop %v3724
    %v3745 = vrot.slane %v3492, 6
    %v3747 = vmul.f32 %v3740, %v3745
    %v3748 = vmul.f32 %v3738, %v3743
    %v3749 = vadd.f32 %v3747, %v3748
    %v3750 = vtanh.pop %v3749
    %v3751 = vmul.f32 %v3742, %v3750
    %3752 = vst [vmem:[#allocation2] sm:$0xc0] %v3751
    %v3753 = vld [vmem:[#allocation3 + $0x20] sm:$0x3]
    %v3754 = vld [vmem:[#allocation3 + $0x28] sm:$0x3]
    %v3755 = vld [vmem:[#allocation3 + $0x30] sm:$0x3]
    %v3756 = vld [vmem:[#allocation3 + $0x38] sm:$0x3]
    %v3757 = vld [vmem:[#allocation12] sm:$0xff]
    %v3758 = vld [vmem:[#allocation12 + $0x8] sm:$0xff]
    %v3759 = vld [vmem:[#allocation12 + $0x10] sm:$0xff]
    %v3760 = vld [vmem:[#allocation12 + $0x18] sm:$0xff]
    %v3761 = vld [vmem:[#allocation12 + $0x20] sm:$0xff]
    %v3762 = vld [vmem:[#allocation12 + $0x28] sm:$0xff]
    %v3763 = vld [vmem:[#allocation12 + $0x30] sm:$0xff]
    %v3764 = vld [vmem:[#allocation12 + $0x38] sm:$0xff]
    %v3765 = vld [vmem:[#allocation12 + $0x40] sm:$0xff]
    %v3766 = vld [vmem:[#allocation12 + $0x48] sm:$0xff]
    %v3767 = vld [vmem:[#allocation12 + $0x50] sm:$0xff]
    %v3768 = vld [vmem:[#allocation12 + $0x58] sm:$0xff]
    %v3769 = vld [vmem:[#allocation12 + $0x60] sm:$0xff]
    %v3770 = vld [vmem:[#allocation12 + $0x68] sm:$0xff]
    %v3771 = vld [vmem:[#allocation12 + $0x70] sm:$0xff]
    %v3772 = vld [vmem:[#allocation12 + $0x78] sm:$0xff]
    %v3773 = vld [vmem:[#allocation12 + $0x80] sm:$0xff]
    %v3774 = vld [vmem:[#allocation12 + $0x88] sm:$0xff]
    %v3775 = vld [vmem:[#allocation12 + $0x90] sm:$0xff]
    %v3776 = vld [vmem:[#allocation12 + $0x98] sm:$0xff]
    %v3777 = vld [vmem:[#allocation12 + $0xa0] sm:$0xff]
    %v3778 = vld [vmem:[#allocation12 + $0xa8] sm:$0xff]
    %v3779 = vld [vmem:[#allocation12 + $0xb0] sm:$0xff]
    %v3780 = vld [vmem:[#allocation12 + $0xb8] sm:$0xff]
    %v3781 = vld [vmem:[#allocation12 + $0xc0] sm:$0xff]
    %v3782 = vld [vmem:[#allocation12 + $0xc8] sm:$0xff]
    %v3783 = vld [vmem:[#allocation12 + $0xd0] sm:$0xff]
    %v3784 = vld [vmem:[#allocation12 + $0xd8] sm:$0xff]
    %v3785 = vld [vmem:[#allocation12 + $0xe0] sm:$0xff]
    %v3786 = vld [vmem:[#allocation12 + $0xe8] sm:$0xff]
    %v3787 = vld [vmem:[#allocation12 + $0xf0] sm:$0xff]
    %v3788 = vld [vmem:[#allocation12 + $0xf8] sm:$0xff]
    %v3789 = vld [vmem:[#allocation12 + $0x100] sm:$0xff]
    %v3790 = vld [vmem:[#allocation12 + $0x108] sm:$0xff]
    %v3791 = vld [vmem:[#allocation12 + $0x110] sm:$0xff]
    %v3792 = vld [vmem:[#allocation12 + $0x118] sm:$0xff]
    %v3793 = vld [vmem:[#allocation12 + $0x120] sm:$0xff]
    %v3794 = vld [vmem:[#allocation12 + $0x128] sm:$0xff]
    %v3795 = vld [vmem:[#allocation12 + $0x130] sm:$0xff]
    %v3796 = vld [vmem:[#allocation12 + $0x138] sm:$0xff]
    %v3797 = vld [vmem:[#allocation12 + $0x140] sm:$0xff]
    %v3798 = vld [vmem:[#allocation12 + $0x148] sm:$0xff]
    %v3799 = vld [vmem:[#allocation12 + $0x150] sm:$0xff]
    %v3800 = vld [vmem:[#allocation12 + $0x158] sm:$0xff]
    %v3801 = vld [vmem:[#allocation12 + $0x160] sm:$0xff]
    %v3802 = vld [vmem:[#allocation12 + $0x168] sm:$0xff]
    %v3803 = vld [vmem:[#allocation12 + $0x170] sm:$0xff]
    %v3804 = vld [vmem:[#allocation12 + $0x178] sm:$0xff]
    %v3805 = vld [vmem:[#allocation12 + $0x180] sm:$0xff]
    %v3806 = vld [vmem:[#allocation12 + $0x188] sm:$0xff]
    %v3807 = vld [vmem:[#allocation12 + $0x190] sm:$0xff]
    %v3808 = vld [vmem:[#allocation12 + $0x198] sm:$0xff]
    %v3809 = vld [vmem:[#allocation12 + $0x1a0] sm:$0xff]
    %v3810 = vld [vmem:[#allocation12 + $0x1a8] sm:$0xff]
    %v3811 = vld [vmem:[#allocation12 + $0x1b0] sm:$0xff]
    %v3812 = vld [vmem:[#allocation12 + $0x1b8] sm:$0xff]
    %v3813 = vld [vmem:[#allocation12 + $0x1c0] sm:$0xff]
    %v3814 = vld [vmem:[#allocation12 + $0x1c8] sm:$0xff]
    %v3815 = vld [vmem:[#allocation12 + $0x1d0] sm:$0xff]
    %v3816 = vld [vmem:[#allocation12 + $0x1d8] sm:$0xff]
    %v3817 = vld [vmem:[#allocation12 + $0x1e0] sm:$0xff]
    %v3818 = vld [vmem:[#allocation12 + $0x1e8] sm:$0xff]
    %v3819 = vld [vmem:[#allocation12 + $0x1f0] sm:$0xff]
    %v3820 = vld [vmem:[#allocation12 + $0x1f8] sm:$0xff]
    %v3822 = vrot.slane %v3751, 6
    %3824 = vmatprep.subr.mxu0 %v3758
    %3825 = vmatpush1.msra.mxu0 %v3757
    %3826 = vmatprep.subr.mxu0 %v3762
    %3827 = vmatpush1.msra.mxu0 %v3761
    %3828 = vmatprep.subr.mxu0 %v3766
    %3829 = vmatpush1.msra.mxu0 %v3765
    %3830 = vmatprep.subr.mxu0 %v3770
    %3831 = vmatpush1.msra.mxu0 %v3769
    %3832 = vmatprep.subr.mxu0 %v3774
    %3833 = vmatpush1.msra.mxu0 %v3773
    %3834 = vmatprep.subr.mxu0 %v3778
    %3835 = vmatpush1.msra.mxu0 %v3777
    %3836 = vmatprep.subr.mxu0 %v3782
    %3837 = vmatpush1.msra.mxu0 %v3781
    %3838 = vmatprep.subr.mxu0 %v3786
    %3839 = vmatpush1.msra.mxu0 %v3785
    %3840 = vmatprep.subr.mxu0 %v3790
    %3841 = vmatpush1.msra.mxu0 %v3789
    %3842 = vmatprep.subr.mxu0 %v3794
    %3843 = vmatpush1.msra.mxu0 %v3793
    %3844 = vmatprep.subr.mxu0 %v3798
    %3845 = vmatpush1.msra.mxu0 %v3797
    %3846 = vmatprep.subr.mxu0 %v3802
    %3847 = vmatpush1.msra.mxu0 %v3801
    %3848 = vmatprep.subr.mxu0 %v3806
    %3849 = vmatpush1.msra.mxu0 %v3805
    %3850 = vmatprep.subr.mxu0 %v3810
    %3851 = vmatpush1.msra.mxu0 %v3809
    %3852 = vmatprep.subr.mxu0 %v3814
    %3853 = vmatpush1.msra.mxu0 %v3813
    %3854 = vmatprep.subr.mxu0 %v3818
    %3855 = vmatpush1.msra.mxu0 %v3817
    %3856 = vmatprep.subr.mxu0 0.0
    %3857 = vmatpush1.msra.mxu0 0.0
    %3858 = vmatprep.subr.mxu0 0.0
    %3859 = vmatpush1.msra.mxu0 0.0
    %3860 = vmatprep.subr.mxu0 0.0
    %3861 = vmatpush1.msra.mxu0 0.0
    %3862 = vmatprep.subr.mxu0 0.0
    %3863 = vmatpush1.msra.mxu0 0.0
    %3864 = vmatprep.subr.mxu0 0.0
    %3865 = vmatpush1.msra.mxu0 0.0
    %3866 = vmatprep.subr.mxu0 0.0
    %3867 = vmatpush1.msra.mxu0 0.0
    %3868 = vmatprep.subr.mxu0 0.0
    %3869 = vmatpush1.msra.mxu0 0.0
    %3870 = vmatprep.subr.mxu0 0.0
    %3871 = vmatpush1.msra.mxu0 0.0
    %3872 = vmatprep.subr.mxu0 0.0
    %3873 = vmatpush1.msra.mxu0 0.0
    %3874 = vmatprep.subr.mxu0 0.0
    %3875 = vmatpush1.msra.mxu0 0.0
    %3876 = vmatprep.subr.mxu0 0.0
    %3877 = vmatpush1.msra.mxu0 0.0
    %3878 = vmatprep.subr.mxu0 0.0
    %3879 = vmatpush1.msra.mxu0 0.0
    %3880 = vmatprep.subr.mxu0 0.0
    %3881 = vmatpush1.msra.mxu0 0.0
    %3882 = vmatprep.subr.mxu0 0.0
    %3883 = vmatpush1.msra.mxu0 0.0
    %3884 = vmatprep.subr.mxu0 0.0
    %3885 = vmatpush1.msra.mxu0 0.0
    %3886 = vmatprep.subr.mxu0 0.0
    %3887 = vmatpush1.msra.mxu0 0.0
    %3888 = vmatprep.mubr.f32.mxu0 0.0
    %3889 = vmatmul.mubr.f32.gmra.mrb[0].mxu0 %v3822
    %v3890 = vpop.f32.mrb[0].mxu0
    %v3891 = vadd.f32 0.0, %v3890
    %v3892 = vpop.f32.mrb[0].mxu0
    %v3893 = vadd.f32 0.0, %v3892
    %3894 = vdwg.mxu0
    %3895 = vmatprep.subr.mxu0 %v3760
    %3896 = vmatpush1.msra.mxu0 %v3759
    %3897 = vmatprep.subr.mxu0 %v3764
    %3898 = vmatpush1.msra.mxu0 %v3763
    %3899 = vmatprep.subr.mxu0 %v3768
    %3900 = vmatpush1.msra.mxu0 %v3767
    %3901 = vmatprep.subr.mxu0 %v3772
    %3902 = vmatpush1.msra.mxu0 %v3771
    %3903 = vmatprep.subr.mxu0 %v3776
    %3904 = vmatpush1.msra.mxu0 %v3775
    %3905 = vmatprep.subr.mxu0 %v3780
    %3906 = vmatpush1.msra.mxu0 %v3779
    %3907 = vmatprep.subr.mxu0 %v3784
    %3908 = vmatpush1.msra.mxu0 %v3783
    %3909 = vmatprep.subr.mxu0 %v3788
    %3910 = vmatpush1.msra.mxu0 %v3787
    %3911 = vmatprep.subr.mxu0 %v3792
    %3912 = vmatpush1.msra.mxu0 %v3791
    %3913 = vmatprep.subr.mxu0 %v3796
    %3914 = vmatpush1.msra.mxu0 %v3795
    %3915 = vmatprep.subr.mxu0 %v3800
    %3916 = vmatpush1.msra.mxu0 %v3799
    %3917 = vmatprep.subr.mxu0 %v3804
    %3918 = vmatpush1.msra.mxu0 %v3803
    %3919 = vmatprep.subr.mxu0 %v3808
    %3920 = vmatpush1.msra.mxu0 %v3807
    %3921 = vmatprep.subr.mxu0 %v3812
    %3922 = vmatpush1.msra.mxu0 %v3811
    %3923 = vmatprep.subr.mxu0 %v3816
    %3924 = vmatpush1.msra.mxu0 %v3815
    %3925 = vmatprep.subr.mxu0 %v3820
    %3926 = vmatpush1.msra.mxu0 %v3819
    %3927 = vmatprep.subr.mxu0 0.0
    %3928 = vmatpush1.msra.mxu0 0.0
    %3929 = vmatprep.subr.mxu0 0.0
    %3930 = vmatpush1.msra.mxu0 0.0
    %3931 = vmatprep.subr.mxu0 0.0
    %3932 = vmatpush1.msra.mxu0 0.0
    %3933 = vmatprep.subr.mxu0 0.0
    %3934 = vmatpush1.msra.mxu0 0.0
    %3935 = vmatprep.subr.mxu0 0.0
    %3936 = vmatpush1.msra.mxu0 0.0
    %3937 = vmatprep.subr.mxu0 0.0
    %3938 = vmatpush1.msra.mxu0 0.0
    %3939 = vmatprep.subr.mxu0 0.0
    %3940 = vmatpush1.msra.mxu0 0.0
    %3941 = vmatprep.subr.mxu0 0.0
    %3942 = vmatpush1.msra.mxu0 0.0
    %3943 = vmatprep.subr.mxu0 0.0
    %3944 = vmatpush1.msra.mxu0 0.0
    %3945 = vmatprep.subr.mxu0 0.0
    %3946 = vmatpush1.msra.mxu0 0.0
    %3947 = vmatprep.subr.mxu0 0.0
    %3948 = vmatpush1.msra.mxu0 0.0
    %3949 = vmatprep.subr.mxu0 0.0
    %3950 = vmatpush1.msra.mxu0 0.0
    %3951 = vmatprep.subr.mxu0 0.0
    %3952 = vmatpush1.msra.mxu0 0.0
    %3953 = vmatprep.subr.mxu0 0.0
    %3954 = vmatpush1.msra.mxu0 0.0
    %3955 = vmatprep.subr.mxu0 0.0
    %3956 = vmatpush1.msra.mxu0 0.0
    %3957 = vmatprep.subr.mxu0 0.0
    %3958 = vmatpush1.msra.mxu0 0.0
    %3959 = vmatprep.mubr.f32.mxu0 0.0
    %3960 = vmatmul.mubr.f32.gmra.mrb[0].mxu0 %v3822
    %v3961 = vpop.f32.mrb[0].mxu0
    %v3962 = vadd.f32 0.0, %v3961
    %v3963 = vpop.f32.mrb[0].mxu0
    %v3964 = vadd.f32 0.0, %v3963
    %3965 = vdwg.mxu0
    %v3966 = vadd.f32 %v3753, %v3891
    %v3967 = vadd.f32 %v3754, %v3893
    %v3968 = vadd.f32 %v3755, %v3962
    %v3969 = vadd.f32 %v3756, %v3964
    %v3970 = vxor.u32 %v3966, 2147483648
    %v3971 = vxor.u32 %v3967, 2147483648
    %v3972 = vxor.u32 %v3968, 2147483648
    %v3973 = vmul.f32 %v3970, 1.442695
    %v3974 = vpow.pop %v3973
    %v3975 = vmul.f32 %v3971, 1.442695
    %v3976 = vpow.pop %v3975
    %v3977 = vmul.f32 %v3972, 1.442695
    %v3978 = vpow.pop %v3977
    %v3979 = vadd.f32 %v3974, 1.0
    %v3980 = vadd.f32 %v3976, 1.0
    %v3981 = vadd.f32 %v3978, 1.0
    %v3982 = vrcp.pop %v3979
    %v3983 = vmul.f32 1.0, %v3982
    %v3984 = vrcp.pop %v3980
    %v3985 = vmul.f32 1.0, %v3984
    %v3986 = vrcp.pop %v3981
    %v3987 = vmul.f32 1.0, %v3986
    %v3988 = vtanh.pop %v3969
    %v3990 = vrot.slane %v3749, 6
    %v3992 = vmul.f32 %v3985, %v3990
    %v3993 = vmul.f32 %v3983, %v3988
    %v3994 = vadd.f32 %v3992, %v3993
    %v3995 = vtanh.pop %v3994
    %v3996 = vmul.f32 %v3987, %v3995
    %3997 = vst [vmem:[#allocation2 + $0x8] sm:$0x3] %v3996
    %v3998 = vld [vmem:[#allocation3 + $0x20] sm:$0xc]
    %v3999 = vld [vmem:[#allocation3 + $0x28] sm:$0xc]
    %v4000 = vld [vmem:[#allocation3 + $0x30] sm:$0xc]
    %v4001 = vld [vmem:[#allocation3 + $0x38] sm:$0xc]
    %v4002 = vld [vmem:[#allocation12] sm:$0xff]
    %v4003 = vld [vmem:[#allocation12 + $0x8] sm:$0xff]
    %v4004 = vld [vmem:[#allocation12 + $0x10] sm:$0xff]
    %v4005 = vld [vmem:[#allocation12 + $0x18] sm:$0xff]
    %v4006 = vld [vmem:[#allocation12 + $0x20] sm:$0xff]
    %v4007 = vld [vmem:[#allocation12 + $0x28] sm:$0xff]
    %v4008 = vld [vmem:[#allocation12 + $0x30] sm:$0xff]
    %v4009 = vld [vmem:[#allocation12 + $0x38] sm:$0xff]
    %v4010 = vld [vmem:[#allocation12 + $0x40] sm:$0xff]
    %v4011 = vld [vmem:[#allocation12 + $0x48] sm:$0xff]
    %v4012 = vld [vmem:[#allocation12 + $0x50] sm:$0xff]
    %v4013 = vld [vmem:[#allocation12 + $0x58] sm:$0xff]
    %v4014 = vld [vmem:[#allocation12 + $0x60] sm:$0xff]
    %v4015 = vld [vmem:[#allocation12 + $0x68] sm:$0xff]
    %v4016 = vld [vmem:[#allocation12 + $0x70] sm:$0xff]
    %v4017 = vld [vmem:[#allocation12 + $0x78] sm:$0xff]
    %v4018 = vld [vmem:[#allocation12 + $0x80] sm:$0xff]
    %v4019 = vld [vmem:[#allocation12 + $0x88] sm:$0xff]
    %v4020 = vld [vmem:[#allocation12 + $0x90] sm:$0xff]
    %v4021 = vld [vmem:[#allocation12 + $0x98] sm:$0xff]
    %v4022 = vld [vmem:[#allocation12 + $0xa0] sm:$0xff]
    %v4023 = vld [vmem:[#allocation12 + $0xa8] sm:$0xff]
    %v4024 = vld [vmem:[#allocation12 + $0xb0] sm:$0xff]
    %v4025 = vld [vmem:[#allocation12 + $0xb8] sm:$0xff]
    %v4026 = vld [vmem:[#allocation12 + $0xc0] sm:$0xff]
    %v4027 = vld [vmem:[#allocation12 + $0xc8] sm:$0xff]
    %v4028 = vld [vmem:[#allocation12 + $0xd0] sm:$0xff]
    %v4029 = vld [vmem:[#allocation12 + $0xd8] sm:$0xff]
    %v4030 = vld [vmem:[#allocation12 + $0xe0] sm:$0xff]
    %v4031 = vld [vmem:[#allocation12 + $0xe8] sm:$0xff]
    %v4032 = vld [vmem:[#allocation12 + $0xf0] sm:$0xff]
    %v4033 = vld [vmem:[#allocation12 + $0xf8] sm:$0xff]
    %v4034 = vld [vmem:[#allocation12 + $0x100] sm:$0xff]
    %v4035 = vld [vmem:[#allocation12 + $0x108] sm:$0xff]
    %v4036 = vld [vmem:[#allocation12 + $0x110] sm:$0xff]
    %v4037 = vld [vmem:[#allocation12 + $0x118] sm:$0xff]
    %v4038 = vld [vmem:[#allocation12 + $0x120] sm:$0xff]
    %v4039 = vld [vmem:[#allocation12 + $0x128] sm:$0xff]
    %v4040 = vld [vmem:[#allocation12 + $0x130] sm:$0xff]
    %v4041 = vld [vmem:[#allocation12 + $0x138] sm:$0xff]
    %v4042 = vld [vmem:[#allocation12 + $0x140] sm:$0xff]
    %v4043 = vld [vmem:[#allocation12 + $0x148] sm:$0xff]
    %v4044 = vld [vmem:[#allocation12 + $0x150] sm:$0xff]
    %v4045 = vld [vmem:[#allocation12 + $0x158] sm:$0xff]
    %v4046 = vld [vmem:[#allocation12 + $0x160] sm:$0xff]
    %v4047 = vld [vmem:[#allocation12 + $0x168] sm:$0xff]
    %v4048 = vld [vmem:[#allocation12 + $0x170] sm:$0xff]
    %v4049 = vld [vmem:[#allocation12 + $0x178] sm:$0xff]
    %v4050 = vld [vmem:[#allocation12 + $0x180] sm:$0xff]
    %v4051 = vld [vmem:[#allocation12 + $0x188] sm:$0xff]
    %v4052 = vld [vmem:[#allocation12 + $0x190] sm:$0xff]
    %v4053 = vld [vmem:[#allocation12 + $0x198] sm:$0xff]
    %v4054 = vld [vmem:[#allocation12 + $0x1a0] sm:$0xff]
    %v4055 = vld [vmem:[#allocation12 + $0x1a8] sm:$0xff]
    %v4056 = vld [vmem:[#allocation12 + $0x1b0] sm:$0xff]
    %v4057 = vld [vmem:[#allocation12 + $0x1b8] sm:$0xff]
    %v4058 = vld [vmem:[#allocation12 + $0x1c0] sm:$0xff]
    %v4059 = vld [vmem:[#allocation12 + $0x1c8] sm:$0xff]
    %v4060 = vld [vmem:[#allocation12 + $0x1d0] sm:$0xff]
    %v4061 = vld [vmem:[#allocation12 + $0x1d8] sm:$0xff]
    %v4062 = vld [vmem:[#allocation12 + $0x1e0] sm:$0xff]
    %v4063 = vld [vmem:[#allocation12 + $0x1e8] sm:$0xff]
    %v4064 = vld [vmem:[#allocation12 + $0x1f0] sm:$0xff]
    %v4065 = vld [vmem:[#allocation12 + $0x1f8] sm:$0xff]
    %4066 = vmatprep.subr.mxu0 %v4003
    %4067 = vmatpush1.msra.mxu0 %v4002
    %4068 = vmatprep.subr.mxu0 %v4007
    %4069 = vmatpush1.msra.mxu0 %v4006
    %4070 = vmatprep.subr.mxu0 %v4011
    %4071 = vmatpush1.msra.mxu0 %v4010
    %4072 = vmatprep.subr.mxu0 %v4015
    %4073 = vmatpush1.msra.mxu0 %v4014
    %4074 = vmatprep.subr.mxu0 %v4019
    %4075 = vmatpush1.msra.mxu0 %v4018
    %4076 = vmatprep.subr.mxu0 %v4023
    %4077 = vmatpush1.msra.mxu0 %v4022
    %4078 = vmatprep.subr.mxu0 %v4027
    %4079 = vmatpush1.msra.mxu0 %v4026
    %4080 = vmatprep.subr.mxu0 %v4031
    %4081 = vmatpush1.msra.mxu0 %v4030
    %4082 = vmatprep.subr.mxu0 %v4035
    %4083 = vmatpush1.msra.mxu0 %v4034
    %4084 = vmatprep.subr.mxu0 %v4039
    %4085 = vmatpush1.msra.mxu0 %v4038
    %4086 = vmatprep.subr.mxu0 %v4043
    %4087 = vmatpush1.msra.mxu0 %v4042
    %4088 = vmatprep.subr.mxu0 %v4047
    %4089 = vmatpush1.msra.mxu0 %v4046
    %4090 = vmatprep.subr.mxu0 %v4051
    %4091 = vmatpush1.msra.mxu0 %v4050
    %4092 = vmatprep.subr.mxu0 %v4055
    %4093 = vmatpush1.msra.mxu0 %v4054
    %4094 = vmatprep.subr.mxu0 %v4059
    %4095 = vmatpush1.msra.mxu0 %v4058
    %4096 = vmatprep.subr.mxu0 %v4063
    %4097 = vmatpush1.msra.mxu0 %v4062
    %4098 = vmatprep.subr.mxu0 0.0
    %4099 = vmatpush1.msra.mxu0 0.0
    %4100 = vmatprep.subr.mxu0 0.0
    %4101 = vmatpush1.msra.mxu0 0.0
    %4102 = vmatprep.subr.mxu0 0.0
    %4103 = vmatpush1.msra.mxu0 0.0
    %4104 = vmatprep.subr.mxu0 0.0
    %4105 = vmatpush1.msra.mxu0 0.0
    %4106 = vmatprep.subr.mxu0 0.0
    %4107 = vmatpush1.msra.mxu0 0.0
    %4108 = vmatprep.subr.mxu0 0.0
    %4109 = vmatpush1.msra.mxu0 0.0
    %4110 = vmatprep.subr.mxu0 0.0
    %4111 = vmatpush1.msra.mxu0 0.0
    %4112 = vmatprep.subr.mxu0 0.0
    %4113 = vmatpush1.msra.mxu0 0.0
    %4114 = vmatprep.subr.mxu0 0.0
    %4115 = vmatpush1.msra.mxu0 0.0
    %4116 = vmatprep.subr.mxu0 0.0
    %4117 = vmatpush1.msra.mxu0 0.0
    %4118 = vmatprep.subr.mxu0 0.0
    %4119 = vmatpush1.msra.mxu0 0.0
    %4120 = vmatprep.subr.mxu0 0.0
    %4121 = vmatpush1.msra.mxu0 0.0
    %4122 = vmatprep.subr.mxu0 0.0
    %4123 = vmatpush1.msra.mxu0 0.0
    %4124 = vmatprep.subr.mxu0 0.0
    %4125 = vmatpush1.msra.mxu0 0.0
    %4126 = vmatprep.subr.mxu0 0.0
    %4127 = vmatpush1.msra.mxu0 0.0
    %4128 = vmatprep.subr.mxu0 0.0
    %4129 = vmatpush1.msra.mxu0 0.0
    %4130 = vmatprep.mubr.f32.mxu0 0.0
    %4131 = vmatmul.mubr.f32.gmra.mrb[0].mxu0 %v3996
    %v4132 = vpop.f32.mrb[0].mxu0
    %v4133 = vadd.f32 0.0, %v4132
    %v4134 = vpop.f32.mrb[0].mxu0
    %v4135 = vadd.f32 0.0, %v4134
    %4136 = vdwg.mxu0
    %4137 = vmatprep.subr.mxu0 %v4005
    %4138 = vmatpush1.msra.mxu0 %v4004
    %4139 = vmatprep.subr.mxu0 %v4009
    %4140 = vmatpush1.msra.mxu0 %v4008
    %4141 = vmatprep.subr.mxu0 %v4013
    %4142 = vmatpush1.msra.mxu0 %v4012
    %4143 = vmatprep.subr.mxu0 %v4017
    %4144 = vmatpush1.msra.mxu0 %v4016
    %4145 = vmatprep.subr.mxu0 %v4021
    %4146 = vmatpush1.msra.mxu0 %v4020
    %4147 = vmatprep.subr.mxu0 %v4025
    %4148 = vmatpush1.msra.mxu0 %v4024
    %4149 = vmatprep.subr.mxu0 %v4029
    %4150 = vmatpush1.msra.mxu0 %v4028
    %4151 = vmatprep.subr.mxu0 %v4033
    %4152 = vmatpush1.msra.mxu0 %v4032
    %4153 = vmatprep.subr.mxu0 %v4037
    %4154 = vmatpush1.msra.mxu0 %v4036
    %4155 = vmatprep.subr.mxu0 %v4041
    %4156 = vmatpush1.msra.mxu0 %v4040
    %4157 = vmatprep.subr.mxu0 %v4045
    %4158 = vmatpush1.msra.mxu0 %v4044
    %4159 = vmatprep.subr.mxu0 %v4049
    %4160 = vmatpush1.msra.mxu0 %v4048
    %4161 = vmatprep.subr.mxu0 %v4053
    %4162 = vmatpush1.msra.mxu0 %v4052
    %4163 = vmatprep.subr.mxu0 %v4057
    %4164 = vmatpush1.msra.mxu0 %v4056
    %4165 = vmatprep.subr.mxu0 %v4061
    %4166 = vmatpush1.msra.mxu0 %v4060
    %4167 = vmatprep.subr.mxu0 %v4065
    %4168 = vmatpush1.msra.mxu0 %v4064
    %4169 = vmatprep.subr.mxu0 0.0
    %4170 = vmatpush1.msra.mxu0 0.0
    %4171 = vmatprep.subr.mxu0 0.0
    %4172 = vmatpush1.msra.mxu0 0.0
    %4173 = vmatprep.subr.mxu0 0.0
    %4174 = vmatpush1.msra.mxu0 0.0
    %4175 = vmatprep.subr.mxu0 0.0
    %4176 = vmatpush1.msra.mxu0 0.0
    %4177 = vmatprep.subr.mxu0 0.0
    %4178 = vmatpush1.msra.mxu0 0.0
    %4179 = vmatprep.subr.mxu0 0.0
    %4180 = vmatpush1.msra.mxu0 0.0
    %4181 = vmatprep.subr.mxu0 0.0
    %4182 = vmatpush1.msra.mxu0 0.0
    %4183 = vmatprep.subr.mxu0 0.0
    %4184 = vmatpush1.msra.mxu0 0.0
    %4185 = vmatprep.subr.mxu0 0.0
    %4186 = vmatpush1.msra.mxu0 0.0
    %4187 = vmatprep.subr.mxu0 0.0
    %4188 = vmatpush1.msra.mxu0 0.0
    %4189 = vmatprep.subr.mxu0 0.0
    %4190 = vmatpush1.msra.mxu0 0.0
    %4191 = vmatprep.subr.mxu0 0.0
    %4192 = vmatpush1.msra.mxu0 0.0
    %4193 = vmatprep.subr.mxu0 0.0
    %4194 = vmatpush1.msra.mxu0 0.0
    %4195 = vmatprep.subr.mxu0 0.0
    %4196 = vmatpush1.msra.mxu0 0.0
    %4197 = vmatprep.subr.mxu0 0.0
    %4198 = vmatpush1.msra.mxu0 0.0
    %4199 = vmatprep.subr.mxu0 0.0
    %4200 = vmatpush1.msra.mxu0 0.0
    %4201 = vmatprep.mubr.f32.mxu0 0.0
    %4202 = vmatmul.mubr.f32.gmra.mrb[0].mxu0 %v3996
    %v4203 = vpop.f32.mrb[0].mxu0
    %v4204 = vadd.f32 0.0, %v4203
    %v4205 = vpop.f32.mrb[0].mxu0
    %v4206 = vadd.f32 0.0, %v4205
    %4207 = vdwg.mxu0
    %v4212 = vrot.slane %v4133, 6
    %v4213 = vrot.slane %v4135, 6
    %v4214 = vrot.slane %v4204, 6
    %v4215 = vrot.slane %v4206, 6
    %v4220 = vadd.f32 %v3998, %v4212
    %v4221 = vadd.f32 %v3999, %v4213
    %v4222 = vadd.f32 %v4000, %v4214
    %v4223 = vadd.f32 %v4001, %v4215
    %v4224 = vxor.u32 %v4220, 2147483648
    %v4225 = vxor.u32 %v4221, 2147483648
    %v4226 = vxor.u32 %v4222, 2147483648
    %v4227 = vmul.f32 %v4224, 1.442695
    %v4228 = vpow.pop %v4227
    %v4229 = vmul.f32 %v4225, 1.442695
    %v4230 = vpow.pop %v4229
    %v4231 = vmul.f32 %v4226, 1.442695
    %v4232 = vpow.pop %v4231
    %v4233 = vadd.f32 %v4228, 1.0
    %v4234 = vadd.f32 %v4230, 1.0
    %v4235 = vadd.f32 %v4232, 1.0
    %v4236 = vrcp.pop %v4233
    %v4237 = vmul.f32 1.0, %v4236
    %v4238 = vrcp.pop %v4234
    %v4239 = vmul.f32 1.0, %v4238
    %v4240 = vrcp.pop %v4235
    %v4241 = vmul.f32 1.0, %v4240
    %v4242 = vtanh.pop %v4223
    %v4244 = vrot.slane %v3994, 6
    %v4246 = vmul.f32 %v4239, %v4244
    %v4247 = vmul.f32 %v4237, %v4242
    %v4248 = vadd.f32 %v4246, %v4247
    %v4249 = vtanh.pop %v4248
    %v4250 = vmul.f32 %v4241, %v4249
    %4251 = vst [vmem:[#allocation2 + $0x8] sm:$0xc] %v4250
    %v4252 = vld [vmem:[#allocation3 + $0x20] sm:$0x30]
    %v4253 = vld [vmem:[#allocation3 + $0x28] sm:$0x30]
    %v4254 = vld [vmem:[#allocation3 + $0x30] sm:$0x30]
    %v4255 = vld [vmem:[#allocation3 + $0x38] sm:$0x30]
    %v4256 = vld [vmem:[#allocation12] sm:$0xff]
    %v4257 = vld [vmem:[#allocation12 + $0x8] sm:$0xff]
    %v4258 = vld [vmem:[#allocation12 + $0x10] sm:$0xff]
    %v4259 = vld [vmem:[#allocation12 + $0x18] sm:$0xff]
    %v4260 = vld [vmem:[#allocation12 + $0x20] sm:$0xff]
    %v4261 = vld [vmem:[#allocation12 + $0x28] sm:$0xff]
    %v4262 = vld [vmem:[#allocation12 + $0x30] sm:$0xff]
    %v4263 = vld [vmem:[#allocation12 + $0x38] sm:$0xff]
    %v4264 = vld [vmem:[#allocation12 + $0x40] sm:$0xff]
    %v4265 = vld [vmem:[#allocation12 + $0x48] sm:$0xff]
    %v4266 = vld [vmem:[#allocation12 + $0x50] sm:$0xff]
    %v4267 = vld [vmem:[#allocation12 + $0x58] sm:$0xff]
    %v4268 = vld [vmem:[#allocation12 + $0x60] sm:$0xff]
    %v4269 = vld [vmem:[#allocation12 + $0x68] sm:$0xff]
    %v4270 = vld [vmem:[#allocation12 + $0x70] sm:$0xff]
    %v4271 = vld [vmem:[#allocation12 + $0x78] sm:$0xff]
    %v4272 = vld [vmem:[#allocation12 + $0x80] sm:$0xff]
    %v4273 = vld [vmem:[#allocation12 + $0x88] sm:$0xff]
    %v4274 = vld [vmem:[#allocation12 + $0x90] sm:$0xff]
    %v4275 = vld [vmem:[#allocation12 + $0x98] sm:$0xff]
    %v4276 = vld [vmem:[#allocation12 + $0xa0] sm:$0xff]
    %v4277 = vld [vmem:[#allocation12 + $0xa8] sm:$0xff]
    %v4278 = vld [vmem:[#allocation12 + $0xb0] sm:$0xff]
    %v4279 = vld [vmem:[#allocation12 + $0xb8] sm:$0xff]
    %v4280 = vld [vmem:[#allocation12 + $0xc0] sm:$0xff]
    %v4281 = vld [vmem:[#allocation12 + $0xc8] sm:$0xff]
    %v4282 = vld [vmem:[#allocation12 + $0xd0] sm:$0xff]
    %v4283 = vld [vmem:[#allocation12 + $0xd8] sm:$0xff]
    %v4284 = vld [vmem:[#allocation12 + $0xe0] sm:$0xff]
    %v4285 = vld [vmem:[#allocation12 + $0xe8] sm:$0xff]
    %v4286 = vld [vmem:[#allocation12 + $0xf0] sm:$0xff]
    %v4287 = vld [vmem:[#allocation12 + $0xf8] sm:$0xff]
    %v4288 = vld [vmem:[#allocation12 + $0x100] sm:$0xff]
    %v4289 = vld [vmem:[#allocation12 + $0x108] sm:$0xff]
    %v4290 = vld [vmem:[#allocation12 + $0x110] sm:$0xff]
    %v4291 = vld [vmem:[#allocation12 + $0x118] sm:$0xff]
    %v4292 = vld [vmem:[#allocation12 + $0x120] sm:$0xff]
    %v4293 = vld [vmem:[#allocation12 + $0x128] sm:$0xff]
    %v4294 = vld [vmem:[#allocation12 + $0x130] sm:$0xff]
    %v4295 = vld [vmem:[#allocation12 + $0x138] sm:$0xff]
    %v4296 = vld [vmem:[#allocation12 + $0x140] sm:$0xff]
    %v4297 = vld [vmem:[#allocation12 + $0x148] sm:$0xff]
    %v4298 = vld [vmem:[#allocation12 + $0x150] sm:$0xff]
    %v4299 = vld [vmem:[#allocation12 + $0x158] sm:$0xff]
    %v4300 = vld [vmem:[#allocation12 + $0x160] sm:$0xff]
    %v4301 = vld [vmem:[#allocation12 + $0x168] sm:$0xff]
    %v4302 = vld [vmem:[#allocation12 + $0x170] sm:$0xff]
    %v4303 = vld [vmem:[#allocation12 + $0x178] sm:$0xff]
    %v4304 = vld [vmem:[#allocation12 + $0x180] sm:$0xff]
    %v4305 = vld [vmem:[#allocation12 + $0x188] sm:$0xff]
    %v4306 = vld [vmem:[#allocation12 + $0x190] sm:$0xff]
    %v4307 = vld [vmem:[#allocation12 + $0x198] sm:$0xff]
    %v4308 = vld [vmem:[#allocation12 + $0x1a0] sm:$0xff]
    %v4309 = vld [vmem:[#allocation12 + $0x1a8] sm:$0xff]
    %v4310 = vld [vmem:[#allocation12 + $0x1b0] sm:$0xff]
    %v4311 = vld [vmem:[#allocation12 + $0x1b8] sm:$0xff]
    %v4312 = vld [vmem:[#allocation12 + $0x1c0] sm:$0xff]
    %v4313 = vld [vmem:[#allocation12 + $0x1c8] sm:$0xff]
    %v4314 = vld [vmem:[#allocation12 + $0x1d0] sm:$0xff]
    %v4315 = vld [vmem:[#allocation12 + $0x1d8] sm:$0xff]
    %v4316 = vld [vmem:[#allocation12 + $0x1e0] sm:$0xff]
    %v4317 = vld [vmem:[#allocation12 + $0x1e8] sm:$0xff]
    %v4318 = vld [vmem:[#allocation12 + $0x1f0] sm:$0xff]
    %v4319 = vld [vmem:[#allocation12 + $0x1f8] sm:$0xff]
    %v4321 = vrot.slane %v4250, 2
    %4323 = vmatprep.subr.mxu0 %v4257
    %4324 = vmatpush1.msra.mxu0 %v4256
    %4325 = vmatprep.subr.mxu0 %v4261
    %4326 = vmatpush1.msra.mxu0 %v4260
    %4327 = vmatprep.subr.mxu0 %v4265
    %4328 = vmatpush1.msra.mxu0 %v4264
    %4329 = vmatprep.subr.mxu0 %v4269
    %4330 = vmatpush1.msra.mxu0 %v4268
    %4331 = vmatprep.subr.mxu0 %v4273
    %4332 = vmatpush1.msra.mxu0 %v4272
    %4333 = vmatprep.subr.mxu0 %v4277
    %4334 = vmatpush1.msra.mxu0 %v4276
    %4335 = vmatprep.subr.mxu0 %v4281
    %4336 = vmatpush1.msra.mxu0 %v4280
    %4337 = vmatprep.subr.mxu0 %v4285
    %4338 = vmatpush1.msra.mxu0 %v4284
    %4339 = vmatprep.subr.mxu0 %v4289
    %4340 = vmatpush1.msra.mxu0 %v4288
    %4341 = vmatprep.subr.mxu0 %v4293
    %4342 = vmatpush1.msra.mxu0 %v4292
    %4343 = vmatprep.subr.mxu0 %v4297
    %4344 = vmatpush1.msra.mxu0 %v4296
    %4345 = vmatprep.subr.mxu0 %v4301
    %4346 = vmatpush1.msra.mxu0 %v4300
    %4347 = vmatprep.subr.mxu0 %v4305
    %4348 = vmatpush1.msra.mxu0 %v4304
    %4349 = vmatprep.subr.mxu0 %v4309
    %4350 = vmatpush1.msra.mxu0 %v4308
    %4351 = vmatprep.subr.mxu0 %v4313
    %4352 = vmatpush1.msra.mxu0 %v4312
    %4353 = vmatprep.subr.mxu0 %v4317
    %4354 = vmatpush1.msra.mxu0 %v4316
    %4355 = vmatprep.subr.mxu0 0.0
    %4356 = vmatpush1.msra.mxu0 0.0
    %4357 = vmatprep.subr.mxu0 0.0
    %4358 = vmatpush1.msra.mxu0 0.0
    %4359 = vmatprep.subr.mxu0 0.0
    %4360 = vmatpush1.msra.mxu0 0.0
    %4361 = vmatprep.subr.mxu0 0.0
    %4362 = vmatpush1.msra.mxu0 0.0
    %4363 = vmatprep.subr.mxu0 0.0
    %4364 = vmatpush1.msra.mxu0 0.0
    %4365 = vmatprep.subr.mxu0 0.0
    %4366 = vmatpush1.msra.mxu0 0.0
    %4367 = vmatprep.subr.mxu0 0.0
    %4368 = vmatpush1.msra.mxu0 0.0
    %4369 = vmatprep.subr.mxu0 0.0
    %4370 = vmatpush1.msra.mxu0 0.0
    %4371 = vmatprep.subr.mxu0 0.0
    %4372 = vmatpush1.msra.mxu0 0.0
    %4373 = vmatprep.subr.mxu0 0.0
    %4374 = vmatpush1.msra.mxu0 0.0
    %4375 = vmatprep.subr.mxu0 0.0
    %4376 = vmatpush1.msra.mxu0 0.0
    %4377 = vmatprep.subr.mxu0 0.0
    %4378 = vmatpush1.msra.mxu0 0.0
    %4379 = vmatprep.subr.mxu0 0.0
    %4380 = vmatpush1.msra.mxu0 0.0
    %4381 = vmatprep.subr.mxu0 0.0
    %4382 = vmatpush1.msra.mxu0 0.0
    %4383 = vmatprep.subr.mxu0 0.0
    %4384 = vmatpush1.msra.mxu0 0.0
    %4385 = vmatprep.subr.mxu0 0.0
    %4386 = vmatpush1.msra.mxu0 0.0
    %4387 = vmatprep.mubr.f32.mxu0 0.0
    %4388 = vmatmul.mubr.f32.gmra.mrb[0].mxu0 %v4321
    %v4389 = vpop.f32.mrb[0].mxu0
    %v4390 = vadd.f32 0.0, %v4389
    %v4391 = vpop.f32.mrb[0].mxu0
    %v4392 = vadd.f32 0.0, %v4391
    %4393 = vdwg.mxu0
    %4394 = vmatprep.subr.mxu0 %v4259
    %4395 = vmatpush1.msra.mxu0 %v4258
    %4396 = vmatprep.subr.mxu0 %v4263
    %4397 = vmatpush1.msra.mxu0 %v4262
    %4398 = vmatprep.subr.mxu0 %v4267
    %4399 = vmatpush1.msra.mxu0 %v4266
    %4400 = vmatprep.subr.mxu0 %v4271
    %4401 = vmatpush1.msra.mxu0 %v4270
    %4402 = vmatprep.subr.mxu0 %v4275
    %4403 = vmatpush1.msra.mxu0 %v4274
    %4404 = vmatprep.subr.mxu0 %v4279
    %4405 = vmatpush1.msra.mxu0 %v4278
    %4406 = vmatprep.subr.mxu0 %v4283
    %4407 = vmatpush1.msra.mxu0 %v4282
    %4408 = vmatprep.subr.mxu0 %v4287
    %4409 = vmatpush1.msra.mxu0 %v4286
    %4410 = vmatprep.subr.mxu0 %v4291
    %4411 = vmatpush1.msra.mxu0 %v4290
    %4412 = vmatprep.subr.mxu0 %v4295
    %4413 = vmatpush1.msra.mxu0 %v4294
    %4414 = vmatprep.subr.mxu0 %v4299
    %4415 = vmatpush1.msra.mxu0 %v4298
    %4416 = vmatprep.subr.mxu0 %v4303
    %4417 = vmatpush1.msra.mxu0 %v4302
    %4418 = vmatprep.subr.mxu0 %v4307
    %4419 = vmatpush1.msra.mxu0 %v4306
    %4420 = vmatprep.subr.mxu0 %v4311
    %4421 = vmatpush1.msra.mxu0 %v4310
    %4422 = vmatprep.subr.mxu0 %v4315
    %4423 = vmatpush1.msra.mxu0 %v4314
    %4424 = vmatprep.subr.mxu0 %v4319
    %4425 = vmatpush1.msra.mxu0 %v4318
    %4426 = vmatprep.subr.mxu0 0.0
    %4427 = vmatpush1.msra.mxu0 0.0
    %4428 = vmatprep.subr.mxu0 0.0
    %4429 = vmatpush1.msra.mxu0 0.0
    %4430 = vmatprep.subr.mxu0 0.0
    %4431 = vmatpush1.msra.mxu0 0.0
    %4432 = vmatprep.subr.mxu0 0.0
    %4433 = vmatpush1.msra.mxu0 0.0
    %4434 = vmatprep.subr.mxu0 0.0
    %4435 = vmatpush1.msra.mxu0 0.0
    %4436 = vmatprep.subr.mxu0 0.0
    %4437 = vmatpush1.msra.mxu0 0.0
    %4438 = vmatprep.subr.mxu0 0.0
    %4439 = vmatpush1.msra.mxu0 0.0
    %4440 = vmatprep.subr.mxu0 0.0
    %4441 = vmatpush1.msra.mxu0 0.0
    %4442 = vmatprep.subr.mxu0 0.0
    %4443 = vmatpush1.msra.mxu0 0.0
    %4444 = vmatprep.subr.mxu0 0.0
    %4445 = vmatpush1.msra.mxu0 0.0
    %4446 = vmatprep.subr.mxu0 0.0
    %4447 = vmatpush1.msra.mxu0 0.0
    %4448 = vmatprep.subr.mxu0 0.0
    %4449 = vmatpush1.msra.mxu0 0.0
    %4450 = vmatprep.subr.mxu0 0.0
    %4451 = vmatpush1.msra.mxu0 0.0
    %4452 = vmatprep.subr.mxu0 0.0
    %4453 = vmatpush1.msra.mxu0 0.0
    %4454 = vmatprep.subr.mxu0 0.0
    %4455 = vmatpush1.msra.mxu0 0.0
    %4456 = vmatprep.subr.mxu0 0.0
    %4457 = vmatpush1.msra.mxu0 0.0
    %4458 = vmatprep.mubr.f32.mxu0 0.0
    %4459 = vmatmul.mubr.f32.gmra.mrb[0].mxu0 %v4321
    %v4460 = vpop.f32.mrb[0].mxu0
    %v4461 = vadd.f32 0.0, %v4460
    %v4462 = vpop.f32.mrb[0].mxu0
    %v4463 = vadd.f32 0.0, %v4462
    %4464 = vdwg.mxu0
    %v4469 = vrot.slane %v4390, 4
    %v4470 = vrot.slane %v4392, 4
    %v4471 = vrot.slane %v4461, 4
    %v4472 = vrot.slane %v4463, 4
    %v4477 = vadd.f32 %v4252, %v4469
    %v4478 = vadd.f32 %v4253, %v4470
    %v4479 = vadd.f32 %v4254, %v4471
    %v4480 = vadd.f32 %v4255, %v4472
    %v4481 = vxor.u32 %v4477, 2147483648
    %v4482 = vxor.u32 %v4478, 2147483648
    %v4483 = vxor.u32 %v4479, 2147483648
    %v4484 = vmul.f32 %v4481, 1.442695
    %v4485 = vpow.pop %v4484
    %v4486 = vmul.f32 %v4482, 1.442695
    %v4487 = vpow.pop %v4486
    %v4488 = vmul.f32 %v4483, 1.442695
    %v4489 = vpow.pop %v4488
    %v4490 = vadd.f32 %v4485, 1.0
    %v4491 = vadd.f32 %v4487, 1.0
    %v4492 = vadd.f32 %v4489, 1.0
    %v4493 = vrcp.pop %v4490
    %v4494 = vmul.f32 1.0, %v4493
    %v4495 = vrcp.pop %v4491
    %v4496 = vmul.f32 1.0, %v4495
    %v4497 = vrcp.pop %v4492
    %v4498 = vmul.f32 1.0, %v4497
    %v4499 = vtanh.pop %v4480
    %v4501 = vrot.slane %v4248, 6
    %v4503 = vmul.f32 %v4496, %v4501
    %v4504 = vmul.f32 %v4494, %v4499
    %v4505 = vadd.f32 %v4503, %v4504
    %v4506 = vtanh.pop %v4505
    %v4507 = vmul.f32 %v4498, %v4506
    %4508 = vst [vmem:[#allocation2 + $0x8] sm:$0x30] %v4507
    %v4509 = vld [vmem:[#allocation3 + $0x20] sm:$0xc0]
    %v4510 = vld [vmem:[#allocation3 + $0x28] sm:$0xc0]
    %v4511 = vld [vmem:[#allocation3 + $0x30] sm:$0xc0]
    %v4512 = vld [vmem:[#allocation3 + $0x38] sm:$0xc0]
    %v4513 = vld [vmem:[#allocation12] sm:$0xff]
    %v4514 = vld [vmem:[#allocation12 + $0x8] sm:$0xff]
    %v4515 = vld [vmem:[#allocation12 + $0x10] sm:$0xff]
    %v4516 = vld [vmem:[#allocation12 + $0x18] sm:$0xff]
    %v4517 = vld [vmem:[#allocation12 + $0x20] sm:$0xff]
    %v4518 = vld [vmem:[#allocation12 + $0x28] sm:$0xff]
    %v4519 = vld [vmem:[#allocation12 + $0x30] sm:$0xff]
    %v4520 = vld [vmem:[#allocation12 + $0x38] sm:$0xff]
    %v4521 = vld [vmem:[#allocation12 + $0x40] sm:$0xff]
    %v4522 = vld [vmem:[#allocation12 + $0x48] sm:$0xff]
    %v4523 = vld [vmem:[#allocation12 + $0x50] sm:$0xff]
    %v4524 = vld [vmem:[#allocation12 + $0x58] sm:$0xff]
    %v4525 = vld [vmem:[#allocation12 + $0x60] sm:$0xff]
    %v4526 = vld [vmem:[#allocation12 + $0x68] sm:$0xff]
    %v4527 = vld [vmem:[#allocation12 + $0x70] sm:$0xff]
    %v4528 = vld [vmem:[#allocation12 + $0x78] sm:$0xff]
    %v4529 = vld [vmem:[#allocation12 + $0x80] sm:$0xff]
    %v4530 = vld [vmem:[#allocation12 + $0x88] sm:$0xff]
    %v4531 = vld [vmem:[#allocation12 + $0x90] sm:$0xff]
    %v4532 = vld [vmem:[#allocation12 + $0x98] sm:$0xff]
    %v4533 = vld [vmem:[#allocation12 + $0xa0] sm:$0xff]
    %v4534 = vld [vmem:[#allocation12 + $0xa8] sm:$0xff]
    %v4535 = vld [vmem:[#allocation12 + $0xb0] sm:$0xff]
    %v4536 = vld [vmem:[#allocation12 + $0xb8] sm:$0xff]
    %v4537 = vld [vmem:[#allocation12 + $0xc0] sm:$0xff]
    %v4538 = vld [vmem:[#allocation12 + $0xc8] sm:$0xff]
    %v4539 = vld [vmem:[#allocation12 + $0xd0] sm:$0xff]
    %v4540 = vld [vmem:[#allocation12 + $0xd8] sm:$0xff]
    %v4541 = vld [vmem:[#allocation12 + $0xe0] sm:$0xff]
    %v4542 = vld [vmem:[#allocation12 + $0xe8] sm:$0xff]
    %v4543 = vld [vmem:[#allocation12 + $0xf0] sm:$0xff]
    %v4544 = vld [vmem:[#allocation12 + $0xf8] sm:$0xff]
    %v4545 = vld [vmem:[#allocation12 + $0x100] sm:$0xff]
    %v4546 = vld [vmem:[#allocation12 + $0x108] sm:$0xff]
    %v4547 = vld [vmem:[#allocation12 + $0x110] sm:$0xff]
    %v4548 = vld [vmem:[#allocation12 + $0x118] sm:$0xff]
    %v4549 = vld [vmem:[#allocation12 + $0x120] sm:$0xff]
    %v4550 = vld [vmem:[#allocation12 + $0x128] sm:$0xff]
    %v4551 = vld [vmem:[#allocation12 + $0x130] sm:$0xff]
    %v4552 = vld [vmem:[#allocation12 + $0x138] sm:$0xff]
    %v4553 = vld [vmem:[#allocation12 + $0x140] sm:$0xff]
    %v4554 = vld [vmem:[#allocation12 + $0x148] sm:$0xff]
    %v4555 = vld [vmem:[#allocation12 + $0x150] sm:$0xff]
    %v4556 = vld [vmem:[#allocation12 + $0x158] sm:$0xff]
    %v4557 = vld [vmem:[#allocation12 + $0x160] sm:$0xff]
    %v4558 = vld [vmem:[#allocation12 + $0x168] sm:$0xff]
    %v4559 = vld [vmem:[#allocation12 + $0x170] sm:$0xff]
    %v4560 = vld [vmem:[#allocation12 + $0x178] sm:$0xff]
    %v4561 = vld [vmem:[#allocation12 + $0x180] sm:$0xff]
    %v4562 = vld [vmem:[#allocation12 + $0x188] sm:$0xff]
    %v4563 = vld [vmem:[#allocation12 + $0x190] sm:$0xff]
    %v4564 = vld [vmem:[#allocation12 + $0x198] sm:$0xff]
    %v4565 = vld [vmem:[#allocation12 + $0x1a0] sm:$0xff]
    %v4566 = vld [vmem:[#allocation12 + $0x1a8] sm:$0xff]
    %v4567 = vld [vmem:[#allocation12 + $0x1b0] sm:$0xff]
    %v4568 = vld [vmem:[#allocation12 + $0x1b8] sm:$0xff]
    %v4569 = vld [vmem:[#allocation12 + $0x1c0] sm:$0xff]
    %v4570 = vld [vmem:[#allocation12 + $0x1c8] sm:$0xff]
    %v4571 = vld [vmem:[#allocation12 + $0x1d0] sm:$0xff]
    %v4572 = vld [vmem:[#allocation12 + $0x1d8] sm:$0xff]
    %v4573 = vld [vmem:[#allocation12 + $0x1e0] sm:$0xff]
    %v4574 = vld [vmem:[#allocation12 + $0x1e8] sm:$0xff]
    %v4575 = vld [vmem:[#allocation12 + $0x1f0] sm:$0xff]
    %v4576 = vld [vmem:[#allocation12 + $0x1f8] sm:$0xff]
    %v4578 = vrot.slane %v4507, 4
    %4580 = vmatprep.subr.mxu0 %v4514
    %4581 = vmatpush1.msra.mxu0 %v4513
    %4582 = vmatprep.subr.mxu0 %v4518
    %4583 = vmatpush1.msra.mxu0 %v4517
    %4584 = vmatprep.subr.mxu0 %v4522
    %4585 = vmatpush1.msra.mxu0 %v4521
    %4586 = vmatprep.subr.mxu0 %v4526
    %4587 = vmatpush1.msra.mxu0 %v4525
    %4588 = vmatprep.subr.mxu0 %v4530
    %4589 = vmatpush1.msra.mxu0 %v4529
    %4590 = vmatprep.subr.mxu0 %v4534
    %4591 = vmatpush1.msra.mxu0 %v4533
    %4592 = vmatprep.subr.mxu0 %v4538
    %4593 = vmatpush1.msra.mxu0 %v4537
    %4594 = vmatprep.subr.mxu0 %v4542
    %4595 = vmatpush1.msra.mxu0 %v4541
    %4596 = vmatprep.subr.mxu0 %v4546
    %4597 = vmatpush1.msra.mxu0 %v4545
    %4598 = vmatprep.subr.mxu0 %v4550
    %4599 = vmatpush1.msra.mxu0 %v4549
    %4600 = vmatprep.subr.mxu0 %v4554
    %4601 = vmatpush1.msra.mxu0 %v4553
    %4602 = vmatprep.subr.mxu0 %v4558
    %4603 = vmatpush1.msra.mxu0 %v4557
    %4604 = vmatprep.subr.mxu0 %v4562
    %4605 = vmatpush1.msra.mxu0 %v4561
    %4606 = vmatprep.subr.mxu0 %v4566
    %4607 = vmatpush1.msra.mxu0 %v4565
    %4608 = vmatprep.subr.mxu0 %v4570
    %4609 = vmatpush1.msra.mxu0 %v4569
    %4610 = vmatprep.subr.mxu0 %v4574
    %4611 = vmatpush1.msra.mxu0 %v4573
    %4612 = vmatprep.subr.mxu0 0.0
    %4613 = vmatpush1.msra.mxu0 0.0
    %4614 = vmatprep.subr.mxu0 0.0
    %4615 = vmatpush1.msra.mxu0 0.0
    %4616 = vmatprep.subr.mxu0 0.0
    %4617 = vmatpush1.msra.mxu0 0.0
    %4618 = vmatprep.subr.mxu0 0.0
    %4619 = vmatpush1.msra.mxu0 0.0
    %4620 = vmatprep.subr.mxu0 0.0
    %4621 = vmatpush1.msra.mxu0 0.0
    %4622 = vmatprep.subr.mxu0 0.0
    %4623 = vmatpush1.msra.mxu0 0.0
    %4624 = vmatprep.subr.mxu0 0.0
    %4625 = vmatpush1.msra.mxu0 0.0
    %4626 = vmatprep.subr.mxu0 0.0
    %4627 = vmatpush1.msra.mxu0 0.0
    %4628 = vmatprep.subr.mxu0 0.0
    %4629 = vmatpush1.msra.mxu0 0.0
    %4630 = vmatprep.subr.mxu0 0.0
    %4631 = vmatpush1.msra.mxu0 0.0
    %4632 = vmatprep.subr.mxu0 0.0
    %4633 = vmatpush1.msra.mxu0 0.0
    %4634 = vmatprep.subr.mxu0 0.0
    %4635 = vmatpush1.msra.mxu0 0.0
    %4636 = vmatprep.subr.mxu0 0.0
    %4637 = vmatpush1.msra.mxu0 0.0
    %4638 = vmatprep.subr.mxu0 0.0
    %4639 = vmatpush1.msra.mxu0 0.0
    %4640 = vmatprep.subr.mxu0 0.0
    %4641 = vmatpush1.msra.mxu0 0.0
    %4642 = vmatprep.subr.mxu0 0.0
    %4643 = vmatpush1.msra.mxu0 0.0
    %4644 = vmatprep.mubr.f32.mxu0 0.0
    %4645 = vmatmul.mubr.f32.gmra.mrb[0].mxu0 %v4578
    %v4646 = vpop.f32.mrb[0].mxu0
    %v4647 = vadd.f32 0.0, %v4646
    %v4648 = vpop.f32.mrb[0].mxu0
    %v4649 = vadd.f32 0.0, %v4648
    %4650 = vdwg.mxu0
    %4651 = vmatprep.subr.mxu0 %v4516
    %4652 = vmatpush1.msra.mxu0 %v4515
    %4653 = vmatprep.subr.mxu0 %v4520
    %4654 = vmatpush1.msra.mxu0 %v4519
    %4655 = vmatprep.subr.mxu0 %v4524
    %4656 = vmatpush1.msra.mxu0 %v4523
    %4657 = vmatprep.subr.mxu0 %v4528
    %4658 = vmatpush1.msra.mxu0 %v4527
    %4659 = vmatprep.subr.mxu0 %v4532
    %4660 = vmatpush1.msra.mxu0 %v4531
    %4661 = vmatprep.subr.mxu0 %v4536
    %4662 = vmatpush1.msra.mxu0 %v4535
    %4663 = vmatprep.subr.mxu0 %v4540
    %4664 = vmatpush1.msra.mxu0 %v4539
    %4665 = vmatprep.subr.mxu0 %v4544
    %4666 = vmatpush1.msra.mxu0 %v4543
    %4667 = vmatprep.subr.mxu0 %v4548
    %4668 = vmatpush1.msra.mxu0 %v4547
    %4669 = vmatprep.subr.mxu0 %v4552
    %4670 = vmatpush1.msra.mxu0 %v4551
    %4671 = vmatprep.subr.mxu0 %v4556
    %4672 = vmatpush1.msra.mxu0 %v4555
    %4673 = vmatprep.subr.mxu0 %v4560
    %4674 = vmatpush1.msra.mxu0 %v4559
    %4675 = vmatprep.subr.mxu0 %v4564
    %4676 = vmatpush1.msra.mxu0 %v4563
    %4677 = vmatprep.subr.mxu0 %v4568
    %4678 = vmatpush1.msra.mxu0 %v4567
    %4679 = vmatprep.subr.mxu0 %v4572
    %4680 = vmatpush1.msra.mxu0 %v4571
    %4681 = vmatprep.subr.mxu0 %v4576
    %4682 = vmatpush1.msra.mxu0 %v4575
    %4683 = vmatprep.subr.mxu0 0.0
    %4684 = vmatpush1.msra.mxu0 0.0
    %4685 = vmatprep.subr.mxu0 0.0
    %4686 = vmatpush1.msra.mxu0 0.0
    %4687 = vmatprep.subr.mxu0 0.0
    %4688 = vmatpush1.msra.mxu0 0.0
    %4689 = vmatprep.subr.mxu0 0.0
    %4690 = vmatpush1.msra.mxu0 0.0
    %4691 = vmatprep.subr.mxu0 0.0
    %4692 = vmatpush1.msra.mxu0 0.0
    %4693 = vmatprep.subr.mxu0 0.0
    %4694 = vmatpush1.msra.mxu0 0.0
    %4695 = vmatprep.subr.mxu0 0.0
    %4696 = vmatpush1.msra.mxu0 0.0
    %4697 = vmatprep.subr.mxu0 0.0
    %4698 = vmatpush1.msra.mxu0 0.0
    %4699 = vmatprep.subr.mxu0 0.0
    %4700 = vmatpush1.msra.mxu0 0.0
    %4701 = vmatprep.subr.mxu0 0.0
    %4702 = vmatpush1.msra.mxu0 0.0
    %4703 = vmatprep.subr.mxu0 0.0
    %4704 = vmatpush1.msra.mxu0 0.0
    %4705 = vmatprep.subr.mxu0 0.0
    %4706 = vmatpush1.msra.mxu0 0.0
    %4707 = vmatprep.subr.mxu0 0.0
    %4708 = vmatpush1.msra.mxu0 0.0
    %4709 = vmatprep.subr.mxu0 0.0
    %4710 = vmatpush1.msra.mxu0 0.0
    %4711 = vmatprep.subr.mxu0 0.0
    %4712 = vmatpush1.msra.mxu0 0.0
    %4713 = vmatprep.subr.mxu0 0.0
    %4714 = vmatpush1.msra.mxu0 0.0
    %4715 = vmatprep.mubr.f32.mxu0 0.0
    %4716 = vmatmul.mubr.f32.gmra.mrb[0].mxu0 %v4578
    %v4717 = vpop.f32.mrb[0].mxu0
    %v4718 = vadd.f32 0.0, %v4717
    %v4719 = vpop.f32.mrb[0].mxu0
    %v4720 = vadd.f32 0.0, %v4719
    %4721 = vdwg.mxu0
    %v4726 = vrot.slane %v4647, 2
    %v4727 = vrot.slane %v4649, 2
    %v4728 = vrot.slane %v4718, 2
    %v4729 = vrot.slane %v4720, 2
    %v4734 = vadd.f32 %v4509, %v4726
    %v4735 = vadd.f32 %v4510, %v4727
    %v4736 = vadd.f32 %v4511, %v4728
    %v4737 = vadd.f32 %v4512, %v4729
    %v4738 = vxor.u32 %v4734, 2147483648
    %v4739 = vxor.u32 %v4735, 2147483648
    %v4740 = vxor.u32 %v4736, 2147483648
    %v4741 = vmul.f32 %v4738, 1.442695
    %v4742 = vpow.pop %v4741
    %v4743 = vmul.f32 %v4739, 1.442695
    %v4744 = vpow.pop %v4743
    %v4745 = vmul.f32 %v4740, 1.442695
    %v4746 = vpow.pop %v4745
    %v4747 = vadd.f32 %v4742, 1.0
    %v4748 = vadd.f32 %v4744, 1.0
    %v4749 = vadd.f32 %v4746, 1.0
    %v4750 = vrcp.pop %v4747
    %v4751 = vmul.f32 1.0, %v4750
    %v4752 = vrcp.pop %v4748
    %v4753 = vmul.f32 1.0, %v4752
    %v4754 = vrcp.pop %v4749
    %v4755 = vmul.f32 1.0, %v4754
    %v4756 = vtanh.pop %v4737
    %v4758 = vrot.slane %v4505, 6
    %v4760 = vmul.f32 %v4753, %v4758
    %v4761 = vmul.f32 %v4751, %v4756
    %v4762 = vadd.f32 %v4760, %v4761
    %v4763 = vtanh.pop %v4762
    %v4764 = vmul.f32 %v4755, %v4763
    %4765 = vst [vmem:[#allocation2 + $0x8] sm:$0xc0] %v4764
    %v4766 = vld [vmem:[#allocation2] sm:$0xff]
    %v4767 = vld [vmem:[#allocation2 + $0x8] sm:$0xff]
    %v4768 = vld [vmem:[#allocation13] sm:$0xff]
    %v4769 = vld [vmem:[#allocation13 + $0x8] sm:$0xff]
    %v4770 = vld [vmem:[#allocation13 + $0x10] sm:$0xff]
    %v4771 = vld [vmem:[#allocation13 + $0x18] sm:$0xff]
    %v4772 = vld [vmem:[#allocation13 + $0x20] sm:$0xff]
    %v4773 = vld [vmem:[#allocation13 + $0x28] sm:$0xff]
    %v4774 = vld [vmem:[#allocation13 + $0x30] sm:$0xff]
    %v4775 = vld [vmem:[#allocation13 + $0x38] sm:$0xff]
    %v4776 = vld [vmem:[#allocation13 + $0x40] sm:$0xff]
    %v4777 = vld [vmem:[#allocation13 + $0x48] sm:$0xff]
    %v4778 = vld [vmem:[#allocation13 + $0x50] sm:$0xff]
    %v4779 = vld [vmem:[#allocation13 + $0x58] sm:$0xff]
    %v4780 = vld [vmem:[#allocation13 + $0x60] sm:$0xff]
    %v4781 = vld [vmem:[#allocation13 + $0x68] sm:$0xff]
    %v4782 = vld [vmem:[#allocation13 + $0x70] sm:$0xff]
    %v4783 = vld [vmem:[#allocation13 + $0x78] sm:$0xff]
    %v4784 = vld [vmem:[#allocation13 + $0x80] sm:$0xff]
    %v4785 = vld [vmem:[#allocation13 + $0x88] sm:$0xff]
    %v4786 = vld [vmem:[#allocation13 + $0x90] sm:$0xff]
    %v4787 = vld [vmem:[#allocation13 + $0x98] sm:$0xff]
    %v4788 = vld [vmem:[#allocation13 + $0xa0] sm:$0xff]
    %v4789 = vld [vmem:[#allocation13 + $0xa8] sm:$0xff]
    %v4790 = vld [vmem:[#allocation13 + $0xb0] sm:$0xff]
    %v4791 = vld [vmem:[#allocation13 + $0xb8] sm:$0xff]
    %v4792 = vld [vmem:[#allocation13 + $0xc0] sm:$0xff]
    %v4793 = vld [vmem:[#allocation13 + $0xc8] sm:$0xff]
    %v4794 = vld [vmem:[#allocation13 + $0xd0] sm:$0xff]
    %v4795 = vld [vmem:[#allocation13 + $0xd8] sm:$0xff]
    %v4796 = vld [vmem:[#allocation13 + $0xe0] sm:$0xff]
    %v4797 = vld [vmem:[#allocation13 + $0xe8] sm:$0xff]
    %v4798 = vld [vmem:[#allocation13 + $0xf0] sm:$0xff]
    %v4799 = vld [vmem:[#allocation13 + $0xf8] sm:$0xff]
    %v4800 = vld [vmem:[#allocation13 + $0x100] sm:$0xff]
    %v4801 = vld [vmem:[#allocation13 + $0x108] sm:$0xff]
    %v4802 = vld [vmem:[#allocation13 + $0x110] sm:$0xff]
    %v4803 = vld [vmem:[#allocation13 + $0x118] sm:$0xff]
    %v4804 = vld [vmem:[#allocation13 + $0x120] sm:$0xff]
    %v4805 = vld [vmem:[#allocation13 + $0x128] sm:$0xff]
    %v4806 = vld [vmem:[#allocation13 + $0x130] sm:$0xff]
    %v4807 = vld [vmem:[#allocation13 + $0x138] sm:$0xff]
    %v4808 = vld [vmem:[#allocation13 + $0x140] sm:$0xff]
    %v4809 = vld [vmem:[#allocation13 + $0x148] sm:$0xff]
    %v4810 = vld [vmem:[#allocation13 + $0x150] sm:$0xff]
    %v4811 = vld [vmem:[#allocation13 + $0x158] sm:$0xff]
    %v4812 = vld [vmem:[#allocation13 + $0x160] sm:$0xff]
    %v4813 = vld [vmem:[#allocation13 + $0x168] sm:$0xff]
    %v4814 = vld [vmem:[#allocation13 + $0x170] sm:$0xff]
    %v4815 = vld [vmem:[#allocation13 + $0x178] sm:$0xff]
    %v4816 = vld [vmem:[#allocation13 + $0x180] sm:$0xff]
    %v4817 = vld [vmem:[#allocation13 + $0x188] sm:$0xff]
    %v4818 = vld [vmem:[#allocation13 + $0x190] sm:$0xff]
    %v4819 = vld [vmem:[#allocation13 + $0x198] sm:$0xff]
    %v4820 = vld [vmem:[#allocation13 + $0x1a0] sm:$0xff]
    %v4821 = vld [vmem:[#allocation13 + $0x1a8] sm:$0xff]
    %v4822 = vld [vmem:[#allocation13 + $0x1b0] sm:$0xff]
    %v4823 = vld [vmem:[#allocation13 + $0x1b8] sm:$0xff]
    %v4824 = vld [vmem:[#allocation13 + $0x1c0] sm:$0xff]
    %v4825 = vld [vmem:[#allocation13 + $0x1c8] sm:$0xff]
    %v4826 = vld [vmem:[#allocation13 + $0x1d0] sm:$0xff]
    %v4827 = vld [vmem:[#allocation13 + $0x1d8] sm:$0xff]
    %v4828 = vld [vmem:[#allocation13 + $0x1e0] sm:$0xff]
    %v4829 = vld [vmem:[#allocation13 + $0x1e8] sm:$0xff]
    %v4830 = vld [vmem:[#allocation13 + $0x1f0] sm:$0xff]
    %v4831 = vld [vmem:[#allocation13 + $0x1f8] sm:$0xff]
    %v4832 = vld [vmem:[%s9] sm:$0xf]
    %v4834 = vlaneseq
    %v4835 = vshrl.u32 %v4834, 7
    %v4836 = vsub.s32 0, %v4835
    %v4837 = vrot.slane %v4832, %v4836
    %v4838 = vlaneseq
    %v4839 = vshrl.u32 %v4838, 7
    %v4840 = vsub.s32 1, %v4839
    %v4841 = vrot.slane %v4832, %v4840
    %v4842 = vlaneseq
    %v4843 = vshrl.u32 %v4842, 7
    %v4844 = vsub.s32 2, %v4843
    %v4845 = vrot.slane %v4832, %v4844
    %v4846 = vlaneseq
    %v4847 = vshrl.u32 %v4846, 7
    %v4848 = vsub.s32 3, %v4847
    %v4849 = vrot.slane %v4832, %v4848
    %4854 = vmatprep.subr.mxu0 %v4769
    %4855 = vmatpush1.msra.mxu0 %v4768
    %4856 = vmatprep.subr.mxu0 %v4773
    %4857 = vmatpush1.msra.mxu0 %v4772
    %4858 = vmatprep.subr.mxu0 %v4777
    %4859 = vmatpush1.msra.mxu0 %v4776
    %4860 = vmatprep.subr.mxu0 %v4781
    %4861 = vmatpush1.msra.mxu0 %v4780
    %4862 = vmatprep.subr.mxu0 %v4785
    %4863 = vmatpush1.msra.mxu0 %v4784
    %4864 = vmatprep.subr.mxu0 %v4789
    %4865 = vmatpush1.msra.mxu0 %v4788
    %4866 = vmatprep.subr.mxu0 %v4793
    %4867 = vmatpush1.msra.mxu0 %v4792
    %4868 = vmatprep.subr.mxu0 %v4797
    %4869 = vmatpush1.msra.mxu0 %v4796
    %4870 = vmatprep.subr.mxu0 %v4801
    %4871 = vmatpush1.msra.mxu0 %v4800
    %4872 = vmatprep.subr.mxu0 %v4805
    %4873 = vmatpush1.msra.mxu0 %v4804
    %4874 = vmatprep.subr.mxu0 %v4809
    %4875 = vmatpush1.msra.mxu0 %v4808
    %4876 = vmatprep.subr.mxu0 %v4813
    %4877 = vmatpush1.msra.mxu0 %v4812
    %4878 = vmatprep.subr.mxu0 %v4817
    %4879 = vmatpush1.msra.mxu0 %v4816
    %4880 = vmatprep.subr.mxu0 %v4821
    %4881 = vmatpush1.msra.mxu0 %v4820
    %4882 = vmatprep.subr.mxu0 %v4825
    %4883 = vmatpush1.msra.mxu0 %v4824
    %4884 = vmatprep.subr.mxu0 %v4829
    %4885 = vmatpush1.msra.mxu0 %v4828
    %4886 = vmatprep.subr.mxu0 0.0
    %4887 = vmatpush1.msra.mxu0 0.0
    %4888 = vmatprep.subr.mxu0 0.0
    %4889 = vmatpush1.msra.mxu0 0.0
    %4890 = vmatprep.subr.mxu0 0.0
    %4891 = vmatpush1.msra.mxu0 0.0
    %4892 = vmatprep.subr.mxu0 0.0
    %4893 = vmatpush1.msra.mxu0 0.0
    %4894 = vmatprep.subr.mxu0 0.0
    %4895 = vmatpush1.msra.mxu0 0.0
    %4896 = vmatprep.subr.mxu0 0.0
    %4897 = vmatpush1.msra.mxu0 0.0
    %4898 = vmatprep.subr.mxu0 0.0
    %4899 = vmatpush1.msra.mxu0 0.0
    %4900 = vmatprep.subr.mxu0 0.0
    %4901 = vmatpush1.msra.mxu0 0.0
    %4902 = vmatprep.subr.mxu0 0.0
    %4903 = vmatpush1.msra.mxu0 0.0
    %4904 = vmatprep.subr.mxu0 0.0
    %4905 = vmatpush1.msra.mxu0 0.0
    %4906 = vmatprep.subr.mxu0 0.0
    %4907 = vmatpush1.msra.mxu0 0.0
    %4908 = vmatprep.subr.mxu0 0.0
    %4909 = vmatpush1.msra.mxu0 0.0
    %4910 = vmatprep.subr.mxu0 0.0
    %4911 = vmatpush1.msra.mxu0 0.0
    %4912 = vmatprep.subr.mxu0 0.0
    %4913 = vmatpush1.msra.mxu0 0.0
    %4914 = vmatprep.subr.mxu0 0.0
    %4915 = vmatpush1.msra.mxu0 0.0
    %4916 = vmatprep.subr.mxu0 0.0
    %4917 = vmatpush1.msra.mxu0 0.0
    %4918 = vmatprep.mubr.f32.mxu0 0.0
    %4919 = vmatmul.mubr.f32.gmra.mrb[0].mxu0 %v4766
    %v4920 = vpop.f32.mrb[0].mxu0
    %v4921 = vadd.f32 %v4837, %v4920
    %v4922 = vpop.f32.mrb[0].mxu0
    %v4923 = vadd.f32 %v4841, %v4922
    %4924 = vmatprep.mubr.f32.mxu0 0.0
    %4925 = vmatmul.mubr.f32.gmra.mrb[0].mxu0 %v4767
    %v4926 = vpop.f32.mrb[0].mxu0
    %v4927 = vadd.f32 %v4837, %v4926
    %v4928 = vpop.f32.mrb[0].mxu0
    %v4929 = vadd.f32 %v4841, %v4928
    %4930 = vdwg.mxu0
    %4931 = vmatprep.subr.mxu0 %v4771
    %4932 = vmatpush1.msra.mxu0 %v4770
    %4933 = vmatprep.subr.mxu0 %v4775
    %4934 = vmatpush1.msra.mxu0 %v4774
    %4935 = vmatprep.subr.mxu0 %v4779
    %4936 = vmatpush1.msra.mxu0 %v4778
    %4937 = vmatprep.subr.mxu0 %v4783
    %4938 = vmatpush1.msra.mxu0 %v4782
    %4939 = vmatprep.subr.mxu0 %v4787
    %4940 = vmatpush1.msra.mxu0 %v4786
    %4941 = vmatprep.subr.mxu0 %v4791
    %4942 = vmatpush1.msra.mxu0 %v4790
    %4943 = vmatprep.subr.mxu0 %v4795
    %4944 = vmatpush1.msra.mxu0 %v4794
    %4945 = vmatprep.subr.mxu0 %v4799
    %4946 = vmatpush1.msra.mxu0 %v4798
    %4947 = vmatprep.subr.mxu0 %v4803
    %4948 = vmatpush1.msra.mxu0 %v4802
    %4949 = vmatprep.subr.mxu0 %v4807
    %4950 = vmatpush1.msra.mxu0 %v4806
    %4951 = vmatprep.subr.mxu0 %v4811
    %4952 = vmatpush1.msra.mxu0 %v4810
    %4953 = vmatprep.subr.mxu0 %v4815
    %4954 = vmatpush1.msra.mxu0 %v4814
    %4955 = vmatprep.subr.mxu0 %v4819
    %4956 = vmatpush1.msra.mxu0 %v4818
    %4957 = vmatprep.subr.mxu0 %v4823
    %4958 = vmatpush1.msra.mxu0 %v4822
    %4959 = vmatprep.subr.mxu0 %v4827
    %4960 = vmatpush1.msra.mxu0 %v4826
    %4961 = vmatprep.subr.mxu0 %v4831
    %4962 = vmatpush1.msra.mxu0 %v4830
    %4963 = vmatprep.subr.mxu0 0.0
    %4964 = vmatpush1.msra.mxu0 0.0
    %4965 = vmatprep.subr.mxu0 0.0
    %4966 = vmatpush1.msra.mxu0 0.0
    %4967 = vmatprep.subr.mxu0 0.0
    %4968 = vmatpush1.msra.mxu0 0.0
    %4969 = vmatprep.subr.mxu0 0.0
    %4970 = vmatpush1.msra.mxu0 0.0
    %4971 = vmatprep.subr.mxu0 0.0
    %4972 = vmatpush1.msra.mxu0 0.0
    %4973 = vmatprep.subr.mxu0 0.0
    %4974 = vmatpush1.msra.mxu0 0.0
    %4975 = vmatprep.subr.mxu0 0.0
    %4976 = vmatpush1.msra.mxu0 0.0
    %4977 = vmatprep.subr.mxu0 0.0
    %4978 = vmatpush1.msra.mxu0 0.0
    %4979 = vmatprep.subr.mxu0 0.0
    %4980 = vmatpush1.msra.mxu0 0.0
    %4981 = vmatprep.subr.mxu0 0.0
    %4982 = vmatpush1.msra.mxu0 0.0
    %4983 = vmatprep.subr.mxu0 0.0
    %4984 = vmatpush1.msra.mxu0 0.0
    %4985 = vmatprep.subr.mxu0 0.0
    %4986 = vmatpush1.msra.mxu0 0.0
    %4987 = vmatprep.subr.mxu0 0.0
    %4988 = vmatpush1.msra.mxu0 0.0
    %4989 = vmatprep.subr.mxu0 0.0
    %4990 = vmatpush1.msra.mxu0 0.0
    %4991 = vmatprep.subr.mxu0 0.0
    %4992 = vmatpush1.msra.mxu0 0.0
    %4993 = vmatprep.subr.mxu0 0.0
    %4994 = vmatpush1.msra.mxu0 0.0
    %4995 = vmatprep.mubr.f32.mxu0 0.0
    %4996 = vmatmul.mubr.f32.gmra.mrb[0].mxu0 %v4766
    %v4997 = vpop.f32.mrb[0].mxu0
    %v4998 = vadd.f32 %v4845, %v4997
    %v4999 = vpop.f32.mrb[0].mxu0
    %v5000 = vadd.f32 %v4849, %v4999
    %5001 = vmatprep.mubr.f32.mxu0 0.0
    %5002 = vmatmul.mubr.f32.gmra.mrb[0].mxu0 %v4767
    %v5003 = vpop.f32.mrb[0].mxu0
    %v5004 = vadd.f32 %v4845, %v5003
    %v5005 = vpop.f32.mrb[0].mxu0
    %v5006 = vadd.f32 %v4849, %v5005
    %5007 = vdwg.mxu0
    %5008 = vst [vmem:[#allocation3] sm:$0xff] %v4921
    %5009 = vst [vmem:[#allocation3 + $0x8] sm:$0xff] %v4923
    %5010 = vst [vmem:[#allocation3 + $0x10] sm:$0xff] %v4998
    %5011 = vst [vmem:[#allocation3 + $0x18] sm:$0xff] %v5000
    %5012 = vst [vmem:[#allocation3 + $0x20] sm:$0xff] %v4927
    %5013 = vst [vmem:[#allocation3 + $0x28] sm:$0xff] %v4929
    %5014 = vst [vmem:[#allocation3 + $0x30] sm:$0xff] %v5004
    %5015 = vst [vmem:[#allocation3 + $0x38] sm:$0xff] %v5006
    %v5016 = vld [vmem:[#allocation3] sm:$0x3]
    %v5017 = vld [vmem:[#allocation3 + $0x8] sm:$0x3]
    %v5018 = vld [vmem:[#allocation3 + $0x10] sm:$0x3]
    %v5019 = vld [vmem:[#allocation3 + $0x18] sm:$0x3]
    %v5020 = vld [vmem:[#allocation15] sm:$0xff]
    %v5021 = vld [vmem:[#allocation15 + $0x8] sm:$0xff]
    %v5022 = vld [vmem:[#allocation15 + $0x10] sm:$0xff]
    %v5023 = vld [vmem:[#allocation15 + $0x18] sm:$0xff]
    %v5024 = vld [vmem:[#allocation15 + $0x20] sm:$0xff]
    %v5025 = vld [vmem:[#allocation15 + $0x28] sm:$0xff]
    %v5026 = vld [vmem:[#allocation15 + $0x30] sm:$0xff]
    %v5027 = vld [vmem:[#allocation15 + $0x38] sm:$0xff]
    %v5028 = vld [vmem:[#allocation15 + $0x40] sm:$0xff]
    %v5029 = vld [vmem:[#allocation15 + $0x48] sm:$0xff]
    %v5030 = vld [vmem:[#allocation15 + $0x50] sm:$0xff]
    %v5031 = vld [vmem:[#allocation15 + $0x58] sm:$0xff]
    %v5032 = vld [vmem:[#allocation15 + $0x60] sm:$0xff]
    %v5033 = vld [vmem:[#allocation15 + $0x68] sm:$0xff]
    %v5034 = vld [vmem:[#allocation15 + $0x70] sm:$0xff]
    %v5035 = vld [vmem:[#allocation15 + $0x78] sm:$0xff]
    %v5036 = vld [vmem:[#allocation15 + $0x80] sm:$0xff]
    %v5037 = vld [vmem:[#allocation15 + $0x88] sm:$0xff]
    %v5038 = vld [vmem:[#allocation15 + $0x90] sm:$0xff]
    %v5039 = vld [vmem:[#allocation15 + $0x98] sm:$0xff]
    %v5040 = vld [vmem:[#allocation15 + $0xa0] sm:$0xff]
    %v5041 = vld [vmem:[#allocation15 + $0xa8] sm:$0xff]
    %v5042 = vld [vmem:[#allocation15 + $0xb0] sm:$0xff]
    %v5043 = vld [vmem:[#allocation15 + $0xb8] sm:$0xff]
    %v5044 = vld [vmem:[#allocation15 + $0xc0] sm:$0xff]
    %v5045 = vld [vmem:[#allocation15 + $0xc8] sm:$0xff]
    %v5046 = vld [vmem:[#allocation15 + $0xd0] sm:$0xff]
    %v5047 = vld [vmem:[#allocation15 + $0xd8] sm:$0xff]
    %v5048 = vld [vmem:[#allocation15 + $0xe0] sm:$0xff]
    %v5049 = vld [vmem:[#allocation15 + $0xe8] sm:$0xff]
    %v5050 = vld [vmem:[#allocation15 + $0xf0] sm:$0xff]
    %v5051 = vld [vmem:[#allocation15 + $0xf8] sm:$0xff]
    %v5052 = vld [vmem:[#allocation15 + $0x100] sm:$0xff]
    %v5053 = vld [vmem:[#allocation15 + $0x108] sm:$0xff]
    %v5054 = vld [vmem:[#allocation15 + $0x110] sm:$0xff]
    %v5055 = vld [vmem:[#allocation15 + $0x118] sm:$0xff]
    %v5056 = vld [vmem:[#allocation15 + $0x120] sm:$0xff]
    %v5057 = vld [vmem:[#allocation15 + $0x128] sm:$0xff]
    %v5058 = vld [vmem:[#allocation15 + $0x130] sm:$0xff]
    %v5059 = vld [vmem:[#allocation15 + $0x138] sm:$0xff]
    %v5060 = vld [vmem:[#allocation15 + $0x140] sm:$0xff]
    %v5061 = vld [vmem:[#allocation15 + $0x148] sm:$0xff]
    %v5062 = vld [vmem:[#allocation15 + $0x150] sm:$0xff]
    %v5063 = vld [vmem:[#allocation15 + $0x158] sm:$0xff]
    %v5064 = vld [vmem:[#allocation15 + $0x160] sm:$0xff]
    %v5065 = vld [vmem:[#allocation15 + $0x168] sm:$0xff]
    %v5066 = vld [vmem:[#allocation15 + $0x170] sm:$0xff]
    %v5067 = vld [vmem:[#allocation15 + $0x178] sm:$0xff]
    %v5068 = vld [vmem:[#allocation15 + $0x180] sm:$0xff]
    %v5069 = vld [vmem:[#allocation15 + $0x188] sm:$0xff]
    %v5070 = vld [vmem:[#allocation15 + $0x190] sm:$0xff]
    %v5071 = vld [vmem:[#allocation15 + $0x198] sm:$0xff]
    %v5072 = vld [vmem:[#allocation15 + $0x1a0] sm:$0xff]
    %v5073 = vld [vmem:[#allocation15 + $0x1a8] sm:$0xff]
    %v5074 = vld [vmem:[#allocation15 + $0x1b0] sm:$0xff]
    %v5075 = vld [vmem:[#allocation15 + $0x1b8] sm:$0xff]
    %v5076 = vld [vmem:[#allocation15 + $0x1c0] sm:$0xff]
    %v5077 = vld [vmem:[#allocation15 + $0x1c8] sm:$0xff]
    %v5078 = vld [vmem:[#allocation15 + $0x1d0] sm:$0xff]
    %v5079 = vld [vmem:[#allocation15 + $0x1d8] sm:$0xff]
    %v5080 = vld [vmem:[#allocation15 + $0x1e0] sm:$0xff]
    %v5081 = vld [vmem:[#allocation15 + $0x1e8] sm:$0xff]
    %v5082 = vld [vmem:[#allocation15 + $0x1f0] sm:$0xff]
    %v5083 = vld [vmem:[#allocation15 + $0x1f8] sm:$0xff]
    %5084 = vmatprep.subr.mxu0 %v5021
    %5085 = vmatpush1.msra.mxu0 %v5020
    %5086 = vmatprep.subr.mxu0 %v5025
    %5087 = vmatpush1.msra.mxu0 %v5024
    %5088 = vmatprep.subr.mxu0 %v5029
    %5089 = vmatpush1.msra.mxu0 %v5028
    %5090 = vmatprep.subr.mxu0 %v5033
    %5091 = vmatpush1.msra.mxu0 %v5032
    %5092 = vmatprep.subr.mxu0 %v5037
    %5093 = vmatpush1.msra.mxu0 %v5036
    %5094 = vmatprep.subr.mxu0 %v5041
    %5095 = vmatpush1.msra.mxu0 %v5040
    %5096 = vmatprep.subr.mxu0 %v5045
    %5097 = vmatpush1.msra.mxu0 %v5044
    %5098 = vmatprep.subr.mxu0 %v5049
    %5099 = vmatpush1.msra.mxu0 %v5048
    %5100 = vmatprep.subr.mxu0 %v5053
    %5101 = vmatpush1.msra.mxu0 %v5052
    %5102 = vmatprep.subr.mxu0 %v5057
    %5103 = vmatpush1.msra.mxu0 %v5056
    %5104 = vmatprep.subr.mxu0 %v5061
    %5105 = vmatpush1.msra.mxu0 %v5060
    %5106 = vmatprep.subr.mxu0 %v5065
    %5107 = vmatpush1.msra.mxu0 %v5064
    %5108 = vmatprep.subr.mxu0 %v5069
    %5109 = vmatpush1.msra.mxu0 %v5068
    %5110 = vmatprep.subr.mxu0 %v5073
    %5111 = vmatpush1.msra.mxu0 %v5072
    %5112 = vmatprep.subr.mxu0 %v5077
    %5113 = vmatpush1.msra.mxu0 %v5076
    %5114 = vmatprep.subr.mxu0 %v5081
    %5115 = vmatpush1.msra.mxu0 %v5080
    %5116 = vmatprep.subr.mxu0 0.0
    %5117 = vmatpush1.msra.mxu0 0.0
    %5118 = vmatprep.subr.mxu0 0.0
    %5119 = vmatpush1.msra.mxu0 0.0
    %5120 = vmatprep.subr.mxu0 0.0
    %5121 = vmatpush1.msra.mxu0 0.0
    %5122 = vmatprep.subr.mxu0 0.0
    %5123 = vmatpush1.msra.mxu0 0.0
    %5124 = vmatprep.subr.mxu0 0.0
    %5125 = vmatpush1.msra.mxu0 0.0
    %5126 = vmatprep.subr.mxu0 0.0
    %5127 = vmatpush1.msra.mxu0 0.0
    %5128 = vmatprep.subr.mxu0 0.0
    %5129 = vmatpush1.msra.mxu0 0.0
    %5130 = vmatprep.subr.mxu0 0.0
    %5131 = vmatpush1.msra.mxu0 0.0
    %5132 = vmatprep.subr.mxu0 0.0
    %5133 = vmatpush1.msra.mxu0 0.0
    %5134 = vmatprep.subr.mxu0 0.0
    %5135 = vmatpush1.msra.mxu0 0.0
    %5136 = vmatprep.subr.mxu0 0.0
    %5137 = vmatpush1.msra.mxu0 0.0
    %5138 = vmatprep.subr.mxu0 0.0
    %5139 = vmatpush1.msra.mxu0 0.0
    %5140 = vmatprep.subr.mxu0 0.0
    %5141 = vmatpush1.msra.mxu0 0.0
    %5142 = vmatprep.subr.mxu0 0.0
    %5143 = vmatpush1.msra.mxu0 0.0
    %5144 = vmatprep.subr.mxu0 0.0
    %5145 = vmatpush1.msra.mxu0 0.0
    %5146 = vmatprep.subr.mxu0 0.0
    %5147 = vmatpush1.msra.mxu0 0.0
    %5148 = vmatprep.mubr.f32.mxu0 0.0
    %5149 = vmatmul.mubr.f32.gmra.mrb[0].mxu0 0.0
    %v5150 = vpop.f32.mrb[0].mxu0
    %v5151 = vadd.f32 0.0, %v5150
    %v5152 = vpop.f32.mrb[0].mxu0
    %v5153 = vadd.f32 0.0, %v5152
    %5154 = vdwg.mxu0
    %5155 = vmatprep.subr.mxu0 %v5023
    %5156 = vmatpush1.msra.mxu0 %v5022
    %5157 = vmatprep.subr.mxu0 %v5027
    %5158 = vmatpush1.msra.mxu0 %v5026
    %5159 = vmatprep.subr.mxu0 %v5031
    %5160 = vmatpush1.msra.mxu0 %v5030
    %5161 = vmatprep.subr.mxu0 %v5035
    %5162 = vmatpush1.msra.mxu0 %v5034
    %5163 = vmatprep.subr.mxu0 %v5039
    %5164 = vmatpush1.msra.mxu0 %v5038
    %5165 = vmatprep.subr.mxu0 %v5043
    %5166 = vmatpush1.msra.mxu0 %v5042
    %5167 = vmatprep.subr.mxu0 %v5047
    %5168 = vmatpush1.msra.mxu0 %v5046
    %5169 = vmatprep.subr.mxu0 %v5051
    %5170 = vmatpush1.msra.mxu0 %v5050
    %5171 = vmatprep.subr.mxu0 %v5055
    %5172 = vmatpush1.msra.mxu0 %v5054
    %5173 = vmatprep.subr.mxu0 %v5059
    %5174 = vmatpush1.msra.mxu0 %v5058
    %5175 = vmatprep.subr.mxu0 %v5063
    %5176 = vmatpush1.msra.mxu0 %v5062
    %5177 = vmatprep.subr.mxu0 %v5067
    %5178 = vmatpush1.msra.mxu0 %v5066
    %5179 = vmatprep.subr.mxu0 %v5071
    %5180 = vmatpush1.msra.mxu0 %v5070
    %5181 = vmatprep.subr.mxu0 %v5075
    %5182 = vmatpush1.msra.mxu0 %v5074
    %5183 = vmatprep.subr.mxu0 %v5079
    %5184 = vmatpush1.msra.mxu0 %v5078
    %5185 = vmatprep.subr.mxu0 %v5083
    %5186 = vmatpush1.msra.mxu0 %v5082
    %5187 = vmatprep.subr.mxu0 0.0
    %5188 = vmatpush1.msra.mxu0 0.0
    %5189 = vmatprep.subr.mxu0 0.0
    %5190 = vmatpush1.msra.mxu0 0.0
    %5191 = vmatprep.subr.mxu0 0.0
    %5192 = vmatpush1.msra.mxu0 0.0
    %5193 = vmatprep.subr.mxu0 0.0
    %5194 = vmatpush1.msra.mxu0 0.0
    %5195 = vmatprep.subr.mxu0 0.0
    %5196 = vmatpush1.msra.mxu0 0.0
    %5197 = vmatprep.subr.mxu0 0.0
    %5198 = vmatpush1.msra.mxu0 0.0
    %5199 = vmatprep.subr.mxu0 0.0
    %5200 = vmatpush1.msra.mxu0 0.0
    %5201 = vmatprep.subr.mxu0 0.0
    %5202 = vmatpush1.msra.mxu0 0.0
    %5203 = vmatprep.subr.mxu0 0.0
    %5204 = vmatpush1.msra.mxu0 0.0
    %5205 = vmatprep.subr.mxu0 0.0
    %5206 = vmatpush1.msra.mxu0 0.0
    %5207 = vmatprep.subr.mxu0 0.0
    %5208 = vmatpush1.msra.mxu0 0.0
    %5209 = vmatprep.subr.mxu0 0.0
    %5210 = vmatpush1.msra.mxu0 0.0
    %5211 = vmatprep.subr.mxu0 0.0
    %5212 = vmatpush1.msra.mxu0 0.0
    %5213 = vmatprep.subr.mxu0 0.0
    %5214 = vmatpush1.msra.mxu0 0.0
    %5215 = vmatprep.subr.mxu0 0.0
    %5216 = vmatpush1.msra.mxu0 0.0
    %5217 = vmatprep.subr.mxu0 0.0
    %5218 = vmatpush1.msra.mxu0 0.0
    %5219 = vmatprep.mubr.f32.mxu0 0.0
    %5220 = vmatmul.mubr.f32.gmra.mrb[0].mxu0 0.0
    %v5221 = vpop.f32.mrb[0].mxu0
    %v5222 = vadd.f32 0.0, %v5221
    %v5223 = vpop.f32.mrb[0].mxu0
    %v5224 = vadd.f32 0.0, %v5223
    %5225 = vdwg.mxu0
    %v5226 = vadd.f32 %v5016, %v5151
    %v5227 = vadd.f32 %v5017, %v5153
    %v5228 = vadd.f32 %v5018, %v5222
    %v5229 = vadd.f32 %v5019, %v5224
    %v5230 = vxor.u32 %v5226, 2147483648
    %v5231 = vxor.u32 %v5227, 2147483648
    %v5232 = vxor.u32 %v5228, 2147483648
    %v5233 = vmul.f32 %v5230, 1.442695
    %v5234 = vpow.pop %v5233
    %v5235 = vmul.f32 %v5231, 1.442695
    %v5236 = vpow.pop %v5235
    %v5237 = vmul.f32 %v5232, 1.442695
    %v5238 = vpow.pop %v5237
    %v5239 = vadd.f32 %v5234, 1.0
    %v5240 = vadd.f32 %v5236, 1.0
    %v5241 = vadd.f32 %v5238, 1.0
    %v5242 = vrcp.pop %v5239
    %v5243 = vmul.f32 1.0, %v5242
    %v5244 = vrcp.pop %v5240
    %v5245 = vmul.f32 1.0, %v5244
    %v5246 = vrcp.pop %v5241
    %v5247 = vmul.f32 1.0, %v5246
    %v5248 = vtanh.pop %v5229
    %v5249 = vmul.f32 %v5245, 0.0
    %v5250 = vmul.f32 %v5243, %v5248
    %v5251 = vadd.f32 %v5249, %v5250
    %v5252 = vtanh.pop %v5251
    %v5253 = vmul.f32 %v5247, %v5252
    %5254 = vst [vmem:[#allocation2] sm:$0x3] %v5253
    %v5255 = vld [vmem:[#allocation3] sm:$0xc]
    %v5256 = vld [vmem:[#allocation3 + $0x8] sm:$0xc]
    %v5257 = vld [vmem:[#allocation3 + $0x10] sm:$0xc]
    %v5258 = vld [vmem:[#allocation3 + $0x18] sm:$0xc]
    %v5259 = vld [vmem:[#allocation15] sm:$0xff]
    %v5260 = vld [vmem:[#allocation15 + $0x8] sm:$0xff]
    %v5261 = vld [vmem:[#allocation15 + $0x10] sm:$0xff]
    %v5262 = vld [vmem:[#allocation15 + $0x18] sm:$0xff]
    %v5263 = vld [vmem:[#allocation15 + $0x20] sm:$0xff]
    %v5264 = vld [vmem:[#allocation15 + $0x28] sm:$0xff]
    %v5265 = vld [vmem:[#allocation15 + $0x30] sm:$0xff]
    %v5266 = vld [vmem:[#allocation15 + $0x38] sm:$0xff]
    %v5267 = vld [vmem:[#allocation15 + $0x40] sm:$0xff]
    %v5268 = vld [vmem:[#allocation15 + $0x48] sm:$0xff]
    %v5269 = vld [vmem:[#allocation15 + $0x50] sm:$0xff]
    %v5270 = vld [vmem:[#allocation15 + $0x58] sm:$0xff]
    %v5271 = vld [vmem:[#allocation15 + $0x60] sm:$0xff]
    %v5272 = vld [vmem:[#allocation15 + $0x68] sm:$0xff]
    %v5273 = vld [vmem:[#allocation15 + $0x70] sm:$0xff]
    %v5274 = vld [vmem:[#allocation15 + $0x78] sm:$0xff]
    %v5275 = vld [vmem:[#allocation15 + $0x80] sm:$0xff]
    %v5276 = vld [vmem:[#allocation15 + $0x88] sm:$0xff]
    %v5277 = vld [vmem:[#allocation15 + $0x90] sm:$0xff]
    %v5278 = vld [vmem:[#allocation15 + $0x98] sm:$0xff]
    %v5279 = vld [vmem:[#allocation15 + $0xa0] sm:$0xff]
    %v5280 = vld [vmem:[#allocation15 + $0xa8] sm:$0xff]
    %v5281 = vld [vmem:[#allocation15 + $0xb0] sm:$0xff]
    %v5282 = vld [vmem:[#allocation15 + $0xb8] sm:$0xff]
    %v5283 = vld [vmem:[#allocation15 + $0xc0] sm:$0xff]
    %v5284 = vld [vmem:[#allocation15 + $0xc8] sm:$0xff]
    %v5285 = vld [vmem:[#allocation15 + $0xd0] sm:$0xff]
    %v5286 = vld [vmem:[#allocation15 + $0xd8] sm:$0xff]
    %v5287 = vld [vmem:[#allocation15 + $0xe0] sm:$0xff]
    %v5288 = vld [vmem:[#allocation15 + $0xe8] sm:$0xff]
    %v5289 = vld [vmem:[#allocation15 + $0xf0] sm:$0xff]
    %v5290 = vld [vmem:[#allocation15 + $0xf8] sm:$0xff]
    %v5291 = vld [vmem:[#allocation15 + $0x100] sm:$0xff]
    %v5292 = vld [vmem:[#allocation15 + $0x108] sm:$0xff]
    %v5293 = vld [vmem:[#allocation15 + $0x110] sm:$0xff]
    %v5294 = vld [vmem:[#allocation15 + $0x118] sm:$0xff]
    %v5295 = vld [vmem:[#allocation15 + $0x120] sm:$0xff]
    %v5296 = vld [vmem:[#allocation15 + $0x128] sm:$0xff]
    %v5297 = vld [vmem:[#allocation15 + $0x130] sm:$0xff]
    %v5298 = vld [vmem:[#allocation15 + $0x138] sm:$0xff]
    %v5299 = vld [vmem:[#allocation15 + $0x140] sm:$0xff]
    %v5300 = vld [vmem:[#allocation15 + $0x148] sm:$0xff]
    %v5301 = vld [vmem:[#allocation15 + $0x150] sm:$0xff]
    %v5302 = vld [vmem:[#allocation15 + $0x158] sm:$0xff]
    %v5303 = vld [vmem:[#allocation15 + $0x160] sm:$0xff]
    %v5304 = vld [vmem:[#allocation15 + $0x168] sm:$0xff]
    %v5305 = vld [vmem:[#allocation15 + $0x170] sm:$0xff]
    %v5306 = vld [vmem:[#allocation15 + $0x178] sm:$0xff]
    %v5307 = vld [vmem:[#allocation15 + $0x180] sm:$0xff]
    %v5308 = vld [vmem:[#allocation15 + $0x188] sm:$0xff]
    %v5309 = vld [vmem:[#allocation15 + $0x190] sm:$0xff]
    %v5310 = vld [vmem:[#allocation15 + $0x198] sm:$0xff]
    %v5311 = vld [vmem:[#allocation15 + $0x1a0] sm:$0xff]
    %v5312 = vld [vmem:[#allocation15 + $0x1a8] sm:$0xff]
    %v5313 = vld [vmem:[#allocation15 + $0x1b0] sm:$0xff]
    %v5314 = vld [vmem:[#allocation15 + $0x1b8] sm:$0xff]
    %v5315 = vld [vmem:[#allocation15 + $0x1c0] sm:$0xff]
    %v5316 = vld [vmem:[#allocation15 + $0x1c8] sm:$0xff]
    %v5317 = vld [vmem:[#allocation15 + $0x1d0] sm:$0xff]
    %v5318 = vld [vmem:[#allocation15 + $0x1d8] sm:$0xff]
    %v5319 = vld [vmem:[#allocation15 + $0x1e0] sm:$0xff]
    %v5320 = vld [vmem:[#allocation15 + $0x1e8] sm:$0xff]
    %v5321 = vld [vmem:[#allocation15 + $0x1f0] sm:$0xff]
    %v5322 = vld [vmem:[#allocation15 + $0x1f8] sm:$0xff]
    %5323 = vmatprep.subr.mxu0 %v5260
    %5324 = vmatpush1.msra.mxu0 %v5259
    %5325 = vmatprep.subr.mxu0 %v5264
    %5326 = vmatpush1.msra.mxu0 %v5263
    %5327 = vmatprep.subr.mxu0 %v5268
    %5328 = vmatpush1.msra.mxu0 %v5267
    %5329 = vmatprep.subr.mxu0 %v5272
    %5330 = vmatpush1.msra.mxu0 %v5271
    %5331 = vmatprep.subr.mxu0 %v5276
    %5332 = vmatpush1.msra.mxu0 %v5275
    %5333 = vmatprep.subr.mxu0 %v5280
    %5334 = vmatpush1.msra.mxu0 %v5279
    %5335 = vmatprep.subr.mxu0 %v5284
    %5336 = vmatpush1.msra.mxu0 %v5283
    %5337 = vmatprep.subr.mxu0 %v5288
    %5338 = vmatpush1.msra.mxu0 %v5287
    %5339 = vmatprep.subr.mxu0 %v5292
    %5340 = vmatpush1.msra.mxu0 %v5291
    %5341 = vmatprep.subr.mxu0 %v5296
    %5342 = vmatpush1.msra.mxu0 %v5295
    %5343 = vmatprep.subr.mxu0 %v5300
    %5344 = vmatpush1.msra.mxu0 %v5299
    %5345 = vmatprep.subr.mxu0 %v5304
    %5346 = vmatpush1.msra.mxu0 %v5303
    %5347 = vmatprep.subr.mxu0 %v5308
    %5348 = vmatpush1.msra.mxu0 %v5307
    %5349 = vmatprep.subr.mxu0 %v5312
    %5350 = vmatpush1.msra.mxu0 %v5311
    %5351 = vmatprep.subr.mxu0 %v5316
    %5352 = vmatpush1.msra.mxu0 %v5315
    %5353 = vmatprep.subr.mxu0 %v5320
    %5354 = vmatpush1.msra.mxu0 %v5319
    %5355 = vmatprep.subr.mxu0 0.0
    %5356 = vmatpush1.msra.mxu0 0.0
    %5357 = vmatprep.subr.mxu0 0.0
    %5358 = vmatpush1.msra.mxu0 0.0
    %5359 = vmatprep.subr.mxu0 0.0
    %5360 = vmatpush1.msra.mxu0 0.0
    %5361 = vmatprep.subr.mxu0 0.0
    %5362 = vmatpush1.msra.mxu0 0.0
    %5363 = vmatprep.subr.mxu0 0.0
    %5364 = vmatpush1.msra.mxu0 0.0
    %5365 = vmatprep.subr.mxu0 0.0
    %5366 = vmatpush1.msra.mxu0 0.0
    %5367 = vmatprep.subr.mxu0 0.0
    %5368 = vmatpush1.msra.mxu0 0.0
    %5369 = vmatprep.subr.mxu0 0.0
    %5370 = vmatpush1.msra.mxu0 0.0
    %5371 = vmatprep.subr.mxu0 0.0
    %5372 = vmatpush1.msra.mxu0 0.0
    %5373 = vmatprep.subr.mxu0 0.0
    %5374 = vmatpush1.msra.mxu0 0.0
    %5375 = vmatprep.subr.mxu0 0.0
    %5376 = vmatpush1.msra.mxu0 0.0
    %5377 = vmatprep.subr.mxu0 0.0
    %5378 = vmatpush1.msra.mxu0 0.0
    %5379 = vmatprep.subr.mxu0 0.0
    %5380 = vmatpush1.msra.mxu0 0.0
    %5381 = vmatprep.subr.mxu0 0.0
    %5382 = vmatpush1.msra.mxu0 0.0
    %5383 = vmatprep.subr.mxu0 0.0
    %5384 = vmatpush1.msra.mxu0 0.0
    %5385 = vmatprep.subr.mxu0 0.0
    %5386 = vmatpush1.msra.mxu0 0.0
    %5387 = vmatprep.mubr.f32.mxu0 0.0
    %5388 = vmatmul.mubr.f32.gmra.mrb[0].mxu0 %v5253
    %v5389 = vpop.f32.mrb[0].mxu0
    %v5390 = vadd.f32 0.0, %v5389
    %v5391 = vpop.f32.mrb[0].mxu0
    %v5392 = vadd.f32 0.0, %v5391
    %5393 = vdwg.mxu0
    %5394 = vmatprep.subr.mxu0 %v5262
    %5395 = vmatpush1.msra.mxu0 %v5261
    %5396 = vmatprep.subr.mxu0 %v5266
    %5397 = vmatpush1.msra.mxu0 %v5265
    %5398 = vmatprep.subr.mxu0 %v5270
    %5399 = vmatpush1.msra.mxu0 %v5269
    %5400 = vmatprep.subr.mxu0 %v5274
    %5401 = vmatpush1.msra.mxu0 %v5273
    %5402 = vmatprep.subr.mxu0 %v5278
    %5403 = vmatpush1.msra.mxu0 %v5277
    %5404 = vmatprep.subr.mxu0 %v5282
    %5405 = vmatpush1.msra.mxu0 %v5281
    %5406 = vmatprep.subr.mxu0 %v5286
    %5407 = vmatpush1.msra.mxu0 %v5285
    %5408 = vmatprep.subr.mxu0 %v5290
    %5409 = vmatpush1.msra.mxu0 %v5289
    %5410 = vmatprep.subr.mxu0 %v5294
    %5411 = vmatpush1.msra.mxu0 %v5293
    %5412 = vmatprep.subr.mxu0 %v5298
    %5413 = vmatpush1.msra.mxu0 %v5297
    %5414 = vmatprep.subr.mxu0 %v5302
    %5415 = vmatpush1.msra.mxu0 %v5301
    %5416 = vmatprep.subr.mxu0 %v5306
    %5417 = vmatpush1.msra.mxu0 %v5305
    %5418 = vmatprep.subr.mxu0 %v5310
    %5419 = vmatpush1.msra.mxu0 %v5309
    %5420 = vmatprep.subr.mxu0 %v5314
    %5421 = vmatpush1.msra.mxu0 %v5313
    %5422 = vmatprep.subr.mxu0 %v5318
    %5423 = vmatpush1.msra.mxu0 %v5317
    %5424 = vmatprep.subr.mxu0 %v5322
    %5425 = vmatpush1.msra.mxu0 %v5321
    %5426 = vmatprep.subr.mxu0 0.0
    %5427 = vmatpush1.msra.mxu0 0.0
    %5428 = vmatprep.subr.mxu0 0.0
    %5429 = vmatpush1.msra.mxu0 0.0
    %5430 = vmatprep.subr.mxu0 0.0
    %5431 = vmatpush1.msra.mxu0 0.0
    %5432 = vmatprep.subr.mxu0 0.0
    %5433 = vmatpush1.msra.mxu0 0.0
    %5434 = vmatprep.subr.mxu0 0.0
    %5435 = vmatpush1.msra.mxu0 0.0
    %5436 = vmatprep.subr.mxu0 0.0
    %5437 = vmatpush1.msra.mxu0 0.0
    %5438 = vmatprep.subr.mxu0 0.0
    %5439 = vmatpush1.msra.mxu0 0.0
    %5440 = vmatprep.subr.mxu0 0.0
    %5441 = vmatpush1.msra.mxu0 0.0
    %5442 = vmatprep.subr.mxu0 0.0
    %5443 = vmatpush1.msra.mxu0 0.0
    %5444 = vmatprep.subr.mxu0 0.0
    %5445 = vmatpush1.msra.mxu0 0.0
    %5446 = vmatprep.subr.mxu0 0.0
    %5447 = vmatpush1.msra.mxu0 0.0
    %5448 = vmatprep.subr.mxu0 0.0
    %5449 = vmatpush1.msra.mxu0 0.0
    %5450 = vmatprep.subr.mxu0 0.0
    %5451 = vmatpush1.msra.mxu0 0.0
    %5452 = vmatprep.subr.mxu0 0.0
    %5453 = vmatpush1.msra.mxu0 0.0
    %5454 = vmatprep.subr.mxu0 0.0
    %5455 = vmatpush1.msra.mxu0 0.0
    %5456 = vmatprep.subr.mxu0 0.0
    %5457 = vmatpush1.msra.mxu0 0.0
    %5458 = vmatprep.mubr.f32.mxu0 0.0
    %5459 = vmatmul.mubr.f32.gmra.mrb[0].mxu0 %v5253
    %v5460 = vpop.f32.mrb[0].mxu0
    %v5461 = vadd.f32 0.0, %v5460
    %v5462 = vpop.f32.mrb[0].mxu0
    %v5463 = vadd.f32 0.0, %v5462
    %5464 = vdwg.mxu0
    %v5469 = vrot.slane %v5390, 6
    %v5470 = vrot.slane %v5392, 6
    %v5471 = vrot.slane %v5461, 6
    %v5472 = vrot.slane %v5463, 6
    %v5477 = vadd.f32 %v5255, %v5469
    %v5478 = vadd.f32 %v5256, %v5470
    %v5479 = vadd.f32 %v5257, %v5471
    %v5480 = vadd.f32 %v5258, %v5472
    %v5481 = vxor.u32 %v5477, 2147483648
    %v5482 = vxor.u32 %v5478, 2147483648
    %v5483 = vxor.u32 %v5479, 2147483648
    %v5484 = vmul.f32 %v5481, 1.442695
    %v5485 = vpow.pop %v5484
    %v5486 = vmul.f32 %v5482, 1.442695
    %v5487 = vpow.pop %v5486
    %v5488 = vmul.f32 %v5483, 1.442695
    %v5489 = vpow.pop %v5488
    %v5490 = vadd.f32 %v5485, 1.0
    %v5491 = vadd.f32 %v5487, 1.0
    %v5492 = vadd.f32 %v5489, 1.0
    %v5493 = vrcp.pop %v5490
    %v5494 = vmul.f32 1.0, %v5493
    %v5495 = vrcp.pop %v5491
    %v5496 = vmul.f32 1.0, %v5495
    %v5497 = vrcp.pop %v5492
    %v5498 = vmul.f32 1.0, %v5497
    %v5499 = vtanh.pop %v5480
    %v5501 = vrot.slane %v5251, 6
    %v5503 = vmul.f32 %v5496, %v5501
    %v5504 = vmul.f32 %v5494, %v5499
    %v5505 = vadd.f32 %v5503, %v5504
    %v5506 = vtanh.pop %v5505
    %v5507 = vmul.f32 %v5498, %v5506
    %5508 = vst [vmem:[#allocation2] sm:$0xc] %v5507
    %v5509 = vld [vmem:[#allocation3] sm:$0x30]
    %v5510 = vld [vmem:[#allocation3 + $0x8] sm:$0x30]
    %v5511 = vld [vmem:[#allocation3 + $0x10] sm:$0x30]
    %v5512 = vld [vmem:[#allocation3 + $0x18] sm:$0x30]
    %v5513 = vld [vmem:[#allocation15] sm:$0xff]
    %v5514 = vld [vmem:[#allocation15 + $0x8] sm:$0xff]
    %v5515 = vld [vmem:[#allocation15 + $0x10] sm:$0xff]
    %v5516 = vld [vmem:[#allocation15 + $0x18] sm:$0xff]
    %v5517 = vld [vmem:[#allocation15 + $0x20] sm:$0xff]
    %v5518 = vld [vmem:[#allocation15 + $0x28] sm:$0xff]
    %v5519 = vld [vmem:[#allocation15 + $0x30] sm:$0xff]
    %v5520 = vld [vmem:[#allocation15 + $0x38] sm:$0xff]
    %v5521 = vld [vmem:[#allocation15 + $0x40] sm:$0xff]
    %v5522 = vld [vmem:[#allocation15 + $0x48] sm:$0xff]
    %v5523 = vld [vmem:[#allocation15 + $0x50] sm:$0xff]
    %v5524 = vld [vmem:[#allocation15 + $0x58] sm:$0xff]
    %v5525 = vld [vmem:[#allocation15 + $0x60] sm:$0xff]
    %v5526 = vld [vmem:[#allocation15 + $0x68] sm:$0xff]
    %v5527 = vld [vmem:[#allocation15 + $0x70] sm:$0xff]
    %v5528 = vld [vmem:[#allocation15 + $0x78] sm:$0xff]
    %v5529 = vld [vmem:[#allocation15 + $0x80] sm:$0xff]
    %v5530 = vld [vmem:[#allocation15 + $0x88] sm:$0xff]
    %v5531 = vld [vmem:[#allocation15 + $0x90] sm:$0xff]
    %v5532 = vld [vmem:[#allocation15 + $0x98] sm:$0xff]
    %v5533 = vld [vmem:[#allocation15 + $0xa0] sm:$0xff]
    %v5534 = vld [vmem:[#allocation15 + $0xa8] sm:$0xff]
    %v5535 = vld [vmem:[#allocation15 + $0xb0] sm:$0xff]
    %v5536 = vld [vmem:[#allocation15 + $0xb8] sm:$0xff]
    %v5537 = vld [vmem:[#allocation15 + $0xc0] sm:$0xff]
    %v5538 = vld [vmem:[#allocation15 + $0xc8] sm:$0xff]
    %v5539 = vld [vmem:[#allocation15 + $0xd0] sm:$0xff]
    %v5540 = vld [vmem:[#allocation15 + $0xd8] sm:$0xff]
    %v5541 = vld [vmem:[#allocation15 + $0xe0] sm:$0xff]
    %v5542 = vld [vmem:[#allocation15 + $0xe8] sm:$0xff]
    %v5543 = vld [vmem:[#allocation15 + $0xf0] sm:$0xff]
    %v5544 = vld [vmem:[#allocation15 + $0xf8] sm:$0xff]
    %v5545 = vld [vmem:[#allocation15 + $0x100] sm:$0xff]
    %v5546 = vld [vmem:[#allocation15 + $0x108] sm:$0xff]
    %v5547 = vld [vmem:[#allocation15 + $0x110] sm:$0xff]
    %v5548 = vld [vmem:[#allocation15 + $0x118] sm:$0xff]
    %v5549 = vld [vmem:[#allocation15 + $0x120] sm:$0xff]
    %v5550 = vld [vmem:[#allocation15 + $0x128] sm:$0xff]
    %v5551 = vld [vmem:[#allocation15 + $0x130] sm:$0xff]
    %v5552 = vld [vmem:[#allocation15 + $0x138] sm:$0xff]
    %v5553 = vld [vmem:[#allocation15 + $0x140] sm:$0xff]
    %v5554 = vld [vmem:[#allocation15 + $0x148] sm:$0xff]
    %v5555 = vld [vmem:[#allocation15 + $0x150] sm:$0xff]
    %v5556 = vld [vmem:[#allocation15 + $0x158] sm:$0xff]
    %v5557 = vld [vmem:[#allocation15 + $0x160] sm:$0xff]
    %v5558 = vld [vmem:[#allocation15 + $0x168] sm:$0xff]
    %v5559 = vld [vmem:[#allocation15 + $0x170] sm:$0xff]
    %v5560 = vld [vmem:[#allocation15 + $0x178] sm:$0xff]
    %v5561 = vld [vmem:[#allocation15 + $0x180] sm:$0xff]
    %v5562 = vld [vmem:[#allocation15 + $0x188] sm:$0xff]
    %v5563 = vld [vmem:[#allocation15 + $0x190] sm:$0xff]
    %v5564 = vld [vmem:[#allocation15 + $0x198] sm:$0xff]
    %v5565 = vld [vmem:[#allocation15 + $0x1a0] sm:$0xff]
    %v5566 = vld [vmem:[#allocation15 + $0x1a8] sm:$0xff]
    %v5567 = vld [vmem:[#allocation15 + $0x1b0] sm:$0xff]
    %v5568 = vld [vmem:[#allocation15 + $0x1b8] sm:$0xff]
    %v5569 = vld [vmem:[#allocation15 + $0x1c0] sm:$0xff]
    %v5570 = vld [vmem:[#allocation15 + $0x1c8] sm:$0xff]
    %v5571 = vld [vmem:[#allocation15 + $0x1d0] sm:$0xff]
    %v5572 = vld [vmem:[#allocation15 + $0x1d8] sm:$0xff]
    %v5573 = vld [vmem:[#allocation15 + $0x1e0] sm:$0xff]
    %v5574 = vld [vmem:[#allocation15 + $0x1e8] sm:$0xff]
    %v5575 = vld [vmem:[#allocation15 + $0x1f0] sm:$0xff]
    %v5576 = vld [vmem:[#allocation15 + $0x1f8] sm:$0xff]
    %v5578 = vrot.slane %v5507, 2
    %5580 = vmatprep.subr.mxu0 %v5514
    %5581 = vmatpush1.msra.mxu0 %v5513
    %5582 = vmatprep.subr.mxu0 %v5518
    %5583 = vmatpush1.msra.mxu0 %v5517
    %5584 = vmatprep.subr.mxu0 %v5522
    %5585 = vmatpush1.msra.mxu0 %v5521
    %5586 = vmatprep.subr.mxu0 %v5526
    %5587 = vmatpush1.msra.mxu0 %v5525
    %5588 = vmatprep.subr.mxu0 %v5530
    %5589 = vmatpush1.msra.mxu0 %v5529
    %5590 = vmatprep.subr.mxu0 %v5534
    %5591 = vmatpush1.msra.mxu0 %v5533
    %5592 = vmatprep.subr.mxu0 %v5538
    %5593 = vmatpush1.msra.mxu0 %v5537
    %5594 = vmatprep.subr.mxu0 %v5542
    %5595 = vmatpush1.msra.mxu0 %v5541
    %5596 = vmatprep.subr.mxu0 %v5546
    %5597 = vmatpush1.msra.mxu0 %v5545
    %5598 = vmatprep.subr.mxu0 %v5550
    %5599 = vmatpush1.msra.mxu0 %v5549
    %5600 = vmatprep.subr.mxu0 %v5554
    %5601 = vmatpush1.msra.mxu0 %v5553
    %5602 = vmatprep.subr.mxu0 %v5558
    %5603 = vmatpush1.msra.mxu0 %v5557
    %5604 = vmatprep.subr.mxu0 %v5562
    %5605 = vmatpush1.msra.mxu0 %v5561
    %5606 = vmatprep.subr.mxu0 %v5566
    %5607 = vmatpush1.msra.mxu0 %v5565
    %5608 = vmatprep.subr.mxu0 %v5570
    %5609 = vmatpush1.msra.mxu0 %v5569
    %5610 = vmatprep.subr.mxu0 %v5574
    %5611 = vmatpush1.msra.mxu0 %v5573
    %5612 = vmatprep.subr.mxu0 0.0
    %5613 = vmatpush1.msra.mxu0 0.0
    %5614 = vmatprep.subr.mxu0 0.0
    %5615 = vmatpush1.msra.mxu0 0.0
    %5616 = vmatprep.subr.mxu0 0.0
    %5617 = vmatpush1.msra.mxu0 0.0
    %5618 = vmatprep.subr.mxu0 0.0
    %5619 = vmatpush1.msra.mxu0 0.0
    %5620 = vmatprep.subr.mxu0 0.0
    %5621 = vmatpush1.msra.mxu0 0.0
    %5622 = vmatprep.subr.mxu0 0.0
    %5623 = vmatpush1.msra.mxu0 0.0
    %5624 = vmatprep.subr.mxu0 0.0
    %5625 = vmatpush1.msra.mxu0 0.0
    %5626 = vmatprep.subr.mxu0 0.0
    %5627 = vmatpush1.msra.mxu0 0.0
    %5628 = vmatprep.subr.mxu0 0.0
    %5629 = vmatpush1.msra.mxu0 0.0
    %5630 = vmatprep.subr.mxu0 0.0
    %5631 = vmatpush1.msra.mxu0 0.0
    %5632 = vmatprep.subr.mxu0 0.0
    %5633 = vmatpush1.msra.mxu0 0.0
    %5634 = vmatprep.subr.mxu0 0.0
    %5635 = vmatpush1.msra.mxu0 0.0
    %5636 = vmatprep.subr.mxu0 0.0
    %5637 = vmatpush1.msra.mxu0 0.0
    %5638 = vmatprep.subr.mxu0 0.0
    %5639 = vmatpush1.msra.mxu0 0.0
    %5640 = vmatprep.subr.mxu0 0.0
    %5641 = vmatpush1.msra.mxu0 0.0
    %5642 = vmatprep.subr.mxu0 0.0
    %5643 = vmatpush1.msra.mxu0 0.0
    %5644 = vmatprep.mubr.f32.mxu0 0.0
    %5645 = vmatmul.mubr.f32.gmra.mrb[0].mxu0 %v5578
    %v5646 = vpop.f32.mrb[0].mxu0
    %v5647 = vadd.f32 0.0, %v5646
    %v5648 = vpop.f32.mrb[0].mxu0
    %v5649 = vadd.f32 0.0, %v5648
    %5650 = vdwg.mxu0
    %5651 = vmatprep.subr.mxu0 %v5516
    %5652 = vmatpush1.msra.mxu0 %v5515
    %5653 = vmatprep.subr.mxu0 %v5520
    %5654 = vmatpush1.msra.mxu0 %v5519
    %5655 = vmatprep.subr.mxu0 %v5524
    %5656 = vmatpush1.msra.mxu0 %v5523
    %5657 = vmatprep.subr.mxu0 %v5528
    %5658 = vmatpush1.msra.mxu0 %v5527
    %5659 = vmatprep.subr.mxu0 %v5532
    %5660 = vmatpush1.msra.mxu0 %v5531
    %5661 = vmatprep.subr.mxu0 %v5536
    %5662 = vmatpush1.msra.mxu0 %v5535
    %5663 = vmatprep.subr.mxu0 %v5540
    %5664 = vmatpush1.msra.mxu0 %v5539
    %5665 = vmatprep.subr.mxu0 %v5544
    %5666 = vmatpush1.msra.mxu0 %v5543
    %5667 = vmatprep.subr.mxu0 %v5548
    %5668 = vmatpush1.msra.mxu0 %v5547
    %5669 = vmatprep.subr.mxu0 %v5552
    %5670 = vmatpush1.msra.mxu0 %v5551
    %5671 = vmatprep.subr.mxu0 %v5556
    %5672 = vmatpush1.msra.mxu0 %v5555
    %5673 = vmatprep.subr.mxu0 %v5560
    %5674 = vmatpush1.msra.mxu0 %v5559
    %5675 = vmatprep.subr.mxu0 %v5564
    %5676 = vmatpush1.msra.mxu0 %v5563
    %5677 = vmatprep.subr.mxu0 %v5568
    %5678 = vmatpush1.msra.mxu0 %v5567
    %5679 = vmatprep.subr.mxu0 %v5572
    %5680 = vmatpush1.msra.mxu0 %v5571
    %5681 = vmatprep.subr.mxu0 %v5576
    %5682 = vmatpush1.msra.mxu0 %v5575
    %5683 = vmatprep.subr.mxu0 0.0
    %5684 = vmatpush1.msra.mxu0 0.0
    %5685 = vmatprep.subr.mxu0 0.0
    %5686 = vmatpush1.msra.mxu0 0.0
    %5687 = vmatprep.subr.mxu0 0.0
    %5688 = vmatpush1.msra.mxu0 0.0
    %5689 = vmatprep.subr.mxu0 0.0
    %5690 = vmatpush1.msra.mxu0 0.0
    %5691 = vmatprep.subr.mxu0 0.0
    %5692 = vmatpush1.msra.mxu0 0.0
    %5693 = vmatprep.subr.mxu0 0.0
    %5694 = vmatpush1.msra.mxu0 0.0
    %5695 = vmatprep.subr.mxu0 0.0
    %5696 = vmatpush1.msra.mxu0 0.0
    %5697 = vmatprep.subr.mxu0 0.0
    %5698 = vmatpush1.msra.mxu0 0.0
    %5699 = vmatprep.subr.mxu0 0.0
    %5700 = vmatpush1.msra.mxu0 0.0
    %5701 = vmatprep.subr.mxu0 0.0
    %5702 = vmatpush1.msra.mxu0 0.0
    %5703 = vmatprep.subr.mxu0 0.0
    %5704 = vmatpush1.msra.mxu0 0.0
    %5705 = vmatprep.subr.mxu0 0.0
    %5706 = vmatpush1.msra.mxu0 0.0
    %5707 = vmatprep.subr.mxu0 0.0
    %5708 = vmatpush1.msra.mxu0 0.0
    %5709 = vmatprep.subr.mxu0 0.0
    %5710 = vmatpush1.msra.mxu0 0.0
    %5711 = vmatprep.subr.mxu0 0.0
    %5712 = vmatpush1.msra.mxu0 0.0
    %5713 = vmatprep.subr.mxu0 0.0
    %5714 = vmatpush1.msra.mxu0 0.0
    %5715 = vmatprep.mubr.f32.mxu0 0.0
    %5716 = vmatmul.mubr.f32.gmra.mrb[0].mxu0 %v5578
    %v5717 = vpop.f32.mrb[0].mxu0
    %v5718 = vadd.f32 0.0, %v5717
    %v5719 = vpop.f32.mrb[0].mxu0
    %v5720 = vadd.f32 0.0, %v5719
    %5721 = vdwg.mxu0
    %v5726 = vrot.slane %v5647, 4
    %v5727 = vrot.slane %v5649, 4
    %v5728 = vrot.slane %v5718, 4
    %v5729 = vrot.slane %v5720, 4
    %v5734 = vadd.f32 %v5509, %v5726
    %v5735 = vadd.f32 %v5510, %v5727
    %v5736 = vadd.f32 %v5511, %v5728
    %v5737 = vadd.f32 %v5512, %v5729
    %v5738 = vxor.u32 %v5734, 2147483648
    %v5739 = vxor.u32 %v5735, 2147483648
    %v5740 = vxor.u32 %v5736, 2147483648
    %v5741 = vmul.f32 %v5738, 1.442695
    %v5742 = vpow.pop %v5741
    %v5743 = vmul.f32 %v5739, 1.442695
    %v5744 = vpow.pop %v5743
    %v5745 = vmul.f32 %v5740, 1.442695
    %v5746 = vpow.pop %v5745
    %v5747 = vadd.f32 %v5742, 1.0
    %v5748 = vadd.f32 %v5744, 1.0
    %v5749 = vadd.f32 %v5746, 1.0
    %v5750 = vrcp.pop %v5747
    %v5751 = vmul.f32 1.0, %v5750
    %v5752 = vrcp.pop %v5748
    %v5753 = vmul.f32 1.0, %v5752
    %v5754 = vrcp.pop %v5749
    %v5755 = vmul.f32 1.0, %v5754
    %v5756 = vtanh.pop %v5737
    %v5758 = vrot.slane %v5505, 6
    %v5760 = vmul.f32 %v5753, %v5758
    %v5761 = vmul.f32 %v5751, %v5756
    %v5762 = vadd.f32 %v5760, %v5761
    %v5763 = vtanh.pop %v5762
    %v5764 = vmul.f32 %v5755, %v5763
    %5765 = vst [vmem:[#allocation2] sm:$0x30] %v5764
    %v5766 = vld [vmem:[#allocation3] sm:$0xc0]
    %v5767 = vld [vmem:[#allocation3 + $0x8] sm:$0xc0]
    %v5768 = vld [vmem:[#allocation3 + $0x10] sm:$0xc0]
    %v5769 = vld [vmem:[#allocation3 + $0x18] sm:$0xc0]
    %v5770 = vld [vmem:[#allocation15] sm:$0xff]
    %v5771 = vld [vmem:[#allocation15 + $0x8] sm:$0xff]
    %v5772 = vld [vmem:[#allocation15 + $0x10] sm:$0xff]
    %v5773 = vld [vmem:[#allocation15 + $0x18] sm:$0xff]
    %v5774 = vld [vmem:[#allocation15 + $0x20] sm:$0xff]
    %v5775 = vld [vmem:[#allocation15 + $0x28] sm:$0xff]
    %v5776 = vld [vmem:[#allocation15 + $0x30] sm:$0xff]
    %v5777 = vld [vmem:[#allocation15 + $0x38] sm:$0xff]
    %v5778 = vld [vmem:[#allocation15 + $0x40] sm:$0xff]
    %v5779 = vld [vmem:[#allocation15 + $0x48] sm:$0xff]
    %v5780 = vld [vmem:[#allocation15 + $0x50] sm:$0xff]
    %v5781 = vld [vmem:[#allocation15 + $0x58] sm:$0xff]
    %v5782 = vld [vmem:[#allocation15 + $0x60] sm:$0xff]
    %v5783 = vld [vmem:[#allocation15 + $0x68] sm:$0xff]
    %v5784 = vld [vmem:[#allocation15 + $0x70] sm:$0xff]
    %v5785 = vld [vmem:[#allocation15 + $0x78] sm:$0xff]
    %v5786 = vld [vmem:[#allocation15 + $0x80] sm:$0xff]
    %v5787 = vld [vmem:[#allocation15 + $0x88] sm:$0xff]
    %v5788 = vld [vmem:[#allocation15 + $0x90] sm:$0xff]
    %v5789 = vld [vmem:[#allocation15 + $0x98] sm:$0xff]
    %v5790 = vld [vmem:[#allocation15 + $0xa0] sm:$0xff]
    %v5791 = vld [vmem:[#allocation15 + $0xa8] sm:$0xff]
    %v5792 = vld [vmem:[#allocation15 + $0xb0] sm:$0xff]
    %v5793 = vld [vmem:[#allocation15 + $0xb8] sm:$0xff]
    %v5794 = vld [vmem:[#allocation15 + $0xc0] sm:$0xff]
    %v5795 = vld [vmem:[#allocation15 + $0xc8] sm:$0xff]
    %v5796 = vld [vmem:[#allocation15 + $0xd0] sm:$0xff]
    %v5797 = vld [vmem:[#allocation15 + $0xd8] sm:$0xff]
    %v5798 = vld [vmem:[#allocation15 + $0xe0] sm:$0xff]
    %v5799 = vld [vmem:[#allocation15 + $0xe8] sm:$0xff]
    %v5800 = vld [vmem:[#allocation15 + $0xf0] sm:$0xff]
    %v5801 = vld [vmem:[#allocation15 + $0xf8] sm:$0xff]
    %v5802 = vld [vmem:[#allocation15 + $0x100] sm:$0xff]
    %v5803 = vld [vmem:[#allocation15 + $0x108] sm:$0xff]
    %v5804 = vld [vmem:[#allocation15 + $0x110] sm:$0xff]
    %v5805 = vld [vmem:[#allocation15 + $0x118] sm:$0xff]
    %v5806 = vld [vmem:[#allocation15 + $0x120] sm:$0xff]
    %v5807 = vld [vmem:[#allocation15 + $0x128] sm:$0xff]
    %v5808 = vld [vmem:[#allocation15 + $0x130] sm:$0xff]
    %v5809 = vld [vmem:[#allocation15 + $0x138] sm:$0xff]
    %v5810 = vld [vmem:[#allocation15 + $0x140] sm:$0xff]
    %v5811 = vld [vmem:[#allocation15 + $0x148] sm:$0xff]
    %v5812 = vld [vmem:[#allocation15 + $0x150] sm:$0xff]
    %v5813 = vld [vmem:[#allocation15 + $0x158] sm:$0xff]
    %v5814 = vld [vmem:[#allocation15 + $0x160] sm:$0xff]
    %v5815 = vld [vmem:[#allocation15 + $0x168] sm:$0xff]
    %v5816 = vld [vmem:[#allocation15 + $0x170] sm:$0xff]
    %v5817 = vld [vmem:[#allocation15 + $0x178] sm:$0xff]
    %v5818 = vld [vmem:[#allocation15 + $0x180] sm:$0xff]
    %v5819 = vld [vmem:[#allocation15 + $0x188] sm:$0xff]
    %v5820 = vld [vmem:[#allocation15 + $0x190] sm:$0xff]
    %v5821 = vld [vmem:[#allocation15 + $0x198] sm:$0xff]
    %v5822 = vld [vmem:[#allocation15 + $0x1a0] sm:$0xff]
    %v5823 = vld [vmem:[#allocation15 + $0x1a8] sm:$0xff]
    %v5824 = vld [vmem:[#allocation15 + $0x1b0] sm:$0xff]
    %v5825 = vld [vmem:[#allocation15 + $0x1b8] sm:$0xff]
    %v5826 = vld [vmem:[#allocation15 + $0x1c0] sm:$0xff]
    %v5827 = vld [vmem:[#allocation15 + $0x1c8] sm:$0xff]
    %v5828 = vld [vmem:[#allocation15 + $0x1d0] sm:$0xff]
    %v5829 = vld [vmem:[#allocation15 + $0x1d8] sm:$0xff]
    %v5830 = vld [vmem:[#allocation15 + $0x1e0] sm:$0xff]
    %v5831 = vld [vmem:[#allocation15 + $0x1e8] sm:$0xff]
    %v5832 = vld [vmem:[#allocation15 + $0x1f0] sm:$0xff]
    %v5833 = vld [vmem:[#allocation15 + $0x1f8] sm:$0xff]
    %v5835 = vrot.slane %v5764, 4
    %5837 = vmatprep.subr.mxu0 %v5771
    %5838 = vmatpush1.msra.mxu0 %v5770
    %5839 = vmatprep.subr.mxu0 %v5775
    %5840 = vmatpush1.msra.mxu0 %v5774
    %5841 = vmatprep.subr.mxu0 %v5779
    %5842 = vmatpush1.msra.mxu0 %v5778
    %5843 = vmatprep.subr.mxu0 %v5783
    %5844 = vmatpush1.msra.mxu0 %v5782
    %5845 = vmatprep.subr.mxu0 %v5787
    %5846 = vmatpush1.msra.mxu0 %v5786
    %5847 = vmatprep.subr.mxu0 %v5791
    %5848 = vmatpush1.msra.mxu0 %v5790
    %5849 = vmatprep.subr.mxu0 %v5795
    %5850 = vmatpush1.msra.mxu0 %v5794
    %5851 = vmatprep.subr.mxu0 %v5799
    %5852 = vmatpush1.msra.mxu0 %v5798
    %5853 = vmatprep.subr.mxu0 %v5803
    %5854 = vmatpush1.msra.mxu0 %v5802
    %5855 = vmatprep.subr.mxu0 %v5807
    %5856 = vmatpush1.msra.mxu0 %v5806
    %5857 = vmatprep.subr.mxu0 %v5811
    %5858 = vmatpush1.msra.mxu0 %v5810
    %5859 = vmatprep.subr.mxu0 %v5815
    %5860 = vmatpush1.msra.mxu0 %v5814
    %5861 = vmatprep.subr.mxu0 %v5819
    %5862 = vmatpush1.msra.mxu0 %v5818
    %5863 = vmatprep.subr.mxu0 %v5823
    %5864 = vmatpush1.msra.mxu0 %v5822
    %5865 = vmatprep.subr.mxu0 %v5827
    %5866 = vmatpush1.msra.mxu0 %v5826
    %5867 = vmatprep.subr.mxu0 %v5831
    %5868 = vmatpush1.msra.mxu0 %v5830
    %5869 = vmatprep.subr.mxu0 0.0
    %5870 = vmatpush1.msra.mxu0 0.0
    %5871 = vmatprep.subr.mxu0 0.0
    %5872 = vmatpush1.msra.mxu0 0.0
    %5873 = vmatprep.subr.mxu0 0.0
    %5874 = vmatpush1.msra.mxu0 0.0
    %5875 = vmatprep.subr.mxu0 0.0
    %5876 = vmatpush1.msra.mxu0 0.0
    %5877 = vmatprep.subr.mxu0 0.0
    %5878 = vmatpush1.msra.mxu0 0.0
    %5879 = vmatprep.subr.mxu0 0.0
    %5880 = vmatpush1.msra.mxu0 0.0
    %5881 = vmatprep.subr.mxu0 0.0
    %5882 = vmatpush1.msra.mxu0 0.0
    %5883 = vmatprep.subr.mxu0 0.0
    %5884 = vmatpush1.msra.mxu0 0.0
    %5885 = vmatprep.subr.mxu0 0.0
    %5886 = vmatpush1.msra.mxu0 0.0
    %5887 = vmatprep.subr.mxu0 0.0
    %5888 = vmatpush1.msra.mxu0 0.0
    %5889 = vmatprep.subr.mxu0 0.0
    %5890 = vmatpush1.msra.mxu0 0.0
    %5891 = vmatprep.subr.mxu0 0.0
    %5892 = vmatpush1.msra.mxu0 0.0
    %5893 = vmatprep.subr.mxu0 0.0
    %5894 = vmatpush1.msra.mxu0 0.0
    %5895 = vmatprep.subr.mxu0 0.0
    %5896 = vmatpush1.msra.mxu0 0.0
    %5897 = vmatprep.subr.mxu0 0.0
    %5898 = vmatpush1.msra.mxu0 0.0
    %5899 = vmatprep.subr.mxu0 0.0
    %5900 = vmatpush1.msra.mxu0 0.0
    %5901 = vmatprep.mubr.f32.mxu0 0.0
    %5902 = vmatmul.mubr.f32.gmra.mrb[0].mxu0 %v5835
    %v5903 = vpop.f32.mrb[0].mxu0
    %v5904 = vadd.f32 0.0, %v5903
    %v5905 = vpop.f32.mrb[0].mxu0
    %v5906 = vadd.f32 0.0, %v5905
    %5907 = vdwg.mxu0
    %5908 = vmatprep.subr.mxu0 %v5773
    %5909 = vmatpush1.msra.mxu0 %v5772
    %5910 = vmatprep.subr.mxu0 %v5777
    %5911 = vmatpush1.msra.mxu0 %v5776
    %5912 = vmatprep.subr.mxu0 %v5781
    %5913 = vmatpush1.msra.mxu0 %v5780
    %5914 = vmatprep.subr.mxu0 %v5785
    %5915 = vmatpush1.msra.mxu0 %v5784
    %5916 = vmatprep.subr.mxu0 %v5789
    %5917 = vmatpush1.msra.mxu0 %v5788
    %5918 = vmatprep.subr.mxu0 %v5793
    %5919 = vmatpush1.msra.mxu0 %v5792
    %5920 = vmatprep.subr.mxu0 %v5797
    %5921 = vmatpush1.msra.mxu0 %v5796
    %5922 = vmatprep.subr.mxu0 %v5801
    %5923 = vmatpush1.msra.mxu0 %v5800
    %5924 = vmatprep.subr.mxu0 %v5805
    %5925 = vmatpush1.msra.mxu0 %v5804
    %5926 = vmatprep.subr.mxu0 %v5809
    %5927 = vmatpush1.msra.mxu0 %v5808
    %5928 = vmatprep.subr.mxu0 %v5813
    %5929 = vmatpush1.msra.mxu0 %v5812
    %5930 = vmatprep.subr.mxu0 %v5817
    %5931 = vmatpush1.msra.mxu0 %v5816
    %5932 = vmatprep.subr.mxu0 %v5821
    %5933 = vmatpush1.msra.mxu0 %v5820
    %5934 = vmatprep.subr.mxu0 %v5825
    %5935 = vmatpush1.msra.mxu0 %v5824
    %5936 = vmatprep.subr.mxu0 %v5829
    %5937 = vmatpush1.msra.mxu0 %v5828
    %5938 = vmatprep.subr.mxu0 %v5833
    %5939 = vmatpush1.msra.mxu0 %v5832
    %5940 = vmatprep.subr.mxu0 0.0
    %5941 = vmatpush1.msra.mxu0 0.0
    %5942 = vmatprep.subr.mxu0 0.0
    %5943 = vmatpush1.msra.mxu0 0.0
    %5944 = vmatprep.subr.mxu0 0.0
    %5945 = vmatpush1.msra.mxu0 0.0
    %5946 = vmatprep.subr.mxu0 0.0
    %5947 = vmatpush1.msra.mxu0 0.0
    %5948 = vmatprep.subr.mxu0 0.0
    %5949 = vmatpush1.msra.mxu0 0.0
    %5950 = vmatprep.subr.mxu0 0.0
    %5951 = vmatpush1.msra.mxu0 0.0
    %5952 = vmatprep.subr.mxu0 0.0
    %5953 = vmatpush1.msra.mxu0 0.0
    %5954 = vmatprep.subr.mxu0 0.0
    %5955 = vmatpush1.msra.mxu0 0.0
    %5956 = vmatprep.subr.mxu0 0.0
    %5957 = vmatpush1.msra.mxu0 0.0
    %5958 = vmatprep.subr.mxu0 0.0
    %5959 = vmatpush1.msra.mxu0 0.0
    %5960 = vmatprep.subr.mxu0 0.0
    %5961 = vmatpush1.msra.mxu0 0.0
    %5962 = vmatprep.subr.mxu0 0.0
    %5963 = vmatpush1.msra.mxu0 0.0
    %5964 = vmatprep.subr.mxu0 0.0
    %5965 = vmatpush1.msra.mxu0 0.0
    %5966 = vmatprep.subr.mxu0 0.0
    %5967 = vmatpush1.msra.mxu0 0.0
    %5968 = vmatprep.subr.mxu0 0.0
    %5969 = vmatpush1.msra.mxu0 0.0
    %5970 = vmatprep.subr.mxu0 0.0
    %5971 = vmatpush1.msra.mxu0 0.0
    %5972 = vmatprep.mubr.f32.mxu0 0.0
    %5973 = vmatmul.mubr.f32.gmra.mrb[0].mxu0 %v5835
    %v5974 = vpop.f32.mrb[0].mxu0
    %v5975 = vadd.f32 0.0, %v5974
    %v5976 = vpop.f32.mrb[0].mxu0
    %v5977 = vadd.f32 0.0, %v5976
    %5978 = vdwg.mxu0
    %v5983 = vrot.slane %v5904, 2
    %v5984 = vrot.slane %v5906, 2
    %v5985 = vrot.slane %v5975, 2
    %v5986 = vrot.slane %v5977, 2
    %v5991 = vadd.f32 %v5766, %v5983
    %v5992 = vadd.f32 %v5767, %v5984
    %v5993 = vadd.f32 %v5768, %v5985
    %v5994 = vadd.f32 %v5769, %v5986
    %v5995 = vxor.u32 %v5991, 2147483648
    %v5996 = vxor.u32 %v5992, 2147483648
    %v5997 = vxor.u32 %v5993, 2147483648
    %v5998 = vmul.f32 %v5995, 1.442695
    %v5999 = vpow.pop %v5998
    %v6000 = vmul.f32 %v5996, 1.442695
    %v6001 = vpow.pop %v6000
    %v6002 = vmul.f32 %v5997, 1.442695
    %v6003 = vpow.pop %v6002
    %v6004 = vadd.f32 %v5999, 1.0
    %v6005 = vadd.f32 %v6001, 1.0
    %v6006 = vadd.f32 %v6003, 1.0
    %v6007 = vrcp.pop %v6004
    %v6008 = vmul.f32 1.0, %v6007
    %v6009 = vrcp.pop %v6005
    %v6010 = vmul.f32 1.0, %v6009
    %v6011 = vrcp.pop %v6006
    %v6012 = vmul.f32 1.0, %v6011
    %v6013 = vtanh.pop %v5994
    %v6015 = vrot.slane %v5762, 6
    %v6017 = vmul.f32 %v6010, %v6015
    %v6018 = vmul.f32 %v6008, %v6013
    %v6019 = vadd.f32 %v6017, %v6018
    %v6020 = vtanh.pop %v6019
    %v6021 = vmul.f32 %v6012, %v6020
    %6022 = vst [vmem:[#allocation2] sm:$0xc0] %v6021
    %v6023 = vld [vmem:[#allocation3 + $0x20] sm:$0x3]
    %v6024 = vld [vmem:[#allocation3 + $0x28] sm:$0x3]
    %v6025 = vld [vmem:[#allocation3 + $0x30] sm:$0x3]
    %v6026 = vld [vmem:[#allocation3 + $0x38] sm:$0x3]
    %v6027 = vld [vmem:[#allocation15] sm:$0xff]
    %v6028 = vld [vmem:[#allocation15 + $0x8] sm:$0xff]
    %v6029 = vld [vmem:[#allocation15 + $0x10] sm:$0xff]
    %v6030 = vld [vmem:[#allocation15 + $0x18] sm:$0xff]
    %v6031 = vld [vmem:[#allocation15 + $0x20] sm:$0xff]
    %v6032 = vld [vmem:[#allocation15 + $0x28] sm:$0xff]
    %v6033 = vld [vmem:[#allocation15 + $0x30] sm:$0xff]
    %v6034 = vld [vmem:[#allocation15 + $0x38] sm:$0xff]
    %v6035 = vld [vmem:[#allocation15 + $0x40] sm:$0xff]
    %v6036 = vld [vmem:[#allocation15 + $0x48] sm:$0xff]
    %v6037 = vld [vmem:[#allocation15 + $0x50] sm:$0xff]
    %v6038 = vld [vmem:[#allocation15 + $0x58] sm:$0xff]
    %v6039 = vld [vmem:[#allocation15 + $0x60] sm:$0xff]
    %v6040 = vld [vmem:[#allocation15 + $0x68] sm:$0xff]
    %v6041 = vld [vmem:[#allocation15 + $0x70] sm:$0xff]
    %v6042 = vld [vmem:[#allocation15 + $0x78] sm:$0xff]
    %v6043 = vld [vmem:[#allocation15 + $0x80] sm:$0xff]
    %v6044 = vld [vmem:[#allocation15 + $0x88] sm:$0xff]
    %v6045 = vld [vmem:[#allocation15 + $0x90] sm:$0xff]
    %v6046 = vld [vmem:[#allocation15 + $0x98] sm:$0xff]
    %v6047 = vld [vmem:[#allocation15 + $0xa0] sm:$0xff]
    %v6048 = vld [vmem:[#allocation15 + $0xa8] sm:$0xff]
    %v6049 = vld [vmem:[#allocation15 + $0xb0] sm:$0xff]
    %v6050 = vld [vmem:[#allocation15 + $0xb8] sm:$0xff]
    %v6051 = vld [vmem:[#allocation15 + $0xc0] sm:$0xff]
    %v6052 = vld [vmem:[#allocation15 + $0xc8] sm:$0xff]
    %v6053 = vld [vmem:[#allocation15 + $0xd0] sm:$0xff]
    %v6054 = vld [vmem:[#allocation15 + $0xd8] sm:$0xff]
    %v6055 = vld [vmem:[#allocation15 + $0xe0] sm:$0xff]
    %v6056 = vld [vmem:[#allocation15 + $0xe8] sm:$0xff]
    %v6057 = vld [vmem:[#allocation15 + $0xf0] sm:$0xff]
    %v6058 = vld [vmem:[#allocation15 + $0xf8] sm:$0xff]
    %v6059 = vld [vmem:[#allocation15 + $0x100] sm:$0xff]
    %v6060 = vld [vmem:[#allocation15 + $0x108] sm:$0xff]
    %v6061 = vld [vmem:[#allocation15 + $0x110] sm:$0xff]
    %v6062 = vld [vmem:[#allocation15 + $0x118] sm:$0xff]
    %v6063 = vld [vmem:[#allocation15 + $0x120] sm:$0xff]
    %v6064 = vld [vmem:[#allocation15 + $0x128] sm:$0xff]
    %v6065 = vld [vmem:[#allocation15 + $0x130] sm:$0xff]
    %v6066 = vld [vmem:[#allocation15 + $0x138] sm:$0xff]
    %v6067 = vld [vmem:[#allocation15 + $0x140] sm:$0xff]
    %v6068 = vld [vmem:[#allocation15 + $0x148] sm:$0xff]
    %v6069 = vld [vmem:[#allocation15 + $0x150] sm:$0xff]
    %v6070 = vld [vmem:[#allocation15 + $0x158] sm:$0xff]
    %v6071 = vld [vmem:[#allocation15 + $0x160] sm:$0xff]
    %v6072 = vld [vmem:[#allocation15 + $0x168] sm:$0xff]
    %v6073 = vld [vmem:[#allocation15 + $0x170] sm:$0xff]
    %v6074 = vld [vmem:[#allocation15 + $0x178] sm:$0xff]
    %v6075 = vld [vmem:[#allocation15 + $0x180] sm:$0xff]
    %v6076 = vld [vmem:[#allocation15 + $0x188] sm:$0xff]
    %v6077 = vld [vmem:[#allocation15 + $0x190] sm:$0xff]
    %v6078 = vld [vmem:[#allocation15 + $0x198] sm:$0xff]
    %v6079 = vld [vmem:[#allocation15 + $0x1a0] sm:$0xff]
    %v6080 = vld [vmem:[#allocation15 + $0x1a8] sm:$0xff]
    %v6081 = vld [vmem:[#allocation15 + $0x1b0] sm:$0xff]
    %v6082 = vld [vmem:[#allocation15 + $0x1b8] sm:$0xff]
    %v6083 = vld [vmem:[#allocation15 + $0x1c0] sm:$0xff]
    %v6084 = vld [vmem:[#allocation15 + $0x1c8] sm:$0xff]
    %v6085 = vld [vmem:[#allocation15 + $0x1d0] sm:$0xff]
    %v6086 = vld [vmem:[#allocation15 + $0x1d8] sm:$0xff]
    %v6087 = vld [vmem:[#allocation15 + $0x1e0] sm:$0xff]
    %v6088 = vld [vmem:[#allocation15 + $0x1e8] sm:$0xff]
    %v6089 = vld [vmem:[#allocation15 + $0x1f0] sm:$0xff]
    %v6090 = vld [vmem:[#allocation15 + $0x1f8] sm:$0xff]
    %v6092 = vrot.slane %v6021, 6
    %6094 = vmatprep.subr.mxu0 %v6028
    %6095 = vmatpush1.msra.mxu0 %v6027
    %6096 = vmatprep.subr.mxu0 %v6032
    %6097 = vmatpush1.msra.mxu0 %v6031
    %6098 = vmatprep.subr.mxu0 %v6036
    %6099 = vmatpush1.msra.mxu0 %v6035
    %6100 = vmatprep.subr.mxu0 %v6040
    %6101 = vmatpush1.msra.mxu0 %v6039
    %6102 = vmatprep.subr.mxu0 %v6044
    %6103 = vmatpush1.msra.mxu0 %v6043
    %6104 = vmatprep.subr.mxu0 %v6048
    %6105 = vmatpush1.msra.mxu0 %v6047
    %6106 = vmatprep.subr.mxu0 %v6052
    %6107 = vmatpush1.msra.mxu0 %v6051
    %6108 = vmatprep.subr.mxu0 %v6056
    %6109 = vmatpush1.msra.mxu0 %v6055
    %6110 = vmatprep.subr.mxu0 %v6060
    %6111 = vmatpush1.msra.mxu0 %v6059
    %6112 = vmatprep.subr.mxu0 %v6064
    %6113 = vmatpush1.msra.mxu0 %v6063
    %6114 = vmatprep.subr.mxu0 %v6068
    %6115 = vmatpush1.msra.mxu0 %v6067
    %6116 = vmatprep.subr.mxu0 %v6072
    %6117 = vmatpush1.msra.mxu0 %v6071
    %6118 = vmatprep.subr.mxu0 %v6076
    %6119 = vmatpush1.msra.mxu0 %v6075
    %6120 = vmatprep.subr.mxu0 %v6080
    %6121 = vmatpush1.msra.mxu0 %v6079
    %6122 = vmatprep.subr.mxu0 %v6084
    %6123 = vmatpush1.msra.mxu0 %v6083
    %6124 = vmatprep.subr.mxu0 %v6088
    %6125 = vmatpush1.msra.mxu0 %v6087
    %6126 = vmatprep.subr.mxu0 0.0
    %6127 = vmatpush1.msra.mxu0 0.0
    %6128 = vmatprep.subr.mxu0 0.0
    %6129 = vmatpush1.msra.mxu0 0.0
    %6130 = vmatprep.subr.mxu0 0.0
    %6131 = vmatpush1.msra.mxu0 0.0
    %6132 = vmatprep.subr.mxu0 0.0
    %6133 = vmatpush1.msra.mxu0 0.0
    %6134 = vmatprep.subr.mxu0 0.0
    %6135 = vmatpush1.msra.mxu0 0.0
    %6136 = vmatprep.subr.mxu0 0.0
    %6137 = vmatpush1.msra.mxu0 0.0
    %6138 = vmatprep.subr.mxu0 0.0
    %6139 = vmatpush1.msra.mxu0 0.0
    %6140 = vmatprep.subr.mxu0 0.0
    %6141 = vmatpush1.msra.mxu0 0.0
    %6142 = vmatprep.subr.mxu0 0.0
    %6143 = vmatpush1.msra.mxu0 0.0
    %6144 = vmatprep.subr.mxu0 0.0
    %6145 = vmatpush1.msra.mxu0 0.0
    %6146 = vmatprep.subr.mxu0 0.0
    %6147 = vmatpush1.msra.mxu0 0.0
    %6148 = vmatprep.subr.mxu0 0.0
    %6149 = vmatpush1.msra.mxu0 0.0
    %6150 = vmatprep.subr.mxu0 0.0
    %6151 = vmatpush1.msra.mxu0 0.0
    %6152 = vmatprep.subr.mxu0 0.0
    %6153 = vmatpush1.msra.mxu0 0.0
    %6154 = vmatprep.subr.mxu0 0.0
    %6155 = vmatpush1.msra.mxu0 0.0
    %6156 = vmatprep.subr.mxu0 0.0
    %6157 = vmatpush1.msra.mxu0 0.0
    %6158 = vmatprep.mubr.f32.mxu0 0.0
    %6159 = vmatmul.mubr.f32.gmra.mrb[0].mxu0 %v6092
    %v6160 = vpop.f32.mrb[0].mxu0
    %v6161 = vadd.f32 0.0, %v6160
    %v6162 = vpop.f32.mrb[0].mxu0
    %v6163 = vadd.f32 0.0, %v6162
    %6164 = vdwg.mxu0
    %6165 = vmatprep.subr.mxu0 %v6030
    %6166 = vmatpush1.msra.mxu0 %v6029
    %6167 = vmatprep.subr.mxu0 %v6034
    %6168 = vmatpush1.msra.mxu0 %v6033
    %6169 = vmatprep.subr.mxu0 %v6038
    %6170 = vmatpush1.msra.mxu0 %v6037
    %6171 = vmatprep.subr.mxu0 %v6042
    %6172 = vmatpush1.msra.mxu0 %v6041
    %6173 = vmatprep.subr.mxu0 %v6046
    %6174 = vmatpush1.msra.mxu0 %v6045
    %6175 = vmatprep.subr.mxu0 %v6050
    %6176 = vmatpush1.msra.mxu0 %v6049
    %6177 = vmatprep.subr.mxu0 %v6054
    %6178 = vmatpush1.msra.mxu0 %v6053
    %6179 = vmatprep.subr.mxu0 %v6058
    %6180 = vmatpush1.msra.mxu0 %v6057
    %6181 = vmatprep.subr.mxu0 %v6062
    %6182 = vmatpush1.msra.mxu0 %v6061
    %6183 = vmatprep.subr.mxu0 %v6066
    %6184 = vmatpush1.msra.mxu0 %v6065
    %6185 = vmatprep.subr.mxu0 %v6070
    %6186 = vmatpush1.msra.mxu0 %v6069
    %6187 = vmatprep.subr.mxu0 %v6074
    %6188 = vmatpush1.msra.mxu0 %v6073
    %6189 = vmatprep.subr.mxu0 %v6078
    %6190 = vmatpush1.msra.mxu0 %v6077
    %6191 = vmatprep.subr.mxu0 %v6082
    %6192 = vmatpush1.msra.mxu0 %v6081
    %6193 = vmatprep.subr.mxu0 %v6086
    %6194 = vmatpush1.msra.mxu0 %v6085
    %6195 = vmatprep.subr.mxu0 %v6090
    %6196 = vmatpush1.msra.mxu0 %v6089
    %6197 = vmatprep.subr.mxu0 0.0
    %6198 = vmatpush1.msra.mxu0 0.0
    %6199 = vmatprep.subr.mxu0 0.0
    %6200 = vmatpush1.msra.mxu0 0.0
    %6201 = vmatprep.subr.mxu0 0.0
    %6202 = vmatpush1.msra.mxu0 0.0
    %6203 = vmatprep.subr.mxu0 0.0
    %6204 = vmatpush1.msra.mxu0 0.0
    %6205 = vmatprep.subr.mxu0 0.0
    %6206 = vmatpush1.msra.mxu0 0.0
    %6207 = vmatprep.subr.mxu0 0.0
    %6208 = vmatpush1.msra.mxu0 0.0
    %6209 = vmatprep.subr.mxu0 0.0
    %6210 = vmatpush1.msra.mxu0 0.0
    %6211 = vmatprep.subr.mxu0 0.0
    %6212 = vmatpush1.msra.mxu0 0.0
    %6213 = vmatprep.subr.mxu0 0.0
    %6214 = vmatpush1.msra.mxu0 0.0
    %6215 = vmatprep.subr.mxu0 0.0
    %6216 = vmatpush1.msra.mxu0 0.0
    %6217 = vmatprep.subr.mxu0 0.0
    %6218 = vmatpush1.msra.mxu0 0.0
    %6219 = vmatprep.subr.mxu0 0.0
    %6220 = vmatpush1.msra.mxu0 0.0
    %6221 = vmatprep.subr.mxu0 0.0
    %6222 = vmatpush1.msra.mxu0 0.0
    %6223 = vmatprep.subr.mxu0 0.0
    %6224 = vmatpush1.msra.mxu0 0.0
    %6225 = vmatprep.subr.mxu0 0.0
    %6226 = vmatpush1.msra.mxu0 0.0
    %6227 = vmatprep.subr.mxu0 0.0
    %6228 = vmatpush1.msra.mxu0 0.0
    %6229 = vmatprep.mubr.f32.mxu0 0.0
    %6230 = vmatmul.mubr.f32.gmra.mrb[0].mxu0 %v6092
    %v6231 = vpop.f32.mrb[0].mxu0
    %v6232 = vadd.f32 0.0, %v6231
    %v6233 = vpop.f32.mrb[0].mxu0
    %v6234 = vadd.f32 0.0, %v6233
    %6235 = vdwg.mxu0
    %v6236 = vadd.f32 %v6023, %v6161
    %v6237 = vadd.f32 %v6024, %v6163
    %v6238 = vadd.f32 %v6025, %v6232
    %v6239 = vadd.f32 %v6026, %v6234
    %v6240 = vxor.u32 %v6236, 2147483648
    %v6241 = vxor.u32 %v6237, 2147483648
    %v6242 = vxor.u32 %v6238, 2147483648
    %v6243 = vmul.f32 %v6240, 1.442695
    %v6244 = vpow.pop %v6243
    %v6245 = vmul.f32 %v6241, 1.442695
    %v6246 = vpow.pop %v6245
    %v6247 = vmul.f32 %v6242, 1.442695
    %v6248 = vpow.pop %v6247
    %v6249 = vadd.f32 %v6244, 1.0
    %v6250 = vadd.f32 %v6246, 1.0
    %v6251 = vadd.f32 %v6248, 1.0
    %v6252 = vrcp.pop %v6249
    %v6253 = vmul.f32 1.0, %v6252
    %v6254 = vrcp.pop %v6250
    %v6255 = vmul.f32 1.0, %v6254
    %v6256 = vrcp.pop %v6251
    %v6257 = vmul.f32 1.0, %v6256
    %v6258 = vtanh.pop %v6239
    %v6260 = vrot.slane %v6019, 6
    %v6262 = vmul.f32 %v6255, %v6260
    %v6263 = vmul.f32 %v6253, %v6258
    %v6264 = vadd.f32 %v6262, %v6263
    %v6265 = vtanh.pop %v6264
    %v6266 = vmul.f32 %v6257, %v6265
    %6267 = vst [vmem:[#allocation2 + $0x8] sm:$0x3] %v6266
    %v6268 = vld [vmem:[#allocation3 + $0x20] sm:$0xc]
    %v6269 = vld [vmem:[#allocation3 + $0x28] sm:$0xc]
    %v6270 = vld [vmem:[#allocation3 + $0x30] sm:$0xc]
    %v6271 = vld [vmem:[#allocation3 + $0x38] sm:$0xc]
    %v6272 = vld [vmem:[#allocation15] sm:$0xff]
    %v6273 = vld [vmem:[#allocation15 + $0x8] sm:$0xff]
    %v6274 = vld [vmem:[#allocation15 + $0x10] sm:$0xff]
    %v6275 = vld [vmem:[#allocation15 + $0x18] sm:$0xff]
    %v6276 = vld [vmem:[#allocation15 + $0x20] sm:$0xff]
    %v6277 = vld [vmem:[#allocation15 + $0x28] sm:$0xff]
    %v6278 = vld [vmem:[#allocation15 + $0x30] sm:$0xff]
    %v6279 = vld [vmem:[#allocation15 + $0x38] sm:$0xff]
    %v6280 = vld [vmem:[#allocation15 + $0x40] sm:$0xff]
    %v6281 = vld [vmem:[#allocation15 + $0x48] sm:$0xff]
    %v6282 = vld [vmem:[#allocation15 + $0x50] sm:$0xff]
    %v6283 = vld [vmem:[#allocation15 + $0x58] sm:$0xff]
    %v6284 = vld [vmem:[#allocation15 + $0x60] sm:$0xff]
    %v6285 = vld [vmem:[#allocation15 + $0x68] sm:$0xff]
    %v6286 = vld [vmem:[#allocation15 + $0x70] sm:$0xff]
    %v6287 = vld [vmem:[#allocation15 + $0x78] sm:$0xff]
    %v6288 = vld [vmem:[#allocation15 + $0x80] sm:$0xff]
    %v6289 = vld [vmem:[#allocation15 + $0x88] sm:$0xff]
    %v6290 = vld [vmem:[#allocation15 + $0x90] sm:$0xff]
    %v6291 = vld [vmem:[#allocation15 + $0x98] sm:$0xff]
    %v6292 = vld [vmem:[#allocation15 + $0xa0] sm:$0xff]
    %v6293 = vld [vmem:[#allocation15 + $0xa8] sm:$0xff]
    %v6294 = vld [vmem:[#allocation15 + $0xb0] sm:$0xff]
    %v6295 = vld [vmem:[#allocation15 + $0xb8] sm:$0xff]
    %v6296 = vld [vmem:[#allocation15 + $0xc0] sm:$0xff]
    %v6297 = vld [vmem:[#allocation15 + $0xc8] sm:$0xff]
    %v6298 = vld [vmem:[#allocation15 + $0xd0] sm:$0xff]
    %v6299 = vld [vmem:[#allocation15 + $0xd8] sm:$0xff]
    %v6300 = vld [vmem:[#allocation15 + $0xe0] sm:$0xff]
    %v6301 = vld [vmem:[#allocation15 + $0xe8] sm:$0xff]
    %v6302 = vld [vmem:[#allocation15 + $0xf0] sm:$0xff]
    %v6303 = vld [vmem:[#allocation15 + $0xf8] sm:$0xff]
    %v6304 = vld [vmem:[#allocation15 + $0x100] sm:$0xff]
    %v6305 = vld [vmem:[#allocation15 + $0x108] sm:$0xff]
    %v6306 = vld [vmem:[#allocation15 + $0x110] sm:$0xff]
    %v6307 = vld [vmem:[#allocation15 + $0x118] sm:$0xff]
    %v6308 = vld [vmem:[#allocation15 + $0x120] sm:$0xff]
    %v6309 = vld [vmem:[#allocation15 + $0x128] sm:$0xff]
    %v6310 = vld [vmem:[#allocation15 + $0x130] sm:$0xff]
    %v6311 = vld [vmem:[#allocation15 + $0x138] sm:$0xff]
    %v6312 = vld [vmem:[#allocation15 + $0x140] sm:$0xff]
    %v6313 = vld [vmem:[#allocation15 + $0x148] sm:$0xff]
    %v6314 = vld [vmem:[#allocation15 + $0x150] sm:$0xff]
    %v6315 = vld [vmem:[#allocation15 + $0x158] sm:$0xff]
    %v6316 = vld [vmem:[#allocation15 + $0x160] sm:$0xff]
    %v6317 = vld [vmem:[#allocation15 + $0x168] sm:$0xff]
    %v6318 = vld [vmem:[#allocation15 + $0x170] sm:$0xff]
    %v6319 = vld [vmem:[#allocation15 + $0x178] sm:$0xff]
    %v6320 = vld [vmem:[#allocation15 + $0x180] sm:$0xff]
    %v6321 = vld [vmem:[#allocation15 + $0x188] sm:$0xff]
    %v6322 = vld [vmem:[#allocation15 + $0x190] sm:$0xff]
    %v6323 = vld [vmem:[#allocation15 + $0x198] sm:$0xff]
    %v6324 = vld [vmem:[#allocation15 + $0x1a0] sm:$0xff]
    %v6325 = vld [vmem:[#allocation15 + $0x1a8] sm:$0xff]
    %v6326 = vld [vmem:[#allocation15 + $0x1b0] sm:$0xff]
    %v6327 = vld [vmem:[#allocation15 + $0x1b8] sm:$0xff]
    %v6328 = vld [vmem:[#allocation15 + $0x1c0] sm:$0xff]
    %v6329 = vld [vmem:[#allocation15 + $0x1c8] sm:$0xff]
    %v6330 = vld [vmem:[#allocation15 + $0x1d0] sm:$0xff]
    %v6331 = vld [vmem:[#allocation15 + $0x1d8] sm:$0xff]
    %v6332 = vld [vmem:[#allocation15 + $0x1e0] sm:$0xff]
    %v6333 = vld [vmem:[#allocation15 + $0x1e8] sm:$0xff]
    %v6334 = vld [vmem:[#allocation15 + $0x1f0] sm:$0xff]
    %v6335 = vld [vmem:[#allocation15 + $0x1f8] sm:$0xff]
    %6336 = vmatprep.subr.mxu0 %v6273
    %6337 = vmatpush1.msra.mxu0 %v6272
    %6338 = vmatprep.subr.mxu0 %v6277
    %6339 = vmatpush1.msra.mxu0 %v6276
    %6340 = vmatprep.subr.mxu0 %v6281
    %6341 = vmatpush1.msra.mxu0 %v6280
    %6342 = vmatprep.subr.mxu0 %v6285
    %6343 = vmatpush1.msra.mxu0 %v6284
    %6344 = vmatprep.subr.mxu0 %v6289
    %6345 = vmatpush1.msra.mxu0 %v6288
    %6346 = vmatprep.subr.mxu0 %v6293
    %6347 = vmatpush1.msra.mxu0 %v6292
    %6348 = vmatprep.subr.mxu0 %v6297
    %6349 = vmatpush1.msra.mxu0 %v6296
    %6350 = vmatprep.subr.mxu0 %v6301
    %6351 = vmatpush1.msra.mxu0 %v6300
    %6352 = vmatprep.subr.mxu0 %v6305
    %6353 = vmatpush1.msra.mxu0 %v6304
    %6354 = vmatprep.subr.mxu0 %v6309
    %6355 = vmatpush1.msra.mxu0 %v6308
    %6356 = vmatprep.subr.mxu0 %v6313
    %6357 = vmatpush1.msra.mxu0 %v6312
    %6358 = vmatprep.subr.mxu0 %v6317
    %6359 = vmatpush1.msra.mxu0 %v6316
    %6360 = vmatprep.subr.mxu0 %v6321
    %6361 = vmatpush1.msra.mxu0 %v6320
    %6362 = vmatprep.subr.mxu0 %v6325
    %6363 = vmatpush1.msra.mxu0 %v6324
    %6364 = vmatprep.subr.mxu0 %v6329
    %6365 = vmatpush1.msra.mxu0 %v6328
    %6366 = vmatprep.subr.mxu0 %v6333
    %6367 = vmatpush1.msra.mxu0 %v6332
    %6368 = vmatprep.subr.mxu0 0.0
    %6369 = vmatpush1.msra.mxu0 0.0
    %6370 = vmatprep.subr.mxu0 0.0
    %6371 = vmatpush1.msra.mxu0 0.0
    %6372 = vmatprep.subr.mxu0 0.0
    %6373 = vmatpush1.msra.mxu0 0.0
    %6374 = vmatprep.subr.mxu0 0.0
    %6375 = vmatpush1.msra.mxu0 0.0
    %6376 = vmatprep.subr.mxu0 0.0
    %6377 = vmatpush1.msra.mxu0 0.0
    %6378 = vmatprep.subr.mxu0 0.0
    %6379 = vmatpush1.msra.mxu0 0.0
    %6380 = vmatprep.subr.mxu0 0.0
    %6381 = vmatpush1.msra.mxu0 0.0
    %6382 = vmatprep.subr.mxu0 0.0
    %6383 = vmatpush1.msra.mxu0 0.0
    %6384 = vmatprep.subr.mxu0 0.0
    %6385 = vmatpush1.msra.mxu0 0.0
    %6386 = vmatprep.subr.mxu0 0.0
    %6387 = vmatpush1.msra.mxu0 0.0
    %6388 = vmatprep.subr.mxu0 0.0
    %6389 = vmatpush1.msra.mxu0 0.0
    %6390 = vmatprep.subr.mxu0 0.0
    %6391 = vmatpush1.msra.mxu0 0.0
    %6392 = vmatprep.subr.mxu0 0.0
    %6393 = vmatpush1.msra.mxu0 0.0
    %6394 = vmatprep.subr.mxu0 0.0
    %6395 = vmatpush1.msra.mxu0 0.0
    %6396 = vmatprep.subr.mxu0 0.0
    %6397 = vmatpush1.msra.mxu0 0.0
    %6398 = vmatprep.subr.mxu0 0.0
    %6399 = vmatpush1.msra.mxu0 0.0
    %6400 = vmatprep.mubr.f32.mxu0 0.0
    %6401 = vmatmul.mubr.f32.gmra.mrb[0].mxu0 %v6266
    %v6402 = vpop.f32.mrb[0].mxu0
    %v6403 = vadd.f32 0.0, %v6402
    %v6404 = vpop.f32.mrb[0].mxu0
    %v6405 = vadd.f32 0.0, %v6404
    %6406 = vdwg.mxu0
    %6407 = vmatprep.subr.mxu0 %v6275
    %6408 = vmatpush1.msra.mxu0 %v6274
    %6409 = vmatprep.subr.mxu0 %v6279
    %6410 = vmatpush1.msra.mxu0 %v6278
    %6411 = vmatprep.subr.mxu0 %v6283
    %6412 = vmatpush1.msra.mxu0 %v6282
    %6413 = vmatprep.subr.mxu0 %v6287
    %6414 = vmatpush1.msra.mxu0 %v6286
    %6415 = vmatprep.subr.mxu0 %v6291
    %6416 = vmatpush1.msra.mxu0 %v6290
    %6417 = vmatprep.subr.mxu0 %v6295
    %6418 = vmatpush1.msra.mxu0 %v6294
    %6419 = vmatprep.subr.mxu0 %v6299
    %6420 = vmatpush1.msra.mxu0 %v6298
    %6421 = vmatprep.subr.mxu0 %v6303
    %6422 = vmatpush1.msra.mxu0 %v6302
    %6423 = vmatprep.subr.mxu0 %v6307
    %6424 = vmatpush1.msra.mxu0 %v6306
    %6425 = vmatprep.subr.mxu0 %v6311
    %6426 = vmatpush1.msra.mxu0 %v6310
    %6427 = vmatprep.subr.mxu0 %v6315
    %6428 = vmatpush1.msra.mxu0 %v6314
    %6429 = vmatprep.subr.mxu0 %v6319
    %6430 = vmatpush1.msra.mxu0 %v6318
    %6431 = vmatprep.subr.mxu0 %v6323
    %6432 = vmatpush1.msra.mxu0 %v6322
    %6433 = vmatprep.subr.mxu0 %v6327
    %6434 = vmatpush1.msra.mxu0 %v6326
    %6435 = vmatprep.subr.mxu0 %v6331
    %6436 = vmatpush1.msra.mxu0 %v6330
    %6437 = vmatprep.subr.mxu0 %v6335
    %6438 = vmatpush1.msra.mxu0 %v6334
    %6439 = vmatprep.subr.mxu0 0.0
    %6440 = vmatpush1.msra.mxu0 0.0
    %6441 = vmatprep.subr.mxu0 0.0
    %6442 = vmatpush1.msra.mxu0 0.0
    %6443 = vmatprep.subr.mxu0 0.0
    %6444 = vmatpush1.msra.mxu0 0.0
    %6445 = vmatprep.subr.mxu0 0.0
    %6446 = vmatpush1.msra.mxu0 0.0
    %6447 = vmatprep.subr.mxu0 0.0
    %6448 = vmatpush1.msra.mxu0 0.0
    %6449 = vmatprep.subr.mxu0 0.0
    %6450 = vmatpush1.msra.mxu0 0.0
    %6451 = vmatprep.subr.mxu0 0.0
    %6452 = vmatpush1.msra.mxu0 0.0
    %6453 = vmatprep.subr.mxu0 0.0
    %6454 = vmatpush1.msra.mxu0 0.0
    %6455 = vmatprep.subr.mxu0 0.0
    %6456 = vmatpush1.msra.mxu0 0.0
    %6457 = vmatprep.subr.mxu0 0.0
    %6458 = vmatpush1.msra.mxu0 0.0
    %6459 = vmatprep.subr.mxu0 0.0
    %6460 = vmatpush1.msra.mxu0 0.0
    %6461 = vmatprep.subr.mxu0 0.0
    %6462 = vmatpush1.msra.mxu0 0.0
    %6463 = vmatprep.subr.mxu0 0.0
    %6464 = vmatpush1.msra.mxu0 0.0
    %6465 = vmatprep.subr.mxu0 0.0
    %6466 = vmatpush1.msra.mxu0 0.0
    %6467 = vmatprep.subr.mxu0 0.0
    %6468 = vmatpush1.msra.mxu0 0.0
    %6469 = vmatprep.subr.mxu0 0.0
    %6470 = vmatpush1.msra.mxu0 0.0
    %6471 = vmatprep.mubr.f32.mxu0 0.0
    %6472 = vmatmul.mubr.f32.gmra.mrb[0].mxu0 %v6266
    %v6473 = vpop.f32.mrb[0].mxu0
    %v6474 = vadd.f32 0.0, %v6473
    %v6475 = vpop.f32.mrb[0].mxu0
    %v6476 = vadd.f32 0.0, %v6475
    %6477 = vdwg.mxu0
    %v6482 = vrot.slane %v6403, 6
    %v6483 = vrot.slane %v6405, 6
    %v6484 = vrot.slane %v6474, 6
    %v6485 = vrot.slane %v6476, 6
    %v6490 = vadd.f32 %v6268, %v6482
    %v6491 = vadd.f32 %v6269, %v6483
    %v6492 = vadd.f32 %v6270, %v6484
    %v6493 = vadd.f32 %v6271, %v6485
    %v6494 = vxor.u32 %v6490, 2147483648
    %v6495 = vxor.u32 %v6491, 2147483648
    %v6496 = vxor.u32 %v6492, 2147483648
    %v6497 = vmul.f32 %v6494, 1.442695
    %v6498 = vpow.pop %v6497
    %v6499 = vmul.f32 %v6495, 1.442695
    %v6500 = vpow.pop %v6499
    %v6501 = vmul.f32 %v6496, 1.442695
    %v6502 = vpow.pop %v6501
    %v6503 = vadd.f32 %v6498, 1.0
    %v6504 = vadd.f32 %v6500, 1.0
    %v6505 = vadd.f32 %v6502, 1.0
    %v6506 = vrcp.pop %v6503
    %v6507 = vmul.f32 1.0, %v6506
    %v6508 = vrcp.pop %v6504
    %v6509 = vmul.f32 1.0, %v6508
    %v6510 = vrcp.pop %v6505
    %v6511 = vmul.f32 1.0, %v6510
    %v6512 = vtanh.pop %v6493
    %v6514 = vrot.slane %v6264, 6
    %v6516 = vmul.f32 %v6509, %v6514
    %v6517 = vmul.f32 %v6507, %v6512
    %v6518 = vadd.f32 %v6516, %v6517
    %v6519 = vtanh.pop %v6518
    %v6520 = vmul.f32 %v6511, %v6519
    %6521 = vst [vmem:[#allocation2 + $0x8] sm:$0xc] %v6520
    %v6522 = vld [vmem:[#allocation3 + $0x20] sm:$0x30]
    %v6523 = vld [vmem:[#allocation3 + $0x28] sm:$0x30]
    %v6524 = vld [vmem:[#allocation3 + $0x30] sm:$0x30]
    %v6525 = vld [vmem:[#allocation3 + $0x38] sm:$0x30]
    %v6526 = vld [vmem:[#allocation15] sm:$0xff]
    %v6527 = vld [vmem:[#allocation15 + $0x8] sm:$0xff]
    %v6528 = vld [vmem:[#allocation15 + $0x10] sm:$0xff]
    %v6529 = vld [vmem:[#allocation15 + $0x18] sm:$0xff]
    %v6530 = vld [vmem:[#allocation15 + $0x20] sm:$0xff]
    %v6531 = vld [vmem:[#allocation15 + $0x28] sm:$0xff]
    %v6532 = vld [vmem:[#allocation15 + $0x30] sm:$0xff]
    %v6533 = vld [vmem:[#allocation15 + $0x38] sm:$0xff]
    %v6534 = vld [vmem:[#allocation15 + $0x40] sm:$0xff]
    %v6535 = vld [vmem:[#allocation15 + $0x48] sm:$0xff]
    %v6536 = vld [vmem:[#allocation15 + $0x50] sm:$0xff]
    %v6537 = vld [vmem:[#allocation15 + $0x58] sm:$0xff]
    %v6538 = vld [vmem:[#allocation15 + $0x60] sm:$0xff]
    %v6539 = vld [vmem:[#allocation15 + $0x68] sm:$0xff]
    %v6540 = vld [vmem:[#allocation15 + $0x70] sm:$0xff]
    %v6541 = vld [vmem:[#allocation15 + $0x78] sm:$0xff]
    %v6542 = vld [vmem:[#allocation15 + $0x80] sm:$0xff]
    %v6543 = vld [vmem:[#allocation15 + $0x88] sm:$0xff]
    %v6544 = vld [vmem:[#allocation15 + $0x90] sm:$0xff]
    %v6545 = vld [vmem:[#allocation15 + $0x98] sm:$0xff]
    %v6546 = vld [vmem:[#allocation15 + $0xa0] sm:$0xff]
    %v6547 = vld [vmem:[#allocation15 + $0xa8] sm:$0xff]
    %v6548 = vld [vmem:[#allocation15 + $0xb0] sm:$0xff]
    %v6549 = vld [vmem:[#allocation15 + $0xb8] sm:$0xff]
    %v6550 = vld [vmem:[#allocation15 + $0xc0] sm:$0xff]
    %v6551 = vld [vmem:[#allocation15 + $0xc8] sm:$0xff]
    %v6552 = vld [vmem:[#allocation15 + $0xd0] sm:$0xff]
    %v6553 = vld [vmem:[#allocation15 + $0xd8] sm:$0xff]
    %v6554 = vld [vmem:[#allocation15 + $0xe0] sm:$0xff]
    %v6555 = vld [vmem:[#allocation15 + $0xe8] sm:$0xff]
    %v6556 = vld [vmem:[#allocation15 + $0xf0] sm:$0xff]
    %v6557 = vld [vmem:[#allocation15 + $0xf8] sm:$0xff]
    %v6558 = vld [vmem:[#allocation15 + $0x100] sm:$0xff]
    %v6559 = vld [vmem:[#allocation15 + $0x108] sm:$0xff]
    %v6560 = vld [vmem:[#allocation15 + $0x110] sm:$0xff]
    %v6561 = vld [vmem:[#allocation15 + $0x118] sm:$0xff]
    %v6562 = vld [vmem:[#allocation15 + $0x120] sm:$0xff]
    %v6563 = vld [vmem:[#allocation15 + $0x128] sm:$0xff]
    %v6564 = vld [vmem:[#allocation15 + $0x130] sm:$0xff]
    %v6565 = vld [vmem:[#allocation15 + $0x138] sm:$0xff]
    %v6566 = vld [vmem:[#allocation15 + $0x140] sm:$0xff]
    %v6567 = vld [vmem:[#allocation15 + $0x148] sm:$0xff]
    %v6568 = vld [vmem:[#allocation15 + $0x150] sm:$0xff]
    %v6569 = vld [vmem:[#allocation15 + $0x158] sm:$0xff]
    %v6570 = vld [vmem:[#allocation15 + $0x160] sm:$0xff]
    %v6571 = vld [vmem:[#allocation15 + $0x168] sm:$0xff]
    %v6572 = vld [vmem:[#allocation15 + $0x170] sm:$0xff]
    %v6573 = vld [vmem:[#allocation15 + $0x178] sm:$0xff]
    %v6574 = vld [vmem:[#allocation15 + $0x180] sm:$0xff]
    %v6575 = vld [vmem:[#allocation15 + $0x188] sm:$0xff]
    %v6576 = vld [vmem:[#allocation15 + $0x190] sm:$0xff]
    %v6577 = vld [vmem:[#allocation15 + $0x198] sm:$0xff]
    %v6578 = vld [vmem:[#allocation15 + $0x1a0] sm:$0xff]
    %v6579 = vld [vmem:[#allocation15 + $0x1a8] sm:$0xff]
    %v6580 = vld [vmem:[#allocation15 + $0x1b0] sm:$0xff]
    %v6581 = vld [vmem:[#allocation15 + $0x1b8] sm:$0xff]
    %v6582 = vld [vmem:[#allocation15 + $0x1c0] sm:$0xff]
    %v6583 = vld [vmem:[#allocation15 + $0x1c8] sm:$0xff]
    %v6584 = vld [vmem:[#allocation15 + $0x1d0] sm:$0xff]
    %v6585 = vld [vmem:[#allocation15 + $0x1d8] sm:$0xff]
    %v6586 = vld [vmem:[#allocation15 + $0x1e0] sm:$0xff]
    %v6587 = vld [vmem:[#allocation15 + $0x1e8] sm:$0xff]
    %v6588 = vld [vmem:[#allocation15 + $0x1f0] sm:$0xff]
    %v6589 = vld [vmem:[#allocation15 + $0x1f8] sm:$0xff]
    %v6591 = vrot.slane %v6520, 2
    %6593 = vmatprep.subr.mxu0 %v6527
    %6594 = vmatpush1.msra.mxu0 %v6526
    %6595 = vmatprep.subr.mxu0 %v6531
    %6596 = vmatpush1.msra.mxu0 %v6530
    %6597 = vmatprep.subr.mxu0 %v6535
    %6598 = vmatpush1.msra.mxu0 %v6534
    %6599 = vmatprep.subr.mxu0 %v6539
    %6600 = vmatpush1.msra.mxu0 %v6538
    %6601 = vmatprep.subr.mxu0 %v6543
    %6602 = vmatpush1.msra.mxu0 %v6542
    %6603 = vmatprep.subr.mxu0 %v6547
    %6604 = vmatpush1.msra.mxu0 %v6546
    %6605 = vmatprep.subr.mxu0 %v6551
    %6606 = vmatpush1.msra.mxu0 %v6550
    %6607 = vmatprep.subr.mxu0 %v6555
    %6608 = vmatpush1.msra.mxu0 %v6554
    %6609 = vmatprep.subr.mxu0 %v6559
    %6610 = vmatpush1.msra.mxu0 %v6558
    %6611 = vmatprep.subr.mxu0 %v6563
    %6612 = vmatpush1.msra.mxu0 %v6562
    %6613 = vmatprep.subr.mxu0 %v6567
    %6614 = vmatpush1.msra.mxu0 %v6566
    %6615 = vmatprep.subr.mxu0 %v6571
    %6616 = vmatpush1.msra.mxu0 %v6570
    %6617 = vmatprep.subr.mxu0 %v6575
    %6618 = vmatpush1.msra.mxu0 %v6574
    %6619 = vmatprep.subr.mxu0 %v6579
    %6620 = vmatpush1.msra.mxu0 %v6578
    %6621 = vmatprep.subr.mxu0 %v6583
    %6622 = vmatpush1.msra.mxu0 %v6582
    %6623 = vmatprep.subr.mxu0 %v6587
    %6624 = vmatpush1.msra.mxu0 %v6586
    %6625 = vmatprep.subr.mxu0 0.0
    %6626 = vmatpush1.msra.mxu0 0.0
    %6627 = vmatprep.subr.mxu0 0.0
    %6628 = vmatpush1.msra.mxu0 0.0
    %6629 = vmatprep.subr.mxu0 0.0
    %6630 = vmatpush1.msra.mxu0 0.0
    %6631 = vmatprep.subr.mxu0 0.0
    %6632 = vmatpush1.msra.mxu0 0.0
    %6633 = vmatprep.subr.mxu0 0.0
    %6634 = vmatpush1.msra.mxu0 0.0
    %6635 = vmatprep.subr.mxu0 0.0
    %6636 = vmatpush1.msra.mxu0 0.0
    %6637 = vmatprep.subr.mxu0 0.0
    %6638 = vmatpush1.msra.mxu0 0.0
    %6639 = vmatprep.subr.mxu0 0.0
    %6640 = vmatpush1.msra.mxu0 0.0
    %6641 = vmatprep.subr.mxu0 0.0
    %6642 = vmatpush1.msra.mxu0 0.0
    %6643 = vmatprep.subr.mxu0 0.0
    %6644 = vmatpush1.msra.mxu0 0.0
    %6645 = vmatprep.subr.mxu0 0.0
    %6646 = vmatpush1.msra.mxu0 0.0
    %6647 = vmatprep.subr.mxu0 0.0
    %6648 = vmatpush1.msra.mxu0 0.0
    %6649 = vmatprep.subr.mxu0 0.0
    %6650 = vmatpush1.msra.mxu0 0.0
    %6651 = vmatprep.subr.mxu0 0.0
    %6652 = vmatpush1.msra.mxu0 0.0
    %6653 = vmatprep.subr.mxu0 0.0
    %6654 = vmatpush1.msra.mxu0 0.0
    %6655 = vmatprep.subr.mxu0 0.0
    %6656 = vmatpush1.msra.mxu0 0.0
    %6657 = vmatprep.mubr.f32.mxu0 0.0
    %6658 = vmatmul.mubr.f32.gmra.mrb[0].mxu0 %v6591
    %v6659 = vpop.f32.mrb[0].mxu0
    %v6660 = vadd.f32 0.0, %v6659
    %v6661 = vpop.f32.mrb[0].mxu0
    %v6662 = vadd.f32 0.0, %v6661
    %6663 = vdwg.mxu0
    %6664 = vmatprep.subr.mxu0 %v6529
    %6665 = vmatpush1.msra.mxu0 %v6528
    %6666 = vmatprep.subr.mxu0 %v6533
    %6667 = vmatpush1.msra.mxu0 %v6532
    %6668 = vmatprep.subr.mxu0 %v6537
    %6669 = vmatpush1.msra.mxu0 %v6536
    %6670 = vmatprep.subr.mxu0 %v6541
    %6671 = vmatpush1.msra.mxu0 %v6540
    %6672 = vmatprep.subr.mxu0 %v6545
    %6673 = vmatpush1.msra.mxu0 %v6544
    %6674 = vmatprep.subr.mxu0 %v6549
    %6675 = vmatpush1.msra.mxu0 %v6548
    %6676 = vmatprep.subr.mxu0 %v6553
    %6677 = vmatpush1.msra.mxu0 %v6552
    %6678 = vmatprep.subr.mxu0 %v6557
    %6679 = vmatpush1.msra.mxu0 %v6556
    %6680 = vmatprep.subr.mxu0 %v6561
    %6681 = vmatpush1.msra.mxu0 %v6560
    %6682 = vmatprep.subr.mxu0 %v6565
    %6683 = vmatpush1.msra.mxu0 %v6564
    %6684 = vmatprep.subr.mxu0 %v6569
    %6685 = vmatpush1.msra.mxu0 %v6568
    %6686 = vmatprep.subr.mxu0 %v6573
    %6687 = vmatpush1.msra.mxu0 %v6572
    %6688 = vmatprep.subr.mxu0 %v6577
    %6689 = vmatpush1.msra.mxu0 %v6576
    %6690 = vmatprep.subr.mxu0 %v6581
    %6691 = vmatpush1.msra.mxu0 %v6580
    %6692 = vmatprep.subr.mxu0 %v6585
    %6693 = vmatpush1.msra.mxu0 %v6584
    %6694 = vmatprep.subr.mxu0 %v6589
    %6695 = vmatpush1.msra.mxu0 %v6588
    %6696 = vmatprep.subr.mxu0 0.0
    %6697 = vmatpush1.msra.mxu0 0.0
    %6698 = vmatprep.subr.mxu0 0.0
    %6699 = vmatpush1.msra.mxu0 0.0
    %6700 = vmatprep.subr.mxu0 0.0
    %6701 = vmatpush1.msra.mxu0 0.0
    %6702 = vmatprep.subr.mxu0 0.0
    %6703 = vmatpush1.msra.mxu0 0.0
    %6704 = vmatprep.subr.mxu0 0.0
    %6705 = vmatpush1.msra.mxu0 0.0
    %6706 = vmatprep.subr.mxu0 0.0
    %6707 = vmatpush1.msra.mxu0 0.0
    %6708 = vmatprep.subr.mxu0 0.0
    %6709 = vmatpush1.msra.mxu0 0.0
    %6710 = vmatprep.subr.mxu0 0.0
    %6711 = vmatpush1.msra.mxu0 0.0
    %6712 = vmatprep.subr.mxu0 0.0
    %6713 = vmatpush1.msra.mxu0 0.0
    %6714 = vmatprep.subr.mxu0 0.0
    %6715 = vmatpush1.msra.mxu0 0.0
    %6716 = vmatprep.subr.mxu0 0.0
    %6717 = vmatpush1.msra.mxu0 0.0
    %6718 = vmatprep.subr.mxu0 0.0
    %6719 = vmatpush1.msra.mxu0 0.0
    %6720 = vmatprep.subr.mxu0 0.0
    %6721 = vmatpush1.msra.mxu0 0.0
    %6722 = vmatprep.subr.mxu0 0.0
    %6723 = vmatpush1.msra.mxu0 0.0
    %6724 = vmatprep.subr.mxu0 0.0
    %6725 = vmatpush1.msra.mxu0 0.0
    %6726 = vmatprep.subr.mxu0 0.0
    %6727 = vmatpush1.msra.mxu0 0.0
    %6728 = vmatprep.mubr.f32.mxu0 0.0
    %6729 = vmatmul.mubr.f32.gmra.mrb[0].mxu0 %v6591
    %v6730 = vpop.f32.mrb[0].mxu0
    %v6731 = vadd.f32 0.0, %v6730
    %v6732 = vpop.f32.mrb[0].mxu0
    %v6733 = vadd.f32 0.0, %v6732
    %6734 = vdwg.mxu0
    %v6739 = vrot.slane %v6660, 4
    %v6740 = vrot.slane %v6662, 4
    %v6741 = vrot.slane %v6731, 4
    %v6742 = vrot.slane %v6733, 4
    %v6747 = vadd.f32 %v6522, %v6739
    %v6748 = vadd.f32 %v6523, %v6740
    %v6749 = vadd.f32 %v6524, %v6741
    %v6750 = vadd.f32 %v6525, %v6742
    %v6751 = vxor.u32 %v6747, 2147483648
    %v6752 = vxor.u32 %v6748, 2147483648
    %v6753 = vxor.u32 %v6749, 2147483648
    %v6754 = vmul.f32 %v6751, 1.442695
    %v6755 = vpow.pop %v6754
    %v6756 = vmul.f32 %v6752, 1.442695
    %v6757 = vpow.pop %v6756
    %v6758 = vmul.f32 %v6753, 1.442695
    %v6759 = vpow.pop %v6758
    %v6760 = vadd.f32 %v6755, 1.0
    %v6761 = vadd.f32 %v6757, 1.0
    %v6762 = vadd.f32 %v6759, 1.0
    %v6763 = vrcp.pop %v6760
    %v6764 = vmul.f32 1.0, %v6763
    %v6765 = vrcp.pop %v6761
    %v6766 = vmul.f32 1.0, %v6765
    %v6767 = vrcp.pop %v6762
    %v6768 = vmul.f32 1.0, %v6767
    %v6769 = vtanh.pop %v6750
    %v6771 = vrot.slane %v6518, 6
    %v6773 = vmul.f32 %v6766, %v6771
    %v6774 = vmul.f32 %v6764, %v6769
    %v6775 = vadd.f32 %v6773, %v6774
    %v6776 = vtanh.pop %v6775
    %v6777 = vmul.f32 %v6768, %v6776
    %6778 = vst [vmem:[#allocation2 + $0x8] sm:$0x30] %v6777
    %v6779 = vld [vmem:[#allocation3 + $0x20] sm:$0xc0]
    %v6780 = vld [vmem:[#allocation3 + $0x28] sm:$0xc0]
    %v6781 = vld [vmem:[#allocation3 + $0x30] sm:$0xc0]
    %v6782 = vld [vmem:[#allocation3 + $0x38] sm:$0xc0]
    %v6783 = vld [vmem:[#allocation15] sm:$0xff]
    %v6784 = vld [vmem:[#allocation15 + $0x8] sm:$0xff]
    %v6785 = vld [vmem:[#allocation15 + $0x10] sm:$0xff]
    %v6786 = vld [vmem:[#allocation15 + $0x18] sm:$0xff]
    %v6787 = vld [vmem:[#allocation15 + $0x20] sm:$0xff]
    %v6788 = vld [vmem:[#allocation15 + $0x28] sm:$0xff]
    %v6789 = vld [vmem:[#allocation15 + $0x30] sm:$0xff]
    %v6790 = vld [vmem:[#allocation15 + $0x38] sm:$0xff]
    %v6791 = vld [vmem:[#allocation15 + $0x40] sm:$0xff]
    %v6792 = vld [vmem:[#allocation15 + $0x48] sm:$0xff]
    %v6793 = vld [vmem:[#allocation15 + $0x50] sm:$0xff]
    %v6794 = vld [vmem:[#allocation15 + $0x58] sm:$0xff]
    %v6795 = vld [vmem:[#allocation15 + $0x60] sm:$0xff]
    %v6796 = vld [vmem:[#allocation15 + $0x68] sm:$0xff]
    %v6797 = vld [vmem:[#allocation15 + $0x70] sm:$0xff]
    %v6798 = vld [vmem:[#allocation15 + $0x78] sm:$0xff]
    %v6799 = vld [vmem:[#allocation15 + $0x80] sm:$0xff]
    %v6800 = vld [vmem:[#allocation15 + $0x88] sm:$0xff]
    %v6801 = vld [vmem:[#allocation15 + $0x90] sm:$0xff]
    %v6802 = vld [vmem:[#allocation15 + $0x98] sm:$0xff]
    %v6803 = vld [vmem:[#allocation15 + $0xa0] sm:$0xff]
    %v6804 = vld [vmem:[#allocation15 + $0xa8] sm:$0xff]
    %v6805 = vld [vmem:[#allocation15 + $0xb0] sm:$0xff]
    %v6806 = vld [vmem:[#allocation15 + $0xb8] sm:$0xff]
    %v6807 = vld [vmem:[#allocation15 + $0xc0] sm:$0xff]
    %v6808 = vld [vmem:[#allocation15 + $0xc8] sm:$0xff]
    %v6809 = vld [vmem:[#allocation15 + $0xd0] sm:$0xff]
    %v6810 = vld [vmem:[#allocation15 + $0xd8] sm:$0xff]
    %v6811 = vld [vmem:[#allocation15 + $0xe0] sm:$0xff]
    %v6812 = vld [vmem:[#allocation15 + $0xe8] sm:$0xff]
    %v6813 = vld [vmem:[#allocation15 + $0xf0] sm:$0xff]
    %v6814 = vld [vmem:[#allocation15 + $0xf8] sm:$0xff]
    %v6815 = vld [vmem:[#allocation15 + $0x100] sm:$0xff]
    %v6816 = vld [vmem:[#allocation15 + $0x108] sm:$0xff]
    %v6817 = vld [vmem:[#allocation15 + $0x110] sm:$0xff]
    %v6818 = vld [vmem:[#allocation15 + $0x118] sm:$0xff]
    %v6819 = vld [vmem:[#allocation15 + $0x120] sm:$0xff]
    %v6820 = vld [vmem:[#allocation15 + $0x128] sm:$0xff]
    %v6821 = vld [vmem:[#allocation15 + $0x130] sm:$0xff]
    %v6822 = vld [vmem:[#allocation15 + $0x138] sm:$0xff]
    %v6823 = vld [vmem:[#allocation15 + $0x140] sm:$0xff]
    %v6824 = vld [vmem:[#allocation15 + $0x148] sm:$0xff]
    %v6825 = vld [vmem:[#allocation15 + $0x150] sm:$0xff]
    %v6826 = vld [vmem:[#allocation15 + $0x158] sm:$0xff]
    %v6827 = vld [vmem:[#allocation15 + $0x160] sm:$0xff]
    %v6828 = vld [vmem:[#allocation15 + $0x168] sm:$0xff]
    %v6829 = vld [vmem:[#allocation15 + $0x170] sm:$0xff]
    %v6830 = vld [vmem:[#allocation15 + $0x178] sm:$0xff]
    %v6831 = vld [vmem:[#allocation15 + $0x180] sm:$0xff]
    %v6832 = vld [vmem:[#allocation15 + $0x188] sm:$0xff]
    %v6833 = vld [vmem:[#allocation15 + $0x190] sm:$0xff]
    %v6834 = vld [vmem:[#allocation15 + $0x198] sm:$0xff]
    %v6835 = vld [vmem:[#allocation15 + $0x1a0] sm:$0xff]
    %v6836 = vld [vmem:[#allocation15 + $0x1a8] sm:$0xff]
    %v6837 = vld [vmem:[#allocation15 + $0x1b0] sm:$0xff]
    %v6838 = vld [vmem:[#allocation15 + $0x1b8] sm:$0xff]
    %v6839 = vld [vmem:[#allocation15 + $0x1c0] sm:$0xff]
    %v6840 = vld [vmem:[#allocation15 + $0x1c8] sm:$0xff]
    %v6841 = vld [vmem:[#allocation15 + $0x1d0] sm:$0xff]
    %v6842 = vld [vmem:[#allocation15 + $0x1d8] sm:$0xff]
    %v6843 = vld [vmem:[#allocation15 + $0x1e0] sm:$0xff]
    %v6844 = vld [vmem:[#allocation15 + $0x1e8] sm:$0xff]
    %v6845 = vld [vmem:[#allocation15 + $0x1f0] sm:$0xff]
    %v6846 = vld [vmem:[#allocation15 + $0x1f8] sm:$0xff]
    %v6848 = vrot.slane %v6777, 4
    %6850 = vmatprep.subr.mxu0 %v6784
    %6851 = vmatpush1.msra.mxu0 %v6783
    %6852 = vmatprep.subr.mxu0 %v6788
    %6853 = vmatpush1.msra.mxu0 %v6787
    %6854 = vmatprep.subr.mxu0 %v6792
    %6855 = vmatpush1.msra.mxu0 %v6791
    %6856 = vmatprep.subr.mxu0 %v6796
    %6857 = vmatpush1.msra.mxu0 %v6795
    %6858 = vmatprep.subr.mxu0 %v6800
    %6859 = vmatpush1.msra.mxu0 %v6799
    %6860 = vmatprep.subr.mxu0 %v6804
    %6861 = vmatpush1.msra.mxu0 %v6803
    %6862 = vmatprep.subr.mxu0 %v6808
    %6863 = vmatpush1.msra.mxu0 %v6807
    %6864 = vmatprep.subr.mxu0 %v6812
    %6865 = vmatpush1.msra.mxu0 %v6811
    %6866 = vmatprep.subr.mxu0 %v6816
    %6867 = vmatpush1.msra.mxu0 %v6815
    %6868 = vmatprep.subr.mxu0 %v6820
    %6869 = vmatpush1.msra.mxu0 %v6819
    %6870 = vmatprep.subr.mxu0 %v6824
    %6871 = vmatpush1.msra.mxu0 %v6823
    %6872 = vmatprep.subr.mxu0 %v6828
    %6873 = vmatpush1.msra.mxu0 %v6827
    %6874 = vmatprep.subr.mxu0 %v6832
    %6875 = vmatpush1.msra.mxu0 %v6831
    %6876 = vmatprep.subr.mxu0 %v6836
    %6877 = vmatpush1.msra.mxu0 %v6835
    %6878 = vmatprep.subr.mxu0 %v6840
    %6879 = vmatpush1.msra.mxu0 %v6839
    %6880 = vmatprep.subr.mxu0 %v6844
    %6881 = vmatpush1.msra.mxu0 %v6843
    %6882 = vmatprep.subr.mxu0 0.0
    %6883 = vmatpush1.msra.mxu0 0.0
    %6884 = vmatprep.subr.mxu0 0.0
    %6885 = vmatpush1.msra.mxu0 0.0
    %6886 = vmatprep.subr.mxu0 0.0
    %6887 = vmatpush1.msra.mxu0 0.0
    %6888 = vmatprep.subr.mxu0 0.0
    %6889 = vmatpush1.msra.mxu0 0.0
    %6890 = vmatprep.subr.mxu0 0.0
    %6891 = vmatpush1.msra.mxu0 0.0
    %6892 = vmatprep.subr.mxu0 0.0
    %6893 = vmatpush1.msra.mxu0 0.0
    %6894 = vmatprep.subr.mxu0 0.0
    %6895 = vmatpush1.msra.mxu0 0.0
    %6896 = vmatprep.subr.mxu0 0.0
    %6897 = vmatpush1.msra.mxu0 0.0
    %6898 = vmatprep.subr.mxu0 0.0
    %6899 = vmatpush1.msra.mxu0 0.0
    %6900 = vmatprep.subr.mxu0 0.0
    %6901 = vmatpush1.msra.mxu0 0.0
    %6902 = vmatprep.subr.mxu0 0.0
    %6903 = vmatpush1.msra.mxu0 0.0
    %6904 = vmatprep.subr.mxu0 0.0
    %6905 = vmatpush1.msra.mxu0 0.0
    %6906 = vmatprep.subr.mxu0 0.0
    %6907 = vmatpush1.msra.mxu0 0.0
    %6908 = vmatprep.subr.mxu0 0.0
    %6909 = vmatpush1.msra.mxu0 0.0
    %6910 = vmatprep.subr.mxu0 0.0
    %6911 = vmatpush1.msra.mxu0 0.0
    %6912 = vmatprep.subr.mxu0 0.0
    %6913 = vmatpush1.msra.mxu0 0.0
    %6914 = vmatprep.mubr.f32.mxu0 0.0
    %6915 = vmatmul.mubr.f32.gmra.mrb[0].mxu0 %v6848
    %v6916 = vpop.f32.mrb[0].mxu0
    %v6917 = vadd.f32 0.0, %v6916
    %v6918 = vpop.f32.mrb[0].mxu0
    %v6919 = vadd.f32 0.0, %v6918
    %6920 = vdwg.mxu0
    %6921 = vmatprep.subr.mxu0 %v6786
    %6922 = vmatpush1.msra.mxu0 %v6785
    %6923 = vmatprep.subr.mxu0 %v6790
    %6924 = vmatpush1.msra.mxu0 %v6789
    %6925 = vmatprep.subr.mxu0 %v6794
    %6926 = vmatpush1.msra.mxu0 %v6793
    %6927 = vmatprep.subr.mxu0 %v6798
    %6928 = vmatpush1.msra.mxu0 %v6797
    %6929 = vmatprep.subr.mxu0 %v6802
    %6930 = vmatpush1.msra.mxu0 %v6801
    %6931 = vmatprep.subr.mxu0 %v6806
    %6932 = vmatpush1.msra.mxu0 %v6805
    %6933 = vmatprep.subr.mxu0 %v6810
    %6934 = vmatpush1.msra.mxu0 %v6809
    %6935 = vmatprep.subr.mxu0 %v6814
    %6936 = vmatpush1.msra.mxu0 %v6813
    %6937 = vmatprep.subr.mxu0 %v6818
    %6938 = vmatpush1.msra.mxu0 %v6817
    %6939 = vmatprep.subr.mxu0 %v6822
    %6940 = vmatpush1.msra.mxu0 %v6821
    %6941 = vmatprep.subr.mxu0 %v6826
    %6942 = vmatpush1.msra.mxu0 %v6825
    %6943 = vmatprep.subr.mxu0 %v6830
    %6944 = vmatpush1.msra.mxu0 %v6829
    %6945 = vmatprep.subr.mxu0 %v6834
    %6946 = vmatpush1.msra.mxu0 %v6833
    %6947 = vmatprep.subr.mxu0 %v6838
    %6948 = vmatpush1.msra.mxu0 %v6837
    %6949 = vmatprep.subr.mxu0 %v6842
    %6950 = vmatpush1.msra.mxu0 %v6841
    %6951 = vmatprep.subr.mxu0 %v6846
    %6952 = vmatpush1.msra.mxu0 %v6845
    %6953 = vmatprep.subr.mxu0 0.0
    %6954 = vmatpush1.msra.mxu0 0.0
    %6955 = vmatprep.subr.mxu0 0.0
    %6956 = vmatpush1.msra.mxu0 0.0
    %6957 = vmatprep.subr.mxu0 0.0
    %6958 = vmatpush1.msra.mxu0 0.0
    %6959 = vmatprep.subr.mxu0 0.0
    %6960 = vmatpush1.msra.mxu0 0.0
    %6961 = vmatprep.subr.mxu0 0.0
    %6962 = vmatpush1.msra.mxu0 0.0
    %6963 = vmatprep.subr.mxu0 0.0
    %6964 = vmatpush1.msra.mxu0 0.0
    %6965 = vmatprep.subr.mxu0 0.0
    %6966 = vmatpush1.msra.mxu0 0.0
    %6967 = vmatprep.subr.mxu0 0.0
    %6968 = vmatpush1.msra.mxu0 0.0
    %6969 = vmatprep.subr.mxu0 0.0
    %6970 = vmatpush1.msra.mxu0 0.0
    %6971 = vmatprep.subr.mxu0 0.0
    %6972 = vmatpush1.msra.mxu0 0.0
    %6973 = vmatprep.subr.mxu0 0.0
    %6974 = vmatpush1.msra.mxu0 0.0
    %6975 = vmatprep.subr.mxu0 0.0
    %6976 = vmatpush1.msra.mxu0 0.0
    %6977 = vmatprep.subr.mxu0 0.0
    %6978 = vmatpush1.msra.mxu0 0.0
    %6979 = vmatprep.subr.mxu0 0.0
    %6980 = vmatpush1.msra.mxu0 0.0
    %6981 = vmatprep.subr.mxu0 0.0
    %6982 = vmatpush1.msra.mxu0 0.0
    %6983 = vmatprep.subr.mxu0 0.0
    %6984 = vmatpush1.msra.mxu0 0.0
    %6985 = vmatprep.mubr.f32.mxu0 0.0
    %6986 = vmatmul.mubr.f32.gmra.mrb[0].mxu0 %v6848
    %v6987 = vpop.f32.mrb[0].mxu0
    %v6988 = vadd.f32 0.0, %v6987
    %v6989 = vpop.f32.mrb[0].mxu0
    %v6990 = vadd.f32 0.0, %v6989
    %6991 = vdwg.mxu0
    %v6996 = vrot.slane %v6917, 2
    %v6997 = vrot.slane %v6919, 2
    %v6998 = vrot.slane %v6988, 2
    %v6999 = vrot.slane %v6990, 2
    %v7004 = vadd.f32 %v6779, %v6996
    %v7005 = vadd.f32 %v6780, %v6997
    %v7006 = vadd.f32 %v6781, %v6998
    %v7007 = vadd.f32 %v6782, %v6999
    %v7008 = vxor.u32 %v7004, 2147483648
    %v7009 = vxor.u32 %v7005, 2147483648
    %v7010 = vxor.u32 %v7006, 2147483648
    %v7011 = vmul.f32 %v7008, 1.442695
    %v7012 = vpow.pop %v7011
    %v7013 = vmul.f32 %v7009, 1.442695
    %v7014 = vpow.pop %v7013
    %v7015 = vmul.f32 %v7010, 1.442695
    %v7016 = vpow.pop %v7015
    %v7017 = vadd.f32 %v7012, 1.0
    %v7018 = vadd.f32 %v7014, 1.0
    %v7019 = vadd.f32 %v7016, 1.0
    %v7020 = vrcp.pop %v7017
    %v7021 = vmul.f32 1.0, %v7020
    %v7022 = vrcp.pop %v7018
    %v7023 = vmul.f32 1.0, %v7022
    %v7024 = vrcp.pop %v7019
    %v7025 = vmul.f32 1.0, %v7024
    %v7026 = vtanh.pop %v7007
    %v7028 = vrot.slane %v6775, 6
    %v7030 = vmul.f32 %v7023, %v7028
    %v7031 = vmul.f32 %v7021, %v7026
    %v7032 = vadd.f32 %v7030, %v7031
    %v7033 = vtanh.pop %v7032
    %v7034 = vmul.f32 %v7025, %v7033
    %7035 = vst [vmem:[#allocation2 + $0x8] sm:$0xc0] %v7034
    %v7036 = vld [vmem:[#allocation2] sm:$0xff]
    %v7037 = vld [vmem:[#allocation2 + $0x8] sm:$0xff]
    %v7038 = vld [vmem:[#allocation16] sm:$0xff]
    %v7039 = vld [vmem:[#allocation16 + $0x8] sm:$0xff]
    %v7040 = vld [vmem:[#allocation16 + $0x10] sm:$0xff]
    %v7041 = vld [vmem:[#allocation16 + $0x18] sm:$0xff]
    %v7042 = vld [vmem:[#allocation16 + $0x20] sm:$0xff]
    %v7043 = vld [vmem:[#allocation16 + $0x28] sm:$0xff]
    %v7044 = vld [vmem:[#allocation16 + $0x30] sm:$0xff]
    %v7045 = vld [vmem:[#allocation16 + $0x38] sm:$0xff]
    %v7046 = vld [vmem:[#allocation16 + $0x40] sm:$0xff]
    %v7047 = vld [vmem:[#allocation16 + $0x48] sm:$0xff]
    %v7048 = vld [vmem:[#allocation16 + $0x50] sm:$0xff]
    %v7049 = vld [vmem:[#allocation16 + $0x58] sm:$0xff]
    %v7050 = vld [vmem:[#allocation16 + $0x60] sm:$0xff]
    %v7051 = vld [vmem:[#allocation16 + $0x68] sm:$0xff]
    %v7052 = vld [vmem:[#allocation16 + $0x70] sm:$0xff]
    %v7053 = vld [vmem:[#allocation16 + $0x78] sm:$0xff]
    %v7054 = vld [vmem:[#allocation16 + $0x80] sm:$0xff]
    %v7055 = vld [vmem:[#allocation16 + $0x88] sm:$0xff]
    %v7056 = vld [vmem:[#allocation16 + $0x90] sm:$0xff]
    %v7057 = vld [vmem:[#allocation16 + $0x98] sm:$0xff]
    %v7058 = vld [vmem:[#allocation16 + $0xa0] sm:$0xff]
    %v7059 = vld [vmem:[#allocation16 + $0xa8] sm:$0xff]
    %v7060 = vld [vmem:[#allocation16 + $0xb0] sm:$0xff]
    %v7061 = vld [vmem:[#allocation16 + $0xb8] sm:$0xff]
    %v7062 = vld [vmem:[#allocation16 + $0xc0] sm:$0xff]
    %v7063 = vld [vmem:[#allocation16 + $0xc8] sm:$0xff]
    %v7064 = vld [vmem:[#allocation16 + $0xd0] sm:$0xff]
    %v7065 = vld [vmem:[#allocation16 + $0xd8] sm:$0xff]
    %v7066 = vld [vmem:[#allocation16 + $0xe0] sm:$0xff]
    %v7067 = vld [vmem:[#allocation16 + $0xe8] sm:$0xff]
    %v7068 = vld [vmem:[#allocation16 + $0xf0] sm:$0xff]
    %v7069 = vld [vmem:[#allocation16 + $0xf8] sm:$0xff]
    %v7070 = vld [vmem:[#allocation16 + $0x100] sm:$0xff]
    %v7071 = vld [vmem:[#allocation16 + $0x108] sm:$0xff]
    %v7072 = vld [vmem:[#allocation16 + $0x110] sm:$0xff]
    %v7073 = vld [vmem:[#allocation16 + $0x118] sm:$0xff]
    %v7074 = vld [vmem:[#allocation16 + $0x120] sm:$0xff]
    %v7075 = vld [vmem:[#allocation16 + $0x128] sm:$0xff]
    %v7076 = vld [vmem:[#allocation16 + $0x130] sm:$0xff]
    %v7077 = vld [vmem:[#allocation16 + $0x138] sm:$0xff]
    %v7078 = vld [vmem:[#allocation16 + $0x140] sm:$0xff]
    %v7079 = vld [vmem:[#allocation16 + $0x148] sm:$0xff]
    %v7080 = vld [vmem:[#allocation16 + $0x150] sm:$0xff]
    %v7081 = vld [vmem:[#allocation16 + $0x158] sm:$0xff]
    %v7082 = vld [vmem:[#allocation16 + $0x160] sm:$0xff]
    %v7083 = vld [vmem:[#allocation16 + $0x168] sm:$0xff]
    %v7084 = vld [vmem:[#allocation16 + $0x170] sm:$0xff]
    %v7085 = vld [vmem:[#allocation16 + $0x178] sm:$0xff]
    %v7086 = vld [vmem:[#allocation16 + $0x180] sm:$0xff]
    %v7087 = vld [vmem:[#allocation16 + $0x188] sm:$0xff]
    %v7088 = vld [vmem:[#allocation16 + $0x190] sm:$0xff]
    %v7089 = vld [vmem:[#allocation16 + $0x198] sm:$0xff]
    %v7090 = vld [vmem:[#allocation16 + $0x1a0] sm:$0xff]
    %v7091 = vld [vmem:[#allocation16 + $0x1a8] sm:$0xff]
    %v7092 = vld [vmem:[#allocation16 + $0x1b0] sm:$0xff]
    %v7093 = vld [vmem:[#allocation16 + $0x1b8] sm:$0xff]
    %v7094 = vld [vmem:[#allocation16 + $0x1c0] sm:$0xff]
    %v7095 = vld [vmem:[#allocation16 + $0x1c8] sm:$0xff]
    %v7096 = vld [vmem:[#allocation16 + $0x1d0] sm:$0xff]
    %v7097 = vld [vmem:[#allocation16 + $0x1d8] sm:$0xff]
    %v7098 = vld [vmem:[#allocation16 + $0x1e0] sm:$0xff]
    %v7099 = vld [vmem:[#allocation16 + $0x1e8] sm:$0xff]
    %v7100 = vld [vmem:[#allocation16 + $0x1f0] sm:$0xff]
    %v7101 = vld [vmem:[#allocation16 + $0x1f8] sm:$0xff]
    %v7102 = vld [vmem:[%s12] sm:$0xf]
    %v7104 = vlaneseq
    %v7105 = vshrl.u32 %v7104, 7
    %v7106 = vsub.s32 0, %v7105
    %v7107 = vrot.slane %v7102, %v7106
    %v7108 = vlaneseq
    %v7109 = vshrl.u32 %v7108, 7
    %v7110 = vsub.s32 1, %v7109
    %v7111 = vrot.slane %v7102, %v7110
    %v7112 = vlaneseq
    %v7113 = vshrl.u32 %v7112, 7
    %v7114 = vsub.s32 2, %v7113
    %v7115 = vrot.slane %v7102, %v7114
    %v7116 = vlaneseq
    %v7117 = vshrl.u32 %v7116, 7
    %v7118 = vsub.s32 3, %v7117
    %v7119 = vrot.slane %v7102, %v7118
    %7124 = vmatprep.subr.mxu0 %v7039
    %7125 = vmatpush1.msra.mxu0 %v7038
    %7126 = vmatprep.subr.mxu0 %v7043
    %7127 = vmatpush1.msra.mxu0 %v7042
    %7128 = vmatprep.subr.mxu0 %v7047
    %7129 = vmatpush1.msra.mxu0 %v7046
    %7130 = vmatprep.subr.mxu0 %v7051
    %7131 = vmatpush1.msra.mxu0 %v7050
    %7132 = vmatprep.subr.mxu0 %v7055
    %7133 = vmatpush1.msra.mxu0 %v7054
    %7134 = vmatprep.subr.mxu0 %v7059
    %7135 = vmatpush1.msra.mxu0 %v7058
    %7136 = vmatprep.subr.mxu0 %v7063
    %7137 = vmatpush1.msra.mxu0 %v7062
    %7138 = vmatprep.subr.mxu0 %v7067
    %7139 = vmatpush1.msra.mxu0 %v7066
    %7140 = vmatprep.subr.mxu0 %v7071
    %7141 = vmatpush1.msra.mxu0 %v7070
    %7142 = vmatprep.subr.mxu0 %v7075
    %7143 = vmatpush1.msra.mxu0 %v7074
    %7144 = vmatprep.subr.mxu0 %v7079
    %7145 = vmatpush1.msra.mxu0 %v7078
    %7146 = vmatprep.subr.mxu0 %v7083
    %7147 = vmatpush1.msra.mxu0 %v7082
    %7148 = vmatprep.subr.mxu0 %v7087
    %7149 = vmatpush1.msra.mxu0 %v7086
    %7150 = vmatprep.subr.mxu0 %v7091
    %7151 = vmatpush1.msra.mxu0 %v7090
    %7152 = vmatprep.subr.mxu0 %v7095
    %7153 = vmatpush1.msra.mxu0 %v7094
    %7154 = vmatprep.subr.mxu0 %v7099
    %7155 = vmatpush1.msra.mxu0 %v7098
    %7156 = vmatprep.subr.mxu0 0.0
    %7157 = vmatpush1.msra.mxu0 0.0
    %7158 = vmatprep.subr.mxu0 0.0
    %7159 = vmatpush1.msra.mxu0 0.0
    %7160 = vmatprep.subr.mxu0 0.0
    %7161 = vmatpush1.msra.mxu0 0.0
    %7162 = vmatprep.subr.mxu0 0.0
    %7163 = vmatpush1.msra.mxu0 0.0
    %7164 = vmatprep.subr.mxu0 0.0
    %7165 = vmatpush1.msra.mxu0 0.0
    %7166 = vmatprep.subr.mxu0 0.0
    %7167 = vmatpush1.msra.mxu0 0.0
    %7168 = vmatprep.subr.mxu0 0.0
    %7169 = vmatpush1.msra.mxu0 0.0
    %7170 = vmatprep.subr.mxu0 0.0
    %7171 = vmatpush1.msra.mxu0 0.0
    %7172 = vmatprep.subr.mxu0 0.0
    %7173 = vmatpush1.msra.mxu0 0.0
    %7174 = vmatprep.subr.mxu0 0.0
    %7175 = vmatpush1.msra.mxu0 0.0
    %7176 = vmatprep.subr.mxu0 0.0
    %7177 = vmatpush1.msra.mxu0 0.0
    %7178 = vmatprep.subr.mxu0 0.0
    %7179 = vmatpush1.msra.mxu0 0.0
    %7180 = vmatprep.subr.mxu0 0.0
    %7181 = vmatpush1.msra.mxu0 0.0
    %7182 = vmatprep.subr.mxu0 0.0
    %7183 = vmatpush1.msra.mxu0 0.0
    %7184 = vmatprep.subr.mxu0 0.0
    %7185 = vmatpush1.msra.mxu0 0.0
    %7186 = vmatprep.subr.mxu0 0.0
    %7187 = vmatpush1.msra.mxu0 0.0
    %7188 = vmatprep.mubr.f32.mxu0 0.0
    %7189 = vmatmul.mubr.f32.gmra.mrb[0].mxu0 %v7036
    %v7190 = vpop.f32.mrb[0].mxu0
    %v7191 = vadd.f32 %v7107, %v7190
    %v7192 = vpop.f32.mrb[0].mxu0
    %v7193 = vadd.f32 %v7111, %v7192
    %7194 = vmatprep.mubr.f32.mxu0 0.0
    %7195 = vmatmul.mubr.f32.gmra.mrb[0].mxu0 %v7037
    %v7196 = vpop.f32.mrb[0].mxu0
    %v7197 = vadd.f32 %v7107, %v7196
    %v7198 = vpop.f32.mrb[0].mxu0
    %v7199 = vadd.f32 %v7111, %v7198
    %7200 = vdwg.mxu0
    %7201 = vmatprep.subr.mxu0 %v7041
    %7202 = vmatpush1.msra.mxu0 %v7040
    %7203 = vmatprep.subr.mxu0 %v7045
    %7204 = vmatpush1.msra.mxu0 %v7044
    %7205 = vmatprep.subr.mxu0 %v7049
    %7206 = vmatpush1.msra.mxu0 %v7048
    %7207 = vmatprep.subr.mxu0 %v7053
    %7208 = vmatpush1.msra.mxu0 %v7052
    %7209 = vmatprep.subr.mxu0 %v7057
    %7210 = vmatpush1.msra.mxu0 %v7056
    %7211 = vmatprep.subr.mxu0 %v7061
    %7212 = vmatpush1.msra.mxu0 %v7060
    %7213 = vmatprep.subr.mxu0 %v7065
    %7214 = vmatpush1.msra.mxu0 %v7064
    %7215 = vmatprep.subr.mxu0 %v7069
    %7216 = vmatpush1.msra.mxu0 %v7068
    %7217 = vmatprep.subr.mxu0 %v7073
    %7218 = vmatpush1.msra.mxu0 %v7072
    %7219 = vmatprep.subr.mxu0 %v7077
    %7220 = vmatpush1.msra.mxu0 %v7076
    %7221 = vmatprep.subr.mxu0 %v7081
    %7222 = vmatpush1.msra.mxu0 %v7080
    %7223 = vmatprep.subr.mxu0 %v7085
    %7224 = vmatpush1.msra.mxu0 %v7084
    %7225 = vmatprep.subr.mxu0 %v7089
    %7226 = vmatpush1.msra.mxu0 %v7088
    %7227 = vmatprep.subr.mxu0 %v7093
    %7228 = vmatpush1.msra.mxu0 %v7092
    %7229 = vmatprep.subr.mxu0 %v7097
    %7230 = vmatpush1.msra.mxu0 %v7096
    %7231 = vmatprep.subr.mxu0 %v7101
    %7232 = vmatpush1.msra.mxu0 %v7100
    %7233 = vmatprep.subr.mxu0 0.0
    %7234 = vmatpush1.msra.mxu0 0.0
    %7235 = vmatprep.subr.mxu0 0.0
    %7236 = vmatpush1.msra.mxu0 0.0
    %7237 = vmatprep.subr.mxu0 0.0
    %7238 = vmatpush1.msra.mxu0 0.0
    %7239 = vmatprep.subr.mxu0 0.0
    %7240 = vmatpush1.msra.mxu0 0.0
    %7241 = vmatprep.subr.mxu0 0.0
    %7242 = vmatpush1.msra.mxu0 0.0
    %7243 = vmatprep.subr.mxu0 0.0
    %7244 = vmatpush1.msra.mxu0 0.0
    %7245 = vmatprep.subr.mxu0 0.0
    %7246 = vmatpush1.msra.mxu0 0.0
    %7247 = vmatprep.subr.mxu0 0.0
    %7248 = vmatpush1.msra.mxu0 0.0
    %7249 = vmatprep.subr.mxu0 0.0
    %7250 = vmatpush1.msra.mxu0 0.0
    %7251 = vmatprep.subr.mxu0 0.0
    %7252 = vmatpush1.msra.mxu0 0.0
    %7253 = vmatprep.subr.mxu0 0.0
    %7254 = vmatpush1.msra.mxu0 0.0
    %7255 = vmatprep.subr.mxu0 0.0
    %7256 = vmatpush1.msra.mxu0 0.0
    %7257 = vmatprep.subr.mxu0 0.0
    %7258 = vmatpush1.msra.mxu0 0.0
    %7259 = vmatprep.subr.mxu0 0.0
    %7260 = vmatpush1.msra.mxu0 0.0
    %7261 = vmatprep.subr.mxu0 0.0
    %7262 = vmatpush1.msra.mxu0 0.0
    %7263 = vmatprep.subr.mxu0 0.0
    %7264 = vmatpush1.msra.mxu0 0.0
    %7265 = vmatprep.mubr.f32.mxu0 0.0
    %7266 = vmatmul.mubr.f32.gmra.mrb[0].mxu0 %v7036
    %v7267 = vpop.f32.mrb[0].mxu0
    %v7268 = vadd.f32 %v7115, %v7267
    %v7269 = vpop.f32.mrb[0].mxu0
    %v7270 = vadd.f32 %v7119, %v7269
    %7271 = vmatprep.mubr.f32.mxu0 0.0
    %7272 = vmatmul.mubr.f32.gmra.mrb[0].mxu0 %v7037
    %v7273 = vpop.f32.mrb[0].mxu0
    %v7274 = vadd.f32 %v7115, %v7273
    %v7275 = vpop.f32.mrb[0].mxu0
    %v7276 = vadd.f32 %v7119, %v7275
    %7277 = vdwg.mxu0
    %7278 = vst [vmem:[#allocation3] sm:$0xff] %v7191
    %7279 = vst [vmem:[#allocation3 + $0x8] sm:$0xff] %v7193
    %7280 = vst [vmem:[#allocation3 + $0x10] sm:$0xff] %v7268
    %7281 = vst [vmem:[#allocation3 + $0x18] sm:$0xff] %v7270
    %7282 = vst [vmem:[#allocation3 + $0x20] sm:$0xff] %v7197
    %7283 = vst [vmem:[#allocation3 + $0x28] sm:$0xff] %v7199
    %7284 = vst [vmem:[#allocation3 + $0x30] sm:$0xff] %v7274
    %7285 = vst [vmem:[#allocation3 + $0x38] sm:$0xff] %v7276
    %v7286 = vld [vmem:[#allocation3] sm:$0x3]
    %v7287 = vld [vmem:[#allocation3 + $0x8] sm:$0x3]
    %v7288 = vld [vmem:[#allocation3 + $0x10] sm:$0x3]
    %v7289 = vld [vmem:[#allocation3 + $0x18] sm:$0x3]
    %v7290 = vld [vmem:[#allocation18] sm:$0xff]
    %v7291 = vld [vmem:[#allocation18 + $0x8] sm:$0xff]
    %v7292 = vld [vmem:[#allocation18 + $0x10] sm:$0xff]
    %v7293 = vld [vmem:[#allocation18 + $0x18] sm:$0xff]
    %v7294 = vld [vmem:[#allocation18 + $0x20] sm:$0xff]
    %v7295 = vld [vmem:[#allocation18 + $0x28] sm:$0xff]
    %v7296 = vld [vmem:[#allocation18 + $0x30] sm:$0xff]
    %v7297 = vld [vmem:[#allocation18 + $0x38] sm:$0xff]
    %v7298 = vld [vmem:[#allocation18 + $0x40] sm:$0xff]
    %v7299 = vld [vmem:[#allocation18 + $0x48] sm:$0xff]
    %v7300 = vld [vmem:[#allocation18 + $0x50] sm:$0xff]
    %v7301 = vld [vmem:[#allocation18 + $0x58] sm:$0xff]
    %v7302 = vld [vmem:[#allocation18 + $0x60] sm:$0xff]
    %v7303 = vld [vmem:[#allocation18 + $0x68] sm:$0xff]
    %v7304 = vld [vmem:[#allocation18 + $0x70] sm:$0xff]
    %v7305 = vld [vmem:[#allocation18 + $0x78] sm:$0xff]
    %v7306 = vld [vmem:[#allocation18 + $0x80] sm:$0xff]
    %v7307 = vld [vmem:[#allocation18 + $0x88] sm:$0xff]
    %v7308 = vld [vmem:[#allocation18 + $0x90] sm:$0xff]
    %v7309 = vld [vmem:[#allocation18 + $0x98] sm:$0xff]
    %v7310 = vld [vmem:[#allocation18 + $0xa0] sm:$0xff]
    %v7311 = vld [vmem:[#allocation18 + $0xa8] sm:$0xff]
    %v7312 = vld [vmem:[#allocation18 + $0xb0] sm:$0xff]
    %v7313 = vld [vmem:[#allocation18 + $0xb8] sm:$0xff]
    %v7314 = vld [vmem:[#allocation18 + $0xc0] sm:$0xff]
    %v7315 = vld [vmem:[#allocation18 + $0xc8] sm:$0xff]
    %v7316 = vld [vmem:[#allocation18 + $0xd0] sm:$0xff]
    %v7317 = vld [vmem:[#allocation18 + $0xd8] sm:$0xff]
    %v7318 = vld [vmem:[#allocation18 + $0xe0] sm:$0xff]
    %v7319 = vld [vmem:[#allocation18 + $0xe8] sm:$0xff]
    %v7320 = vld [vmem:[#allocation18 + $0xf0] sm:$0xff]
    %v7321 = vld [vmem:[#allocation18 + $0xf8] sm:$0xff]
    %v7322 = vld [vmem:[#allocation18 + $0x100] sm:$0xff]
    %v7323 = vld [vmem:[#allocation18 + $0x108] sm:$0xff]
    %v7324 = vld [vmem:[#allocation18 + $0x110] sm:$0xff]
    %v7325 = vld [vmem:[#allocation18 + $0x118] sm:$0xff]
    %v7326 = vld [vmem:[#allocation18 + $0x120] sm:$0xff]
    %v7327 = vld [vmem:[#allocation18 + $0x128] sm:$0xff]
    %v7328 = vld [vmem:[#allocation18 + $0x130] sm:$0xff]
    %v7329 = vld [vmem:[#allocation18 + $0x138] sm:$0xff]
    %v7330 = vld [vmem:[#allocation18 + $0x140] sm:$0xff]
    %v7331 = vld [vmem:[#allocation18 + $0x148] sm:$0xff]
    %v7332 = vld [vmem:[#allocation18 + $0x150] sm:$0xff]
    %v7333 = vld [vmem:[#allocation18 + $0x158] sm:$0xff]
    %v7334 = vld [vmem:[#allocation18 + $0x160] sm:$0xff]
    %v7335 = vld [vmem:[#allocation18 + $0x168] sm:$0xff]
    %v7336 = vld [vmem:[#allocation18 + $0x170] sm:$0xff]
    %v7337 = vld [vmem:[#allocation18 + $0x178] sm:$0xff]
    %v7338 = vld [vmem:[#allocation18 + $0x180] sm:$0xff]
    %v7339 = vld [vmem:[#allocation18 + $0x188] sm:$0xff]
    %v7340 = vld [vmem:[#allocation18 + $0x190] sm:$0xff]
    %v7341 = vld [vmem:[#allocation18 + $0x198] sm:$0xff]
    %v7342 = vld [vmem:[#allocation18 + $0x1a0] sm:$0xff]
    %v7343 = vld [vmem:[#allocation18 + $0x1a8] sm:$0xff]
    %v7344 = vld [vmem:[#allocation18 + $0x1b0] sm:$0xff]
    %v7345 = vld [vmem:[#allocation18 + $0x1b8] sm:$0xff]
    %v7346 = vld [vmem:[#allocation18 + $0x1c0] sm:$0xff]
    %v7347 = vld [vmem:[#allocation18 + $0x1c8] sm:$0xff]
    %v7348 = vld [vmem:[#allocation18 + $0x1d0] sm:$0xff]
    %v7349 = vld [vmem:[#allocation18 + $0x1d8] sm:$0xff]
    %v7350 = vld [vmem:[#allocation18 + $0x1e0] sm:$0xff]
    %v7351 = vld [vmem:[#allocation18 + $0x1e8] sm:$0xff]
    %v7352 = vld [vmem:[#allocation18 + $0x1f0] sm:$0xff]
    %v7353 = vld [vmem:[#allocation18 + $0x1f8] sm:$0xff]
    %7354 = vmatprep.subr.mxu0 %v7291
    %7355 = vmatpush1.msra.mxu0 %v7290
    %7356 = vmatprep.subr.mxu0 %v7295
    %7357 = vmatpush1.msra.mxu0 %v7294
    %7358 = vmatprep.subr.mxu0 %v7299
    %7359 = vmatpush1.msra.mxu0 %v7298
    %7360 = vmatprep.subr.mxu0 %v7303
    %7361 = vmatpush1.msra.mxu0 %v7302
    %7362 = vmatprep.subr.mxu0 %v7307
    %7363 = vmatpush1.msra.mxu0 %v7306
    %7364 = vmatprep.subr.mxu0 %v7311
    %7365 = vmatpush1.msra.mxu0 %v7310
    %7366 = vmatprep.subr.mxu0 %v7315
    %7367 = vmatpush1.msra.mxu0 %v7314
    %7368 = vmatprep.subr.mxu0 %v7319
    %7369 = vmatpush1.msra.mxu0 %v7318
    %7370 = vmatprep.subr.mxu0 %v7323
    %7371 = vmatpush1.msra.mxu0 %v7322
    %7372 = vmatprep.subr.mxu0 %v7327
    %7373 = vmatpush1.msra.mxu0 %v7326
    %7374 = vmatprep.subr.mxu0 %v7331
    %7375 = vmatpush1.msra.mxu0 %v7330
    %7376 = vmatprep.subr.mxu0 %v7335
    %7377 = vmatpush1.msra.mxu0 %v7334
    %7378 = vmatprep.subr.mxu0 %v7339
    %7379 = vmatpush1.msra.mxu0 %v7338
    %7380 = vmatprep.subr.mxu0 %v7343
    %7381 = vmatpush1.msra.mxu0 %v7342
    %7382 = vmatprep.subr.mxu0 %v7347
    %7383 = vmatpush1.msra.mxu0 %v7346
    %7384 = vmatprep.subr.mxu0 %v7351
    %7385 = vmatpush1.msra.mxu0 %v7350
    %7386 = vmatprep.subr.mxu0 0.0
    %7387 = vmatpush1.msra.mxu0 0.0
    %7388 = vmatprep.subr.mxu0 0.0
    %7389 = vmatpush1.msra.mxu0 0.0
    %7390 = vmatprep.subr.mxu0 0.0
    %7391 = vmatpush1.msra.mxu0 0.0
    %7392 = vmatprep.subr.mxu0 0.0
    %7393 = vmatpush1.msra.mxu0 0.0
    %7394 = vmatprep.subr.mxu0 0.0
    %7395 = vmatpush1.msra.mxu0 0.0
    %7396 = vmatprep.subr.mxu0 0.0
    %7397 = vmatpush1.msra.mxu0 0.0
    %7398 = vmatprep.subr.mxu0 0.0
    %7399 = vmatpush1.msra.mxu0 0.0
    %7400 = vmatprep.subr.mxu0 0.0
    %7401 = vmatpush1.msra.mxu0 0.0
    %7402 = vmatprep.subr.mxu0 0.0
    %7403 = vmatpush1.msra.mxu0 0.0
    %7404 = vmatprep.subr.mxu0 0.0
    %7405 = vmatpush1.msra.mxu0 0.0
    %7406 = vmatprep.subr.mxu0 0.0
    %7407 = vmatpush1.msra.mxu0 0.0
    %7408 = vmatprep.subr.mxu0 0.0
    %7409 = vmatpush1.msra.mxu0 0.0
    %7410 = vmatprep.subr.mxu0 0.0
    %7411 = vmatpush1.msra.mxu0 0.0
    %7412 = vmatprep.subr.mxu0 0.0
    %7413 = vmatpush1.msra.mxu0 0.0
    %7414 = vmatprep.subr.mxu0 0.0
    %7415 = vmatpush1.msra.mxu0 0.0
    %7416 = vmatprep.subr.mxu0 0.0
    %7417 = vmatpush1.msra.mxu0 0.0
    %7418 = vmatprep.mubr.f32.mxu0 0.0
    %7419 = vmatmul.mubr.f32.gmra.mrb[0].mxu0 0.0
    %v7420 = vpop.f32.mrb[0].mxu0
    %v7421 = vadd.f32 0.0, %v7420
    %v7422 = vpop.f32.mrb[0].mxu0
    %v7423 = vadd.f32 0.0, %v7422
    %7424 = vdwg.mxu0
    %7425 = vmatprep.subr.mxu0 %v7293
    %7426 = vmatpush1.msra.mxu0 %v7292
    %7427 = vmatprep.subr.mxu0 %v7297
    %7428 = vmatpush1.msra.mxu0 %v7296
    %7429 = vmatprep.subr.mxu0 %v7301
    %7430 = vmatpush1.msra.mxu0 %v7300
    %7431 = vmatprep.subr.mxu0 %v7305
    %7432 = vmatpush1.msra.mxu0 %v7304
    %7433 = vmatprep.subr.mxu0 %v7309
    %7434 = vmatpush1.msra.mxu0 %v7308
    %7435 = vmatprep.subr.mxu0 %v7313
    %7436 = vmatpush1.msra.mxu0 %v7312
    %7437 = vmatprep.subr.mxu0 %v7317
    %7438 = vmatpush1.msra.mxu0 %v7316
    %7439 = vmatprep.subr.mxu0 %v7321
    %7440 = vmatpush1.msra.mxu0 %v7320
    %7441 = vmatprep.subr.mxu0 %v7325
    %7442 = vmatpush1.msra.mxu0 %v7324
    %7443 = vmatprep.subr.mxu0 %v7329
    %7444 = vmatpush1.msra.mxu0 %v7328
    %7445 = vmatprep.subr.mxu0 %v7333
    %7446 = vmatpush1.msra.mxu0 %v7332
    %7447 = vmatprep.subr.mxu0 %v7337
    %7448 = vmatpush1.msra.mxu0 %v7336
    %7449 = vmatprep.subr.mxu0 %v7341
    %7450 = vmatpush1.msra.mxu0 %v7340
    %7451 = vmatprep.subr.mxu0 %v7345
    %7452 = vmatpush1.msra.mxu0 %v7344
    %7453 = vmatprep.subr.mxu0 %v7349
    %7454 = vmatpush1.msra.mxu0 %v7348
    %7455 = vmatprep.subr.mxu0 %v7353
    %7456 = vmatpush1.msra.mxu0 %v7352
    %7457 = vmatprep.subr.mxu0 0.0
    %7458 = vmatpush1.msra.mxu0 0.0
    %7459 = vmatprep.subr.mxu0 0.0
    %7460 = vmatpush1.msra.mxu0 0.0
    %7461 = vmatprep.subr.mxu0 0.0
    %7462 = vmatpush1.msra.mxu0 0.0
    %7463 = vmatprep.subr.mxu0 0.0
    %7464 = vmatpush1.msra.mxu0 0.0
    %7465 = vmatprep.subr.mxu0 0.0
    %7466 = vmatpush1.msra.mxu0 0.0
    %7467 = vmatprep.subr.mxu0 0.0
    %7468 = vmatpush1.msra.mxu0 0.0
    %7469 = vmatprep.subr.mxu0 0.0
    %7470 = vmatpush1.msra.mxu0 0.0
    %7471 = vmatprep.subr.mxu0 0.0
    %7472 = vmatpush1.msra.mxu0 0.0
    %7473 = vmatprep.subr.mxu0 0.0
    %7474 = vmatpush1.msra.mxu0 0.0
    %7475 = vmatprep.subr.mxu0 0.0
    %7476 = vmatpush1.msra.mxu0 0.0
    %7477 = vmatprep.subr.mxu0 0.0
    %7478 = vmatpush1.msra.mxu0 0.0
    %7479 = vmatprep.subr.mxu0 0.0
    %7480 = vmatpush1.msra.mxu0 0.0
    %7481 = vmatprep.subr.mxu0 0.0
    %7482 = vmatpush1.msra.mxu0 0.0
    %7483 = vmatprep.subr.mxu0 0.0
    %7484 = vmatpush1.msra.mxu0 0.0
    %7485 = vmatprep.subr.mxu0 0.0
    %7486 = vmatpush1.msra.mxu0 0.0
    %7487 = vmatprep.subr.mxu0 0.0
    %7488 = vmatpush1.msra.mxu0 0.0
    %7489 = vmatprep.mubr.f32.mxu0 0.0
    %7490 = vmatmul.mubr.f32.gmra.mrb[0].mxu0 0.0
    %v7491 = vpop.f32.mrb[0].mxu0
    %v7492 = vadd.f32 0.0, %v7491
    %v7493 = vpop.f32.mrb[0].mxu0
    %v7494 = vadd.f32 0.0, %v7493
    %7495 = vdwg.mxu0
    %v7496 = vadd.f32 %v7286, %v7421
    %v7497 = vadd.f32 %v7287, %v7423
    %v7498 = vadd.f32 %v7288, %v7492
    %v7499 = vadd.f32 %v7289, %v7494
    %v7500 = vxor.u32 %v7496, 2147483648
    %v7501 = vxor.u32 %v7497, 2147483648
    %v7502 = vxor.u32 %v7498, 2147483648
    %v7503 = vmul.f32 %v7500, 1.442695
    %v7504 = vpow.pop %v7503
    %v7505 = vmul.f32 %v7501, 1.442695
    %v7506 = vpow.pop %v7505
    %v7507 = vmul.f32 %v7502, 1.442695
    %v7508 = vpow.pop %v7507
    %v7509 = vadd.f32 %v7504, 1.0
    %v7510 = vadd.f32 %v7506, 1.0
    %v7511 = vadd.f32 %v7508, 1.0
    %v7512 = vrcp.pop %v7509
    %v7513 = vmul.f32 1.0, %v7512
    %v7514 = vrcp.pop %v7510
    %v7515 = vmul.f32 1.0, %v7514
    %v7516 = vrcp.pop %v7511
    %v7517 = vmul.f32 1.0, %v7516
    %v7518 = vtanh.pop %v7499
    %v7519 = vmul.f32 %v7515, 0.0
    %v7520 = vmul.f32 %v7513, %v7518
    %v7521 = vadd.f32 %v7519, %v7520
    %v7522 = vtanh.pop %v7521
    %v7523 = vmul.f32 %v7517, %v7522
    %v7524 = vld [vmem:[#allocation3] sm:$0xc]
    %v7525 = vld [vmem:[#allocation3 + $0x8] sm:$0xc]
    %v7526 = vld [vmem:[#allocation3 + $0x10] sm:$0xc]
    %v7527 = vld [vmem:[#allocation3 + $0x18] sm:$0xc]
    %7528 = vmatprep.subr.mxu0 %v7291
    %7529 = vmatpush1.msra.mxu0 %v7290
    %7530 = vmatprep.subr.mxu0 %v7295
    %7531 = vmatpush1.msra.mxu0 %v7294
    %7532 = vmatprep.subr.mxu0 %v7299
    %7533 = vmatpush1.msra.mxu0 %v7298
    %7534 = vmatprep.subr.mxu0 %v7303
    %7535 = vmatpush1.msra.mxu0 %v7302
    %7536 = vmatprep.subr.mxu0 %v7307
    %7537 = vmatpush1.msra.mxu0 %v7306
    %7538 = vmatprep.subr.mxu0 %v7311
    %7539 = vmatpush1.msra.mxu0 %v7310
    %7540 = vmatprep.subr.mxu0 %v7315
    %7541 = vmatpush1.msra.mxu0 %v7314
    %7542 = vmatprep.subr.mxu0 %v7319
    %7543 = vmatpush1.msra.mxu0 %v7318
    %7544 = vmatprep.subr.mxu0 %v7323
    %7545 = vmatpush1.msra.mxu0 %v7322
    %7546 = vmatprep.subr.mxu0 %v7327
    %7547 = vmatpush1.msra.mxu0 %v7326
    %7548 = vmatprep.subr.mxu0 %v7331
    %7549 = vmatpush1.msra.mxu0 %v7330
    %7550 = vmatprep.subr.mxu0 %v7335
    %7551 = vmatpush1.msra.mxu0 %v7334
    %7552 = vmatprep.subr.mxu0 %v7339
    %7553 = vmatpush1.msra.mxu0 %v7338
    %7554 = vmatprep.subr.mxu0 %v7343
    %7555 = vmatpush1.msra.mxu0 %v7342
    %7556 = vmatprep.subr.mxu0 %v7347
    %7557 = vmatpush1.msra.mxu0 %v7346
    %7558 = vmatprep.subr.mxu0 %v7351
    %7559 = vmatpush1.msra.mxu0 %v7350
    %7560 = vmatprep.subr.mxu0 0.0
    %7561 = vmatpush1.msra.mxu0 0.0
    %7562 = vmatprep.subr.mxu0 0.0
    %7563 = vmatpush1.msra.mxu0 0.0
    %7564 = vmatprep.subr.mxu0 0.0
    %7565 = vmatpush1.msra.mxu0 0.0
    %7566 = vmatprep.subr.mxu0 0.0
    %7567 = vmatpush1.msra.mxu0 0.0
    %7568 = vmatprep.subr.mxu0 0.0
    %7569 = vmatpush1.msra.mxu0 0.0
    %7570 = vmatprep.subr.mxu0 0.0
    %7571 = vmatpush1.msra.mxu0 0.0
    %7572 = vmatprep.subr.mxu0 0.0
    %7573 = vmatpush1.msra.mxu0 0.0
    %7574 = vmatprep.subr.mxu0 0.0
    %7575 = vmatpush1.msra.mxu0 0.0
    %7576 = vmatprep.subr.mxu0 0.0
    %7577 = vmatpush1.msra.mxu0 0.0
    %7578 = vmatprep.subr.mxu0 0.0
    %7579 = vmatpush1.msra.mxu0 0.0
    %7580 = vmatprep.subr.mxu0 0.0
    %7581 = vmatpush1.msra.mxu0 0.0
    %7582 = vmatprep.subr.mxu0 0.0
    %7583 = vmatpush1.msra.mxu0 0.0
    %7584 = vmatprep.subr.mxu0 0.0
    %7585 = vmatpush1.msra.mxu0 0.0
    %7586 = vmatprep.subr.mxu0 0.0
    %7587 = vmatpush1.msra.mxu0 0.0
    %7588 = vmatprep.subr.mxu0 0.0
    %7589 = vmatpush1.msra.mxu0 0.0
    %7590 = vmatprep.subr.mxu0 0.0
    %7591 = vmatpush1.msra.mxu0 0.0
    %7592 = vmatprep.mubr.f32.mxu0 0.0
    %7593 = vmatmul.mubr.f32.gmra.mrb[0].mxu0 %v7523
    %v7594 = vpop.f32.mrb[0].mxu0
    %v7595 = vadd.f32 0.0, %v7594
    %v7596 = vpop.f32.mrb[0].mxu0
    %v7597 = vadd.f32 0.0, %v7596
    %7598 = vdwg.mxu0
    %7599 = vmatprep.subr.mxu0 %v7293
    %7600 = vmatpush1.msra.mxu0 %v7292
    %7601 = vmatprep.subr.mxu0 %v7297
    %7602 = vmatpush1.msra.mxu0 %v7296
    %7603 = vmatprep.subr.mxu0 %v7301
    %7604 = vmatpush1.msra.mxu0 %v7300
    %7605 = vmatprep.subr.mxu0 %v7305
    %7606 = vmatpush1.msra.mxu0 %v7304
    %7607 = vmatprep.subr.mxu0 %v7309
    %7608 = vmatpush1.msra.mxu0 %v7308
    %7609 = vmatprep.subr.mxu0 %v7313
    %7610 = vmatpush1.msra.mxu0 %v7312
    %7611 = vmatprep.subr.mxu0 %v7317
    %7612 = vmatpush1.msra.mxu0 %v7316
    %7613 = vmatprep.subr.mxu0 %v7321
    %7614 = vmatpush1.msra.mxu0 %v7320
    %7615 = vmatprep.subr.mxu0 %v7325
    %7616 = vmatpush1.msra.mxu0 %v7324
    %7617 = vmatprep.subr.mxu0 %v7329
    %7618 = vmatpush1.msra.mxu0 %v7328
    %7619 = vmatprep.subr.mxu0 %v7333
    %7620 = vmatpush1.msra.mxu0 %v7332
    %7621 = vmatprep.subr.mxu0 %v7337
    %7622 = vmatpush1.msra.mxu0 %v7336
    %7623 = vmatprep.subr.mxu0 %v7341
    %7624 = vmatpush1.msra.mxu0 %v7340
    %7625 = vmatprep.subr.mxu0 %v7345
    %7626 = vmatpush1.msra.mxu0 %v7344
    %7627 = vmatprep.subr.mxu0 %v7349
    %7628 = vmatpush1.msra.mxu0 %v7348
    %7629 = vmatprep.subr.mxu0 %v7353
    %7630 = vmatpush1.msra.mxu0 %v7352
    %7631 = vmatprep.subr.mxu0 0.0
    %7632 = vmatpush1.msra.mxu0 0.0
    %7633 = vmatprep.subr.mxu0 0.0
    %7634 = vmatpush1.msra.mxu0 0.0
    %7635 = vmatprep.subr.mxu0 0.0
    %7636 = vmatpush1.msra.mxu0 0.0
    %7637 = vmatprep.subr.mxu0 0.0
    %7638 = vmatpush1.msra.mxu0 0.0
    %7639 = vmatprep.subr.mxu0 0.0
    %7640 = vmatpush1.msra.mxu0 0.0
    %7641 = vmatprep.subr.mxu0 0.0
    %7642 = vmatpush1.msra.mxu0 0.0
    %7643 = vmatprep.subr.mxu0 0.0
    %7644 = vmatpush1.msra.mxu0 0.0
    %7645 = vmatprep.subr.mxu0 0.0
    %7646 = vmatpush1.msra.mxu0 0.0
    %7647 = vmatprep.subr.mxu0 0.0
    %7648 = vmatpush1.msra.mxu0 0.0
    %7649 = vmatprep.subr.mxu0 0.0
    %7650 = vmatpush1.msra.mxu0 0.0
    %7651 = vmatprep.subr.mxu0 0.0
    %7652 = vmatpush1.msra.mxu0 0.0
    %7653 = vmatprep.subr.mxu0 0.0
    %7654 = vmatpush1.msra.mxu0 0.0
    %7655 = vmatprep.subr.mxu0 0.0
    %7656 = vmatpush1.msra.mxu0 0.0
    %7657 = vmatprep.subr.mxu0 0.0
    %7658 = vmatpush1.msra.mxu0 0.0
    %7659 = vmatprep.subr.mxu0 0.0
    %7660 = vmatpush1.msra.mxu0 0.0
    %7661 = vmatprep.subr.mxu0 0.0
    %7662 = vmatpush1.msra.mxu0 0.0
    %7663 = vmatprep.mubr.f32.mxu0 0.0
    %7664 = vmatmul.mubr.f32.gmra.mrb[0].mxu0 %v7523
    %v7665 = vpop.f32.mrb[0].mxu0
    %v7666 = vadd.f32 0.0, %v7665
    %v7667 = vpop.f32.mrb[0].mxu0
    %v7668 = vadd.f32 0.0, %v7667
    %7669 = vdwg.mxu0
    %v7674 = vrot.slane %v7595, 6
    %v7675 = vrot.slane %v7597, 6
    %v7676 = vrot.slane %v7666, 6
    %v7677 = vrot.slane %v7668, 6
    %v7682 = vadd.f32 %v7524, %v7674
    %v7683 = vadd.f32 %v7525, %v7675
    %v7684 = vadd.f32 %v7526, %v7676
    %v7685 = vadd.f32 %v7527, %v7677
    %v7686 = vxor.u32 %v7682, 2147483648
    %v7687 = vxor.u32 %v7683, 2147483648
    %v7688 = vxor.u32 %v7684, 2147483648
    %v7689 = vmul.f32 %v7686, 1.442695
    %v7690 = vpow.pop %v7689
    %v7691 = vmul.f32 %v7687, 1.442695
    %v7692 = vpow.pop %v7691
    %v7693 = vmul.f32 %v7688, 1.442695
    %v7694 = vpow.pop %v7693
    %v7695 = vadd.f32 %v7690, 1.0
    %v7696 = vadd.f32 %v7692, 1.0
    %v7697 = vadd.f32 %v7694, 1.0
    %v7698 = vrcp.pop %v7695
    %v7699 = vmul.f32 1.0, %v7698
    %v7700 = vrcp.pop %v7696
    %v7701 = vmul.f32 1.0, %v7700
    %v7702 = vrcp.pop %v7697
    %v7703 = vmul.f32 1.0, %v7702
    %v7704 = vtanh.pop %v7685
    %v7706 = vrot.slane %v7521, 6
    %v7708 = vmul.f32 %v7701, %v7706
    %v7709 = vmul.f32 %v7699, %v7704
    %v7710 = vadd.f32 %v7708, %v7709
    %v7711 = vtanh.pop %v7710
    %v7712 = vmul.f32 %v7703, %v7711
    %v7713 = vld [vmem:[#allocation3] sm:$0x30]
    %v7714 = vld [vmem:[#allocation3 + $0x8] sm:$0x30]
    %v7715 = vld [vmem:[#allocation3 + $0x10] sm:$0x30]
    %v7716 = vld [vmem:[#allocation3 + $0x18] sm:$0x30]
    %v7718 = vrot.slane %v7712, 2
    %7720 = vmatprep.subr.mxu0 %v7291
    %7721 = vmatpush1.msra.mxu0 %v7290
    %7722 = vmatprep.subr.mxu0 %v7295
    %7723 = vmatpush1.msra.mxu0 %v7294
    %7724 = vmatprep.subr.mxu0 %v7299
    %7725 = vmatpush1.msra.mxu0 %v7298
    %7726 = vmatprep.subr.mxu0 %v7303
    %7727 = vmatpush1.msra.mxu0 %v7302
    %7728 = vmatprep.subr.mxu0 %v7307
    %7729 = vmatpush1.msra.mxu0 %v7306
    %7730 = vmatprep.subr.mxu0 %v7311
    %7731 = vmatpush1.msra.mxu0 %v7310
    %7732 = vmatprep.subr.mxu0 %v7315
    %7733 = vmatpush1.msra.mxu0 %v7314
    %7734 = vmatprep.subr.mxu0 %v7319
    %7735 = vmatpush1.msra.mxu0 %v7318
    %7736 = vmatprep.subr.mxu0 %v7323
    %7737 = vmatpush1.msra.mxu0 %v7322
    %7738 = vmatprep.subr.mxu0 %v7327
    %7739 = vmatpush1.msra.mxu0 %v7326
    %7740 = vmatprep.subr.mxu0 %v7331
    %7741 = vmatpush1.msra.mxu0 %v7330
    %7742 = vmatprep.subr.mxu0 %v7335
    %7743 = vmatpush1.msra.mxu0 %v7334
    %7744 = vmatprep.subr.mxu0 %v7339
    %7745 = vmatpush1.msra.mxu0 %v7338
    %7746 = vmatprep.subr.mxu0 %v7343
    %7747 = vmatpush1.msra.mxu0 %v7342
    %7748 = vmatprep.subr.mxu0 %v7347
    %7749 = vmatpush1.msra.mxu0 %v7346
    %7750 = vmatprep.subr.mxu0 %v7351
    %7751 = vmatpush1.msra.mxu0 %v7350
    %7752 = vmatprep.subr.mxu0 0.0
    %7753 = vmatpush1.msra.mxu0 0.0
    %7754 = vmatprep.subr.mxu0 0.0
    %7755 = vmatpush1.msra.mxu0 0.0
    %7756 = vmatprep.subr.mxu0 0.0
    %7757 = vmatpush1.msra.mxu0 0.0
    %7758 = vmatprep.subr.mxu0 0.0
    %7759 = vmatpush1.msra.mxu0 0.0
    %7760 = vmatprep.subr.mxu0 0.0
    %7761 = vmatpush1.msra.mxu0 0.0
    %7762 = vmatprep.subr.mxu0 0.0
    %7763 = vmatpush1.msra.mxu0 0.0
    %7764 = vmatprep.subr.mxu0 0.0
    %7765 = vmatpush1.msra.mxu0 0.0
    %7766 = vmatprep.subr.mxu0 0.0
    %7767 = vmatpush1.msra.mxu0 0.0
    %7768 = vmatprep.subr.mxu0 0.0
    %7769 = vmatpush1.msra.mxu0 0.0
    %7770 = vmatprep.subr.mxu0 0.0
    %7771 = vmatpush1.msra.mxu0 0.0
    %7772 = vmatprep.subr.mxu0 0.0
    %7773 = vmatpush1.msra.mxu0 0.0
    %7774 = vmatprep.subr.mxu0 0.0
    %7775 = vmatpush1.msra.mxu0 0.0
    %7776 = vmatprep.subr.mxu0 0.0
    %7777 = vmatpush1.msra.mxu0 0.0
    %7778 = vmatprep.subr.mxu0 0.0
    %7779 = vmatpush1.msra.mxu0 0.0
    %7780 = vmatprep.subr.mxu0 0.0
    %7781 = vmatpush1.msra.mxu0 0.0
    %7782 = vmatprep.subr.mxu0 0.0
    %7783 = vmatpush1.msra.mxu0 0.0
    %7784 = vmatprep.mubr.f32.mxu0 0.0
    %7785 = vmatmul.mubr.f32.gmra.mrb[0].mxu0 %v7718
    %v7786 = vpop.f32.mrb[0].mxu0
    %v7787 = vadd.f32 0.0, %v7786
    %v7788 = vpop.f32.mrb[0].mxu0
    %v7789 = vadd.f32 0.0, %v7788
    %7790 = vdwg.mxu0
    %7791 = vmatprep.subr.mxu0 %v7293
    %7792 = vmatpush1.msra.mxu0 %v7292
    %7793 = vmatprep.subr.mxu0 %v7297
    %7794 = vmatpush1.msra.mxu0 %v7296
    %7795 = vmatprep.subr.mxu0 %v7301
    %7796 = vmatpush1.msra.mxu0 %v7300
    %7797 = vmatprep.subr.mxu0 %v7305
    %7798 = vmatpush1.msra.mxu0 %v7304
    %7799 = vmatprep.subr.mxu0 %v7309
    %7800 = vmatpush1.msra.mxu0 %v7308
    %7801 = vmatprep.subr.mxu0 %v7313
    %7802 = vmatpush1.msra.mxu0 %v7312
    %7803 = vmatprep.subr.mxu0 %v7317
    %7804 = vmatpush1.msra.mxu0 %v7316
    %7805 = vmatprep.subr.mxu0 %v7321
    %7806 = vmatpush1.msra.mxu0 %v7320
    %7807 = vmatprep.subr.mxu0 %v7325
    %7808 = vmatpush1.msra.mxu0 %v7324
    %7809 = vmatprep.subr.mxu0 %v7329
    %7810 = vmatpush1.msra.mxu0 %v7328
    %7811 = vmatprep.subr.mxu0 %v7333
    %7812 = vmatpush1.msra.mxu0 %v7332
    %7813 = vmatprep.subr.mxu0 %v7337
    %7814 = vmatpush1.msra.mxu0 %v7336
    %7815 = vmatprep.subr.mxu0 %v7341
    %7816 = vmatpush1.msra.mxu0 %v7340
    %7817 = vmatprep.subr.mxu0 %v7345
    %7818 = vmatpush1.msra.mxu0 %v7344
    %7819 = vmatprep.subr.mxu0 %v7349
    %7820 = vmatpush1.msra.mxu0 %v7348
    %7821 = vmatprep.subr.mxu0 %v7353
    %7822 = vmatpush1.msra.mxu0 %v7352
    %7823 = vmatprep.subr.mxu0 0.0
    %7824 = vmatpush1.msra.mxu0 0.0
    %7825 = vmatprep.subr.mxu0 0.0
    %7826 = vmatpush1.msra.mxu0 0.0
    %7827 = vmatprep.subr.mxu0 0.0
    %7828 = vmatpush1.msra.mxu0 0.0
    %7829 = vmatprep.subr.mxu0 0.0
    %7830 = vmatpush1.msra.mxu0 0.0
    %7831 = vmatprep.subr.mxu0 0.0
    %7832 = vmatpush1.msra.mxu0 0.0
    %7833 = vmatprep.subr.mxu0 0.0
    %7834 = vmatpush1.msra.mxu0 0.0
    %7835 = vmatprep.subr.mxu0 0.0
    %7836 = vmatpush1.msra.mxu0 0.0
    %7837 = vmatprep.subr.mxu0 0.0
    %7838 = vmatpush1.msra.mxu0 0.0
    %7839 = vmatprep.subr.mxu0 0.0
    %7840 = vmatpush1.msra.mxu0 0.0
    %7841 = vmatprep.subr.mxu0 0.0
    %7842 = vmatpush1.msra.mxu0 0.0
    %7843 = vmatprep.subr.mxu0 0.0
    %7844 = vmatpush1.msra.mxu0 0.0
    %7845 = vmatprep.subr.mxu0 0.0
    %7846 = vmatpush1.msra.mxu0 0.0
    %7847 = vmatprep.subr.mxu0 0.0
    %7848 = vmatpush1.msra.mxu0 0.0
    %7849 = vmatprep.subr.mxu0 0.0
    %7850 = vmatpush1.msra.mxu0 0.0
    %7851 = vmatprep.subr.mxu0 0.0
    %7852 = vmatpush1.msra.mxu0 0.0
    %7853 = vmatprep.subr.mxu0 0.0
    %7854 = vmatpush1.msra.mxu0 0.0
    %7855 = vmatprep.mubr.f32.mxu0 0.0
    %7856 = vmatmul.mubr.f32.gmra.mrb[0].mxu0 %v7718
    %v7857 = vpop.f32.mrb[0].mxu0
    %v7858 = vadd.f32 0.0, %v7857
    %v7859 = vpop.f32.mrb[0].mxu0
    %v7860 = vadd.f32 0.0, %v7859
    %7861 = vdwg.mxu0
    %v7866 = vrot.slane %v7787, 4
    %v7867 = vrot.slane %v7789, 4
    %v7868 = vrot.slane %v7858, 4
    %v7869 = vrot.slane %v7860, 4
    %v7874 = vadd.f32 %v7713, %v7866
    %v7875 = vadd.f32 %v7714, %v7867
    %v7876 = vadd.f32 %v7715, %v7868
    %v7877 = vadd.f32 %v7716, %v7869
    %v7878 = vxor.u32 %v7874, 2147483648
    %v7879 = vxor.u32 %v7875, 2147483648
    %v7880 = vxor.u32 %v7876, 2147483648
    %v7881 = vmul.f32 %v7878, 1.442695
    %v7882 = vpow.pop %v7881
    %v7883 = vmul.f32 %v7879, 1.442695
    %v7884 = vpow.pop %v7883
    %v7885 = vmul.f32 %v7880, 1.442695
    %v7886 = vpow.pop %v7885
    %v7887 = vadd.f32 %v7882, 1.0
    %v7888 = vadd.f32 %v7884, 1.0
    %v7889 = vadd.f32 %v7886, 1.0
    %v7890 = vrcp.pop %v7887
    %v7891 = vmul.f32 1.0, %v7890
    %v7892 = vrcp.pop %v7888
    %v7893 = vmul.f32 1.0, %v7892
    %v7894 = vrcp.pop %v7889
    %v7895 = vmul.f32 1.0, %v7894
    %v7896 = vtanh.pop %v7877
    %v7898 = vrot.slane %v7710, 6
    %v7900 = vmul.f32 %v7893, %v7898
    %v7901 = vmul.f32 %v7891, %v7896
    %v7902 = vadd.f32 %v7900, %v7901
    %v7903 = vtanh.pop %v7902
    %v7904 = vmul.f32 %v7895, %v7903
    %v7905 = vld [vmem:[#allocation3] sm:$0xc0]
    %v7906 = vld [vmem:[#allocation3 + $0x8] sm:$0xc0]
    %v7907 = vld [vmem:[#allocation3 + $0x10] sm:$0xc0]
    %v7908 = vld [vmem:[#allocation3 + $0x18] sm:$0xc0]
    %v7910 = vrot.slane %v7904, 4
    %7912 = vmatprep.subr.mxu0 %v7291
    %7913 = vmatpush1.msra.mxu0 %v7290
    %7914 = vmatprep.subr.mxu0 %v7295
    %7915 = vmatpush1.msra.mxu0 %v7294
    %7916 = vmatprep.subr.mxu0 %v7299
    %7917 = vmatpush1.msra.mxu0 %v7298
    %7918 = vmatprep.subr.mxu0 %v7303
    %7919 = vmatpush1.msra.mxu0 %v7302
    %7920 = vmatprep.subr.mxu0 %v7307
    %7921 = vmatpush1.msra.mxu0 %v7306
    %7922 = vmatprep.subr.mxu0 %v7311
    %7923 = vmatpush1.msra.mxu0 %v7310
    %7924 = vmatprep.subr.mxu0 %v7315
    %7925 = vmatpush1.msra.mxu0 %v7314
    %7926 = vmatprep.subr.mxu0 %v7319
    %7927 = vmatpush1.msra.mxu0 %v7318
    %7928 = vmatprep.subr.mxu0 %v7323
    %7929 = vmatpush1.msra.mxu0 %v7322
    %7930 = vmatprep.subr.mxu0 %v7327
    %7931 = vmatpush1.msra.mxu0 %v7326
    %7932 = vmatprep.subr.mxu0 %v7331
    %7933 = vmatpush1.msra.mxu0 %v7330
    %7934 = vmatprep.subr.mxu0 %v7335
    %7935 = vmatpush1.msra.mxu0 %v7334
    %7936 = vmatprep.subr.mxu0 %v7339
    %7937 = vmatpush1.msra.mxu0 %v7338
    %7938 = vmatprep.subr.mxu0 %v7343
    %7939 = vmatpush1.msra.mxu0 %v7342
    %7940 = vmatprep.subr.mxu0 %v7347
    %7941 = vmatpush1.msra.mxu0 %v7346
    %7942 = vmatprep.subr.mxu0 %v7351
    %7943 = vmatpush1.msra.mxu0 %v7350
    %7944 = vmatprep.subr.mxu0 0.0
    %7945 = vmatpush1.msra.mxu0 0.0
    %7946 = vmatprep.subr.mxu0 0.0
    %7947 = vmatpush1.msra.mxu0 0.0
    %7948 = vmatprep.subr.mxu0 0.0
    %7949 = vmatpush1.msra.mxu0 0.0
    %7950 = vmatprep.subr.mxu0 0.0
    %7951 = vmatpush1.msra.mxu0 0.0
    %7952 = vmatprep.subr.mxu0 0.0
    %7953 = vmatpush1.msra.mxu0 0.0
    %7954 = vmatprep.subr.mxu0 0.0
    %7955 = vmatpush1.msra.mxu0 0.0
    %7956 = vmatprep.subr.mxu0 0.0
    %7957 = vmatpush1.msra.mxu0 0.0
    %7958 = vmatprep.subr.mxu0 0.0
    %7959 = vmatpush1.msra.mxu0 0.0
    %7960 = vmatprep.subr.mxu0 0.0
    %7961 = vmatpush1.msra.mxu0 0.0
    %7962 = vmatprep.subr.mxu0 0.0
    %7963 = vmatpush1.msra.mxu0 0.0
    %7964 = vmatprep.subr.mxu0 0.0
    %7965 = vmatpush1.msra.mxu0 0.0
    %7966 = vmatprep.subr.mxu0 0.0
    %7967 = vmatpush1.msra.mxu0 0.0
    %7968 = vmatprep.subr.mxu0 0.0
    %7969 = vmatpush1.msra.mxu0 0.0
    %7970 = vmatprep.subr.mxu0 0.0
    %7971 = vmatpush1.msra.mxu0 0.0
    %7972 = vmatprep.subr.mxu0 0.0
    %7973 = vmatpush1.msra.mxu0 0.0
    %7974 = vmatprep.subr.mxu0 0.0
    %7975 = vmatpush1.msra.mxu0 0.0
    %7976 = vmatprep.mubr.f32.mxu0 0.0
    %7977 = vmatmul.mubr.f32.gmra.mrb[0].mxu0 %v7910
    %v7978 = vpop.f32.mrb[0].mxu0
    %v7979 = vadd.f32 0.0, %v7978
    %v7980 = vpop.f32.mrb[0].mxu0
    %v7981 = vadd.f32 0.0, %v7980
    %7982 = vdwg.mxu0
    %7983 = vmatprep.subr.mxu0 %v7293
    %7984 = vmatpush1.msra.mxu0 %v7292
    %7985 = vmatprep.subr.mxu0 %v7297
    %7986 = vmatpush1.msra.mxu0 %v7296
    %7987 = vmatprep.subr.mxu0 %v7301
    %7988 = vmatpush1.msra.mxu0 %v7300
    %7989 = vmatprep.subr.mxu0 %v7305
    %7990 = vmatpush1.msra.mxu0 %v7304
    %7991 = vmatprep.subr.mxu0 %v7309
    %7992 = vmatpush1.msra.mxu0 %v7308
    %7993 = vmatprep.subr.mxu0 %v7313
    %7994 = vmatpush1.msra.mxu0 %v7312
    %7995 = vmatprep.subr.mxu0 %v7317
    %7996 = vmatpush1.msra.mxu0 %v7316
    %7997 = vmatprep.subr.mxu0 %v7321
    %7998 = vmatpush1.msra.mxu0 %v7320
    %7999 = vmatprep.subr.mxu0 %v7325
    %8000 = vmatpush1.msra.mxu0 %v7324
    %8001 = vmatprep.subr.mxu0 %v7329
    %8002 = vmatpush1.msra.mxu0 %v7328
    %8003 = vmatprep.subr.mxu0 %v7333
    %8004 = vmatpush1.msra.mxu0 %v7332
    %8005 = vmatprep.subr.mxu0 %v7337
    %8006 = vmatpush1.msra.mxu0 %v7336
    %8007 = vmatprep.subr.mxu0 %v7341
    %8008 = vmatpush1.msra.mxu0 %v7340
    %8009 = vmatprep.subr.mxu0 %v7345
    %8010 = vmatpush1.msra.mxu0 %v7344
    %8011 = vmatprep.subr.mxu0 %v7349
    %8012 = vmatpush1.msra.mxu0 %v7348
    %8013 = vmatprep.subr.mxu0 %v7353
    %8014 = vmatpush1.msra.mxu0 %v7352
    %8015 = vmatprep.subr.mxu0 0.0
    %8016 = vmatpush1.msra.mxu0 0.0
    %8017 = vmatprep.subr.mxu0 0.0
    %8018 = vmatpush1.msra.mxu0 0.0
    %8019 = vmatprep.subr.mxu0 0.0
    %8020 = vmatpush1.msra.mxu0 0.0
    %8021 = vmatprep.subr.mxu0 0.0
    %8022 = vmatpush1.msra.mxu0 0.0
    %8023 = vmatprep.subr.mxu0 0.0
    %8024 = vmatpush1.msra.mxu0 0.0
    %8025 = vmatprep.subr.mxu0 0.0
    %8026 = vmatpush1.msra.mxu0 0.0
    %8027 = vmatprep.subr.mxu0 0.0
    %8028 = vmatpush1.msra.mxu0 0.0
    %8029 = vmatprep.subr.mxu0 0.0
    %8030 = vmatpush1.msra.mxu0 0.0
    %8031 = vmatprep.subr.mxu0 0.0
    %8032 = vmatpush1.msra.mxu0 0.0
    %8033 = vmatprep.subr.mxu0 0.0
    %8034 = vmatpush1.msra.mxu0 0.0
    %8035 = vmatprep.subr.mxu0 0.0
    %8036 = vmatpush1.msra.mxu0 0.0
    %8037 = vmatprep.subr.mxu0 0.0
    %8038 = vmatpush1.msra.mxu0 0.0
    %8039 = vmatprep.subr.mxu0 0.0
    %8040 = vmatpush1.msra.mxu0 0.0
    %8041 = vmatprep.subr.mxu0 0.0
    %8042 = vmatpush1.msra.mxu0 0.0
    %8043 = vmatprep.subr.mxu0 0.0
    %8044 = vmatpush1.msra.mxu0 0.0
    %8045 = vmatprep.subr.mxu0 0.0
    %8046 = vmatpush1.msra.mxu0 0.0
    %8047 = vmatprep.mubr.f32.mxu0 0.0
    %8048 = vmatmul.mubr.f32.gmra.mrb[0].mxu0 %v7910
    %v8049 = vpop.f32.mrb[0].mxu0
    %v8050 = vadd.f32 0.0, %v8049
    %v8051 = vpop.f32.mrb[0].mxu0
    %v8052 = vadd.f32 0.0, %v8051
    %8053 = vdwg.mxu0
    %v8058 = vrot.slane %v7979, 2
    %v8059 = vrot.slane %v7981, 2
    %v8060 = vrot.slane %v8050, 2
    %v8061 = vrot.slane %v8052, 2
    %v8066 = vadd.f32 %v7905, %v8058
    %v8067 = vadd.f32 %v7906, %v8059
    %v8068 = vadd.f32 %v7907, %v8060
    %v8069 = vadd.f32 %v7908, %v8061
    %v8070 = vxor.u32 %v8066, 2147483648
    %v8071 = vxor.u32 %v8067, 2147483648
    %v8072 = vxor.u32 %v8068, 2147483648
    %v8073 = vmul.f32 %v8070, 1.442695
    %v8074 = vpow.pop %v8073
    %v8075 = vmul.f32 %v8071, 1.442695
    %v8076 = vpow.pop %v8075
    %v8077 = vmul.f32 %v8072, 1.442695
    %v8078 = vpow.pop %v8077
    %v8079 = vadd.f32 %v8074, 1.0
    %v8080 = vadd.f32 %v8076, 1.0
    %v8081 = vadd.f32 %v8078, 1.0
    %v8082 = vrcp.pop %v8079
    %v8083 = vmul.f32 1.0, %v8082
    %v8084 = vrcp.pop %v8080
    %v8085 = vmul.f32 1.0, %v8084
    %v8086 = vrcp.pop %v8081
    %v8087 = vmul.f32 1.0, %v8086
    %v8088 = vtanh.pop %v8069
    %v8090 = vrot.slane %v7902, 6
    %v8092 = vmul.f32 %v8085, %v8090
    %v8093 = vmul.f32 %v8083, %v8088
    %v8094 = vadd.f32 %v8092, %v8093
    %v8095 = vtanh.pop %v8094
    %v8096 = vmul.f32 %v8087, %v8095
    %v8097 = vld [vmem:[#allocation3 + $0x20] sm:$0x3]
    %v8098 = vld [vmem:[#allocation3 + $0x28] sm:$0x3]
    %v8099 = vld [vmem:[#allocation3 + $0x30] sm:$0x3]
    %v8100 = vld [vmem:[#allocation3 + $0x38] sm:$0x3]
    %v8102 = vrot.slane %v8096, 6
    %8104 = vmatprep.subr.mxu0 %v7291
    %8105 = vmatpush1.msra.mxu0 %v7290
    %8106 = vmatprep.subr.mxu0 %v7295
    %8107 = vmatpush1.msra.mxu0 %v7294
    %8108 = vmatprep.subr.mxu0 %v7299
    %8109 = vmatpush1.msra.mxu0 %v7298
    %8110 = vmatprep.subr.mxu0 %v7303
    %8111 = vmatpush1.msra.mxu0 %v7302
    %8112 = vmatprep.subr.mxu0 %v7307
    %8113 = vmatpush1.msra.mxu0 %v7306
    %8114 = vmatprep.subr.mxu0 %v7311
    %8115 = vmatpush1.msra.mxu0 %v7310
    %8116 = vmatprep.subr.mxu0 %v7315
    %8117 = vmatpush1.msra.mxu0 %v7314
    %8118 = vmatprep.subr.mxu0 %v7319
    %8119 = vmatpush1.msra.mxu0 %v7318
    %8120 = vmatprep.subr.mxu0 %v7323
    %8121 = vmatpush1.msra.mxu0 %v7322
    %8122 = vmatprep.subr.mxu0 %v7327
    %8123 = vmatpush1.msra.mxu0 %v7326
    %8124 = vmatprep.subr.mxu0 %v7331
    %8125 = vmatpush1.msra.mxu0 %v7330
    %8126 = vmatprep.subr.mxu0 %v7335
    %8127 = vmatpush1.msra.mxu0 %v7334
    %8128 = vmatprep.subr.mxu0 %v7339
    %8129 = vmatpush1.msra.mxu0 %v7338
    %8130 = vmatprep.subr.mxu0 %v7343
    %8131 = vmatpush1.msra.mxu0 %v7342
    %8132 = vmatprep.subr.mxu0 %v7347
    %8133 = vmatpush1.msra.mxu0 %v7346
    %8134 = vmatprep.subr.mxu0 %v7351
    %8135 = vmatpush1.msra.mxu0 %v7350
    %8136 = vmatprep.subr.mxu0 0.0
    %8137 = vmatpush1.msra.mxu0 0.0
    %8138 = vmatprep.subr.mxu0 0.0
    %8139 = vmatpush1.msra.mxu0 0.0
    %8140 = vmatprep.subr.mxu0 0.0
    %8141 = vmatpush1.msra.mxu0 0.0
    %8142 = vmatprep.subr.mxu0 0.0
    %8143 = vmatpush1.msra.mxu0 0.0
    %8144 = vmatprep.subr.mxu0 0.0
    %8145 = vmatpush1.msra.mxu0 0.0
    %8146 = vmatprep.subr.mxu0 0.0
    %8147 = vmatpush1.msra.mxu0 0.0
    %8148 = vmatprep.subr.mxu0 0.0
    %8149 = vmatpush1.msra.mxu0 0.0
    %8150 = vmatprep.subr.mxu0 0.0
    %8151 = vmatpush1.msra.mxu0 0.0
    %8152 = vmatprep.subr.mxu0 0.0
    %8153 = vmatpush1.msra.mxu0 0.0
    %8154 = vmatprep.subr.mxu0 0.0
    %8155 = vmatpush1.msra.mxu0 0.0
    %8156 = vmatprep.subr.mxu0 0.0
    %8157 = vmatpush1.msra.mxu0 0.0
    %8158 = vmatprep.subr.mxu0 0.0
    %8159 = vmatpush1.msra.mxu0 0.0
    %8160 = vmatprep.subr.mxu0 0.0
    %8161 = vmatpush1.msra.mxu0 0.0
    %8162 = vmatprep.subr.mxu0 0.0
    %8163 = vmatpush1.msra.mxu0 0.0
    %8164 = vmatprep.subr.mxu0 0.0
    %8165 = vmatpush1.msra.mxu0 0.0
    %8166 = vmatprep.subr.mxu0 0.0
    %8167 = vmatpush1.msra.mxu0 0.0
    %8168 = vmatprep.mubr.f32.mxu0 0.0
    %8169 = vmatmul.mubr.f32.gmra.mrb[0].mxu0 %v8102
    %v8170 = vpop.f32.mrb[0].mxu0
    %v8171 = vadd.f32 0.0, %v8170
    %v8172 = vpop.f32.mrb[0].mxu0
    %v8173 = vadd.f32 0.0, %v8172
    %8174 = vdwg.mxu0
    %8175 = vmatprep.subr.mxu0 %v7293
    %8176 = vmatpush1.msra.mxu0 %v7292
    %8177 = vmatprep.subr.mxu0 %v7297
    %8178 = vmatpush1.msra.mxu0 %v7296
    %8179 = vmatprep.subr.mxu0 %v7301
    %8180 = vmatpush1.msra.mxu0 %v7300
    %8181 = vmatprep.subr.mxu0 %v7305
    %8182 = vmatpush1.msra.mxu0 %v7304
    %8183 = vmatprep.subr.mxu0 %v7309
    %8184 = vmatpush1.msra.mxu0 %v7308
    %8185 = vmatprep.subr.mxu0 %v7313
    %8186 = vmatpush1.msra.mxu0 %v7312
    %8187 = vmatprep.subr.mxu0 %v7317
    %8188 = vmatpush1.msra.mxu0 %v7316
    %8189 = vmatprep.subr.mxu0 %v7321
    %8190 = vmatpush1.msra.mxu0 %v7320
    %8191 = vmatprep.subr.mxu0 %v7325
    %8192 = vmatpush1.msra.mxu0 %v7324
    %8193 = vmatprep.subr.mxu0 %v7329
    %8194 = vmatpush1.msra.mxu0 %v7328
    %8195 = vmatprep.subr.mxu0 %v7333
    %8196 = vmatpush1.msra.mxu0 %v7332
    %8197 = vmatprep.subr.mxu0 %v7337
    %8198 = vmatpush1.msra.mxu0 %v7336
    %8199 = vmatprep.subr.mxu0 %v7341
    %8200 = vmatpush1.msra.mxu0 %v7340
    %8201 = vmatprep.subr.mxu0 %v7345
    %8202 = vmatpush1.msra.mxu0 %v7344
    %8203 = vmatprep.subr.mxu0 %v7349
    %8204 = vmatpush1.msra.mxu0 %v7348
    %8205 = vmatprep.subr.mxu0 %v7353
    %8206 = vmatpush1.msra.mxu0 %v7352
    %8207 = vmatprep.subr.mxu0 0.0
    %8208 = vmatpush1.msra.mxu0 0.0
    %8209 = vmatprep.subr.mxu0 0.0
    %8210 = vmatpush1.msra.mxu0 0.0
    %8211 = vmatprep.subr.mxu0 0.0
    %8212 = vmatpush1.msra.mxu0 0.0
    %8213 = vmatprep.subr.mxu0 0.0
    %8214 = vmatpush1.msra.mxu0 0.0
    %8215 = vmatprep.subr.mxu0 0.0
    %8216 = vmatpush1.msra.mxu0 0.0
    %8217 = vmatprep.subr.mxu0 0.0
    %8218 = vmatpush1.msra.mxu0 0.0
    %8219 = vmatprep.subr.mxu0 0.0
    %8220 = vmatpush1.msra.mxu0 0.0
    %8221 = vmatprep.subr.mxu0 0.0
    %8222 = vmatpush1.msra.mxu0 0.0
    %8223 = vmatprep.subr.mxu0 0.0
    %8224 = vmatpush1.msra.mxu0 0.0
    %8225 = vmatprep.subr.mxu0 0.0
    %8226 = vmatpush1.msra.mxu0 0.0
    %8227 = vmatprep.subr.mxu0 0.0
    %8228 = vmatpush1.msra.mxu0 0.0
    %8229 = vmatprep.subr.mxu0 0.0
    %8230 = vmatpush1.msra.mxu0 0.0
    %8231 = vmatprep.subr.mxu0 0.0
    %8232 = vmatpush1.msra.mxu0 0.0
    %8233 = vmatprep.subr.mxu0 0.0
    %8234 = vmatpush1.msra.mxu0 0.0
    %8235 = vmatprep.subr.mxu0 0.0
    %8236 = vmatpush1.msra.mxu0 0.0
    %8237 = vmatprep.subr.mxu0 0.0
    %8238 = vmatpush1.msra.mxu0 0.0
    %8239 = vmatprep.mubr.f32.mxu0 0.0
    %8240 = vmatmul.mubr.f32.gmra.mrb[0].mxu0 %v8102
    %v8241 = vpop.f32.mrb[0].mxu0
    %v8242 = vadd.f32 0.0, %v8241
    %v8243 = vpop.f32.mrb[0].mxu0
    %v8244 = vadd.f32 0.0, %v8243
    %8245 = vdwg.mxu0
    %v8246 = vadd.f32 %v8097, %v8171
    %v8247 = vadd.f32 %v8098, %v8173
    %v8248 = vadd.f32 %v8099, %v8242
    %v8249 = vadd.f32 %v8100, %v8244
    %v8250 = vxor.u32 %v8246, 2147483648
    %v8251 = vxor.u32 %v8247, 2147483648
    %v8252 = vxor.u32 %v8248, 2147483648
    %v8253 = vmul.f32 %v8250, 1.442695
    %v8254 = vpow.pop %v8253
    %v8255 = vmul.f32 %v8251, 1.442695
    %v8256 = vpow.pop %v8255
    %v8257 = vmul.f32 %v8252, 1.442695
    %v8258 = vpow.pop %v8257
    %v8259 = vadd.f32 %v8254, 1.0
    %v8260 = vadd.f32 %v8256, 1.0
    %v8261 = vadd.f32 %v8258, 1.0
    %v8262 = vrcp.pop %v8259
    %v8263 = vmul.f32 1.0, %v8262
    %v8264 = vrcp.pop %v8260
    %v8265 = vmul.f32 1.0, %v8264
    %v8266 = vrcp.pop %v8261
    %v8267 = vmul.f32 1.0, %v8266
    %v8268 = vtanh.pop %v8249
    %v8270 = vrot.slane %v8094, 6
    %v8272 = vmul.f32 %v8265, %v8270
    %v8273 = vmul.f32 %v8263, %v8268
    %v8274 = vadd.f32 %v8272, %v8273
    %v8275 = vtanh.pop %v8274
    %v8276 = vmul.f32 %v8267, %v8275
    %v8277 = vld [vmem:[#allocation3 + $0x20] sm:$0xc]
    %v8278 = vld [vmem:[#allocation3 + $0x28] sm:$0xc]
    %v8279 = vld [vmem:[#allocation3 + $0x30] sm:$0xc]
    %v8280 = vld [vmem:[#allocation3 + $0x38] sm:$0xc]
    %8281 = vmatprep.subr.mxu0 %v7291
    %8282 = vmatpush1.msra.mxu0 %v7290
    %8283 = vmatprep.subr.mxu0 %v7295
    %8284 = vmatpush1.msra.mxu0 %v7294
    %8285 = vmatprep.subr.mxu0 %v7299
    %8286 = vmatpush1.msra.mxu0 %v7298
    %8287 = vmatprep.subr.mxu0 %v7303
    %8288 = vmatpush1.msra.mxu0 %v7302
    %8289 = vmatprep.subr.mxu0 %v7307
    %8290 = vmatpush1.msra.mxu0 %v7306
    %8291 = vmatprep.subr.mxu0 %v7311
    %8292 = vmatpush1.msra.mxu0 %v7310
    %8293 = vmatprep.subr.mxu0 %v7315
    %8294 = vmatpush1.msra.mxu0 %v7314
    %8295 = vmatprep.subr.mxu0 %v7319
    %8296 = vmatpush1.msra.mxu0 %v7318
    %8297 = vmatprep.subr.mxu0 %v7323
    %8298 = vmatpush1.msra.mxu0 %v7322
    %8299 = vmatprep.subr.mxu0 %v7327
    %8300 = vmatpush1.msra.mxu0 %v7326
    %8301 = vmatprep.subr.mxu0 %v7331
    %8302 = vmatpush1.msra.mxu0 %v7330
    %8303 = vmatprep.subr.mxu0 %v7335
    %8304 = vmatpush1.msra.mxu0 %v7334
    %8305 = vmatprep.subr.mxu0 %v7339
    %8306 = vmatpush1.msra.mxu0 %v7338
    %8307 = vmatprep.subr.mxu0 %v7343
    %8308 = vmatpush1.msra.mxu0 %v7342
    %8309 = vmatprep.subr.mxu0 %v7347
    %8310 = vmatpush1.msra.mxu0 %v7346
    %8311 = vmatprep.subr.mxu0 %v7351
    %8312 = vmatpush1.msra.mxu0 %v7350
    %8313 = vmatprep.subr.mxu0 0.0
    %8314 = vmatpush1.msra.mxu0 0.0
    %8315 = vmatprep.subr.mxu0 0.0
    %8316 = vmatpush1.msra.mxu0 0.0
    %8317 = vmatprep.subr.mxu0 0.0
    %8318 = vmatpush1.msra.mxu0 0.0
    %8319 = vmatprep.subr.mxu0 0.0
    %8320 = vmatpush1.msra.mxu0 0.0
    %8321 = vmatprep.subr.mxu0 0.0
    %8322 = vmatpush1.msra.mxu0 0.0
    %8323 = vmatprep.subr.mxu0 0.0
    %8324 = vmatpush1.msra.mxu0 0.0
    %8325 = vmatprep.subr.mxu0 0.0
    %8326 = vmatpush1.msra.mxu0 0.0
    %8327 = vmatprep.subr.mxu0 0.0
    %8328 = vmatpush1.msra.mxu0 0.0
    %8329 = vmatprep.subr.mxu0 0.0
    %8330 = vmatpush1.msra.mxu0 0.0
    %8331 = vmatprep.subr.mxu0 0.0
    %8332 = vmatpush1.msra.mxu0 0.0
    %8333 = vmatprep.subr.mxu0 0.0
    %8334 = vmatpush1.msra.mxu0 0.0
    %8335 = vmatprep.subr.mxu0 0.0
    %8336 = vmatpush1.msra.mxu0 0.0
    %8337 = vmatprep.subr.mxu0 0.0
    %8338 = vmatpush1.msra.mxu0 0.0
    %8339 = vmatprep.subr.mxu0 0.0
    %8340 = vmatpush1.msra.mxu0 0.0
    %8341 = vmatprep.subr.mxu0 0.0
    %8342 = vmatpush1.msra.mxu0 0.0
    %8343 = vmatprep.subr.mxu0 0.0
    %8344 = vmatpush1.msra.mxu0 0.0
    %8345 = vmatprep.mubr.f32.mxu0 0.0
    %8346 = vmatmul.mubr.f32.gmra.mrb[0].mxu0 %v8276
    %v8347 = vpop.f32.mrb[0].mxu0
    %v8348 = vadd.f32 0.0, %v8347
    %v8349 = vpop.f32.mrb[0].mxu0
    %v8350 = vadd.f32 0.0, %v8349
    %8351 = vdwg.mxu0
    %8352 = vmatprep.subr.mxu0 %v7293
    %8353 = vmatpush1.msra.mxu0 %v7292
    %8354 = vmatprep.subr.mxu0 %v7297
    %8355 = vmatpush1.msra.mxu0 %v7296
    %8356 = vmatprep.subr.mxu0 %v7301
    %8357 = vmatpush1.msra.mxu0 %v7300
    %8358 = vmatprep.subr.mxu0 %v7305
    %8359 = vmatpush1.msra.mxu0 %v7304
    %8360 = vmatprep.subr.mxu0 %v7309
    %8361 = vmatpush1.msra.mxu0 %v7308
    %8362 = vmatprep.subr.mxu0 %v7313
    %8363 = vmatpush1.msra.mxu0 %v7312
    %8364 = vmatprep.subr.mxu0 %v7317
    %8365 = vmatpush1.msra.mxu0 %v7316
    %8366 = vmatprep.subr.mxu0 %v7321
    %8367 = vmatpush1.msra.mxu0 %v7320
    %8368 = vmatprep.subr.mxu0 %v7325
    %8369 = vmatpush1.msra.mxu0 %v7324
    %8370 = vmatprep.subr.mxu0 %v7329
    %8371 = vmatpush1.msra.mxu0 %v7328
    %8372 = vmatprep.subr.mxu0 %v7333
    %8373 = vmatpush1.msra.mxu0 %v7332
    %8374 = vmatprep.subr.mxu0 %v7337
    %8375 = vmatpush1.msra.mxu0 %v7336
    %8376 = vmatprep.subr.mxu0 %v7341
    %8377 = vmatpush1.msra.mxu0 %v7340
    %8378 = vmatprep.subr.mxu0 %v7345
    %8379 = vmatpush1.msra.mxu0 %v7344
    %8380 = vmatprep.subr.mxu0 %v7349
    %8381 = vmatpush1.msra.mxu0 %v7348
    %8382 = vmatprep.subr.mxu0 %v7353
    %8383 = vmatpush1.msra.mxu0 %v7352
    %8384 = vmatprep.subr.mxu0 0.0
    %8385 = vmatpush1.msra.mxu0 0.0
    %8386 = vmatprep.subr.mxu0 0.0
    %8387 = vmatpush1.msra.mxu0 0.0
    %8388 = vmatprep.subr.mxu0 0.0
    %8389 = vmatpush1.msra.mxu0 0.0
    %8390 = vmatprep.subr.mxu0 0.0
    %8391 = vmatpush1.msra.mxu0 0.0
    %8392 = vmatprep.subr.mxu0 0.0
    %8393 = vmatpush1.msra.mxu0 0.0
    %8394 = vmatprep.subr.mxu0 0.0
    %8395 = vmatpush1.msra.mxu0 0.0
    %8396 = vmatprep.subr.mxu0 0.0
    %8397 = vmatpush1.msra.mxu0 0.0
    %8398 = vmatprep.subr.mxu0 0.0
    %8399 = vmatpush1.msra.mxu0 0.0
    %8400 = vmatprep.subr.mxu0 0.0
    %8401 = vmatpush1.msra.mxu0 0.0
    %8402 = vmatprep.subr.mxu0 0.0
    %8403 = vmatpush1.msra.mxu0 0.0
    %8404 = vmatprep.subr.mxu0 0.0
    %8405 = vmatpush1.msra.mxu0 0.0
    %8406 = vmatprep.subr.mxu0 0.0
    %8407 = vmatpush1.msra.mxu0 0.0
    %8408 = vmatprep.subr.mxu0 0.0
    %8409 = vmatpush1.msra.mxu0 0.0
    %8410 = vmatprep.subr.mxu0 0.0
    %8411 = vmatpush1.msra.mxu0 0.0
    %8412 = vmatprep.subr.mxu0 0.0
    %8413 = vmatpush1.msra.mxu0 0.0
    %8414 = vmatprep.subr.mxu0 0.0
    %8415 = vmatpush1.msra.mxu0 0.0
    %8416 = vmatprep.mubr.f32.mxu0 0.0
    %8417 = vmatmul.mubr.f32.gmra.mrb[0].mxu0 %v8276
    %v8418 = vpop.f32.mrb[0].mxu0
    %v8419 = vadd.f32 0.0, %v8418
    %v8420 = vpop.f32.mrb[0].mxu0
    %v8421 = vadd.f32 0.0, %v8420
    %8422 = vdwg.mxu0
    %v8427 = vrot.slane %v8348, 6
    %v8428 = vrot.slane %v8350, 6
    %v8429 = vrot.slane %v8419, 6
    %v8430 = vrot.slane %v8421, 6
    %v8435 = vadd.f32 %v8277, %v8427
    %v8436 = vadd.f32 %v8278, %v8428
    %v8437 = vadd.f32 %v8279, %v8429
    %v8438 = vadd.f32 %v8280, %v8430
    %v8439 = vxor.u32 %v8435, 2147483648
    %v8440 = vxor.u32 %v8436, 2147483648
    %v8441 = vxor.u32 %v8437, 2147483648
    %v8442 = vmul.f32 %v8439, 1.442695
    %v8443 = vpow.pop %v8442
    %v8444 = vmul.f32 %v8440, 1.442695
    %v8445 = vpow.pop %v8444
    %v8446 = vmul.f32 %v8441, 1.442695
    %v8447 = vpow.pop %v8446
    %v8448 = vadd.f32 %v8443, 1.0
    %v8449 = vadd.f32 %v8445, 1.0
    %v8450 = vadd.f32 %v8447, 1.0
    %v8451 = vrcp.pop %v8448
    %v8452 = vmul.f32 1.0, %v8451
    %v8453 = vrcp.pop %v8449
    %v8454 = vmul.f32 1.0, %v8453
    %v8455 = vrcp.pop %v8450
    %v8456 = vmul.f32 1.0, %v8455
    %v8457 = vtanh.pop %v8438
    %v8459 = vrot.slane %v8274, 6
    %v8461 = vmul.f32 %v8454, %v8459
    %v8462 = vmul.f32 %v8452, %v8457
    %v8463 = vadd.f32 %v8461, %v8462
    %v8464 = vtanh.pop %v8463
    %v8465 = vmul.f32 %v8456, %v8464
    %v8466 = vld [vmem:[#allocation3 + $0x20] sm:$0x30]
    %v8467 = vld [vmem:[#allocation3 + $0x28] sm:$0x30]
    %v8468 = vld [vmem:[#allocation3 + $0x30] sm:$0x30]
    %v8469 = vld [vmem:[#allocation3 + $0x38] sm:$0x30]
    %v8471 = vrot.slane %v8465, 2
    %8473 = vmatprep.subr.mxu0 %v7291
    %8474 = vmatpush1.msra.mxu0 %v7290
    %8475 = vmatprep.subr.mxu0 %v7295
    %8476 = vmatpush1.msra.mxu0 %v7294
    %8477 = vmatprep.subr.mxu0 %v7299
    %8478 = vmatpush1.msra.mxu0 %v7298
    %8479 = vmatprep.subr.mxu0 %v7303
    %8480 = vmatpush1.msra.mxu0 %v7302
    %8481 = vmatprep.subr.mxu0 %v7307
    %8482 = vmatpush1.msra.mxu0 %v7306
    %8483 = vmatprep.subr.mxu0 %v7311
    %8484 = vmatpush1.msra.mxu0 %v7310
    %8485 = vmatprep.subr.mxu0 %v7315
    %8486 = vmatpush1.msra.mxu0 %v7314
    %8487 = vmatprep.subr.mxu0 %v7319
    %8488 = vmatpush1.msra.mxu0 %v7318
    %8489 = vmatprep.subr.mxu0 %v7323
    %8490 = vmatpush1.msra.mxu0 %v7322
    %8491 = vmatprep.subr.mxu0 %v7327
    %8492 = vmatpush1.msra.mxu0 %v7326
    %8493 = vmatprep.subr.mxu0 %v7331
    %8494 = vmatpush1.msra.mxu0 %v7330
    %8495 = vmatprep.subr.mxu0 %v7335
    %8496 = vmatpush1.msra.mxu0 %v7334
    %8497 = vmatprep.subr.mxu0 %v7339
    %8498 = vmatpush1.msra.mxu0 %v7338
    %8499 = vmatprep.subr.mxu0 %v7343
    %8500 = vmatpush1.msra.mxu0 %v7342
    %8501 = vmatprep.subr.mxu0 %v7347
    %8502 = vmatpush1.msra.mxu0 %v7346
    %8503 = vmatprep.subr.mxu0 %v7351
    %8504 = vmatpush1.msra.mxu0 %v7350
    %8505 = vmatprep.subr.mxu0 0.0
    %8506 = vmatpush1.msra.mxu0 0.0
    %8507 = vmatprep.subr.mxu0 0.0
    %8508 = vmatpush1.msra.mxu0 0.0
    %8509 = vmatprep.subr.mxu0 0.0
    %8510 = vmatpush1.msra.mxu0 0.0
    %8511 = vmatprep.subr.mxu0 0.0
    %8512 = vmatpush1.msra.mxu0 0.0
    %8513 = vmatprep.subr.mxu0 0.0
    %8514 = vmatpush1.msra.mxu0 0.0
    %8515 = vmatprep.subr.mxu0 0.0
    %8516 = vmatpush1.msra.mxu0 0.0
    %8517 = vmatprep.subr.mxu0 0.0
    %8518 = vmatpush1.msra.mxu0 0.0
    %8519 = vmatprep.subr.mxu0 0.0
    %8520 = vmatpush1.msra.mxu0 0.0
    %8521 = vmatprep.subr.mxu0 0.0
    %8522 = vmatpush1.msra.mxu0 0.0
    %8523 = vmatprep.subr.mxu0 0.0
    %8524 = vmatpush1.msra.mxu0 0.0
    %8525 = vmatprep.subr.mxu0 0.0
    %8526 = vmatpush1.msra.mxu0 0.0
    %8527 = vmatprep.subr.mxu0 0.0
    %8528 = vmatpush1.msra.mxu0 0.0
    %8529 = vmatprep.subr.mxu0 0.0
    %8530 = vmatpush1.msra.mxu0 0.0
    %8531 = vmatprep.subr.mxu0 0.0
    %8532 = vmatpush1.msra.mxu0 0.0
    %8533 = vmatprep.subr.mxu0 0.0
    %8534 = vmatpush1.msra.mxu0 0.0
    %8535 = vmatprep.subr.mxu0 0.0
    %8536 = vmatpush1.msra.mxu0 0.0
    %8537 = vmatprep.mubr.f32.mxu0 0.0
    %8538 = vmatmul.mubr.f32.gmra.mrb[0].mxu0 %v8471
    %v8539 = vpop.f32.mrb[0].mxu0
    %v8540 = vadd.f32 0.0, %v8539
    %v8541 = vpop.f32.mrb[0].mxu0
    %v8542 = vadd.f32 0.0, %v8541
    %8543 = vdwg.mxu0
    %8544 = vmatprep.subr.mxu0 %v7293
    %8545 = vmatpush1.msra.mxu0 %v7292
    %8546 = vmatprep.subr.mxu0 %v7297
    %8547 = vmatpush1.msra.mxu0 %v7296
    %8548 = vmatprep.subr.mxu0 %v7301
    %8549 = vmatpush1.msra.mxu0 %v7300
    %8550 = vmatprep.subr.mxu0 %v7305
    %8551 = vmatpush1.msra.mxu0 %v7304
    %8552 = vmatprep.subr.mxu0 %v7309
    %8553 = vmatpush1.msra.mxu0 %v7308
    %8554 = vmatprep.subr.mxu0 %v7313
    %8555 = vmatpush1.msra.mxu0 %v7312
    %8556 = vmatprep.subr.mxu0 %v7317
    %8557 = vmatpush1.msra.mxu0 %v7316
    %8558 = vmatprep.subr.mxu0 %v7321
    %8559 = vmatpush1.msra.mxu0 %v7320
    %8560 = vmatprep.subr.mxu0 %v7325
    %8561 = vmatpush1.msra.mxu0 %v7324
    %8562 = vmatprep.subr.mxu0 %v7329
    %8563 = vmatpush1.msra.mxu0 %v7328
    %8564 = vmatprep.subr.mxu0 %v7333
    %8565 = vmatpush1.msra.mxu0 %v7332
    %8566 = vmatprep.subr.mxu0 %v7337
    %8567 = vmatpush1.msra.mxu0 %v7336
    %8568 = vmatprep.subr.mxu0 %v7341
    %8569 = vmatpush1.msra.mxu0 %v7340
    %8570 = vmatprep.subr.mxu0 %v7345
    %8571 = vmatpush1.msra.mxu0 %v7344
    %8572 = vmatprep.subr.mxu0 %v7349
    %8573 = vmatpush1.msra.mxu0 %v7348
    %8574 = vmatprep.subr.mxu0 %v7353
    %8575 = vmatpush1.msra.mxu0 %v7352
    %8576 = vmatprep.subr.mxu0 0.0
    %8577 = vmatpush1.msra.mxu0 0.0
    %8578 = vmatprep.subr.mxu0 0.0
    %8579 = vmatpush1.msra.mxu0 0.0
    %8580 = vmatprep.subr.mxu0 0.0
    %8581 = vmatpush1.msra.mxu0 0.0
    %8582 = vmatprep.subr.mxu0 0.0
    %8583 = vmatpush1.msra.mxu0 0.0
    %8584 = vmatprep.subr.mxu0 0.0
    %8585 = vmatpush1.msra.mxu0 0.0
    %8586 = vmatprep.subr.mxu0 0.0
    %8587 = vmatpush1.msra.mxu0 0.0
    %8588 = vmatprep.subr.mxu0 0.0
    %8589 = vmatpush1.msra.mxu0 0.0
    %8590 = vmatprep.subr.mxu0 0.0
    %8591 = vmatpush1.msra.mxu0 0.0
    %8592 = vmatprep.subr.mxu0 0.0
    %8593 = vmatpush1.msra.mxu0 0.0
    %8594 = vmatprep.subr.mxu0 0.0
    %8595 = vmatpush1.msra.mxu0 0.0
    %8596 = vmatprep.subr.mxu0 0.0
    %8597 = vmatpush1.msra.mxu0 0.0
    %8598 = vmatprep.subr.mxu0 0.0
    %8599 = vmatpush1.msra.mxu0 0.0
    %8600 = vmatprep.subr.mxu0 0.0
    %8601 = vmatpush1.msra.mxu0 0.0
    %8602 = vmatprep.subr.mxu0 0.0
    %8603 = vmatpush1.msra.mxu0 0.0
    %8604 = vmatprep.subr.mxu0 0.0
    %8605 = vmatpush1.msra.mxu0 0.0
    %8606 = vmatprep.subr.mxu0 0.0
    %8607 = vmatpush1.msra.mxu0 0.0
    %8608 = vmatprep.mubr.f32.mxu0 0.0
    %8609 = vmatmul.mubr.f32.gmra.mrb[0].mxu0 %v8471
    %v8610 = vpop.f32.mrb[0].mxu0
    %v8611 = vadd.f32 0.0, %v8610
    %v8612 = vpop.f32.mrb[0].mxu0
    %v8613 = vadd.f32 0.0, %v8612
    %8614 = vdwg.mxu0
    %v8619 = vrot.slane %v8540, 4
    %v8620 = vrot.slane %v8542, 4
    %v8621 = vrot.slane %v8611, 4
    %v8622 = vrot.slane %v8613, 4
    %v8627 = vadd.f32 %v8466, %v8619
    %v8628 = vadd.f32 %v8467, %v8620
    %v8629 = vadd.f32 %v8468, %v8621
    %v8630 = vadd.f32 %v8469, %v8622
    %v8631 = vxor.u32 %v8627, 2147483648
    %v8632 = vxor.u32 %v8628, 2147483648
    %v8633 = vxor.u32 %v8629, 2147483648
    %v8634 = vmul.f32 %v8631, 1.442695
    %v8635 = vpow.pop %v8634
    %v8636 = vmul.f32 %v8632, 1.442695
    %v8637 = vpow.pop %v8636
    %v8638 = vmul.f32 %v8633, 1.442695
    %v8639 = vpow.pop %v8638
    %v8640 = vadd.f32 %v8635, 1.0
    %v8641 = vadd.f32 %v8637, 1.0
    %v8642 = vadd.f32 %v8639, 1.0
    %v8643 = vrcp.pop %v8640
    %v8644 = vmul.f32 1.0, %v8643
    %v8645 = vrcp.pop %v8641
    %v8646 = vmul.f32 1.0, %v8645
    %v8647 = vrcp.pop %v8642
    %v8648 = vmul.f32 1.0, %v8647
    %v8649 = vtanh.pop %v8630
    %v8651 = vrot.slane %v8463, 6
    %v8653 = vmul.f32 %v8646, %v8651
    %v8654 = vmul.f32 %v8644, %v8649
    %v8655 = vadd.f32 %v8653, %v8654
    %v8656 = vtanh.pop %v8655
    %v8657 = vmul.f32 %v8648, %v8656
    %v8658 = vld [vmem:[#allocation3 + $0x20] sm:$0xc0]
    %v8659 = vld [vmem:[#allocation3 + $0x28] sm:$0xc0]
    %v8660 = vld [vmem:[#allocation3 + $0x30] sm:$0xc0]
    %v8661 = vld [vmem:[#allocation3 + $0x38] sm:$0xc0]
    %v8663 = vrot.slane %v8657, 4
    %8665 = vmatprep.subr.mxu0 %v7291
    %8666 = vmatpush1.msra.mxu0 %v7290
    %8667 = vmatprep.subr.mxu0 %v7295
    %8668 = vmatpush1.msra.mxu0 %v7294
    %8669 = vmatprep.subr.mxu0 %v7299
    %8670 = vmatpush1.msra.mxu0 %v7298
    %8671 = vmatprep.subr.mxu0 %v7303
    %8672 = vmatpush1.msra.mxu0 %v7302
    %8673 = vmatprep.subr.mxu0 %v7307
    %8674 = vmatpush1.msra.mxu0 %v7306
    %8675 = vmatprep.subr.mxu0 %v7311
    %8676 = vmatpush1.msra.mxu0 %v7310
    %8677 = vmatprep.subr.mxu0 %v7315
    %8678 = vmatpush1.msra.mxu0 %v7314
    %8679 = vmatprep.subr.mxu0 %v7319
    %8680 = vmatpush1.msra.mxu0 %v7318
    %8681 = vmatprep.subr.mxu0 %v7323
    %8682 = vmatpush1.msra.mxu0 %v7322
    %8683 = vmatprep.subr.mxu0 %v7327
    %8684 = vmatpush1.msra.mxu0 %v7326
    %8685 = vmatprep.subr.mxu0 %v7331
    %8686 = vmatpush1.msra.mxu0 %v7330
    %8687 = vmatprep.subr.mxu0 %v7335
    %8688 = vmatpush1.msra.mxu0 %v7334
    %8689 = vmatprep.subr.mxu0 %v7339
    %8690 = vmatpush1.msra.mxu0 %v7338
    %8691 = vmatprep.subr.mxu0 %v7343
    %8692 = vmatpush1.msra.mxu0 %v7342
    %8693 = vmatprep.subr.mxu0 %v7347
    %8694 = vmatpush1.msra.mxu0 %v7346
    %8695 = vmatprep.subr.mxu0 %v7351
    %8696 = vmatpush1.msra.mxu0 %v7350
    %8697 = vmatprep.subr.mxu0 0.0
    %8698 = vmatpush1.msra.mxu0 0.0
    %8699 = vmatprep.subr.mxu0 0.0
    %8700 = vmatpush1.msra.mxu0 0.0
    %8701 = vmatprep.subr.mxu0 0.0
    %8702 = vmatpush1.msra.mxu0 0.0
    %8703 = vmatprep.subr.mxu0 0.0
    %8704 = vmatpush1.msra.mxu0 0.0
    %8705 = vmatprep.subr.mxu0 0.0
    %8706 = vmatpush1.msra.mxu0 0.0
    %8707 = vmatprep.subr.mxu0 0.0
    %8708 = vmatpush1.msra.mxu0 0.0
    %8709 = vmatprep.subr.mxu0 0.0
    %8710 = vmatpush1.msra.mxu0 0.0
    %8711 = vmatprep.subr.mxu0 0.0
    %8712 = vmatpush1.msra.mxu0 0.0
    %8713 = vmatprep.subr.mxu0 0.0
    %8714 = vmatpush1.msra.mxu0 0.0
    %8715 = vmatprep.subr.mxu0 0.0
    %8716 = vmatpush1.msra.mxu0 0.0
    %8717 = vmatprep.subr.mxu0 0.0
    %8718 = vmatpush1.msra.mxu0 0.0
    %8719 = vmatprep.subr.mxu0 0.0
    %8720 = vmatpush1.msra.mxu0 0.0
    %8721 = vmatprep.subr.mxu0 0.0
    %8722 = vmatpush1.msra.mxu0 0.0
    %8723 = vmatprep.subr.mxu0 0.0
    %8724 = vmatpush1.msra.mxu0 0.0
    %8725 = vmatprep.subr.mxu0 0.0
    %8726 = vmatpush1.msra.mxu0 0.0
    %8727 = vmatprep.subr.mxu0 0.0
    %8728 = vmatpush1.msra.mxu0 0.0
    %8729 = vmatprep.mubr.f32.mxu0 0.0
    %8730 = vmatmul.mubr.f32.gmra.mrb[0].mxu0 %v8663
    %v8731 = vpop.f32.mrb[0].mxu0
    %v8732 = vadd.f32 0.0, %v8731
    %v8733 = vpop.f32.mrb[0].mxu0
    %v8734 = vadd.f32 0.0, %v8733
    %8735 = vdwg.mxu0
    %8736 = vmatprep.subr.mxu0 %v7293
    %8737 = vmatpush1.msra.mxu0 %v7292
    %8738 = vmatprep.subr.mxu0 %v7297
    %8739 = vmatpush1.msra.mxu0 %v7296
    %8740 = vmatprep.subr.mxu0 %v7301
    %8741 = vmatpush1.msra.mxu0 %v7300
    %8742 = vmatprep.subr.mxu0 %v7305
    %8743 = vmatpush1.msra.mxu0 %v7304
    %8744 = vmatprep.subr.mxu0 %v7309
    %8745 = vmatpush1.msra.mxu0 %v7308
    %8746 = vmatprep.subr.mxu0 %v7313
    %8747 = vmatpush1.msra.mxu0 %v7312
    %8748 = vmatprep.subr.mxu0 %v7317
    %8749 = vmatpush1.msra.mxu0 %v7316
    %8750 = vmatprep.subr.mxu0 %v7321
    %8751 = vmatpush1.msra.mxu0 %v7320
    %8752 = vmatprep.subr.mxu0 %v7325
    %8753 = vmatpush1.msra.mxu0 %v7324
    %8754 = vmatprep.subr.mxu0 %v7329
    %8755 = vmatpush1.msra.mxu0 %v7328
    %8756 = vmatprep.subr.mxu0 %v7333
    %8757 = vmatpush1.msra.mxu0 %v7332
    %8758 = vmatprep.subr.mxu0 %v7337
    %8759 = vmatpush1.msra.mxu0 %v7336
    %8760 = vmatprep.subr.mxu0 %v7341
    %8761 = vmatpush1.msra.mxu0 %v7340
    %8762 = vmatprep.subr.mxu0 %v7345
    %8763 = vmatpush1.msra.mxu0 %v7344
    %8764 = vmatprep.subr.mxu0 %v7349
    %8765 = vmatpush1.msra.mxu0 %v7348
    %8766 = vmatprep.subr.mxu0 %v7353
    %8767 = vmatpush1.msra.mxu0 %v7352
    %8768 = vmatprep.subr.mxu0 0.0
    %8769 = vmatpush1.msra.mxu0 0.0
    %8770 = vmatprep.subr.mxu0 0.0
    %8771 = vmatpush1.msra.mxu0 0.0
    %8772 = vmatprep.subr.mxu0 0.0
    %8773 = vmatpush1.msra.mxu0 0.0
    %8774 = vmatprep.subr.mxu0 0.0
    %8775 = vmatpush1.msra.mxu0 0.0
    %8776 = vmatprep.subr.mxu0 0.0
    %8777 = vmatpush1.msra.mxu0 0.0
    %8778 = vmatprep.subr.mxu0 0.0
    %8779 = vmatpush1.msra.mxu0 0.0
    %8780 = vmatprep.subr.mxu0 0.0
    %8781 = vmatpush1.msra.mxu0 0.0
    %8782 = vmatprep.subr.mxu0 0.0
    %8783 = vmatpush1.msra.mxu0 0.0
    %8784 = vmatprep.subr.mxu0 0.0
    %8785 = vmatpush1.msra.mxu0 0.0
    %8786 = vmatprep.subr.mxu0 0.0
    %8787 = vmatpush1.msra.mxu0 0.0
    %8788 = vmatprep.subr.mxu0 0.0
    %8789 = vmatpush1.msra.mxu0 0.0
    %8790 = vmatprep.subr.mxu0 0.0
    %8791 = vmatpush1.msra.mxu0 0.0
    %8792 = vmatprep.subr.mxu0 0.0
    %8793 = vmatpush1.msra.mxu0 0.0
    %8794 = vmatprep.subr.mxu0 0.0
    %8795 = vmatpush1.msra.mxu0 0.0
    %8796 = vmatprep.subr.mxu0 0.0
    %8797 = vmatpush1.msra.mxu0 0.0
    %8798 = vmatprep.subr.mxu0 0.0
    %8799 = vmatpush1.msra.mxu0 0.0
    %8800 = vmatprep.mubr.f32.mxu0 0.0
    %8801 = vmatmul.mubr.f32.gmra.mrb[0].mxu0 %v8663
    %v8802 = vpop.f32.mrb[0].mxu0
    %v8803 = vadd.f32 0.0, %v8802
    %v8804 = vpop.f32.mrb[0].mxu0
    %v8805 = vadd.f32 0.0, %v8804
    %8806 = vdwg.mxu0
    %v8811 = vrot.slane %v8732, 2
    %v8812 = vrot.slane %v8734, 2
    %v8813 = vrot.slane %v8803, 2
    %v8814 = vrot.slane %v8805, 2
    %v8819 = vadd.f32 %v8658, %v8811
    %v8820 = vadd.f32 %v8659, %v8812
    %v8821 = vadd.f32 %v8660, %v8813
    %v8822 = vadd.f32 %v8661, %v8814
    %v8823 = vxor.u32 %v8819, 2147483648
    %v8824 = vxor.u32 %v8820, 2147483648
    %v8825 = vxor.u32 %v8821, 2147483648
    %v8826 = vmul.f32 %v8823, 1.442695
    %v8827 = vpow.pop %v8826
    %v8828 = vmul.f32 %v8824, 1.442695
    %v8829 = vpow.pop %v8828
    %v8830 = vmul.f32 %v8825, 1.442695
    %v8831 = vpow.pop %v8830
    %v8832 = vadd.f32 %v8827, 1.0
    %v8833 = vadd.f32 %v8829, 1.0
    %v8834 = vadd.f32 %v8831, 1.0
    %v8835 = vrcp.pop %v8832
    %v8836 = vmul.f32 1.0, %v8835
    %v8837 = vrcp.pop %v8833
    %v8838 = vmul.f32 1.0, %v8837
    %v8839 = vrcp.pop %v8834
    %v8840 = vmul.f32 1.0, %v8839
    %v8841 = vtanh.pop %v8822
    %v8843 = vrot.slane %v8655, 6
    %v8845 = vmul.f32 %v8838, %v8843
    %v8846 = vmul.f32 %v8836, %v8841
    %v8847 = vadd.f32 %v8845, %v8846
    %v8848 = vtanh.pop %v8847
    %v8849 = vmul.f32 %v8840, %v8848
    %v8850 = vld [vmem:[#allocation19] sm:$0xff]
    %v8851 = vld [vmem:[#allocation19 + $0x8] sm:$0xff]
    %v8852 = vld [vmem:[#allocation19 + $0x10] sm:$0xff]
    %v8853 = vld [vmem:[#allocation19 + $0x18] sm:$0xff]
    %v8854 = vld [vmem:[#allocation19 + $0x20] sm:$0xff]
    %v8855 = vld [vmem:[#allocation19 + $0x28] sm:$0xff]
    %v8856 = vld [vmem:[#allocation19 + $0x30] sm:$0xff]
    %v8857 = vld [vmem:[#allocation19 + $0x38] sm:$0xff]
    %v8858 = vld [vmem:[#allocation19 + $0x40] sm:$0xff]
    %v8859 = vld [vmem:[#allocation19 + $0x48] sm:$0xff]
    %v8860 = vld [vmem:[#allocation19 + $0x50] sm:$0xff]
    %v8861 = vld [vmem:[#allocation19 + $0x58] sm:$0xff]
    %v8862 = vld [vmem:[#allocation19 + $0x60] sm:$0xff]
    %v8863 = vld [vmem:[#allocation19 + $0x68] sm:$0xff]
    %v8864 = vld [vmem:[#allocation19 + $0x70] sm:$0xff]
    %v8865 = vld [vmem:[#allocation19 + $0x78] sm:$0xff]
    %v8866 = vld [vmem:[#allocation19 + $0x80] sm:$0xff]
    %v8867 = vld [vmem:[#allocation19 + $0x88] sm:$0xff]
    %v8868 = vld [vmem:[#allocation19 + $0x90] sm:$0xff]
    %v8869 = vld [vmem:[#allocation19 + $0x98] sm:$0xff]
    %v8870 = vld [vmem:[#allocation19 + $0xa0] sm:$0xff]
    %v8871 = vld [vmem:[#allocation19 + $0xa8] sm:$0xff]
    %v8872 = vld [vmem:[#allocation19 + $0xb0] sm:$0xff]
    %v8873 = vld [vmem:[#allocation19 + $0xb8] sm:$0xff]
    %v8874 = vld [vmem:[#allocation19 + $0xc0] sm:$0xff]
    %v8875 = vld [vmem:[#allocation19 + $0xc8] sm:$0xff]
    %v8876 = vld [vmem:[#allocation19 + $0xd0] sm:$0xff]
    %v8877 = vld [vmem:[#allocation19 + $0xd8] sm:$0xff]
    %v8878 = vld [vmem:[#allocation19 + $0xe0] sm:$0xff]
    %v8879 = vld [vmem:[#allocation19 + $0xe8] sm:$0xff]
    %v8880 = vld [vmem:[#allocation19 + $0xf0] sm:$0xff]
    %v8881 = vld [vmem:[#allocation19 + $0xf8] sm:$0xff]
    %v8882 = vld [vmem:[%s14] sm:$0x3]
    %v8884 = vlaneseq
    %v8885 = vshrl.u32 %v8884, 7
    %v8886 = vsub.s32 0, %v8885
    %v8887 = vrot.slane %v8882, %v8886
    %v8888 = vlaneseq
    %v8889 = vshrl.u32 %v8888, 7
    %v8890 = vsub.s32 1, %v8889
    %v8891 = vrot.slane %v8882, %v8890
    %v8895 = vrot.slane %v8849, 6
    %8897 = vmatprep.subr.mxu0 %v8851
    %8898 = vmatpush1.msra.mxu0 %v8850
    %8899 = vmatprep.subr.mxu0 %v8853
    %8900 = vmatpush1.msra.mxu0 %v8852
    %8901 = vmatprep.subr.mxu0 %v8855
    %8902 = vmatpush1.msra.mxu0 %v8854
    %8903 = vmatprep.subr.mxu0 %v8857
    %8904 = vmatpush1.msra.mxu0 %v8856
    %8905 = vmatprep.subr.mxu0 %v8859
    %8906 = vmatpush1.msra.mxu0 %v8858
    %8907 = vmatprep.subr.mxu0 %v8861
    %8908 = vmatpush1.msra.mxu0 %v8860
    %8909 = vmatprep.subr.mxu0 %v8863
    %8910 = vmatpush1.msra.mxu0 %v8862
    %8911 = vmatprep.subr.mxu0 %v8865
    %8912 = vmatpush1.msra.mxu0 %v8864
    %8913 = vmatprep.subr.mxu0 %v8867
    %8914 = vmatpush1.msra.mxu0 %v8866
    %8915 = vmatprep.subr.mxu0 %v8869
    %8916 = vmatpush1.msra.mxu0 %v8868
    %8917 = vmatprep.subr.mxu0 %v8871
    %8918 = vmatpush1.msra.mxu0 %v8870
    %8919 = vmatprep.subr.mxu0 %v8873
    %8920 = vmatpush1.msra.mxu0 %v8872
    %8921 = vmatprep.subr.mxu0 %v8875
    %8922 = vmatpush1.msra.mxu0 %v8874
    %8923 = vmatprep.subr.mxu0 %v8877
    %8924 = vmatpush1.msra.mxu0 %v8876
    %8925 = vmatprep.subr.mxu0 %v8879
    %8926 = vmatpush1.msra.mxu0 %v8878
    %8927 = vmatprep.subr.mxu0 %v8881
    %8928 = vmatpush1.msra.mxu0 %v8880
    %8929 = vmatprep.subr.mxu0 0.0
    %8930 = vmatpush1.msra.mxu0 0.0
    %8931 = vmatprep.subr.mxu0 0.0
    %8932 = vmatpush1.msra.mxu0 0.0
    %8933 = vmatprep.subr.mxu0 0.0
    %8934 = vmatpush1.msra.mxu0 0.0
    %8935 = vmatprep.subr.mxu0 0.0
    %8936 = vmatpush1.msra.mxu0 0.0
    %8937 = vmatprep.subr.mxu0 0.0
    %8938 = vmatpush1.msra.mxu0 0.0
    %8939 = vmatprep.subr.mxu0 0.0
    %8940 = vmatpush1.msra.mxu0 0.0
    %8941 = vmatprep.subr.mxu0 0.0
    %8942 = vmatpush1.msra.mxu0 0.0
    %8943 = vmatprep.subr.mxu0 0.0
    %8944 = vmatpush1.msra.mxu0 0.0
    %8945 = vmatprep.subr.mxu0 0.0
    %8946 = vmatpush1.msra.mxu0 0.0
    %8947 = vmatprep.subr.mxu0 0.0
    %8948 = vmatpush1.msra.mxu0 0.0
    %8949 = vmatprep.subr.mxu0 0.0
    %8950 = vmatpush1.msra.mxu0 0.0
    %8951 = vmatprep.subr.mxu0 0.0
    %8952 = vmatpush1.msra.mxu0 0.0
    %8953 = vmatprep.subr.mxu0 0.0
    %8954 = vmatpush1.msra.mxu0 0.0
    %8955 = vmatprep.subr.mxu0 0.0
    %8956 = vmatpush1.msra.mxu0 0.0
    %8957 = vmatprep.subr.mxu0 0.0
    %8958 = vmatpush1.msra.mxu0 0.0
    %8959 = vmatprep.subr.mxu0 0.0
    %8960 = vmatpush1.msra.mxu0 0.0
    %8961 = vmatprep.mubr.f32.mxu0 0.0
    %8962 = vmatmul.mubr.f32.gmra.mrb[0].mxu0 %v8895
    %v8963 = vpop.f32.mrb[0].mxu0
    %v8964 = vadd.f32 %v8887, %v8963
    %v8965 = vpop.f32.mrb[0].mxu0
    %v8966 = vadd.f32 %v8891, %v8965
    %8967 = vdwg.mxu0
    %v8968 = vmax.f32 %v8964, 0.0
    %v8969 = vmax.f32 %v8966, 0.0
    %v8970 = vld [vmem:[#allocation21] sm:$0xff]
    %v8971 = vld [vmem:[#allocation21 + $0x8] sm:$0xff]
    %v8972 = vld [vmem:[#allocation21 + $0x10] sm:$0xff]
    %v8973 = vld [vmem:[#allocation21 + $0x18] sm:$0xff]
    %v8974 = vld [vmem:[#allocation21 + $0x20] sm:$0xff]
    %v8975 = vld [vmem:[#allocation21 + $0x28] sm:$0xff]
    %v8976 = vld [vmem:[#allocation21 + $0x30] sm:$0xff]
    %v8977 = vld [vmem:[#allocation21 + $0x38] sm:$0xff]
    %v8978 = vld [vmem:[#allocation21 + $0x40] sm:$0xff]
    %v8979 = vld [vmem:[#allocation21 + $0x48] sm:$0xff]
    %v8980 = vld [vmem:[#allocation21 + $0x50] sm:$0xff]
    %v8981 = vld [vmem:[#allocation21 + $0x58] sm:$0xff]
    %v8982 = vld [vmem:[#allocation21 + $0x60] sm:$0xff]
    %v8983 = vld [vmem:[#allocation21 + $0x68] sm:$0xff]
    %v8984 = vld [vmem:[#allocation21 + $0x70] sm:$0xff]
    %v8985 = vld [vmem:[#allocation21 + $0x78] sm:$0xff]
    %v8986 = vld [vmem:[#allocation21 + $0x80] sm:$0xff]
    %v8987 = vld [vmem:[#allocation21 + $0x88] sm:$0xff]
    %v8988 = vld [vmem:[#allocation21 + $0x90] sm:$0xff]
    %v8989 = vld [vmem:[#allocation21 + $0x98] sm:$0xff]
    %v8990 = vld [vmem:[#allocation21 + $0xa0] sm:$0xff]
    %v8991 = vld [vmem:[#allocation21 + $0xa8] sm:$0xff]
    %v8992 = vld [vmem:[#allocation21 + $0xb0] sm:$0xff]
    %v8993 = vld [vmem:[#allocation21 + $0xb8] sm:$0xff]
    %v8994 = vld [vmem:[#allocation21 + $0xc0] sm:$0xff]
    %v8995 = vld [vmem:[#allocation21 + $0xc8] sm:$0xff]
    %v8996 = vld [vmem:[#allocation21 + $0xd0] sm:$0xff]
    %v8997 = vld [vmem:[#allocation21 + $0xd8] sm:$0xff]
    %v8998 = vld [vmem:[#allocation21 + $0xe0] sm:$0xff]
    %v8999 = vld [vmem:[#allocation21 + $0xe8] sm:$0xff]
    %v9000 = vld [vmem:[#allocation21 + $0xf0] sm:$0xff]
    %v9001 = vld [vmem:[#allocation21 + $0xf8] sm:$0xff]
    %v9002 = vld [vmem:[%s16] sm:$0x1]
    %v9004 = vlaneseq
    %v9005 = vshrl.u32 %v9004, 7
    %v9006 = vsub.s32 0, %v9005
    %v9007 = vrot.slane %v9002, %v9006
    %9009 = vmatprep.subr.mxu0 0.0
    %9010 = vmatpush1.msra.mxu0 %v8970
    %9011 = vmatprep.subr.mxu0 0.0
    %9012 = vmatpush1.msra.mxu0 %v8971
    %9013 = vmatprep.subr.mxu0 0.0
    %9014 = vmatpush1.msra.mxu0 %v8972
    %9015 = vmatprep.subr.mxu0 0.0
    %9016 = vmatpush1.msra.mxu0 %v8973
    %9017 = vmatprep.subr.mxu0 0.0
    %9018 = vmatpush1.msra.mxu0 %v8974
    %9019 = vmatprep.subr.mxu0 0.0
    %9020 = vmatpush1.msra.mxu0 %v8975
    %9021 = vmatprep.subr.mxu0 0.0
    %9022 = vmatpush1.msra.mxu0 %v8976
    %9023 = vmatprep.subr.mxu0 0.0
    %9024 = vmatpush1.msra.mxu0 %v8977
    %9025 = vmatprep.subr.mxu0 0.0
    %9026 = vmatpush1.msra.mxu0 %v8978
    %9027 = vmatprep.subr.mxu0 0.0
    %9028 = vmatpush1.msra.mxu0 %v8979
    %9029 = vmatprep.subr.mxu0 0.0
    %9030 = vmatpush1.msra.mxu0 %v8980
    %9031 = vmatprep.subr.mxu0 0.0
    %9032 = vmatpush1.msra.mxu0 %v8981
    %9033 = vmatprep.subr.mxu0 0.0
    %9034 = vmatpush1.msra.mxu0 %v8982
    %9035 = vmatprep.subr.mxu0 0.0
    %9036 = vmatpush1.msra.mxu0 %v8983
    %9037 = vmatprep.subr.mxu0 0.0
    %9038 = vmatpush1.msra.mxu0 %v8984
    %9039 = vmatprep.subr.mxu0 0.0
    %9040 = vmatpush1.msra.mxu0 %v8985
    %9041 = vmatprep.subr.mxu0 0.0
    %9042 = vmatpush1.msra.mxu0 %v8986
    %9043 = vmatprep.subr.mxu0 0.0
    %9044 = vmatpush1.msra.mxu0 %v8987
    %9045 = vmatprep.subr.mxu0 0.0
    %9046 = vmatpush1.msra.mxu0 %v8988
    %9047 = vmatprep.subr.mxu0 0.0
    %9048 = vmatpush1.msra.mxu0 %v8989
    %9049 = vmatprep.subr.mxu0 0.0
    %9050 = vmatpush1.msra.mxu0 %v8990
    %9051 = vmatprep.subr.mxu0 0.0
    %9052 = vmatpush1.msra.mxu0 %v8991
    %9053 = vmatprep.subr.mxu0 0.0
    %9054 = vmatpush1.msra.mxu0 %v8992
    %9055 = vmatprep.subr.mxu0 0.0
    %9056 = vmatpush1.msra.mxu0 %v8993
    %9057 = vmatprep.subr.mxu0 0.0
    %9058 = vmatpush1.msra.mxu0 %v8994
    %9059 = vmatprep.subr.mxu0 0.0
    %9060 = vmatpush1.msra.mxu0 %v8995
    %9061 = vmatprep.subr.mxu0 0.0
    %9062 = vmatpush1.msra.mxu0 %v8996
    %9063 = vmatprep.subr.mxu0 0.0
    %9064 = vmatpush1.msra.mxu0 %v8997
    %9065 = vmatprep.subr.mxu0 0.0
    %9066 = vmatpush1.msra.mxu0 %v8998
    %9067 = vmatprep.subr.mxu0 0.0
    %9068 = vmatpush1.msra.mxu0 %v8999
    %9069 = vmatprep.subr.mxu0 0.0
    %9070 = vmatpush1.msra.mxu0 %v9000
    %9071 = vmatprep.subr.mxu0 0.0
    %9072 = vmatpush1.msra.mxu0 %v9001
    %9073 = vmatprep.mubr.f32.mxu0 %v8969
    %9074 = vmatmul.mubr.f32.gmra.mrb[0].mxu0 %v8968
    %v9075 = vpop.f32.mrb[0].mxu0
    %v9076 = vadd.f32 %v9007, %v9075
    %v9077 = vpop.f32.mrb[0].mxu0
    %9078 = vdwg.mxu0
    %v9079 = vmax.f32 %v9076, 0.0
    %v9080 = vld [vmem:[#allocation22] sm:$0xff]
    %v9081 = vld [vmem:[#allocation22 + $0x8] sm:$0xff]
    %v9082 = vld [vmem:[#allocation22 + $0x10] sm:$0xff]
    %v9083 = vld [vmem:[#allocation22 + $0x18] sm:$0xff]
    %v9084 = vld [vmem:[#allocation22 + $0x20] sm:$0xff]
    %v9085 = vld [vmem:[#allocation22 + $0x28] sm:$0xff]
    %v9086 = vld [vmem:[#allocation22 + $0x30] sm:$0xff]
    %v9087 = vld [vmem:[#allocation22 + $0x38] sm:$0xff]
    %v9088 = vld [vmem:[#allocation22 + $0x40] sm:$0xff]
    %v9089 = vld [vmem:[#allocation22 + $0x48] sm:$0xff]
    %v9090 = vld [vmem:[#allocation22 + $0x50] sm:$0xff]
    %v9091 = vld [vmem:[#allocation22 + $0x58] sm:$0xff]
    %v9092 = vld [vmem:[#allocation22 + $0x60] sm:$0xff]
    %v9093 = vld [vmem:[#allocation22 + $0x68] sm:$0xff]
    %v9094 = vld [vmem:[#allocation22 + $0x70] sm:$0xff]
    %v9095 = vld [vmem:[#allocation22 + $0x78] sm:$0xff]
    %v9096 = vld [vmem:[%s18] sm:$0x1]
    %v9098 = vlaneseq
    %v9099 = vshrl.u32 %v9098, 7
    %v9100 = vsub.s32 0, %v9099
    %v9101 = vrot.slane %v9096, %v9100
    %9103 = vmatprep.subr.mxu0 0.0
    %9104 = vmatpush1.msra.mxu0 %v9080
    %9105 = vmatprep.subr.mxu0 0.0
    %9106 = vmatpush1.msra.mxu0 %v9081
    %9107 = vmatprep.subr.mxu0 0.0
    %9108 = vmatpush1.msra.mxu0 %v9082
    %9109 = vmatprep.subr.mxu0 0.0
    %9110 = vmatpush1.msra.mxu0 %v9083
    %9111 = vmatprep.subr.mxu0 0.0
    %9112 = vmatpush1.msra.mxu0 %v9084
    %9113 = vmatprep.subr.mxu0 0.0
    %9114 = vmatpush1.msra.mxu0 %v9085
    %9115 = vmatprep.subr.mxu0 0.0
    %9116 = vmatpush1.msra.mxu0 %v9086
    %9117 = vmatprep.subr.mxu0 0.0
    %9118 = vmatpush1.msra.mxu0 %v9087
    %9119 = vmatprep.subr.mxu0 0.0
    %9120 = vmatpush1.msra.mxu0 %v9088
    %9121 = vmatprep.subr.mxu0 0.0
    %9122 = vmatpush1.msra.mxu0 %v9089
    %9123 = vmatprep.subr.mxu0 0.0
    %9124 = vmatpush1.msra.mxu0 %v9090
    %9125 = vmatprep.subr.mxu0 0.0
    %9126 = vmatpush1.msra.mxu0 %v9091
    %9127 = vmatprep.subr.mxu0 0.0
    %9128 = vmatpush1.msra.mxu0 %v9092
    %9129 = vmatprep.subr.mxu0 0.0
    %9130 = vmatpush1.msra.mxu0 %v9093
    %9131 = vmatprep.subr.mxu0 0.0
    %9132 = vmatpush1.msra.mxu0 %v9094
    %9133 = vmatprep.subr.mxu0 0.0
    %9134 = vmatpush1.msra.mxu0 %v9095
    %9135 = vmatprep.subr.mxu0 0.0
    %9136 = vmatpush1.msra.mxu0 0.0
    %9137 = vmatprep.subr.mxu0 0.0
    %9138 = vmatpush1.msra.mxu0 0.0
    %9139 = vmatprep.subr.mxu0 0.0
    %9140 = vmatpush1.msra.mxu0 0.0
    %9141 = vmatprep.subr.mxu0 0.0
    %9142 = vmatpush1.msra.mxu0 0.0
    %9143 = vmatprep.subr.mxu0 0.0
    %9144 = vmatpush1.msra.mxu0 0.0
    %9145 = vmatprep.subr.mxu0 0.0
    %9146 = vmatpush1.msra.mxu0 0.0
    %9147 = vmatprep.subr.mxu0 0.0
    %9148 = vmatpush1.msra.mxu0 0.0
    %9149 = vmatprep.subr.mxu0 0.0
    %9150 = vmatpush1.msra.mxu0 0.0
    %9151 = vmatprep.subr.mxu0 0.0
    %9152 = vmatpush1.msra.mxu0 0.0
    %9153 = vmatprep.subr.mxu0 0.0
    %9154 = vmatpush1.msra.mxu0 0.0
    %9155 = vmatprep.subr.mxu0 0.0
    %9156 = vmatpush1.msra.mxu0 0.0
    %9157 = vmatprep.subr.mxu0 0.0
    %9158 = vmatpush1.msra.mxu0 0.0
    %9159 = vmatprep.subr.mxu0 0.0
    %9160 = vmatpush1.msra.mxu0 0.0
    %9161 = vmatprep.subr.mxu0 0.0
    %9162 = vmatpush1.msra.mxu0 0.0
    %9163 = vmatprep.subr.mxu0 0.0
    %9164 = vmatpush1.msra.mxu0 0.0
    %9165 = vmatprep.subr.mxu0 0.0
    %9166 = vmatpush1.msra.mxu0 0.0
    %9167 = vmatprep.mubr.f32.mxu0 0.0
    %9168 = vmatmul.mubr.f32.gmra.mrb[0].mxu0 %v9079
    %v9169 = vpop.f32.mrb[0].mxu0
    %v9170 = vadd.f32 %v9101, %v9169
    %v9171 = vpop.f32.mrb[0].mxu0
    %9172 = vdwg.mxu0
    %9173 = vst [vmem:[#allocation24] sm:$0x3] %v9170
    // Predicated region
    $region126: #{tpu_custom_call.1} parent=1 // pred_check
      _
    $region127: #{tpu_custom_call.1} parent=1 // pred_check_branch
      %9175 = sbr.rel (0) target = $region129
    $region128: #{tpu_custom_call.1} parent=1 // pred_region
      %s9177 = ssub.s32 32, 32
      %9178 = vsyncadd [#allocation6], %s9177
      %s9180 = sshll.u32 [#allocation24], 4
      %s9181 = int_to_ptr.vmem [resolvable:$true] %s9180
      %9183 = dma.vmem_to_hbm [thread:$0]  %s9181, 32, %s19, [#allocation6]
    $region129: #{tpu_custom_call.1} parent=1 // pred_fallthru
      _
    // Predicated region
    $region130: #{tpu_custom_call.1} parent=1 // pred_check
      _
    $region131: #{tpu_custom_call.1} parent=1 // pred_check_branch
      %9185 = sbr.rel (0) target = $region133
    $region132: #{tpu_custom_call.1} parent=1 // pred_region
      %9186 = dma.done [#allocation6], 32
    $region133: #{tpu_custom_call.1} parent=1 // pred_fallthru
      _
    %9187 = vsyncpa [#allocation5], 1
    %9188 = vsyncpa [#allocation8], 1
    %9189 = vsyncpa [#allocation11], 1
    %9190 = vsyncpa [#allocation14], 1
    %9191 = vsyncpa [#allocation17], 1
    %9192 = vsyncpa [#allocation20], 1
    %9193 = vsyncpa [#allocation23], 1
    %9194 = vsyncpa [#allocation6], 1

</llo_original>
